<compile_context>
chip_gen: v7x
topology: tpu7x:2x2x1
jax: 0.10.0
libtpu: 0.0.40
codegen_flags: <defaults>
</compile_context>

<pallas_src>
import functools

import jax
import jax.numpy as jnp
from jax.experimental import pallas as pl
from jax.experimental.pallas import tpu as pltpu

LANE = 128      # hidden padded to a multiple of this (lane width)
SUBLANE = 8     # batch padded to a multiple of this (f32 sublane width)


def _round_up(x, m):
    return ((x + m - 1) // m) * m


# --------------------------------------------------------------------------
# Probe: does this JAX accept pipeline_mode=pl.Buffered(1) (single-buffer a
# resident input)?  Saves 1x the weight footprint in VMEM (matters at large
# Hp on v7x).  Falls back gracefully if unsupported.
# --------------------------------------------------------------------------
def _probe_single_buffer():
    try:
        def _k(x_ref, o_ref):
            o_ref[...] = x_ref[...]
        out = pl.pallas_call(
            _k,
            out_shape=jax.ShapeDtypeStruct((8, 128), jnp.float32),
            grid=(1,),
            in_specs=[pl.BlockSpec((8, 128), lambda i: (0, 0),
                                   pipeline_mode=pl.Buffered(1))],
            out_specs=pl.BlockSpec((8, 128), lambda i: (0, 0)),
        )(jnp.zeros((8, 128), jnp.float32))
        jax.block_until_ready(out)
        return True
    except Exception:
        return False


_WEIGHT_SINGLE_BUFFER = _probe_single_buffer()


def _vmem_cap_bytes():
    """Physical VMEM capacity (falls back to v7x's 64 MiB, the smallest)."""
    try:
        info = pltpu.get_tpu_info()
        cap = getattr(info, "vmem_capacity_bytes", None)
        if cap:
            return int(cap)
    except Exception:
        pass
    return 64 << 20


# --------------------------------------------------------------------------
# Kernel: one GRU layer, one (batch block, time block) grid step.
# --------------------------------------------------------------------------
def gru_layer_kernel(x_ref, wih_ref, whh_ref, bx_ref, bhn_ref, h0_ref,
                     out_ref, h_scr, gx_scr, *,
                     t_blk, b_blk, hp, gate_dtype, gx_chunks, unroll):
    """
    x_ref  : (T_BLK*B_BLK, in)    time-major rows, flattened (t, b)
    wih_ref: (in, 3*Hp)           gates r|z|n concatenated on lanes
    whh_ref: (Hp, 3*Hp)
    bx_ref : (1, 3*Hp)            b_ih (+ b_hh for r,z gates) pre-folded
    bhn_ref: (1, Hp)              b_hh of the n gate
    h0_ref : (B_BLK, Hp)
    out_ref: (T_BLK*B_BLK, Hp)
    h_scr  : (B_BLK, Hp) f32      hidden state carried across time blocks
    gx_scr : (T_BLK*B_BLK, 3*Hp) f32
    """
    @pl.when(pl.program_id(1) == 0)
    def _init():
        h_scr[...] = h0_ref[...].astype(jnp.float32)

    mxu_dt = whh_ref.dtype

    # Time-parallel part: input projections for the whole time block, written
    # in a few chunks so later chunks' MXU work can interleave under the
    # recurrent loop (where the MXU is mostly idle).
    rows_per_chunk = (t_blk // gx_chunks) * b_blk
    for c in range(gx_chunks):
        r0 = c * rows_per_chunk
        gx_scr[pl.ds(r0, rows_per_chunk), :] = (
            jnp.dot(x_ref[pl.ds(r0, rows_per_chunk), :].astype(mxu_dt),
                    wih_ref[...], preferred_element_type=jnp.float32)
            + bx_ref[...]
        )

    # Hoisted broadcast of the n-gate recurrent bias (JAX does not CSE
    # broadcast_in_dim; inside the unrolled loop it would be emitted per step).
    bhn_b = jnp.broadcast_to(bhn_ref[...], (b_blk, hp))

    def step(t, h_prev):
        # h_prev lives in the loop carry (vregs) -- no per-step VMEM roundtrip.
        row = pl.multiple_of(t * b_blk, b_blk)
        gx_t = gx_scr[pl.ds(row, b_blk), :]                   # (B_BLK, 3*Hp)
        # Recurrent part: single fused (B_BLK, Hp) @ (Hp, 3*Hp) matmul.
        gh = jnp.dot(h_prev.astype(mxu_dt), whh_ref[...],
                     preferred_element_type=jnp.float32)
        r = jax.nn.sigmoid(
            (gx_t[:, :hp] + gh[:, :hp]).astype(gate_dtype)).astype(jnp.float32)
        z = jax.nn.sigmoid(
            (gx_t[:, hp:2 * hp] + gh[:, hp:2 * hp]).astype(gate_dtype)
        ).astype(jnp.float32)
        n = jnp.tanh(
            (gx_t[:, 2 * hp:] + r * (gh[:, 2 * hp:] + bhn_b)).astype(gate_dtype)
        ).astype(jnp.float32)
        h_new = (1.0 - z) * n + z * h_prev
        out_ref[pl.ds(row, b_blk), :] = h_new.astype(out_ref.dtype)
        return h_new

    h_last = jax.lax.fori_loop(0, t_blk, step, h_scr[...], unroll=unroll)
    h_scr[...] = h_last        # cross-time-block carry: one store per block


# --------------------------------------------------------------------------
# Per-layer pallas_call wrapper.
# --------------------------------------------------------------------------
def gru_layer(x_flat, h0_blk, wih, whh, bx, bhn, *, t_blk, b_blk, hp,
              gate_dtype, out_dtype):
    """x_flat: (nb, T_pad*B_BLK, in) flattened (t, b) rows per batch block."""
    nb, rows, i_l = x_flat.shape
    t_pad = rows // b_blk
    n_tblk = t_pad // t_blk

    gx_chunks = 4 if t_blk % 4 == 0 else (2 if t_blk % 2 == 0 else 1)
    unroll = max(1, min(8, t_blk))

    kernel = functools.partial(gru_layer_kernel,
                               t_blk=t_blk, b_blk=b_blk, hp=hp,
                               gate_dtype=gate_dtype, gx_chunks=gx_chunks,
                               unroll=unroll)

    # Resident weights: constant index_map; single-buffer them when supported.
    wmode = ({"pipeline_mode": pl.Buffered(1)}
             if _WEIGHT_SINGLE_BUFFER else {})

    grid_spec = pltpu.PrefetchScalarGridSpec(
        num_scalar_prefetch=0,
        grid=(nb, n_tblk),
        in_specs=[
            pl.BlockSpec((pl.Squeezed(), t_blk * b_blk, i_l),
                         lambda b, t: (b, t, 0)),                      # x
            pl.BlockSpec((i_l, 3 * hp), lambda b, t: (0, 0), **wmode),  # W_ih
            pl.BlockSpec((hp, 3 * hp), lambda b, t: (0, 0), **wmode),   # W_hh
            pl.BlockSpec((1, 3 * hp), lambda b, t: (0, 0)),             # bias
            pl.BlockSpec((1, hp), lambda b, t: (0, 0)),                 # b_hh[n]
            pl.BlockSpec((pl.Squeezed(), b_blk, hp),
                         lambda b, t: (b, 0, 0)),                       # h0
        ],
        out_specs=pl.BlockSpec((pl.Squeezed(), t_blk * b_blk, hp),
                               lambda b, t: (b, t, 0)),
        scratch_shapes=[
            pltpu.VMEM((b_blk, hp), jnp.float32),                # hidden carry
            pltpu.VMEM((t_blk * b_blk, 3 * hp), jnp.float32),    # gx block
        ],
    )

    # VMEM budget derived from the actual footprint and chip capacity
    # (no hard 32 MiB cap -- that would block the larger tiles).
    def _bytes(a):
        return int(a.size) * a.dtype.itemsize
    weight_bytes = _bytes(wih) + _bytes(whh)
    if not _WEIGHT_SINGLE_BUFFER:
        weight_bytes *= 2
    weight_bytes += 2 * (_bytes(bx) + _bytes(bhn))
    stream_bytes = 2 * (
        t_blk * b_blk * i_l * x_flat.dtype.itemsize
        + t_blk * b_blk * hp * jnp.dtype(out_dtype).itemsize
        + b_blk * hp * h0_blk.dtype.itemsize)
    scratch_bytes = 4 * (b_blk * hp + t_blk * b_blk * 3 * hp)
    need = weight_bytes + stream_bytes + scratch_bytes + (4 << 20)
    ceiling = max(_vmem_cap_bytes() - (8 << 20), 32 << 20)
    vmem_limit = int(min(max(need, 16 << 20), ceiling))

    return pl.pallas_call(
        kernel,
        out_shape=jax.ShapeDtypeStruct((nb, t_pad * b_blk, hp), out_dtype),
        grid_spec=grid_spec,
        compiler_params=pltpu.CompilerParams(
            dimension_semantics=("parallel", "arbitrary"),
            vmem_limit_bytes=vmem_limit,
        ),
    )(x_flat, wih, whh, bx, bhn, h0_blk)


# --------------------------------------------------------------------------
# Forward pass (flow_GRUNet.forward equivalent).
# --------------------------------------------------------------------------
@functools.partial(jax.jit, static_argnames=("hidden_dim", "t_blk", "b_blk",
                                              "gate_dtype", "inter_dtype"))
def flow_gru_forward(x, h0, packed_params, *, hidden_dim, t_blk=32,
                     b_blk=None, gate_dtype=jnp.float32, inter_dtype=None):
    """x: (B, T, I), h0: (L, B, H)  ->  (out (B, T, H), h (L, B, H)).

    b_blk=None -> one batch block covering the whole padded batch (nb == 1:
    best for single-TC v5e/v6e).  On v7x pass b_blk = padded_B // 2 so each
    TensorCore ("parallel" axis) gets exactly one batch block.
    gate_dtype=jnp.bfloat16 speeds up the serial-chain transcendentals on
    v6e/v7x; keep f32 on v5e.  inter_dtype=jnp.bfloat16 halves the HBM
    roundtrip of inter-layer activations.
    """
    B, T, _ = x.shape
    L = h0.shape[0]
    hp = packed_params[0][1].shape[0]                 # padded hidden width

    bp = _round_up(B, SUBLANE)
    b_blk_eff = bp if b_blk is None else _round_up(min(b_blk, bp), SUBLANE)
    bp = _round_up(bp, b_blk_eff)
    nb = bp // b_blk_eff

    t_blk_eff = max(1, min(t_blk, T))
    t_pad = _round_up(T, t_blk_eff)

    inter = x.dtype if inter_dtype is None else inter_dtype

    # (B, T, I) -> time-major, pad batch/time, flatten (t, b) rows per block.
    x_tm = jnp.zeros((t_pad, bp, x.shape[-1]), x.dtype)
    x_tm = x_tm.at[:T, :B].set(jnp.transpose(x, (1, 0, 2)))
    layer_in = (x_tm.reshape(t_pad, nb, b_blk_eff, -1)
                    .transpose(1, 0, 2, 3)
                    .reshape(nb, t_pad * b_blk_eff, -1))

    h0_p = jnp.zeros((L, bp, hp), jnp.float32)
    h0_p = h0_p.at[:, :B, :hidden_dim].set(h0.astype(jnp.float32))
    h0_p = h0_p.reshape(L, nb, b_blk_eff, hp)

    h_finals = []
    for l, (wih, whh, bx, bhn) in enumerate(packed_params):
        out_dtype = x.dtype if l == L - 1 else inter
        layer_out = gru_layer(layer_in, h0_p[l], wih, whh, bx, bhn,
                              t_blk=t_blk_eff, b_blk=b_blk_eff, hp=hp,
                              gate_dtype=gate_dtype, out_dtype=out_dtype)
        layer_in = layer_out
        # Final hidden of layer l == its output at the last real timestep.
        h_fin = (layer_out[:, (T - 1) * b_blk_eff:T * b_blk_eff, :]
                 .reshape(bp, hp)[:B, :hidden_dim]).astype(jnp.float32)
        h_finals.append(h_fin)

    out = (layer_in.reshape(nb, t_pad, b_blk_eff, hp)
                   .transpose(1, 0, 2, 3)
                   .reshape(t_pad, bp, hp)[:T, :B, :hidden_dim]
                   .transpose(1, 0, 2))
    return out, jnp.stack(h_finals, axis=0)


# --------------------------------------------------------------------------
# Parameter init (mirrors flow_GRUNet.__init__) and kernel-layout packing.
# --------------------------------------------------------------------------
def init_raw_params(key, input_dim, hidden_dim, n_layers):
    """PyTorch-layout params: w_ih (3H, in), w_hh (3H, H), biases (3H,) = 0."""
    raw = []
    for l in range(n_layers):
        in_dim = input_dim if l == 0 else hidden_dim
        key, k1, k2 = jax.random.split(key, 3)
        w_ih = (jax.random.normal(k1, (3 * hidden_dim, in_dim), jnp.float32)
                * jnp.sqrt(2.0 / in_dim))                       # kaiming_normal
        a = jax.random.normal(k2, (3 * hidden_dim, hidden_dim), jnp.float32)
        q, r = jnp.linalg.qr(a)
        w_hh = q * jnp.sign(jnp.diagonal(r))[None, :]            # orthogonal
        b_ih = jnp.zeros((3 * hidden_dim,), jnp.float32)
        b_hh = jnp.zeros((3 * hidden_dim,), jnp.float32)
        raw.append((w_ih, w_hh, b_ih, b_hh))
    return raw


def pack_params(raw_params, hidden_dim, hp, mxu_dtype):
    """Repack to padded, gate-fused kernel layout.

    Returns per layer: (W_ih (in_p, 3*hp), W_hh (hp, 3*hp),
                        bx (1, 3*hp), bhn (1, hp)).
    Padded hidden lanes have zero weight columns / zero input rows / zero
    bias, so padded state stays exactly 0 through the recurrence.
    """
    H = hidden_dim
    packed = []
    for l, (w_ih, w_hh, b_ih, b_hh) in enumerate(raw_params):
        in_dim = w_ih.shape[1]
        in_p = in_dim if l == 0 else hp          # deeper layers read padded h
        wih_g = jnp.transpose(w_ih.reshape(3, H, in_dim), (0, 2, 1))  # (3,in,H)
        whh_g = jnp.transpose(w_hh.reshape(3, H, H), (0, 2, 1))       # (3,H,H)
        wih_p = jnp.zeros((3, in_p, hp), jnp.float32).at[:, :in_dim, :H].set(wih_g)
        whh_p = jnp.zeros((3, hp, hp), jnp.float32).at[:, :H, :H].set(whh_g)
        wih_k = jnp.concatenate([wih_p[0], wih_p[1], wih_p[2]], axis=-1)
        whh_k = jnp.concatenate([whh_p[0], whh_p[1], whh_p[2]], axis=-1)
        bih_p = jnp.zeros((3, hp), jnp.float32).at[:, :H].set(b_ih.reshape(3, H))
        bhh_p = jnp.zeros((3, hp), jnp.float32).at[:, :H].set(b_hh.reshape(3, H))
        # Fold b_hh of r/z into the time-parallel bias; keep the n-gate b_hh
        # separate (PyTorch GRU: n = tanh(W_in x + b_in + r*(W_hn h + b_hn))).
        bx = jnp.concatenate([bih_p[0] + bhh_p[0],
                              bih_p[1] + bhh_p[1],
                              bih_p[2]], axis=-1).reshape(1, 3 * hp)
        bhn = bhh_p[2].reshape(1, hp)
        packed.append((wih_k.astype(mxu_dtype), whh_k.astype(mxu_dtype),
                       bx, bhn))
    return packed


# --------------------------------------------------------------------------
# Pure-JAX reference (lax.scan) for correctness checks.
# --------------------------------------------------------------------------
def gru_ref(x, h0, raw_params, mxu_dtype=jnp.float32):
    def mm(a, b):
        return jnp.dot(a.astype(mxu_dtype), b.astype(mxu_dtype),
                       preferred_element_type=jnp.float32)

    H = h0.shape[-1]
    out_l = x
    hs = []
    for (w_ih, w_hh, b_ih, b_hh) in raw_params:
        wih = [w_ih[g * H:(g + 1) * H].T for g in range(3)]
        whh = [w_hh[g * H:(g + 1) * H].T for g in range(3)]
        bih = [b_ih[g * H:(g + 1) * H] for g in range(3)]
        bhh = [b_hh[g * H:(g + 1) * H] for g in range(3)]

        def step(h, x_t, wih=wih, whh=whh, bih=bih, bhh=bhh):
            gx = [mm(x_t, wih[g]) + bih[g] for g in range(3)]
            gh = [mm(h, whh[g]) + bhh[g] for g in range(3)]
            r = jax.nn.sigmoid(gx[0] + gh[0])
            z = jax.nn.sigmoid(gx[1] + gh[1])
            n = jnp.tanh(gx[2] + r * gh[2])
            h_new = (1.0 - z) * n + z * h
            return h_new, h_new

        h_fin, ys = jax.lax.scan(step, h0[len(hs)],
                                 jnp.transpose(out_l, (1, 0, 2)))
        out_l = jnp.transpose(ys, (1, 0, 2))
        hs.append(h_fin)
    return out_l, jnp.stack(hs)


if __name__ == "__main__":
    B, T, I, H, L = 2, 8, 4, 32, 2          # batch, seq, input, hidden, layers
    HP = _round_up(H, LANE)                 # lane-dense padded hidden width

    key = jax.random.PRNGKey(0)
    kx, kh, kp = jax.random.split(key, 3)
    x = jax.random.normal(kx, (B, T, I), jnp.float32)
    h0 = jax.random.normal(kh, (L, B, H), jnp.float32)
    raw = init_raw_params(kp, I, H, L)

    # --- f32 MXU path, default (whole-batch block) tiling: strict check ---
    params_f32 = tuple(pack_params(raw, H, HP, jnp.float32))
    out, h = flow_gru_forward(x, h0, params_f32, hidden_dim=H)
    jax.block_until_ready((out, h))
    out_ref, h_ref = gru_ref(x, h0, raw, jnp.float32)
    assert out.shape == (B, T, H) and h.shape == (L, B, H)
    assert jnp.allclose(out, out_ref, atol=1e-4, rtol=1e-4)
    assert jnp.allclose(h, h_ref, atol=1e-4, rtol=1e-4)

    # --- multi time-block + multi batch-block carry paths (T > t_blk with
    #     padding, B > b_blk): exercises the h_scr cross-block carry ---
    B2, T2 = 10, 20
    kx2, kh2 = jax.random.split(jax.random.PRNGKey(1), 2)
    x2 = jax.random.normal(kx2, (B2, T2, I), jnp.float32)
    h02 = jax.random.normal(kh2, (L, B2, H), jnp.float32)
    out2, h2 = flow_gru_forward(x2, h02, params_f32, hidden_dim=H,
                                t_blk=8, b_blk=8)
    jax.block_until_ready((out2, h2))
    out2_ref, h2_ref = gru_ref(x2, h02, raw, jnp.float32)
    assert out2.shape == (B2, T2, H) and h2.shape == (L, B2, H)
    assert jnp.allclose(out2, out2_ref, atol=1e-4, rtol=1e-4)
    assert jnp.allclose(h2, h2_ref, atol=1e-4, rtol=1e-4)

    # --- bf16 throughput path: bf16 MXU operands, bf16 gate nonlinearities,
    #     bf16 inter-layer activations (v6e/v7x mode) ---
    params_bf16 = tuple(pack_params(raw, H, HP, jnp.bfloat16))
    out_b, h_b = flow_gru_forward(x, h0, params_bf16, hidden_dim=H,
                                  gate_dtype=jnp.bfloat16,
                                  inter_dtype=jnp.bfloat16)
    jax.block_until_ready((out_b, h_b))
    out_rb, h_rb = gru_ref(x, h0, raw, jnp.bfloat16)   # bf16-operand reference
    assert jnp.allclose(out_b, out_rb, atol=8e-2, rtol=8e-2)
    assert jnp.allclose(h_b, h_rb, atol=8e-2, rtol=8e-2)

    print("KERNEL_OK")
</pallas_src>

<mosaic_0001>
module attributes {stable_mosaic.version = 11 : i64} {
  func.func @_k(%arg0: i32, %arg1: memref<8x128xf32, #tpu.memory_space<vmem>>, %arg2: memref<8x128xf32, #tpu.memory_space<vmem>>) attributes {dimension_semantics = [#tpu.dimension_semantics<arbitrary>], iteration_bounds = array<i64: 1>, scalar_prefetch = 0 : i64, scratch_operands = 0 : i64, tpu.core_type = #tpu.core_type<tc>, window_params = [{pipeline_mode = #tpu.pipeline_mode<synchronous>, transform_indices = @transform_0, window_bounds = array<i64: 8, 128>}, {pipeline_mode = #tpu.pipeline_mode<synchronous>, transform_indices = @transform_1, window_bounds = array<i64: 8, 128>}]} {
    %c0 = arith.constant 0 : index
    %c0_0 = arith.constant 0 : index
    %0 = vector.load %arg1[%c0, %c0_0] : memref<8x128xf32, #tpu.memory_space<vmem>>, vector<8x128xf32>
    %c0_1 = arith.constant 0 : index
    %c0_2 = arith.constant 0 : index
    %1 = vector.load %arg2[%c0_1, %c0_2] : memref<8x128xf32, #tpu.memory_space<vmem>>, vector<8x128xf32>
    tpu.vector_store %arg2[%c0_1, %c0_2], %0 {strides = array<i32>} : memref<8x128xf32, #tpu.memory_space<vmem>>, vector<8x128xf32>,
    return
  }
  func.func @transform_0(%arg0: i32) -> (i32, i32) {
    %c0_i32 = arith.constant 0 : i32
    %c0_i32_0 = arith.constant 0 : i32
    %c0_i32_1 = arith.constant 0 : i32
    return %c0_i32, %c0_i32_0 : i32, i32
  }
  func.func @transform_1(%arg0: i32) -> (i32, i32) {
    %c0_i32 = arith.constant 0 : i32
    %c0_i32_0 = arith.constant 0 : i32
    %c0_i32_1 = arith.constant 0 : i32
    return %c0_i32, %c0_i32_0 : i32, i32
  }
}

module attributes {stable_mosaic.version = 11 : i64} {
  func.func @gru_layer_kernel(%arg0: i32, %arg1: i32, %arg2: memref<1x64x4xf32, #tpu.memory_space<vmem>>, %arg3: memref<4x384xf32, #tpu.memory_space<vmem>>, %arg4: memref<128x384xf32, #tpu.memory_space<vmem>>, %arg5: memref<1x384xf32, #tpu.memory_space<vmem>>, %arg6: memref<1x128xf32, #tpu.memory_space<vmem>>, %arg7: memref<1x8x128xf32, #tpu.memory_space<vmem>>, %arg8: memref<1x64x128xf32, #tpu.memory_space<vmem>>, %arg9: memref<8x128xf32, #tpu.memory_space<vmem>>, %arg10: memref<64x384xf32, #tpu.memory_space<vmem>>) attributes {dimension_semantics = [#tpu.dimension_semantics<parallel>, #tpu.dimension_semantics<arbitrary>], iteration_bounds = array<i64: 1, 1>, scalar_prefetch = 0 : i64, scratch_operands = 2 : i64, tpu.core_type = #tpu.core_type<tc>, window_params = [{transform_indices = @transform_0, window_bounds = array<i64: 1, 64, 4>}, {pipeline_mode = #tpu.pipeline_mode<synchronous>, transform_indices = @transform_1, window_bounds = array<i64: 4, 384>}, {pipeline_mode = #tpu.pipeline_mode<synchronous>, transform_indices = @transform_2, window_bounds = array<i64: 128, 384>}, {pipeline_mode = #tpu.pipeline_mode<synchronous>, transform_indices = @transform_3, window_bounds = array<i64: 1, 384>}, {pipeline_mode = #tpu.pipeline_mode<synchronous>, transform_indices = @transform_4, window_bounds = array<i64: 1, 128>}, {transform_indices = @transform_5, window_bounds = array<i64: 1, 8, 128>}, {transform_indices = @transform_6, window_bounds = array<i64: 1, 64, 128>}]} {
    %c0_i32 = arith.constant 0 : i32
    %0 = arith.cmpi eq, %arg1, %c0_i32 : i32
    %1 = arith.extui %0 : i1 to i32
    %c0_i32_0 = arith.constant 0 : i32
    %2 = arith.cmpi ne, %1, %c0_i32_0 : i32
    scf.if %2 {
      %c0_123 = arith.constant 0 : index
      %c0_124 = arith.constant 0 : index
      %c0_125 = arith.constant 0 : index
      %336 = vector.load %arg7[%c0_123, %c0_124, %c0_125] : memref<1x8x128xf32, #tpu.memory_space<vmem>>, vector<1x8x128xf32>
      %337 = vector.shape_cast %336 : vector<1x8x128xf32> to vector<8x128xf32>
      %c0_126 = arith.constant 0 : index
      %c0_127 = arith.constant 0 : index
      %338 = vector.load %arg9[%c0_126, %c0_127] : memref<8x128xf32, #tpu.memory_space<vmem>>, vector<8x128xf32>
      tpu.vector_store %arg9[%c0_126, %c0_127], %337 {strides = array<i32>} : memref<8x128xf32, #tpu.memory_space<vmem>>, vector<8x128xf32>,
    } else {
    }
    %c0 = arith.constant 0 : index
    %c0_1 = arith.constant 0 : index
    %c0_2 = arith.constant 0 : index
    %3 = vector.load %arg2[%c0, %c0_1, %c0_2] : memref<1x64x4xf32, #tpu.memory_space<vmem>>, vector<1x16x4xf32>
    %4 = vector.shape_cast %3 : vector<1x16x4xf32> to vector<16x4xf32>
    %c0_3 = arith.constant 0 : index
    %c0_4 = arith.constant 0 : index
    %5 = vector.load %arg3[%c0_3, %c0_4] : memref<4x384xf32, #tpu.memory_space<vmem>>, vector<4x384xf32>
    %cst = arith.constant dense<0.000000e+00> : vector<16x384xf32>
    %6 = tpu.matmul %4, %5, %cst {dimension_numbers = #tpu.dot_dimension_numbers<[1], [0], [0], [1], [0, 0, 1, 1], [], []>} : vector<16x4xf32>, vector<4x384xf32>, vector<16x384xf32> -> vector<16x384xf32>
    %c0_5 = arith.constant 0 : index
    %c0_6 = arith.constant 0 : index
    %7 = vector.load %arg5[%c0_5, %c0_6] : memref<1x384xf32, #tpu.memory_space<vmem>>, vector<1x384xf32>
    %8 = vector.broadcast %7 : vector<1x384xf32> to vector<16x384xf32>
    %9 = arith.addf %6, %8 : vector<16x384xf32>
    %c0_7 = arith.constant 0 : index
    %c0_8 = arith.constant 0 : index
    %10 = vector.load %arg10[%c0_7, %c0_8] : memref<64x384xf32, #tpu.memory_space<vmem>>, vector<16x384xf32>
    tpu.vector_store %arg10[%c0_7, %c0_8], %9 {strides = array<i32>} : memref<64x384xf32, #tpu.memory_space<vmem>>, vector<16x384xf32>,
    %c0_9 = arith.constant 0 : index
    %c16 = arith.constant 16 : index
    %c0_10 = arith.constant 0 : index
    %11 = vector.load %arg2[%c0_9, %c16, %c0_10] : memref<1x64x4xf32, #tpu.memory_space<vmem>>, vector<1x16x4xf32>
    %12 = vector.shape_cast %11 : vector<1x16x4xf32> to vector<16x4xf32>
    %c0_11 = arith.constant 0 : index
    %c0_12 = arith.constant 0 : index
    %13 = vector.load %arg3[%c0_11, %c0_12] : memref<4x384xf32, #tpu.memory_space<vmem>>, vector<4x384xf32>
    %cst_13 = arith.constant dense<0.000000e+00> : vector<16x384xf32>
    %14 = tpu.matmul %12, %13, %cst_13 {dimension_numbers = #tpu.dot_dimension_numbers<[1], [0], [0], [1], [0, 0, 1, 1], [], []>} : vector<16x4xf32>, vector<4x384xf32>, vector<16x384xf32> -> vector<16x384xf32>
    %c0_14 = arith.constant 0 : index
    %c0_15 = arith.constant 0 : index
    %15 = vector.load %arg5[%c0_14, %c0_15] : memref<1x384xf32, #tpu.memory_space<vmem>>, vector<1x384xf32>
    %16 = vector.broadcast %15 : vector<1x384xf32> to vector<16x384xf32>
    %17 = arith.addf %14, %16 : vector<16x384xf32>
    %c16_16 = arith.constant 16 : index
    %c0_17 = arith.constant 0 : index
    %18 = vector.load %arg10[%c16_16, %c0_17] : memref<64x384xf32, #tpu.memory_space<vmem>>, vector<16x384xf32>
    tpu.vector_store %arg10[%c16_16, %c0_17], %17 {strides = array<i32>} : memref<64x384xf32, #tpu.memory_space<vmem>>, vector<16x384xf32>,
    %c0_18 = arith.constant 0 : index
    %c32 = arith.constant 32 : index
    %c0_19 = arith.constant 0 : index
    %19 = vector.load %arg2[%c0_18, %c32, %c0_19] : memref<1x64x4xf32, #tpu.memory_space<vmem>>, vector<1x16x4xf32>
    %20 = vector.shape_cast %19 : vector<1x16x4xf32> to vector<16x4xf32>
    %c0_20 = arith.constant 0 : index
    %c0_21 = arith.constant 0 : index
    %21 = vector.load %arg3[%c0_20, %c0_21] : memref<4x384xf32, #tpu.memory_space<vmem>>, vector<4x384xf32>
    %cst_22 = arith.constant dense<0.000000e+00> : vector<16x384xf32>
    %22 = tpu.matmul %20, %21, %cst_22 {dimension_numbers = #tpu.dot_dimension_numbers<[1], [0], [0], [1], [0, 0, 1, 1], [], []>} : vector<16x4xf32>, vector<4x384xf32>, vector<16x384xf32> -> vector<16x384xf32>
    %c0_23 = arith.constant 0 : index
    %c0_24 = arith.constant 0 : index
    %23 = vector.load %arg5[%c0_23, %c0_24] : memref<1x384xf32, #tpu.memory_space<vmem>>, vector<1x384xf32>
    %24 = vector.broadcast %23 : vector<1x384xf32> to vector<16x384xf32>
    %25 = arith.addf %22, %24 : vector<16x384xf32>
    %c32_25 = arith.constant 32 : index
    %c0_26 = arith.constant 0 : index
    %26 = vector.load %arg10[%c32_25, %c0_26] : memref<64x384xf32, #tpu.memory_space<vmem>>, vector<16x384xf32>
    tpu.vector_store %arg10[%c32_25, %c0_26], %25 {strides = array<i32>} : memref<64x384xf32, #tpu.memory_space<vmem>>, vector<16x384xf32>,
    %c0_27 = arith.constant 0 : index
    %c48 = arith.constant 48 : index
    %c0_28 = arith.constant 0 : index
    %27 = vector.load %arg2[%c0_27, %c48, %c0_28] : memref<1x64x4xf32, #tpu.memory_space<vmem>>, vector<1x16x4xf32>
    %28 = vector.shape_cast %27 : vector<1x16x4xf32> to vector<16x4xf32>
    %c0_29 = arith.constant 0 : index
    %c0_30 = arith.constant 0 : index
    %29 = vector.load %arg3[%c0_29, %c0_30] : memref<4x384xf32, #tpu.memory_space<vmem>>, vector<4x384xf32>
    %cst_31 = arith.constant dense<0.000000e+00> : vector<16x384xf32>
    %30 = tpu.matmul %28, %29, %cst_31 {dimension_numbers = #tpu.dot_dimension_numbers<[1], [0], [0], [1], [0, 0, 1, 1], [], []>} : vector<16x4xf32>, vector<4x384xf32>, vector<16x384xf32> -> vector<16x384xf32>
    %c0_32 = arith.constant 0 : index
    %c0_33 = arith.constant 0 : index
    %31 = vector.load %arg5[%c0_32, %c0_33] : memref<1x384xf32, #tpu.memory_space<vmem>>, vector<1x384xf32>
    %32 = vector.broadcast %31 : vector<1x384xf32> to vector<16x384xf32>
    %33 = arith.addf %30, %32 : vector<16x384xf32>
    %c48_34 = arith.constant 48 : index
    %c0_35 = arith.constant 0 : index
    %34 = vector.load %arg10[%c48_34, %c0_35] : memref<64x384xf32, #tpu.memory_space<vmem>>, vector<16x384xf32>
    tpu.vector_store %arg10[%c48_34, %c0_35], %33 {strides = array<i32>} : memref<64x384xf32, #tpu.memory_space<vmem>>, vector<16x384xf32>,
    %c0_36 = arith.constant 0 : index
    %c0_37 = arith.constant 0 : index
    %35 = vector.load %arg6[%c0_36, %c0_37] : memref<1x128xf32, #tpu.memory_space<vmem>>, vector<1x128xf32>
    %36 = vector.shape_cast %35 : vector<1x128xf32> to vector<1x128xf32>
    %37 = vector.broadcast %36 : vector<1x128xf32> to vector<8x128xf32>
    %c0_38 = arith.constant 0 : index
    %c0_39 = arith.constant 0 : index
    %38 = vector.load %arg9[%c0_38, %c0_39] : memref<8x128xf32, #tpu.memory_space<vmem>>, vector<8x128xf32>
    %c0_i32_40 = arith.constant 0 : i32
    %c8_i32 = arith.constant 8 : i32
    %39 = arith.muli %c0_i32_40, %c8_i32 : i32
    %40 = tpu.assume_multiple %39, 8 : i32
    %41 = arith.index_cast %40 : i32 to index
    %c0_41 = arith.constant 0 : index
    %42 = vector.load %arg10[%41, %c0_41] : memref<64x384xf32, #tpu.memory_space<vmem>>, vector<8x384xf32>
    %c0_42 = arith.constant 0 : index
    %c0_43 = arith.constant 0 : index
    %43 = vector.load %arg4[%c0_42, %c0_43] : memref<128x384xf32, #tpu.memory_space<vmem>>, vector<128x384xf32>
    %cst_44 = arith.constant dense<0.000000e+00> : vector<8x384xf32>
    %44 = tpu.matmul %38, %43, %cst_44 {dimension_numbers = #tpu.dot_dimension_numbers<[1], [0], [0], [1], [0, 0, 1, 1], [], []>} : vector<8x128xf32>, vector<128x384xf32>, vector<8x384xf32> -> vector<8x384xf32>
    %45 = vector.extract_strided_slice %42 {offsets = [0, 0], sizes = [8, 128], strides = [1, 1]} : vector<8x384xf32> to vector<8x128xf32>
    %46 = vector.extract_strided_slice %44 {offsets = [0, 0], sizes = [8, 128], strides = [1, 1]} : vector<8x384xf32> to vector<8x128xf32>
    %47 = arith.addf %45, %46 : vector<8x128xf32>
    %48 = arith.negf %47 : vector<8x128xf32>
    %49 = math.exp %48 : vector<8x128xf32>
    %cst_45 = arith.constant 1.000000e+00 : f32
    %50 = vector.broadcast %cst_45 : f32 to vector<8x128xf32>
    %51 = arith.addf %50, %49 : vector<8x128xf32>
    %52 = arith.divf %50, %51 : vector<8x128xf32>
    %53 = vector.extract_strided_slice %42 {offsets = [0, 128], sizes = [8, 128], strides = [1, 1]} : vector<8x384xf32> to vector<8x128xf32>
    %54 = vector.extract_strided_slice %44 {offsets = [0, 128], sizes = [8, 128], strides = [1, 1]} : vector<8x384xf32> to vector<8x128xf32>
    %55 = arith.addf %53, %54 : vector<8x128xf32>
    %56 = arith.negf %55 : vector<8x128xf32>
    %57 = math.exp %56 : vector<8x128xf32>
    %cst_46 = arith.constant 1.000000e+00 : f32
    %58 = vector.broadcast %cst_46 : f32 to vector<8x128xf32>
    %59 = arith.addf %58, %57 : vector<8x128xf32>
    %60 = arith.divf %58, %59 : vector<8x128xf32>
    %61 = vector.extract_strided_slice %42 {offsets = [0, 256], sizes = [8, 128], strides = [1, 1]} : vector<8x384xf32> to vector<8x128xf32>
    %62 = vector.extract_strided_slice %44 {offsets = [0, 256], sizes = [8, 128], strides = [1, 1]} : vector<8x384xf32> to vector<8x128xf32>
    %63 = arith.addf %62, %37 : vector<8x128xf32>
    %64 = arith.mulf %52, %63 : vector<8x128xf32>
    %65 = arith.addf %61, %64 : vector<8x128xf32>
    %66 = math.tanh %65 : vector<8x128xf32>
    %cst_47 = arith.constant 1.000000e+00 : f32
    %67 = vector.broadcast %cst_47 : f32 to vector<8x128xf32>
    %68 = arith.subf %67, %60 : vector<8x128xf32>
    %69 = arith.mulf %68, %66 : vector<8x128xf32>
    %70 = arith.mulf %60, %38 : vector<8x128xf32>
    %71 = arith.addf %69, %70 : vector<8x128xf32>
    %c0_48 = arith.constant 0 : index
    %72 = arith.index_cast %40 : i32 to index
    %c0_49 = arith.constant 0 : index
    %73 = vector.load %arg8[%c0_48, %72, %c0_49] : memref<1x64x128xf32, #tpu.memory_space<vmem>>, vector<1x8x128xf32>
    %74 = vector.shape_cast %73 : vector<1x8x128xf32> to vector<8x128xf32>
    %75 = vector.shape_cast %71 : vector<8x128xf32> to vector<1x8x128xf32>
    tpu.vector_store %arg8[%c0_48, %72, %c0_49], %75 {strides = array<i32>} : memref<1x64x128xf32, #tpu.memory_space<vmem>>, vector<1x8x128xf32>,
    %c1_i32 = arith.constant 1 : i32
    %c8_i32_50 = arith.constant 8 : i32
    %76 = arith.muli %c1_i32, %c8_i32_50 : i32
    %77 = tpu.assume_multiple %76, 8 : i32
    %78 = arith.index_cast %77 : i32 to index
    %c0_51 = arith.constant 0 : index
    %79 = vector.load %arg10[%78, %c0_51] : memref<64x384xf32, #tpu.memory_space<vmem>>, vector<8x384xf32>
    %c0_52 = arith.constant 0 : index
    %c0_53 = arith.constant 0 : index
    %80 = vector.load %arg4[%c0_52, %c0_53] : memref<128x384xf32, #tpu.memory_space<vmem>>, vector<128x384xf32>
    %cst_54 = arith.constant dense<0.000000e+00> : vector<8x384xf32>
    %81 = tpu.matmul %71, %80, %cst_54 {dimension_numbers = #tpu.dot_dimension_numbers<[1], [0], [0], [1], [0, 0, 1, 1], [], []>} : vector<8x128xf32>, vector<128x384xf32>, vector<8x384xf32> -> vector<8x384xf32>
    %82 = vector.extract_strided_slice %79 {offsets = [0, 0], sizes = [8, 128], strides = [1, 1]} : vector<8x384xf32> to vector<8x128xf32>
    %83 = vector.extract_strided_slice %81 {offsets = [0, 0], sizes = [8, 128], strides = [1, 1]} : vector<8x384xf32> to vector<8x128xf32>
    %84 = arith.addf %82, %83 : vector<8x128xf32>
    %85 = arith.negf %84 : vector<8x128xf32>
    %86 = math.exp %85 : vector<8x128xf32>
    %cst_55 = arith.constant 1.000000e+00 : f32
    %87 = vector.broadcast %cst_55 : f32 to vector<8x128xf32>
    %88 = arith.addf %87, %86 : vector<8x128xf32>
    %89 = arith.divf %87, %88 : vector<8x128xf32>
    %90 = vector.extract_strided_slice %79 {offsets = [0, 128], sizes = [8, 128], strides = [1, 1]} : vector<8x384xf32> to vector<8x128xf32>
    %91 = vector.extract_strided_slice %81 {offsets = [0, 128], sizes = [8, 128], strides = [1, 1]} : vector<8x384xf32> to vector<8x128xf32>
    %92 = arith.addf %90, %91 : vector<8x128xf32>
    %93 = arith.negf %92 : vector<8x128xf32>
    %94 = math.exp %93 : vector<8x128xf32>
    %cst_56 = arith.constant 1.000000e+00 : f32
    %95 = vector.broadcast %cst_56 : f32 to vector<8x128xf32>
    %96 = arith.addf %95, %94 : vector<8x128xf32>
    %97 = arith.divf %95, %96 : vector<8x128xf32>
    %98 = vector.extract_strided_slice %79 {offsets = [0, 256], sizes = [8, 128], strides = [1, 1]} : vector<8x384xf32> to vector<8x128xf32>
    %99 = vector.extract_strided_slice %81 {offsets = [0, 256], sizes = [8, 128], strides = [1, 1]} : vector<8x384xf32> to vector<8x128xf32>
    %100 = arith.addf %99, %37 : vector<8x128xf32>
    %101 = arith.mulf %89, %100 : vector<8x128xf32>
    %102 = arith.addf %98, %101 : vector<8x128xf32>
    %103 = math.tanh %102 : vector<8x128xf32>
    %cst_57 = arith.constant 1.000000e+00 : f32
    %104 = vector.broadcast %cst_57 : f32 to vector<8x128xf32>
    %105 = arith.subf %104, %97 : vector<8x128xf32>
    %106 = arith.mulf %105, %103 : vector<8x128xf32>
    %107 = arith.mulf %97, %71 : vector<8x128xf32>
    %108 = arith.addf %106, %107 : vector<8x128xf32>
    %c0_58 = arith.constant 0 : index
    %109 = arith.index_cast %77 : i32 to index
    %c0_59 = arith.constant 0 : index
    %110 = vector.load %arg8[%c0_58, %109, %c0_59] : memref<1x64x128xf32, #tpu.memory_space<vmem>>, vector<1x8x128xf32>
    %111 = vector.shape_cast %110 : vector<1x8x128xf32> to vector<8x128xf32>
    %112 = vector.shape_cast %108 : vector<8x128xf32> to vector<1x8x128xf32>
    tpu.vector_store %arg8[%c0_58, %109, %c0_59], %112 {strides = array<i32>} : memref<1x64x128xf32, #tpu.memory_space<vmem>>, vector<1x8x128xf32>,
    %c2_i32 = arith.constant 2 : i32
    %c8_i32_60 = arith.constant 8 : i32
    %113 = arith.muli %c2_i32, %c8_i32_60 : i32
    %114 = tpu.assume_multiple %113, 8 : i32
    %115 = arith.index_cast %114 : i32 to index
    %c0_61 = arith.constant 0 : index
    %116 = vector.load %arg10[%115, %c0_61] : memref<64x384xf32, #tpu.memory_space<vmem>>, vector<8x384xf32>
    %c0_62 = arith.constant 0 : index
    %c0_63 = arith.constant 0 : index
    %117 = vector.load %arg4[%c0_62, %c0_63] : memref<128x384xf32, #tpu.memory_space<vmem>>, vector<128x384xf32>
    %cst_64 = arith.constant dense<0.000000e+00> : vector<8x384xf32>
    %118 = tpu.matmul %108, %117, %cst_64 {dimension_numbers = #tpu.dot_dimension_numbers<[1], [0], [0], [1], [0, 0, 1, 1], [], []>} : vector<8x128xf32>, vector<128x384xf32>, vector<8x384xf32> -> vector<8x384xf32>
    %119 = vector.extract_strided_slice %116 {offsets = [0, 0], sizes = [8, 128], strides = [1, 1]} : vector<8x384xf32> to vector<8x128xf32>
    %120 = vector.extract_strided_slice %118 {offsets = [0, 0], sizes = [8, 128], strides = [1, 1]} : vector<8x384xf32> to vector<8x128xf32>
    %121 = arith.addf %119, %120 : vector<8x128xf32>
    %122 = arith.negf %121 : vector<8x128xf32>
    %123 = math.exp %122 : vector<8x128xf32>
    %cst_65 = arith.constant 1.000000e+00 : f32
    %124 = vector.broadcast %cst_65 : f32 to vector<8x128xf32>
    %125 = arith.addf %124, %123 : vector<8x128xf32>
    %126 = arith.divf %124, %125 : vector<8x128xf32>
    %127 = vector.extract_strided_slice %116 {offsets = [0, 128], sizes = [8, 128], strides = [1, 1]} : vector<8x384xf32> to vector<8x128xf32>
    %128 = vector.extract_strided_slice %118 {offsets = [0, 128], sizes = [8, 128], strides = [1, 1]} : vector<8x384xf32> to vector<8x128xf32>
    %129 = arith.addf %127, %128 : vector<8x128xf32>
    %130 = arith.negf %129 : vector<8x128xf32>
    %131 = math.exp %130 : vector<8x128xf32>
    %cst_66 = arith.constant 1.000000e+00 : f32
    %132 = vector.broadcast %cst_66 : f32 to vector<8x128xf32>
    %133 = arith.addf %132, %131 : vector<8x128xf32>
    %134 = arith.divf %132, %133 : vector<8x128xf32>
    %135 = vector.extract_strided_slice %116 {offsets = [0, 256], sizes = [8, 128], strides = [1, 1]} : vector<8x384xf32> to vector<8x128xf32>
    %136 = vector.extract_strided_slice %118 {offsets = [0, 256], sizes = [8, 128], strides = [1, 1]} : vector<8x384xf32> to vector<8x128xf32>
    %137 = arith.addf %136, %37 : vector<8x128xf32>
    %138 = arith.mulf %126, %137 : vector<8x128xf32>
    %139 = arith.addf %135, %138 : vector<8x128xf32>
    %140 = math.tanh %139 : vector<8x128xf32>
    %cst_67 = arith.constant 1.000000e+00 : f32
    %141 = vector.broadcast %cst_67 : f32 to vector<8x128xf32>
    %142 = arith.subf %141, %134 : vector<8x128xf32>
    %143 = arith.mulf %142, %140 : vector<8x128xf32>
    %144 = arith.mulf %134, %108 : vector<8x128xf32>
    %145 = arith.addf %143, %144 : vector<8x128xf32>
    %c0_68 = arith.constant 0 : index
    %146 = arith.index_cast %114 : i32 to index
    %c0_69 = arith.constant 0 : index
    %147 = vector.load %arg8[%c0_68, %146, %c0_69] : memref<1x64x128xf32, #tpu.memory_space<vmem>>, vector<1x8x128xf32>
    %148 = vector.shape_cast %147 : vector<1x8x128xf32> to vector<8x128xf32>
    %149 = vector.shape_cast %145 : vector<8x128xf32> to vector<1x8x128xf32>
    tpu.vector_store %arg8[%c0_68, %146, %c0_69], %149 {strides = array<i32>} : memref<1x64x128xf32, #tpu.memory_space<vmem>>, vector<1x8x128xf32>,
    %c3_i32 = arith.constant 3 : i32
    %c8_i32_70 = arith.constant 8 : i32
    %150 = arith.muli %c3_i32, %c8_i32_70 : i32
    %151 = tpu.assume_multiple %150, 8 : i32
    %152 = arith.index_cast %151 : i32 to index
    %c0_71 = arith.constant 0 : index
    %153 = vector.load %arg10[%152, %c0_71] : memref<64x384xf32, #tpu.memory_space<vmem>>, vector<8x384xf32>
    %c0_72 = arith.constant 0 : index
    %c0_73 = arith.constant 0 : index
    %154 = vector.load %arg4[%c0_72, %c0_73] : memref<128x384xf32, #tpu.memory_space<vmem>>, vector<128x384xf32>
    %cst_74 = arith.constant dense<0.000000e+00> : vector<8x384xf32>
    %155 = tpu.matmul %145, %154, %cst_74 {dimension_numbers = #tpu.dot_dimension_numbers<[1], [0], [0], [1], [0, 0, 1, 1], [], []>} : vector<8x128xf32>, vector<128x384xf32>, vector<8x384xf32> -> vector<8x384xf32>
    %156 = vector.extract_strided_slice %153 {offsets = [0, 0], sizes = [8, 128], strides = [1, 1]} : vector<8x384xf32> to vector<8x128xf32>
    %157 = vector.extract_strided_slice %155 {offsets = [0, 0], sizes = [8, 128], strides = [1, 1]} : vector<8x384xf32> to vector<8x128xf32>
    %158 = arith.addf %156, %157 : vector<8x128xf32>
    %159 = arith.negf %158 : vector<8x128xf32>
    %160 = math.exp %159 : vector<8x128xf32>
    %cst_75 = arith.constant 1.000000e+00 : f32
    %161 = vector.broadcast %cst_75 : f32 to vector<8x128xf32>
    %162 = arith.addf %161, %160 : vector<8x128xf32>
    %163 = arith.divf %161, %162 : vector<8x128xf32>
    %164 = vector.extract_strided_slice %153 {offsets = [0, 128], sizes = [8, 128], strides = [1, 1]} : vector<8x384xf32> to vector<8x128xf32>
    %165 = vector.extract_strided_slice %155 {offsets = [0, 128], sizes = [8, 128], strides = [1, 1]} : vector<8x384xf32> to vector<8x128xf32>
    %166 = arith.addf %164, %165 : vector<8x128xf32>
    %167 = arith.negf %166 : vector<8x128xf32>
    %168 = math.exp %167 : vector<8x128xf32>
    %cst_76 = arith.constant 1.000000e+00 : f32
    %169 = vector.broadcast %cst_76 : f32 to vector<8x128xf32>
    %170 = arith.addf %169, %168 : vector<8x128xf32>
    %171 = arith.divf %169, %170 : vector<8x128xf32>
    %172 = vector.extract_strided_slice %153 {offsets = [0, 256], sizes = [8, 128], strides = [1, 1]} : vector<8x384xf32> to vector<8x128xf32>
    %173 = vector.extract_strided_slice %155 {offsets = [0, 256], sizes = [8, 128], strides = [1, 1]} : vector<8x384xf32> to vector<8x128xf32>
    %174 = arith.addf %173, %37 : vector<8x128xf32>
    %175 = arith.mulf %163, %174 : vector<8x128xf32>
    %176 = arith.addf %172, %175 : vector<8x128xf32>
    %177 = math.tanh %176 : vector<8x128xf32>
    %cst_77 = arith.constant 1.000000e+00 : f32
    %178 = vector.broadcast %cst_77 : f32 to vector<8x128xf32>
    %179 = arith.subf %178, %171 : vector<8x128xf32>
    %180 = arith.mulf %179, %177 : vector<8x128xf32>
    %181 = arith.mulf %171, %145 : vector<8x128xf32>
    %182 = arith.addf %180, %181 : vector<8x128xf32>
    %c0_78 = arith.constant 0 : index
    %183 = arith.index_cast %151 : i32 to index
    %c0_79 = arith.constant 0 : index
    %184 = vector.load %arg8[%c0_78, %183, %c0_79] : memref<1x64x128xf32, #tpu.memory_space<vmem>>, vector<1x8x128xf32>
    %185 = vector.shape_cast %184 : vector<1x8x128xf32> to vector<8x128xf32>
    %186 = vector.shape_cast %182 : vector<8x128xf32> to vector<1x8x128xf32>
    tpu.vector_store %arg8[%c0_78, %183, %c0_79], %186 {strides = array<i32>} : memref<1x64x128xf32, #tpu.memory_space<vmem>>, vector<1x8x128xf32>,
    %c4_i32 = arith.constant 4 : i32
    %c8_i32_80 = arith.constant 8 : i32
    %187 = arith.muli %c4_i32, %c8_i32_80 : i32
    %188 = tpu.assume_multiple %187, 8 : i32
    %189 = arith.index_cast %188 : i32 to index
    %c0_81 = arith.constant 0 : index
    %190 = vector.load %arg10[%189, %c0_81] : memref<64x384xf32, #tpu.memory_space<vmem>>, vector<8x384xf32>
    %c0_82 = arith.constant 0 : index
    %c0_83 = arith.constant 0 : index
    %191 = vector.load %arg4[%c0_82, %c0_83] : memref<128x384xf32, #tpu.memory_space<vmem>>, vector<128x384xf32>
    %cst_84 = arith.constant dense<0.000000e+00> : vector<8x384xf32>
    %192 = tpu.matmul %182, %191, %cst_84 {dimension_numbers = #tpu.dot_dimension_numbers<[1], [0], [0], [1], [0, 0, 1, 1], [], []>} : vector<8x128xf32>, vector<128x384xf32>, vector<8x384xf32> -> vector<8x384xf32>
    %193 = vector.extract_strided_slice %190 {offsets = [0, 0], sizes = [8, 128], strides = [1, 1]} : vector<8x384xf32> to vector<8x128xf32>
    %194 = vector.extract_strided_slice %192 {offsets = [0, 0], sizes = [8, 128], strides = [1, 1]} : vector<8x384xf32> to vector<8x128xf32>
    %195 = arith.addf %193, %194 : vector<8x128xf32>
    %196 = arith.negf %195 : vector<8x128xf32>
    %197 = math.exp %196 : vector<8x128xf32>
    %cst_85 = arith.constant 1.000000e+00 : f32
    %198 = vector.broadcast %cst_85 : f32 to vector<8x128xf32>
    %199 = arith.addf %198, %197 : vector<8x128xf32>
    %200 = arith.divf %198, %199 : vector<8x128xf32>
    %201 = vector.extract_strided_slice %190 {offsets = [0, 128], sizes = [8, 128], strides = [1, 1]} : vector<8x384xf32> to vector<8x128xf32>
    %202 = vector.extract_strided_slice %192 {offsets = [0, 128], sizes = [8, 128], strides = [1, 1]} : vector<8x384xf32> to vector<8x128xf32>
    %203 = arith.addf %201, %202 : vector<8x128xf32>
    %204 = arith.negf %203 : vector<8x128xf32>
    %205 = math.exp %204 : vector<8x128xf32>
    %cst_86 = arith.constant 1.000000e+00 : f32
    %206 = vector.broadcast %cst_86 : f32 to vector<8x128xf32>
    %207 = arith.addf %206, %205 : vector<8x128xf32>
    %208 = arith.divf %206, %207 : vector<8x128xf32>
    %209 = vector.extract_strided_slice %190 {offsets = [0, 256], sizes = [8, 128], strides = [1, 1]} : vector<8x384xf32> to vector<8x128xf32>
    %210 = vector.extract_strided_slice %192 {offsets = [0, 256], sizes = [8, 128], strides = [1, 1]} : vector<8x384xf32> to vector<8x128xf32>
    %211 = arith.addf %210, %37 : vector<8x128xf32>
    %212 = arith.mulf %200, %211 : vector<8x128xf32>
    %213 = arith.addf %209, %212 : vector<8x128xf32>
    %214 = math.tanh %213 : vector<8x128xf32>
    %cst_87 = arith.constant 1.000000e+00 : f32
    %215 = vector.broadcast %cst_87 : f32 to vector<8x128xf32>
    %216 = arith.subf %215, %208 : vector<8x128xf32>
    %217 = arith.mulf %216, %214 : vector<8x128xf32>
    %218 = arith.mulf %208, %182 : vector<8x128xf32>
    %219 = arith.addf %217, %218 : vector<8x128xf32>
    %c0_88 = arith.constant 0 : index
    %220 = arith.index_cast %188 : i32 to index
    %c0_89 = arith.constant 0 : index
    %221 = vector.load %arg8[%c0_88, %220, %c0_89] : memref<1x64x128xf32, #tpu.memory_space<vmem>>, vector<1x8x128xf32>
    %222 = vector.shape_cast %221 : vector<1x8x128xf32> to vector<8x128xf32>
    %223 = vector.shape_cast %219 : vector<8x128xf32> to vector<1x8x128xf32>
    tpu.vector_store %arg8[%c0_88, %220, %c0_89], %223 {strides = array<i32>} : memref<1x64x128xf32, #tpu.memory_space<vmem>>, vector<1x8x128xf32>,
    %c5_i32 = arith.constant 5 : i32
    %c8_i32_90 = arith.constant 8 : i32
    %224 = arith.muli %c5_i32, %c8_i32_90 : i32
    %225 = tpu.assume_multiple %224, 8 : i32
    %226 = arith.index_cast %225 : i32 to index
    %c0_91 = arith.constant 0 : index
    %227 = vector.load %arg10[%226, %c0_91] : memref<64x384xf32, #tpu.memory_space<vmem>>, vector<8x384xf32>
    %c0_92 = arith.constant 0 : index
    %c0_93 = arith.constant 0 : index
    %228 = vector.load %arg4[%c0_92, %c0_93] : memref<128x384xf32, #tpu.memory_space<vmem>>, vector<128x384xf32>
    %cst_94 = arith.constant dense<0.000000e+00> : vector<8x384xf32>
    %229 = tpu.matmul %219, %228, %cst_94 {dimension_numbers = #tpu.dot_dimension_numbers<[1], [0], [0], [1], [0, 0, 1, 1], [], []>} : vector<8x128xf32>, vector<128x384xf32>, vector<8x384xf32> -> vector<8x384xf32>
    %230 = vector.extract_strided_slice %227 {offsets = [0, 0], sizes = [8, 128], strides = [1, 1]} : vector<8x384xf32> to vector<8x128xf32>
    %231 = vector.extract_strided_slice %229 {offsets = [0, 0], sizes = [8, 128], strides = [1, 1]} : vector<8x384xf32> to vector<8x128xf32>
    %232 = arith.addf %230, %231 : vector<8x128xf32>
    %233 = arith.negf %232 : vector<8x128xf32>
    %234 = math.exp %233 : vector<8x128xf32>
    %cst_95 = arith.constant 1.000000e+00 : f32
    %235 = vector.broadcast %cst_95 : f32 to vector<8x128xf32>
    %236 = arith.addf %235, %234 : vector<8x128xf32>
    %237 = arith.divf %235, %236 : vector<8x128xf32>
    %238 = vector.extract_strided_slice %227 {offsets = [0, 128], sizes = [8, 128], strides = [1, 1]} : vector<8x384xf32> to vector<8x128xf32>
    %239 = vector.extract_strided_slice %229 {offsets = [0, 128], sizes = [8, 128], strides = [1, 1]} : vector<8x384xf32> to vector<8x128xf32>
    %240 = arith.addf %238, %239 : vector<8x128xf32>
    %241 = arith.negf %240 : vector<8x128xf32>
    %242 = math.exp %241 : vector<8x128xf32>
    %cst_96 = arith.constant 1.000000e+00 : f32
    %243 = vector.broadcast %cst_96 : f32 to vector<8x128xf32>
    %244 = arith.addf %243, %242 : vector<8x128xf32>
    %245 = arith.divf %243, %244 : vector<8x128xf32>
    %246 = vector.extract_strided_slice %227 {offsets = [0, 256], sizes = [8, 128], strides = [1, 1]} : vector<8x384xf32> to vector<8x128xf32>
    %247 = vector.extract_strided_slice %229 {offsets = [0, 256], sizes = [8, 128], strides = [1, 1]} : vector<8x384xf32> to vector<8x128xf32>
    %248 = arith.addf %247, %37 : vector<8x128xf32>
    %249 = arith.mulf %237, %248 : vector<8x128xf32>
    %250 = arith.addf %246, %249 : vector<8x128xf32>
    %251 = math.tanh %250 : vector<8x128xf32>
    %cst_97 = arith.constant 1.000000e+00 : f32
    %252 = vector.broadcast %cst_97 : f32 to vector<8x128xf32>
    %253 = arith.subf %252, %245 : vector<8x128xf32>
    %254 = arith.mulf %253, %251 : vector<8x128xf32>
    %255 = arith.mulf %245, %219 : vector<8x128xf32>
    %256 = arith.addf %254, %255 : vector<8x128xf32>
    %c0_98 = arith.constant 0 : index
    %257 = arith.index_cast %225 : i32 to index
    %c0_99 = arith.constant 0 : index
    %258 = vector.load %arg8[%c0_98, %257, %c0_99] : memref<1x64x128xf32, #tpu.memory_space<vmem>>, vector<1x8x128xf32>
    %259 = vector.shape_cast %258 : vector<1x8x128xf32> to vector<8x128xf32>
    %260 = vector.shape_cast %256 : vector<8x128xf32> to vector<1x8x128xf32>
    tpu.vector_store %arg8[%c0_98, %257, %c0_99], %260 {strides = array<i32>} : memref<1x64x128xf32, #tpu.memory_space<vmem>>, vector<1x8x128xf32>,
    %c6_i32 = arith.constant 6 : i32
    %c8_i32_100 = arith.constant 8 : i32
    %261 = arith.muli %c6_i32, %c8_i32_100 : i32
    %262 = tpu.assume_multiple %261, 8 : i32
    %263 = arith.index_cast %262 : i32 to index
    %c0_101 = arith.constant 0 : index
    %264 = vector.load %arg10[%263, %c0_101] : memref<64x384xf32, #tpu.memory_space<vmem>>, vector<8x384xf32>
    %c0_102 = arith.constant 0 : index
    %c0_103 = arith.constant 0 : index
    %265 = vector.load %arg4[%c0_102, %c0_103] : memref<128x384xf32, #tpu.memory_space<vmem>>, vector<128x384xf32>
    %cst_104 = arith.constant dense<0.000000e+00> : vector<8x384xf32>
    %266 = tpu.matmul %256, %265, %cst_104 {dimension_numbers = #tpu.dot_dimension_numbers<[1], [0], [0], [1], [0, 0, 1, 1], [], []>} : vector<8x128xf32>, vector<128x384xf32>, vector<8x384xf32> -> vector<8x384xf32>
    %267 = vector.extract_strided_slice %264 {offsets = [0, 0], sizes = [8, 128], strides = [1, 1]} : vector<8x384xf32> to vector<8x128xf32>
    %268 = vector.extract_strided_slice %266 {offsets = [0, 0], sizes = [8, 128], strides = [1, 1]} : vector<8x384xf32> to vector<8x128xf32>
    %269 = arith.addf %267, %268 : vector<8x128xf32>
    %270 = arith.negf %269 : vector<8x128xf32>
    %271 = math.exp %270 : vector<8x128xf32>
    %cst_105 = arith.constant 1.000000e+00 : f32
    %272 = vector.broadcast %cst_105 : f32 to vector<8x128xf32>
    %273 = arith.addf %272, %271 : vector<8x128xf32>
    %274 = arith.divf %272, %273 : vector<8x128xf32>
    %275 = vector.extract_strided_slice %264 {offsets = [0, 128], sizes = [8, 128], strides = [1, 1]} : vector<8x384xf32> to vector<8x128xf32>
    %276 = vector.extract_strided_slice %266 {offsets = [0, 128], sizes = [8, 128], strides = [1, 1]} : vector<8x384xf32> to vector<8x128xf32>
    %277 = arith.addf %275, %276 : vector<8x128xf32>
    %278 = arith.negf %277 : vector<8x128xf32>
    %279 = math.exp %278 : vector<8x128xf32>
    %cst_106 = arith.constant 1.000000e+00 : f32
    %280 = vector.broadcast %cst_106 : f32 to vector<8x128xf32>
    %281 = arith.addf %280, %279 : vector<8x128xf32>
    %282 = arith.divf %280, %281 : vector<8x128xf32>
    %283 = vector.extract_strided_slice %264 {offsets = [0, 256], sizes = [8, 128], strides = [1, 1]} : vector<8x384xf32> to vector<8x128xf32>
    %284 = vector.extract_strided_slice %266 {offsets = [0, 256], sizes = [8, 128], strides = [1, 1]} : vector<8x384xf32> to vector<8x128xf32>
    %285 = arith.addf %284, %37 : vector<8x128xf32>
    %286 = arith.mulf %274, %285 : vector<8x128xf32>
    %287 = arith.addf %283, %286 : vector<8x128xf32>
    %288 = math.tanh %287 : vector<8x128xf32>
    %cst_107 = arith.constant 1.000000e+00 : f32
    %289 = vector.broadcast %cst_107 : f32 to vector<8x128xf32>
    %290 = arith.subf %289, %282 : vector<8x128xf32>
    %291 = arith.mulf %290, %288 : vector<8x128xf32>
    %292 = arith.mulf %282, %256 : vector<8x128xf32>
    %293 = arith.addf %291, %292 : vector<8x128xf32>
    %c0_108 = arith.constant 0 : index
    %294 = arith.index_cast %262 : i32 to index
    %c0_109 = arith.constant 0 : index
    %295 = vector.load %arg8[%c0_108, %294, %c0_109] : memref<1x64x128xf32, #tpu.memory_space<vmem>>, vector<1x8x128xf32>
    %296 = vector.shape_cast %295 : vector<1x8x128xf32> to vector<8x128xf32>
    %297 = vector.shape_cast %293 : vector<8x128xf32> to vector<1x8x128xf32>
    tpu.vector_store %arg8[%c0_108, %294, %c0_109], %297 {strides = array<i32>} : memref<1x64x128xf32, #tpu.memory_space<vmem>>, vector<1x8x128xf32>,
    %c7_i32 = arith.constant 7 : i32
    %c8_i32_110 = arith.constant 8 : i32
    %298 = arith.muli %c7_i32, %c8_i32_110 : i32
    %299 = tpu.assume_multiple %298, 8 : i32
    %300 = arith.index_cast %299 : i32 to index
    %c0_111 = arith.constant 0 : index
    %301 = vector.load %arg10[%300, %c0_111] : memref<64x384xf32, #tpu.memory_space<vmem>>, vector<8x384xf32>
    %c0_112 = arith.constant 0 : index
    %c0_113 = arith.constant 0 : index
    %302 = vector.load %arg4[%c0_112, %c0_113] : memref<128x384xf32, #tpu.memory_space<vmem>>, vector<128x384xf32>
    %cst_114 = arith.constant dense<0.000000e+00> : vector<8x384xf32>
    %303 = tpu.matmul %293, %302, %cst_114 {dimension_numbers = #tpu.dot_dimension_numbers<[1], [0], [0], [1], [0, 0, 1, 1], [], []>} : vector<8x128xf32>, vector<128x384xf32>, vector<8x384xf32> -> vector<8x384xf32>
    %304 = vector.extract_strided_slice %301 {offsets = [0, 0], sizes = [8, 128], strides = [1, 1]} : vector<8x384xf32> to vector<8x128xf32>
    %305 = vector.extract_strided_slice %303 {offsets = [0, 0], sizes = [8, 128], strides = [1, 1]} : vector<8x384xf32> to vector<8x128xf32>
    %306 = arith.addf %304, %305 : vector<8x128xf32>
    %307 = arith.negf %306 : vector<8x128xf32>
    %308 = math.exp %307 : vector<8x128xf32>
    %cst_115 = arith.constant 1.000000e+00 : f32
    %309 = vector.broadcast %cst_115 : f32 to vector<8x128xf32>
    %310 = arith.addf %309, %308 : vector<8x128xf32>
    %311 = arith.divf %309, %310 : vector<8x128xf32>
    %312 = vector.extract_strided_slice %301 {offsets = [0, 128], sizes = [8, 128], strides = [1, 1]} : vector<8x384xf32> to vector<8x128xf32>
    %313 = vector.extract_strided_slice %303 {offsets = [0, 128], sizes = [8, 128], strides = [1, 1]} : vector<8x384xf32> to vector<8x128xf32>
    %314 = arith.addf %312, %313 : vector<8x128xf32>
    %315 = arith.negf %314 : vector<8x128xf32>
    %316 = math.exp %315 : vector<8x128xf32>
    %cst_116 = arith.constant 1.000000e+00 : f32
    %317 = vector.broadcast %cst_116 : f32 to vector<8x128xf32>
    %318 = arith.addf %317, %316 : vector<8x128xf32>
    %319 = arith.divf %317, %318 : vector<8x128xf32>
    %320 = vector.extract_strided_slice %301 {offsets = [0, 256], sizes = [8, 128], strides = [1, 1]} : vector<8x384xf32> to vector<8x128xf32>
    %321 = vector.extract_strided_slice %303 {offsets = [0, 256], sizes = [8, 128], strides = [1, 1]} : vector<8x384xf32> to vector<8x128xf32>
    %322 = arith.addf %321, %37 : vector<8x128xf32>
    %323 = arith.mulf %311, %322 : vector<8x128xf32>
    %324 = arith.addf %320, %323 : vector<8x128xf32>
    %325 = math.tanh %324 : vector<8x128xf32>
    %cst_117 = arith.constant 1.000000e+00 : f32
    %326 = vector.broadcast %cst_117 : f32 to vector<8x128xf32>
    %327 = arith.subf %326, %319 : vector<8x128xf32>
    %328 = arith.mulf %327, %325 : vector<8x128xf32>
    %329 = arith.mulf %319, %293 : vector<8x128xf32>
    %330 = arith.addf %328, %329 : vector<8x128xf32>
    %c0_118 = arith.constant 0 : index
    %331 = arith.index_cast %299 : i32 to index
    %c0_119 = arith.constant 0 : index
    %332 = vector.load %arg8[%c0_118, %331, %c0_119] : memref<1x64x128xf32, #tpu.memory_space<vmem>>, vector<1x8x128xf32>
    %333 = vector.shape_cast %332 : vector<1x8x128xf32> to vector<8x128xf32>
    %334 = vector.shape_cast %330 : vector<8x128xf32> to vector<1x8x128xf32>
    tpu.vector_store %arg8[%c0_118, %331, %c0_119], %334 {strides = array<i32>} : memref<1x64x128xf32, #tpu.memory_space<vmem>>, vector<1x8x128xf32>,
    %c8_i32_120 = arith.constant 8 : i32
    %c0_121 = arith.constant 0 : index
    %c0_122 = arith.constant 0 : index
    %335 = vector.load %arg9[%c0_121, %c0_122] : memref<8x128xf32, #tpu.memory_space<vmem>>, vector<8x128xf32>
    tpu.vector_store %arg9[%c0_121, %c0_122], %330 {strides = array<i32>} : memref<8x128xf32, #tpu.memory_space<vmem>>, vector<8x128xf32>,
    return
  }
  func.func @transform_0(%arg0: i32, %arg1: i32) -> (i32, i32, i32) {
    %c0_i32 = arith.constant 0 : i32
    %c0_i32_0 = arith.constant 0 : i32
    return %arg0, %arg1, %c0_i32 : i32, i32, i32
  }
  func.func @transform_1(%arg0: i32, %arg1: i32) -> (i32, i32) {
    %c0_i32 = arith.constant 0 : i32
    %c0_i32_0 = arith.constant 0 : i32
    %c0_i32_1 = arith.constant 0 : i32
    return %c0_i32, %c0_i32_0 : i32, i32
  }
  func.func @transform_2(%arg0: i32, %arg1: i32) -> (i32, i32) {
    %c0_i32 = arith.constant 0 : i32
    %c0_i32_0 = arith.constant 0 : i32
    %c0_i32_1 = arith.constant 0 : i32
    return %c0_i32, %c0_i32_0 : i32, i32
  }
  func.func @transform_3(%arg0: i32, %arg1: i32) -> (i32, i32) {
    %c0_i32 = arith.constant 0 : i32
    %c0_i32_0 = arith.constant 0 : i32
    %c0_i32_1 = arith.constant 0 : i32
    return %c0_i32, %c0_i32_0 : i32, i32
  }
  func.func @transform_4(%arg0: i32, %arg1: i32) -> (i32, i32) {
    %c0_i32 = arith.constant 0 : i32
    %c0_i32_0 = arith.constant 0 : i32
    %c0_i32_1 = arith.constant 0 : i32
    return %c0_i32, %c0_i32_0 : i32, i32
  }
  func.func @transform_5(%arg0: i32, %arg1: i32) -> (i32, i32, i32) {
    %c0_i32 = arith.constant 0 : i32
    %c0_i32_0 = arith.constant 0 : i32
    %c0_i32_1 = arith.constant 0 : i32
    return %arg0, %c0_i32, %c0_i32_0 : i32, i32, i32
  }
  func.func @transform_6(%arg0: i32, %arg1: i32) -> (i32, i32, i32) {
    %c0_i32 = arith.constant 0 : i32
    %c0_i32_0 = arith.constant 0 : i32
    return %arg0, %arg1, %c0_i32 : i32, i32, i32
  }
}

module attributes {stable_mosaic.version = 11 : i64} {
  func.func @gru_layer_kernel(%arg0: i32, %arg1: i32, %arg2: memref<1x64x128xf32, #tpu.memory_space<vmem>>, %arg3: memref<128x384xf32, #tpu.memory_space<vmem>>, %arg4: memref<128x384xf32, #tpu.memory_space<vmem>>, %arg5: memref<1x384xf32, #tpu.memory_space<vmem>>, %arg6: memref<1x128xf32, #tpu.memory_space<vmem>>, %arg7: memref<1x8x128xf32, #tpu.memory_space<vmem>>, %arg8: memref<1x64x128xf32, #tpu.memory_space<vmem>>, %arg9: memref<8x128xf32, #tpu.memory_space<vmem>>, %arg10: memref<64x384xf32, #tpu.memory_space<vmem>>) attributes {dimension_semantics = [#tpu.dimension_semantics<parallel>, #tpu.dimension_semantics<arbitrary>], iteration_bounds = array<i64: 1, 1>, scalar_prefetch = 0 : i64, scratch_operands = 2 : i64, tpu.core_type = #tpu.core_type<tc>, window_params = [{transform_indices = @transform_0, window_bounds = array<i64: 1, 64, 128>}, {pipeline_mode = #tpu.pipeline_mode<synchronous>, transform_indices = @transform_1, window_bounds = array<i64: 128, 384>}, {pipeline_mode = #tpu.pipeline_mode<synchronous>, transform_indices = @transform_2, window_bounds = array<i64: 128, 384>}, {pipeline_mode = #tpu.pipeline_mode<synchronous>, transform_indices = @transform_3, window_bounds = array<i64: 1, 384>}, {pipeline_mode = #tpu.pipeline_mode<synchronous>, transform_indices = @transform_4, window_bounds = array<i64: 1, 128>}, {transform_indices = @transform_5, window_bounds = array<i64: 1, 8, 128>}, {transform_indices = @transform_6, window_bounds = array<i64: 1, 64, 128>}]} {
    %c0_i32 = arith.constant 0 : i32
    %0 = arith.cmpi eq, %arg1, %c0_i32 : i32
    %1 = arith.extui %0 : i1 to i32
    %c0_i32_0 = arith.constant 0 : i32
    %2 = arith.cmpi ne, %1, %c0_i32_0 : i32
    scf.if %2 {
      %c0_123 = arith.constant 0 : index
      %c0_124 = arith.constant 0 : index
      %c0_125 = arith.constant 0 : index
      %336 = vector.load %arg7[%c0_123, %c0_124, %c0_125] : memref<1x8x128xf32, #tpu.memory_space<vmem>>, vector<1x8x128xf32>
      %337 = vector.shape_cast %336 : vector<1x8x128xf32> to vector<8x128xf32>
      %c0_126 = arith.constant 0 : index
      %c0_127 = arith.constant 0 : index
      %338 = vector.load %arg9[%c0_126, %c0_127] : memref<8x128xf32, #tpu.memory_space<vmem>>, vector<8x128xf32>
      tpu.vector_store %arg9[%c0_126, %c0_127], %337 {strides = array<i32>} : memref<8x128xf32, #tpu.memory_space<vmem>>, vector<8x128xf32>,
    } else {
    }
    %c0 = arith.constant 0 : index
    %c0_1 = arith.constant 0 : index
    %c0_2 = arith.constant 0 : index
    %3 = vector.load %arg2[%c0, %c0_1, %c0_2] : memref<1x64x128xf32, #tpu.memory_space<vmem>>, vector<1x16x128xf32>
    %4 = vector.shape_cast %3 : vector<1x16x128xf32> to vector<16x128xf32>
    %c0_3 = arith.constant 0 : index
    %c0_4 = arith.constant 0 : index
    %5 = vector.load %arg3[%c0_3, %c0_4] : memref<128x384xf32, #tpu.memory_space<vmem>>, vector<128x384xf32>
    %cst = arith.constant dense<0.000000e+00> : vector<16x384xf32>
    %6 = tpu.matmul %4, %5, %cst {dimension_numbers = #tpu.dot_dimension_numbers<[1], [0], [0], [1], [0, 0, 1, 1], [], []>} : vector<16x128xf32>, vector<128x384xf32>, vector<16x384xf32> -> vector<16x384xf32>
    %c0_5 = arith.constant 0 : index
    %c0_6 = arith.constant 0 : index
    %7 = vector.load %arg5[%c0_5, %c0_6] : memref<1x384xf32, #tpu.memory_space<vmem>>, vector<1x384xf32>
    %8 = vector.broadcast %7 : vector<1x384xf32> to vector<16x384xf32>
    %9 = arith.addf %6, %8 : vector<16x384xf32>
    %c0_7 = arith.constant 0 : index
    %c0_8 = arith.constant 0 : index
    %10 = vector.load %arg10[%c0_7, %c0_8] : memref<64x384xf32, #tpu.memory_space<vmem>>, vector<16x384xf32>
    tpu.vector_store %arg10[%c0_7, %c0_8], %9 {strides = array<i32>} : memref<64x384xf32, #tpu.memory_space<vmem>>, vector<16x384xf32>,
    %c0_9 = arith.constant 0 : index
    %c16 = arith.constant 16 : index
    %c0_10 = arith.constant 0 : index
    %11 = vector.load %arg2[%c0_9, %c16, %c0_10] : memref<1x64x128xf32, #tpu.memory_space<vmem>>, vector<1x16x128xf32>
    %12 = vector.shape_cast %11 : vector<1x16x128xf32> to vector<16x128xf32>
    %c0_11 = arith.constant 0 : index
    %c0_12 = arith.constant 0 : index
    %13 = vector.load %arg3[%c0_11, %c0_12] : memref<128x384xf32, #tpu.memory_space<vmem>>, vector<128x384xf32>
    %cst_13 = arith.constant dense<0.000000e+00> : vector<16x384xf32>
    %14 = tpu.matmul %12, %13, %cst_13 {dimension_numbers = #tpu.dot_dimension_numbers<[1], [0], [0], [1], [0, 0, 1, 1], [], []>} : vector<16x128xf32>, vector<128x384xf32>, vector<16x384xf32> -> vector<16x384xf32>
    %c0_14 = arith.constant 0 : index
    %c0_15 = arith.constant 0 : index
    %15 = vector.load %arg5[%c0_14, %c0_15] : memref<1x384xf32, #tpu.memory_space<vmem>>, vector<1x384xf32>
    %16 = vector.broadcast %15 : vector<1x384xf32> to vector<16x384xf32>
    %17 = arith.addf %14, %16 : vector<16x384xf32>
    %c16_16 = arith.constant 16 : index
    %c0_17 = arith.constant 0 : index
    %18 = vector.load %arg10[%c16_16, %c0_17] : memref<64x384xf32, #tpu.memory_space<vmem>>, vector<16x384xf32>
    tpu.vector_store %arg10[%c16_16, %c0_17], %17 {strides = array<i32>} : memref<64x384xf32, #tpu.memory_space<vmem>>, vector<16x384xf32>,
    %c0_18 = arith.constant 0 : index
    %c32 = arith.constant 32 : index
    %c0_19 = arith.constant 0 : index
    %19 = vector.load %arg2[%c0_18, %c32, %c0_19] : memref<1x64x128xf32, #tpu.memory_space<vmem>>, vector<1x16x128xf32>
    %20 = vector.shape_cast %19 : vector<1x16x128xf32> to vector<16x128xf32>
    %c0_20 = arith.constant 0 : index
    %c0_21 = arith.constant 0 : index
    %21 = vector.load %arg3[%c0_20, %c0_21] : memref<128x384xf32, #tpu.memory_space<vmem>>, vector<128x384xf32>
    %cst_22 = arith.constant dense<0.000000e+00> : vector<16x384xf32>
    %22 = tpu.matmul %20, %21, %cst_22 {dimension_numbers = #tpu.dot_dimension_numbers<[1], [0], [0], [1], [0, 0, 1, 1], [], []>} : vector<16x128xf32>, vector<128x384xf32>, vector<16x384xf32> -> vector<16x384xf32>
    %c0_23 = arith.constant 0 : index
    %c0_24 = arith.constant 0 : index
    %23 = vector.load %arg5[%c0_23, %c0_24] : memref<1x384xf32, #tpu.memory_space<vmem>>, vector<1x384xf32>
    %24 = vector.broadcast %23 : vector<1x384xf32> to vector<16x384xf32>
    %25 = arith.addf %22, %24 : vector<16x384xf32>
    %c32_25 = arith.constant 32 : index
    %c0_26 = arith.constant 0 : index
    %26 = vector.load %arg10[%c32_25, %c0_26] : memref<64x384xf32, #tpu.memory_space<vmem>>, vector<16x384xf32>
    tpu.vector_store %arg10[%c32_25, %c0_26], %25 {strides = array<i32>} : memref<64x384xf32, #tpu.memory_space<vmem>>, vector<16x384xf32>,
    %c0_27 = arith.constant 0 : index
    %c48 = arith.constant 48 : index
    %c0_28 = arith.constant 0 : index
    %27 = vector.load %arg2[%c0_27, %c48, %c0_28] : memref<1x64x128xf32, #tpu.memory_space<vmem>>, vector<1x16x128xf32>
    %28 = vector.shape_cast %27 : vector<1x16x128xf32> to vector<16x128xf32>
    %c0_29 = arith.constant 0 : index
    %c0_30 = arith.constant 0 : index
    %29 = vector.load %arg3[%c0_29, %c0_30] : memref<128x384xf32, #tpu.memory_space<vmem>>, vector<128x384xf32>
    %cst_31 = arith.constant dense<0.000000e+00> : vector<16x384xf32>
    %30 = tpu.matmul %28, %29, %cst_31 {dimension_numbers = #tpu.dot_dimension_numbers<[1], [0], [0], [1], [0, 0, 1, 1], [], []>} : vector<16x128xf32>, vector<128x384xf32>, vector<16x384xf32> -> vector<16x384xf32>
    %c0_32 = arith.constant 0 : index
    %c0_33 = arith.constant 0 : index
    %31 = vector.load %arg5[%c0_32, %c0_33] : memref<1x384xf32, #tpu.memory_space<vmem>>, vector<1x384xf32>
    %32 = vector.broadcast %31 : vector<1x384xf32> to vector<16x384xf32>
    %33 = arith.addf %30, %32 : vector<16x384xf32>
    %c48_34 = arith.constant 48 : index
    %c0_35 = arith.constant 0 : index
    %34 = vector.load %arg10[%c48_34, %c0_35] : memref<64x384xf32, #tpu.memory_space<vmem>>, vector<16x384xf32>
    tpu.vector_store %arg10[%c48_34, %c0_35], %33 {strides = array<i32>} : memref<64x384xf32, #tpu.memory_space<vmem>>, vector<16x384xf32>,
    %c0_36 = arith.constant 0 : index
    %c0_37 = arith.constant 0 : index
    %35 = vector.load %arg6[%c0_36, %c0_37] : memref<1x128xf32, #tpu.memory_space<vmem>>, vector<1x128xf32>
    %36 = vector.shape_cast %35 : vector<1x128xf32> to vector<1x128xf32>
    %37 = vector.broadcast %36 : vector<1x128xf32> to vector<8x128xf32>
    %c0_38 = arith.constant 0 : index
    %c0_39 = arith.constant 0 : index
    %38 = vector.load %arg9[%c0_38, %c0_39] : memref<8x128xf32, #tpu.memory_space<vmem>>, vector<8x128xf32>
    %c0_i32_40 = arith.constant 0 : i32
    %c8_i32 = arith.constant 8 : i32
    %39 = arith.muli %c0_i32_40, %c8_i32 : i32
    %40 = tpu.assume_multiple %39, 8 : i32
    %41 = arith.index_cast %40 : i32 to index
    %c0_41 = arith.constant 0 : index
    %42 = vector.load %arg10[%41, %c0_41] : memref<64x384xf32, #tpu.memory_space<vmem>>, vector<8x384xf32>
    %c0_42 = arith.constant 0 : index
    %c0_43 = arith.constant 0 : index
    %43 = vector.load %arg4[%c0_42, %c0_43] : memref<128x384xf32, #tpu.memory_space<vmem>>, vector<128x384xf32>
    %cst_44 = arith.constant dense<0.000000e+00> : vector<8x384xf32>
    %44 = tpu.matmul %38, %43, %cst_44 {dimension_numbers = #tpu.dot_dimension_numbers<[1], [0], [0], [1], [0, 0, 1, 1], [], []>} : vector<8x128xf32>, vector<128x384xf32>, vector<8x384xf32> -> vector<8x384xf32>
    %45 = vector.extract_strided_slice %42 {offsets = [0, 0], sizes = [8, 128], strides = [1, 1]} : vector<8x384xf32> to vector<8x128xf32>
    %46 = vector.extract_strided_slice %44 {offsets = [0, 0], sizes = [8, 128], strides = [1, 1]} : vector<8x384xf32> to vector<8x128xf32>
    %47 = arith.addf %45, %46 : vector<8x128xf32>
    %48 = arith.negf %47 : vector<8x128xf32>
    %49 = math.exp %48 : vector<8x128xf32>
    %cst_45 = arith.constant 1.000000e+00 : f32
    %50 = vector.broadcast %cst_45 : f32 to vector<8x128xf32>
    %51 = arith.addf %50, %49 : vector<8x128xf32>
    %52 = arith.divf %50, %51 : vector<8x128xf32>
    %53 = vector.extract_strided_slice %42 {offsets = [0, 128], sizes = [8, 128], strides = [1, 1]} : vector<8x384xf32> to vector<8x128xf32>
    %54 = vector.extract_strided_slice %44 {offsets = [0, 128], sizes = [8, 128], strides = [1, 1]} : vector<8x384xf32> to vector<8x128xf32>
    %55 = arith.addf %53, %54 : vector<8x128xf32>
    %56 = arith.negf %55 : vector<8x128xf32>
    %57 = math.exp %56 : vector<8x128xf32>
    %cst_46 = arith.constant 1.000000e+00 : f32
    %58 = vector.broadcast %cst_46 : f32 to vector<8x128xf32>
    %59 = arith.addf %58, %57 : vector<8x128xf32>
    %60 = arith.divf %58, %59 : vector<8x128xf32>
    %61 = vector.extract_strided_slice %42 {offsets = [0, 256], sizes = [8, 128], strides = [1, 1]} : vector<8x384xf32> to vector<8x128xf32>
    %62 = vector.extract_strided_slice %44 {offsets = [0, 256], sizes = [8, 128], strides = [1, 1]} : vector<8x384xf32> to vector<8x128xf32>
    %63 = arith.addf %62, %37 : vector<8x128xf32>
    %64 = arith.mulf %52, %63 : vector<8x128xf32>
    %65 = arith.addf %61, %64 : vector<8x128xf32>
    %66 = math.tanh %65 : vector<8x128xf32>
    %cst_47 = arith.constant 1.000000e+00 : f32
    %67 = vector.broadcast %cst_47 : f32 to vector<8x128xf32>
    %68 = arith.subf %67, %60 : vector<8x128xf32>
    %69 = arith.mulf %68, %66 : vector<8x128xf32>
    %70 = arith.mulf %60, %38 : vector<8x128xf32>
    %71 = arith.addf %69, %70 : vector<8x128xf32>
    %c0_48 = arith.constant 0 : index
    %72 = arith.index_cast %40 : i32 to index
    %c0_49 = arith.constant 0 : index
    %73 = vector.load %arg8[%c0_48, %72, %c0_49] : memref<1x64x128xf32, #tpu.memory_space<vmem>>, vector<1x8x128xf32>
    %74 = vector.shape_cast %73 : vector<1x8x128xf32> to vector<8x128xf32>
    %75 = vector.shape_cast %71 : vector<8x128xf32> to vector<1x8x128xf32>
    tpu.vector_store %arg8[%c0_48, %72, %c0_49], %75 {strides = array<i32>} : memref<1x64x128xf32, #tpu.memory_space<vmem>>, vector<1x8x128xf32>,
    %c1_i32 = arith.constant 1 : i32
    %c8_i32_50 = arith.constant 8 : i32
    %76 = arith.muli %c1_i32, %c8_i32_50 : i32
    %77 = tpu.assume_multiple %76, 8 : i32
    %78 = arith.index_cast %77 : i32 to index
    %c0_51 = arith.constant 0 : index
    %79 = vector.load %arg10[%78, %c0_51] : memref<64x384xf32, #tpu.memory_space<vmem>>, vector<8x384xf32>
    %c0_52 = arith.constant 0 : index
    %c0_53 = arith.constant 0 : index
    %80 = vector.load %arg4[%c0_52, %c0_53] : memref<128x384xf32, #tpu.memory_space<vmem>>, vector<128x384xf32>
    %cst_54 = arith.constant dense<0.000000e+00> : vector<8x384xf32>
    %81 = tpu.matmul %71, %80, %cst_54 {dimension_numbers = #tpu.dot_dimension_numbers<[1], [0], [0], [1], [0, 0, 1, 1], [], []>} : vector<8x128xf32>, vector<128x384xf32>, vector<8x384xf32> -> vector<8x384xf32>
    %82 = vector.extract_strided_slice %79 {offsets = [0, 0], sizes = [8, 128], strides = [1, 1]} : vector<8x384xf32> to vector<8x128xf32>
    %83 = vector.extract_strided_slice %81 {offsets = [0, 0], sizes = [8, 128], strides = [1, 1]} : vector<8x384xf32> to vector<8x128xf32>
    %84 = arith.addf %82, %83 : vector<8x128xf32>
    %85 = arith.negf %84 : vector<8x128xf32>
    %86 = math.exp %85 : vector<8x128xf32>
    %cst_55 = arith.constant 1.000000e+00 : f32
    %87 = vector.broadcast %cst_55 : f32 to vector<8x128xf32>
    %88 = arith.addf %87, %86 : vector<8x128xf32>
    %89 = arith.divf %87, %88 : vector<8x128xf32>
    %90 = vector.extract_strided_slice %79 {offsets = [0, 128], sizes = [8, 128], strides = [1, 1]} : vector<8x384xf32> to vector<8x128xf32>
    %91 = vector.extract_strided_slice %81 {offsets = [0, 128], sizes = [8, 128], strides = [1, 1]} : vector<8x384xf32> to vector<8x128xf32>
    %92 = arith.addf %90, %91 : vector<8x128xf32>
    %93 = arith.negf %92 : vector<8x128xf32>
    %94 = math.exp %93 : vector<8x128xf32>
    %cst_56 = arith.constant 1.000000e+00 : f32
    %95 = vector.broadcast %cst_56 : f32 to vector<8x128xf32>
    %96 = arith.addf %95, %94 : vector<8x128xf32>
    %97 = arith.divf %95, %96 : vector<8x128xf32>
    %98 = vector.extract_strided_slice %79 {offsets = [0, 256], sizes = [8, 128], strides = [1, 1]} : vector<8x384xf32> to vector<8x128xf32>
    %99 = vector.extract_strided_slice %81 {offsets = [0, 256], sizes = [8, 128], strides = [1, 1]} : vector<8x384xf32> to vector<8x128xf32>
    %100 = arith.addf %99, %37 : vector<8x128xf32>
    %101 = arith.mulf %89, %100 : vector<8x128xf32>
    %102 = arith.addf %98, %101 : vector<8x128xf32>
    %103 = math.tanh %102 : vector<8x128xf32>
    %cst_57 = arith.constant 1.000000e+00 : f32
    %104 = vector.broadcast %cst_57 : f32 to vector<8x128xf32>
    %105 = arith.subf %104, %97 : vector<8x128xf32>
    %106 = arith.mulf %105, %103 : vector<8x128xf32>
    %107 = arith.mulf %97, %71 : vector<8x128xf32>
    %108 = arith.addf %106, %107 : vector<8x128xf32>
    %c0_58 = arith.constant 0 : index
    %109 = arith.index_cast %77 : i32 to index
    %c0_59 = arith.constant 0 : index
    %110 = vector.load %arg8[%c0_58, %109, %c0_59] : memref<1x64x128xf32, #tpu.memory_space<vmem>>, vector<1x8x128xf32>
    %111 = vector.shape_cast %110 : vector<1x8x128xf32> to vector<8x128xf32>
    %112 = vector.shape_cast %108 : vector<8x128xf32> to vector<1x8x128xf32>
    tpu.vector_store %arg8[%c0_58, %109, %c0_59], %112 {strides = array<i32>} : memref<1x64x128xf32, #tpu.memory_space<vmem>>, vector<1x8x128xf32>,
    %c2_i32 = arith.constant 2 : i32
    %c8_i32_60 = arith.constant 8 : i32
    %113 = arith.muli %c2_i32, %c8_i32_60 : i32
    %114 = tpu.assume_multiple %113, 8 : i32
    %115 = arith.index_cast %114 : i32 to index
    %c0_61 = arith.constant 0 : index
    %116 = vector.load %arg10[%115, %c0_61] : memref<64x384xf32, #tpu.memory_space<vmem>>, vector<8x384xf32>
    %c0_62 = arith.constant 0 : index
    %c0_63 = arith.constant 0 : index
    %117 = vector.load %arg4[%c0_62, %c0_63] : memref<128x384xf32, #tpu.memory_space<vmem>>, vector<128x384xf32>
    %cst_64 = arith.constant dense<0.000000e+00> : vector<8x384xf32>
    %118 = tpu.matmul %108, %117, %cst_64 {dimension_numbers = #tpu.dot_dimension_numbers<[1], [0], [0], [1], [0, 0, 1, 1], [], []>} : vector<8x128xf32>, vector<128x384xf32>, vector<8x384xf32> -> vector<8x384xf32>
    %119 = vector.extract_strided_slice %116 {offsets = [0, 0], sizes = [8, 128], strides = [1, 1]} : vector<8x384xf32> to vector<8x128xf32>
    %120 = vector.extract_strided_slice %118 {offsets = [0, 0], sizes = [8, 128], strides = [1, 1]} : vector<8x384xf32> to vector<8x128xf32>
    %121 = arith.addf %119, %120 : vector<8x128xf32>
    %122 = arith.negf %121 : vector<8x128xf32>
    %123 = math.exp %122 : vector<8x128xf32>
    %cst_65 = arith.constant 1.000000e+00 : f32
    %124 = vector.broadcast %cst_65 : f32 to vector<8x128xf32>
    %125 = arith.addf %124, %123 : vector<8x128xf32>
    %126 = arith.divf %124, %125 : vector<8x128xf32>
    %127 = vector.extract_strided_slice %116 {offsets = [0, 128], sizes = [8, 128], strides = [1, 1]} : vector<8x384xf32> to vector<8x128xf32>
    %128 = vector.extract_strided_slice %118 {offsets = [0, 128], sizes = [8, 128], strides = [1, 1]} : vector<8x384xf32> to vector<8x128xf32>
    %129 = arith.addf %127, %128 : vector<8x128xf32>
    %130 = arith.negf %129 : vector<8x128xf32>
    %131 = math.exp %130 : vector<8x128xf32>
    %cst_66 = arith.constant 1.000000e+00 : f32
    %132 = vector.broadcast %cst_66 : f32 to vector<8x128xf32>
    %133 = arith.addf %132, %131 : vector<8x128xf32>
    %134 = arith.divf %132, %133 : vector<8x128xf32>
    %135 = vector.extract_strided_slice %116 {offsets = [0, 256], sizes = [8, 128], strides = [1, 1]} : vector<8x384xf32> to vector<8x128xf32>
    %136 = vector.extract_strided_slice %118 {offsets = [0, 256], sizes = [8, 128], strides = [1, 1]} : vector<8x384xf32> to vector<8x128xf32>
    %137 = arith.addf %136, %37 : vector<8x128xf32>
    %138 = arith.mulf %126, %137 : vector<8x128xf32>
    %139 = arith.addf %135, %138 : vector<8x128xf32>
    %140 = math.tanh %139 : vector<8x128xf32>
    %cst_67 = arith.constant 1.000000e+00 : f32
    %141 = vector.broadcast %cst_67 : f32 to vector<8x128xf32>
    %142 = arith.subf %141, %134 : vector<8x128xf32>
    %143 = arith.mulf %142, %140 : vector<8x128xf32>
    %144 = arith.mulf %134, %108 : vector<8x128xf32>
    %145 = arith.addf %143, %144 : vector<8x128xf32>
    %c0_68 = arith.constant 0 : index
    %146 = arith.index_cast %114 : i32 to index
    %c0_69 = arith.constant 0 : index
    %147 = vector.load %arg8[%c0_68, %146, %c0_69] : memref<1x64x128xf32, #tpu.memory_space<vmem>>, vector<1x8x128xf32>
    %148 = vector.shape_cast %147 : vector<1x8x128xf32> to vector<8x128xf32>
    %149 = vector.shape_cast %145 : vector<8x128xf32> to vector<1x8x128xf32>
    tpu.vector_store %arg8[%c0_68, %146, %c0_69], %149 {strides = array<i32>} : memref<1x64x128xf32, #tpu.memory_space<vmem>>, vector<1x8x128xf32>,
    %c3_i32 = arith.constant 3 : i32
    %c8_i32_70 = arith.constant 8 : i32
    %150 = arith.muli %c3_i32, %c8_i32_70 : i32
    %151 = tpu.assume_multiple %150, 8 : i32
    %152 = arith.index_cast %151 : i32 to index
    %c0_71 = arith.constant 0 : index
    %153 = vector.load %arg10[%152, %c0_71] : memref<64x384xf32, #tpu.memory_space<vmem>>, vector<8x384xf32>
    %c0_72 = arith.constant 0 : index
    %c0_73 = arith.constant 0 : index
    %154 = vector.load %arg4[%c0_72, %c0_73] : memref<128x384xf32, #tpu.memory_space<vmem>>, vector<128x384xf32>
    %cst_74 = arith.constant dense<0.000000e+00> : vector<8x384xf32>
    %155 = tpu.matmul %145, %154, %cst_74 {dimension_numbers = #tpu.dot_dimension_numbers<[1], [0], [0], [1], [0, 0, 1, 1], [], []>} : vector<8x128xf32>, vector<128x384xf32>, vector<8x384xf32> -> vector<8x384xf32>
    %156 = vector.extract_strided_slice %153 {offsets = [0, 0], sizes = [8, 128], strides = [1, 1]} : vector<8x384xf32> to vector<8x128xf32>
    %157 = vector.extract_strided_slice %155 {offsets = [0, 0], sizes = [8, 128], strides = [1, 1]} : vector<8x384xf32> to vector<8x128xf32>
    %158 = arith.addf %156, %157 : vector<8x128xf32>
    %159 = arith.negf %158 : vector<8x128xf32>
    %160 = math.exp %159 : vector<8x128xf32>
    %cst_75 = arith.constant 1.000000e+00 : f32
    %161 = vector.broadcast %cst_75 : f32 to vector<8x128xf32>
    %162 = arith.addf %161, %160 : vector<8x128xf32>
    %163 = arith.divf %161, %162 : vector<8x128xf32>
    %164 = vector.extract_strided_slice %153 {offsets = [0, 128], sizes = [8, 128], strides = [1, 1]} : vector<8x384xf32> to vector<8x128xf32>
    %165 = vector.extract_strided_slice %155 {offsets = [0, 128], sizes = [8, 128], strides = [1, 1]} : vector<8x384xf32> to vector<8x128xf32>
    %166 = arith.addf %164, %165 : vector<8x128xf32>
    %167 = arith.negf %166 : vector<8x128xf32>
    %168 = math.exp %167 : vector<8x128xf32>
    %cst_76 = arith.constant 1.000000e+00 : f32
    %169 = vector.broadcast %cst_76 : f32 to vector<8x128xf32>
    %170 = arith.addf %169, %168 : vector<8x128xf32>
    %171 = arith.divf %169, %170 : vector<8x128xf32>
    %172 = vector.extract_strided_slice %153 {offsets = [0, 256], sizes = [8, 128], strides = [1, 1]} : vector<8x384xf32> to vector<8x128xf32>
    %173 = vector.extract_strided_slice %155 {offsets = [0, 256], sizes = [8, 128], strides = [1, 1]} : vector<8x384xf32> to vector<8x128xf32>
    %174 = arith.addf %173, %37 : vector<8x128xf32>
    %175 = arith.mulf %163, %174 : vector<8x128xf32>
    %176 = arith.addf %172, %175 : vector<8x128xf32>
    %177 = math.tanh %176 : vector<8x128xf32>
    %cst_77 = arith.constant 1.000000e+00 : f32
    %178 = vector.broadcast %cst_77 : f32 to vector<8x128xf32>
    %179 = arith.subf %178, %171 : vector<8x128xf32>
    %180 = arith.mulf %179, %177 : vector<8x128xf32>
    %181 = arith.mulf %171, %145 : vector<8x128xf32>
    %182 = arith.addf %180, %181 : vector<8x128xf32>
    %c0_78 = arith.constant 0 : index
    %183 = arith.index_cast %151 : i32 to index
    %c0_79 = arith.constant 0 : index
    %184 = vector.load %arg8[%c0_78, %183, %c0_79] : memref<1x64x128xf32, #tpu.memory_space<vmem>>, vector<1x8x128xf32>
    %185 = vector.shape_cast %184 : vector<1x8x128xf32> to vector<8x128xf32>
    %186 = vector.shape_cast %182 : vector<8x128xf32> to vector<1x8x128xf32>
    tpu.vector_store %arg8[%c0_78, %183, %c0_79], %186 {strides = array<i32>} : memref<1x64x128xf32, #tpu.memory_space<vmem>>, vector<1x8x128xf32>,
    %c4_i32 = arith.constant 4 : i32
    %c8_i32_80 = arith.constant 8 : i32
    %187 = arith.muli %c4_i32, %c8_i32_80 : i32
    %188 = tpu.assume_multiple %187, 8 : i32
    %189 = arith.index_cast %188 : i32 to index
    %c0_81 = arith.constant 0 : index
    %190 = vector.load %arg10[%189, %c0_81] : memref<64x384xf32, #tpu.memory_space<vmem>>, vector<8x384xf32>
    %c0_82 = arith.constant 0 : index
    %c0_83 = arith.constant 0 : index
    %191 = vector.load %arg4[%c0_82, %c0_83] : memref<128x384xf32, #tpu.memory_space<vmem>>, vector<128x384xf32>
    %cst_84 = arith.constant dense<0.000000e+00> : vector<8x384xf32>
    %192 = tpu.matmul %182, %191, %cst_84 {dimension_numbers = #tpu.dot_dimension_numbers<[1], [0], [0], [1], [0, 0, 1, 1], [], []>} : vector<8x128xf32>, vector<128x384xf32>, vector<8x384xf32> -> vector<8x384xf32>
    %193 = vector.extract_strided_slice %190 {offsets = [0, 0], sizes = [8, 128], strides = [1, 1]} : vector<8x384xf32> to vector<8x128xf32>
    %194 = vector.extract_strided_slice %192 {offsets = [0, 0], sizes = [8, 128], strides = [1, 1]} : vector<8x384xf32> to vector<8x128xf32>
    %195 = arith.addf %193, %194 : vector<8x128xf32>
    %196 = arith.negf %195 : vector<8x128xf32>
    %197 = math.exp %196 : vector<8x128xf32>
    %cst_85 = arith.constant 1.000000e+00 : f32
    %198 = vector.broadcast %cst_85 : f32 to vector<8x128xf32>
    %199 = arith.addf %198, %197 : vector<8x128xf32>
    %200 = arith.divf %198, %199 : vector<8x128xf32>
    %201 = vector.extract_strided_slice %190 {offsets = [0, 128], sizes = [8, 128], strides = [1, 1]} : vector<8x384xf32> to vector<8x128xf32>
    %202 = vector.extract_strided_slice %192 {offsets = [0, 128], sizes = [8, 128], strides = [1, 1]} : vector<8x384xf32> to vector<8x128xf32>
    %203 = arith.addf %201, %202 : vector<8x128xf32>
    %204 = arith.negf %203 : vector<8x128xf32>
    %205 = math.exp %204 : vector<8x128xf32>
    %cst_86 = arith.constant 1.000000e+00 : f32
    %206 = vector.broadcast %cst_86 : f32 to vector<8x128xf32>
    %207 = arith.addf %206, %205 : vector<8x128xf32>
    %208 = arith.divf %206, %207 : vector<8x128xf32>
    %209 = vector.extract_strided_slice %190 {offsets = [0, 256], sizes = [8, 128], strides = [1, 1]} : vector<8x384xf32> to vector<8x128xf32>
    %210 = vector.extract_strided_slice %192 {offsets = [0, 256], sizes = [8, 128], strides = [1, 1]} : vector<8x384xf32> to vector<8x128xf32>
    %211 = arith.addf %210, %37 : vector<8x128xf32>
    %212 = arith.mulf %200, %211 : vector<8x128xf32>
    %213 = arith.addf %209, %212 : vector<8x128xf32>
    %214 = math.tanh %213 : vector<8x128xf32>
    %cst_87 = arith.constant 1.000000e+00 : f32
    %215 = vector.broadcast %cst_87 : f32 to vector<8x128xf32>
    %216 = arith.subf %215, %208 : vector<8x128xf32>
    %217 = arith.mulf %216, %214 : vector<8x128xf32>
    %218 = arith.mulf %208, %182 : vector<8x128xf32>
    %219 = arith.addf %217, %218 : vector<8x128xf32>
    %c0_88 = arith.constant 0 : index
    %220 = arith.index_cast %188 : i32 to index
    %c0_89 = arith.constant 0 : index
    %221 = vector.load %arg8[%c0_88, %220, %c0_89] : memref<1x64x128xf32, #tpu.memory_space<vmem>>, vector<1x8x128xf32>
    %222 = vector.shape_cast %221 : vector<1x8x128xf32> to vector<8x128xf32>
    %223 = vector.shape_cast %219 : vector<8x128xf32> to vector<1x8x128xf32>
    tpu.vector_store %arg8[%c0_88, %220, %c0_89], %223 {strides = array<i32>} : memref<1x64x128xf32, #tpu.memory_space<vmem>>, vector<1x8x128xf32>,
    %c5_i32 = arith.constant 5 : i32
    %c8_i32_90 = arith.constant 8 : i32
    %224 = arith.muli %c5_i32, %c8_i32_90 : i32
    %225 = tpu.assume_multiple %224, 8 : i32
    %226 = arith.index_cast %225 : i32 to index
    %c0_91 = arith.constant 0 : index
    %227 = vector.load %arg10[%226, %c0_91] : memref<64x384xf32, #tpu.memory_space<vmem>>, vector<8x384xf32>
    %c0_92 = arith.constant 0 : index
    %c0_93 = arith.constant 0 : index
    %228 = vector.load %arg4[%c0_92, %c0_93] : memref<128x384xf32, #tpu.memory_space<vmem>>, vector<128x384xf32>
    %cst_94 = arith.constant dense<0.000000e+00> : vector<8x384xf32>
    %229 = tpu.matmul %219, %228, %cst_94 {dimension_numbers = #tpu.dot_dimension_numbers<[1], [0], [0], [1], [0, 0, 1, 1], [], []>} : vector<8x128xf32>, vector<128x384xf32>, vector<8x384xf32> -> vector<8x384xf32>
    %230 = vector.extract_strided_slice %227 {offsets = [0, 0], sizes = [8, 128], strides = [1, 1]} : vector<8x384xf32> to vector<8x128xf32>
    %231 = vector.extract_strided_slice %229 {offsets = [0, 0], sizes = [8, 128], strides = [1, 1]} : vector<8x384xf32> to vector<8x128xf32>
    %232 = arith.addf %230, %231 : vector<8x128xf32>
    %233 = arith.negf %232 : vector<8x128xf32>
    %234 = math.exp %233 : vector<8x128xf32>
    %cst_95 = arith.constant 1.000000e+00 : f32
    %235 = vector.broadcast %cst_95 : f32 to vector<8x128xf32>
    %236 = arith.addf %235, %234 : vector<8x128xf32>
    %237 = arith.divf %235, %236 : vector<8x128xf32>
    %238 = vector.extract_strided_slice %227 {offsets = [0, 128], sizes = [8, 128], strides = [1, 1]} : vector<8x384xf32> to vector<8x128xf32>
    %239 = vector.extract_strided_slice %229 {offsets = [0, 128], sizes = [8, 128], strides = [1, 1]} : vector<8x384xf32> to vector<8x128xf32>
    %240 = arith.addf %238, %239 : vector<8x128xf32>
    %241 = arith.negf %240 : vector<8x128xf32>
    %242 = math.exp %241 : vector<8x128xf32>
    %cst_96 = arith.constant 1.000000e+00 : f32
    %243 = vector.broadcast %cst_96 : f32 to vector<8x128xf32>
    %244 = arith.addf %243, %242 : vector<8x128xf32>
    %245 = arith.divf %243, %244 : vector<8x128xf32>
    %246 = vector.extract_strided_slice %227 {offsets = [0, 256], sizes = [8, 128], strides = [1, 1]} : vector<8x384xf32> to vector<8x128xf32>
    %247 = vector.extract_strided_slice %229 {offsets = [0, 256], sizes = [8, 128], strides = [1, 1]} : vector<8x384xf32> to vector<8x128xf32>
    %248 = arith.addf %247, %37 : vector<8x128xf32>
    %249 = arith.mulf %237, %248 : vector<8x128xf32>
    %250 = arith.addf %246, %249 : vector<8x128xf32>
    %251 = math.tanh %250 : vector<8x128xf32>
    %cst_97 = arith.constant 1.000000e+00 : f32
    %252 = vector.broadcast %cst_97 : f32 to vector<8x128xf32>
    %253 = arith.subf %252, %245 : vector<8x128xf32>
    %254 = arith.mulf %253, %251 : vector<8x128xf32>
    %255 = arith.mulf %245, %219 : vector<8x128xf32>
    %256 = arith.addf %254, %255 : vector<8x128xf32>
    %c0_98 = arith.constant 0 : index
    %257 = arith.index_cast %225 : i32 to index
    %c0_99 = arith.constant 0 : index
    %258 = vector.load %arg8[%c0_98, %257, %c0_99] : memref<1x64x128xf32, #tpu.memory_space<vmem>>, vector<1x8x128xf32>
    %259 = vector.shape_cast %258 : vector<1x8x128xf32> to vector<8x128xf32>
    %260 = vector.shape_cast %256 : vector<8x128xf32> to vector<1x8x128xf32>
    tpu.vector_store %arg8[%c0_98, %257, %c0_99], %260 {strides = array<i32>} : memref<1x64x128xf32, #tpu.memory_space<vmem>>, vector<1x8x128xf32>,
    %c6_i32 = arith.constant 6 : i32
    %c8_i32_100 = arith.constant 8 : i32
    %261 = arith.muli %c6_i32, %c8_i32_100 : i32
    %262 = tpu.assume_multiple %261, 8 : i32
    %263 = arith.index_cast %262 : i32 to index
    %c0_101 = arith.constant 0 : index
    %264 = vector.load %arg10[%263, %c0_101] : memref<64x384xf32, #tpu.memory_space<vmem>>, vector<8x384xf32>
    %c0_102 = arith.constant 0 : index
    %c0_103 = arith.constant 0 : index
    %265 = vector.load %arg4[%c0_102, %c0_103] : memref<128x384xf32, #tpu.memory_space<vmem>>, vector<128x384xf32>
    %cst_104 = arith.constant dense<0.000000e+00> : vector<8x384xf32>
    %266 = tpu.matmul %256, %265, %cst_104 {dimension_numbers = #tpu.dot_dimension_numbers<[1], [0], [0], [1], [0, 0, 1, 1], [], []>} : vector<8x128xf32>, vector<128x384xf32>, vector<8x384xf32> -> vector<8x384xf32>
    %267 = vector.extract_strided_slice %264 {offsets = [0, 0], sizes = [8, 128], strides = [1, 1]} : vector<8x384xf32> to vector<8x128xf32>
    %268 = vector.extract_strided_slice %266 {offsets = [0, 0], sizes = [8, 128], strides = [1, 1]} : vector<8x384xf32> to vector<8x128xf32>
    %269 = arith.addf %267, %268 : vector<8x128xf32>
    %270 = arith.negf %269 : vector<8x128xf32>
    %271 = math.exp %270 : vector<8x128xf32>
    %cst_105 = arith.constant 1.000000e+00 : f32
    %272 = vector.broadcast %cst_105 : f32 to vector<8x128xf32>
    %273 = arith.addf %272, %271 : vector<8x128xf32>
    %274 = arith.divf %272, %273 : vector<8x128xf32>
    %275 = vector.extract_strided_slice %264 {offsets = [0, 128], sizes = [8, 128], strides = [1, 1]} : vector<8x384xf32> to vector<8x128xf32>
    %276 = vector.extract_strided_slice %266 {offsets = [0, 128], sizes = [8, 128], strides = [1, 1]} : vector<8x384xf32> to vector<8x128xf32>
    %277 = arith.addf %275, %276 : vector<8x128xf32>
    %278 = arith.negf %277 : vector<8x128xf32>
    %279 = math.exp %278 : vector<8x128xf32>
    %cst_106 = arith.constant 1.000000e+00 : f32
    %280 = vector.broadcast %cst_106 : f32 to vector<8x128xf32>
    %281 = arith.addf %280, %279 : vector<8x128xf32>
    %282 = arith.divf %280, %281 : vector<8x128xf32>
    %283 = vector.extract_strided_slice %264 {offsets = [0, 256], sizes = [8, 128], strides = [1, 1]} : vector<8x384xf32> to vector<8x128xf32>
    %284 = vector.extract_strided_slice %266 {offsets = [0, 256], sizes = [8, 128], strides = [1, 1]} : vector<8x384xf32> to vector<8x128xf32>
    %285 = arith.addf %284, %37 : vector<8x128xf32>
    %286 = arith.mulf %274, %285 : vector<8x128xf32>
    %287 = arith.addf %283, %286 : vector<8x128xf32>
    %288 = math.tanh %287 : vector<8x128xf32>
    %cst_107 = arith.constant 1.000000e+00 : f32
    %289 = vector.broadcast %cst_107 : f32 to vector<8x128xf32>
    %290 = arith.subf %289, %282 : vector<8x128xf32>
    %291 = arith.mulf %290, %288 : vector<8x128xf32>
    %292 = arith.mulf %282, %256 : vector<8x128xf32>
    %293 = arith.addf %291, %292 : vector<8x128xf32>
    %c0_108 = arith.constant 0 : index
    %294 = arith.index_cast %262 : i32 to index
    %c0_109 = arith.constant 0 : index
    %295 = vector.load %arg8[%c0_108, %294, %c0_109] : memref<1x64x128xf32, #tpu.memory_space<vmem>>, vector<1x8x128xf32>
    %296 = vector.shape_cast %295 : vector<1x8x128xf32> to vector<8x128xf32>
    %297 = vector.shape_cast %293 : vector<8x128xf32> to vector<1x8x128xf32>
    tpu.vector_store %arg8[%c0_108, %294, %c0_109], %297 {strides = array<i32>} : memref<1x64x128xf32, #tpu.memory_space<vmem>>, vector<1x8x128xf32>,
    %c7_i32 = arith.constant 7 : i32
    %c8_i32_110 = arith.constant 8 : i32
    %298 = arith.muli %c7_i32, %c8_i32_110 : i32
    %299 = tpu.assume_multiple %298, 8 : i32
    %300 = arith.index_cast %299 : i32 to index
    %c0_111 = arith.constant 0 : index
    %301 = vector.load %arg10[%300, %c0_111] : memref<64x384xf32, #tpu.memory_space<vmem>>, vector<8x384xf32>
    %c0_112 = arith.constant 0 : index
    %c0_113 = arith.constant 0 : index
    %302 = vector.load %arg4[%c0_112, %c0_113] : memref<128x384xf32, #tpu.memory_space<vmem>>, vector<128x384xf32>
    %cst_114 = arith.constant dense<0.000000e+00> : vector<8x384xf32>
    %303 = tpu.matmul %293, %302, %cst_114 {dimension_numbers = #tpu.dot_dimension_numbers<[1], [0], [0], [1], [0, 0, 1, 1], [], []>} : vector<8x128xf32>, vector<128x384xf32>, vector<8x384xf32> -> vector<8x384xf32>
    %304 = vector.extract_strided_slice %301 {offsets = [0, 0], sizes = [8, 128], strides = [1, 1]} : vector<8x384xf32> to vector<8x128xf32>
    %305 = vector.extract_strided_slice %303 {offsets = [0, 0], sizes = [8, 128], strides = [1, 1]} : vector<8x384xf32> to vector<8x128xf32>
    %306 = arith.addf %304, %305 : vector<8x128xf32>
    %307 = arith.negf %306 : vector<8x128xf32>
    %308 = math.exp %307 : vector<8x128xf32>
    %cst_115 = arith.constant 1.000000e+00 : f32
    %309 = vector.broadcast %cst_115 : f32 to vector<8x128xf32>
    %310 = arith.addf %309, %308 : vector<8x128xf32>
    %311 = arith.divf %309, %310 : vector<8x128xf32>
    %312 = vector.extract_strided_slice %301 {offsets = [0, 128], sizes = [8, 128], strides = [1, 1]} : vector<8x384xf32> to vector<8x128xf32>
    %313 = vector.extract_strided_slice %303 {offsets = [0, 128], sizes = [8, 128], strides = [1, 1]} : vector<8x384xf32> to vector<8x128xf32>
    %314 = arith.addf %312, %313 : vector<8x128xf32>
    %315 = arith.negf %314 : vector<8x128xf32>
    %316 = math.exp %315 : vector<8x128xf32>
    %cst_116 = arith.constant 1.000000e+00 : f32
    %317 = vector.broadcast %cst_116 : f32 to vector<8x128xf32>
    %318 = arith.addf %317, %316 : vector<8x128xf32>
    %319 = arith.divf %317, %318 : vector<8x128xf32>
    %320 = vector.extract_strided_slice %301 {offsets = [0, 256], sizes = [8, 128], strides = [1, 1]} : vector<8x384xf32> to vector<8x128xf32>
    %321 = vector.extract_strided_slice %303 {offsets = [0, 256], sizes = [8, 128], strides = [1, 1]} : vector<8x384xf32> to vector<8x128xf32>
    %322 = arith.addf %321, %37 : vector<8x128xf32>
    %323 = arith.mulf %311, %322 : vector<8x128xf32>
    %324 = arith.addf %320, %323 : vector<8x128xf32>
    %325 = math.tanh %324 : vector<8x128xf32>
    %cst_117 = arith.constant 1.000000e+00 : f32
    %326 = vector.broadcast %cst_117 : f32 to vector<8x128xf32>
    %327 = arith.subf %326, %319 : vector<8x128xf32>
    %328 = arith.mulf %327, %325 : vector<8x128xf32>
    %329 = arith.mulf %319, %293 : vector<8x128xf32>
    %330 = arith.addf %328, %329 : vector<8x128xf32>
    %c0_118 = arith.constant 0 : index
    %331 = arith.index_cast %299 : i32 to index
    %c0_119 = arith.constant 0 : index
    %332 = vector.load %arg8[%c0_118, %331, %c0_119] : memref<1x64x128xf32, #tpu.memory_space<vmem>>, vector<1x8x128xf32>
    %333 = vector.shape_cast %332 : vector<1x8x128xf32> to vector<8x128xf32>
    %334 = vector.shape_cast %330 : vector<8x128xf32> to vector<1x8x128xf32>
    tpu.vector_store %arg8[%c0_118, %331, %c0_119], %334 {strides = array<i32>} : memref<1x64x128xf32, #tpu.memory_space<vmem>>, vector<1x8x128xf32>,
    %c8_i32_120 = arith.constant 8 : i32
    %c0_121 = arith.constant 0 : index
    %c0_122 = arith.constant 0 : index
    %335 = vector.load %arg9[%c0_121, %c0_122] : memref<8x128xf32, #tpu.memory_space<vmem>>, vector<8x128xf32>
    tpu.vector_store %arg9[%c0_121, %c0_122], %330 {strides = array<i32>} : memref<8x128xf32, #tpu.memory_space<vmem>>, vector<8x128xf32>,
    return
  }
  func.func @transform_0(%arg0: i32, %arg1: i32) -> (i32, i32, i32) {
    %c0_i32 = arith.constant 0 : i32
    %c0_i32_0 = arith.constant 0 : i32
    return %arg0, %arg1, %c0_i32 : i32, i32, i32
  }
  func.func @transform_1(%arg0: i32, %arg1: i32) -> (i32, i32) {
    %c0_i32 = arith.constant 0 : i32
    %c0_i32_0 = arith.constant 0 : i32
    %c0_i32_1 = arith.constant 0 : i32
    return %c0_i32, %c0_i32_0 : i32, i32
  }
  func.func @transform_2(%arg0: i32, %arg1: i32) -> (i32, i32) {
    %c0_i32 = arith.constant 0 : i32
    %c0_i32_0 = arith.constant 0 : i32
    %c0_i32_1 = arith.constant 0 : i32
    return %c0_i32, %c0_i32_0 : i32, i32
  }
  func.func @transform_3(%arg0: i32, %arg1: i32) -> (i32, i32) {
    %c0_i32 = arith.constant 0 : i32
    %c0_i32_0 = arith.constant 0 : i32
    %c0_i32_1 = arith.constant 0 : i32
    return %c0_i32, %c0_i32_0 : i32, i32
  }
  func.func @transform_4(%arg0: i32, %arg1: i32) -> (i32, i32) {
    %c0_i32 = arith.constant 0 : i32
    %c0_i32_0 = arith.constant 0 : i32
    %c0_i32_1 = arith.constant 0 : i32
    return %c0_i32, %c0_i32_0 : i32, i32
  }
  func.func @transform_5(%arg0: i32, %arg1: i32) -> (i32, i32, i32) {
    %c0_i32 = arith.constant 0 : i32
    %c0_i32_0 = arith.constant 0 : i32
    %c0_i32_1 = arith.constant 0 : i32
    return %arg0, %c0_i32, %c0_i32_0 : i32, i32, i32
  }
  func.func @transform_6(%arg0: i32, %arg1: i32) -> (i32, i32, i32) {
    %c0_i32 = arith.constant 0 : i32
    %c0_i32_0 = arith.constant 0 : i32
    return %arg0, %arg1, %c0_i32 : i32, i32, i32
  }
}

</mosaic_0001>

<llo_original>
// kernel: tpu_custom_call.1
$region0: #{tpu_custom_call.1}
  #allocation0 [shape = 'u32[]', space=smem, size = 0x4, offset = 0x4, fixed_abs, tag = 'smem constant byte address 0x4 - core index']
  #allocation1 [shape = 'u32[144,128]{1,0:T(1,128)}', space=vmem, size = 0x12000, scoped, tag = 'internal scratch']
  %s0 = inlined_call_operand.hbm [shape: f32[8,128], index: 0, kind: input, shape index: {}]
  %s1 = inlined_call_operand.hbm [shape: f32[8,128], index: 1, kind: output, shape index: {}]
  %s2 = sld [smem:[#allocation0]]
  $region18: #{tpu_custom_call.1} parent=0
    _
  %s4 = ssub.s32 1, %s2
  %s5 = scalar_select 0, %s4, %s2
  $region1: #{tpu_custom_call.1} parent=0
    #allocation2 [shape = 'u8[4096]{0}', space=vmem, size = 0x1000, scoped, tag = 'input window, operand 0, single buffered']
    #allocation3 [shape = 's32[1]{0}', space=sflag, size = 0x4, scoped, tag = 'scoped memory for tpu_custom_call.1']
    #allocation4 [shape = 's32[1]{0}', space=sflag, size = 0x4, scoped, tag = 'scoped memory for tpu_custom_call.1']
    #allocation5 [shape = 'u8[4096]{0}', space=vmem, size = 0x1000, scoped, tag = 'output window, operand 0, single buffered']
    %6 = vsyncpa [#allocation3], 0
    %7 = vsyncpa [#allocation4], 0
    // Predicated region
    $region2: #{tpu_custom_call.1} parent=1 // pred_check
      _
    $region3: #{tpu_custom_call.1} parent=1 // pred_check_branch
      %9 = sbr.rel (0) target = $region5
    $region4: #{tpu_custom_call.1} parent=1 // pred_region
      %s11 = ssub.s32 128, 128
      %12 = vsyncadd [#allocation3], %s11
      %s14 = sshll.u32 [#allocation2], 4
      %s15 = int_to_ptr.vmem [resolvable:$true] %s14
      %17 = dma.hbm_to_vmem [thread:$0]  %s0, 128, %s15, [#allocation3]
    $region5: #{tpu_custom_call.1} parent=1 // pred_fallthru
      _
    // Predicated region
    $region6: #{tpu_custom_call.1} parent=1 // pred_check
      _
    $region7: #{tpu_custom_call.1} parent=1 // pred_check_branch
      %19 = sbr.rel (0) target = $region9
    $region8: #{tpu_custom_call.1} parent=1 // pred_region
      %20 = dma.done [#allocation3], 128
    $region9: #{tpu_custom_call.1} parent=1 // pred_fallthru
      _
    %v21 = vld [vmem:[#allocation2] sm:$0xff]
    %22 = vst [vmem:[#allocation5] sm:$0xff] %v21
    // Predicated region
    $region10: #{tpu_custom_call.1} parent=1 // pred_check
      _
    $region11: #{tpu_custom_call.1} parent=1 // pred_check_branch
      %24 = sbr.rel (0) target = $region13
    $region12: #{tpu_custom_call.1} parent=1 // pred_region
      %s26 = ssub.s32 128, 128
      %27 = vsyncadd [#allocation4], %s26
      %s29 = sshll.u32 [#allocation5], 4
      %s30 = int_to_ptr.vmem [resolvable:$true] %s29
      %32 = dma.vmem_to_hbm [thread:$0]  %s30, 128, %s1, [#allocation4]
    $region13: #{tpu_custom_call.1} parent=1 // pred_fallthru
      _
    // Predicated region
    $region14: #{tpu_custom_call.1} parent=1 // pred_check
      _
    $region15: #{tpu_custom_call.1} parent=1 // pred_check_branch
      %34 = sbr.rel (0) target = $region17
    $region16: #{tpu_custom_call.1} parent=1 // pred_region
      %35 = dma.done [#allocation4], 128
    $region17: #{tpu_custom_call.1} parent=1 // pred_fallthru
      _
    %36 = vsyncpa [#allocation3], 1
    %37 = vsyncpa [#allocation4], 1

// kernel: flow_gru_forward.2
$region0: #{flow_gru_forward.2}
  #allocation0 [shape = 'u32[]', space=smem, size = 0x4, offset = 0x4, fixed_abs, tag = 'smem constant byte address 0x4 - core index']
  #allocation1 [shape = 'u32[144,128]{1,0:T(1,128)}', space=vmem, size = 0x12000, scoped, tag = 'internal scratch']
  #allocation2 [shape = 'f32[8,128]{1,0:T(8,128)}', space=vmem, size = 0x1000, scoped, tag = 'scratch operand']
  #allocation3 [shape = 'f32[64,384]{1,0:T(8,128)}', space=vmem, size = 0x18000, scoped, tag = 'scratch operand']
  %s0 = inlined_call_operand.vmem [shape: f32[1,64,4], index: 0, kind: input, shape index: {}]
  %s1 = inlined_call_operand.hbm [shape: f32[4,384], index: 1, kind: input, shape index: {}]
  %s2 = inlined_call_operand.hbm [shape: f32[128,384], index: 2, kind: input, shape index: {}]
  %s3 = inlined_call_operand.hbm [shape: f32[1,384], index: 3, kind: input, shape index: {}]
  %s4 = inlined_call_operand.hbm [shape: f32[1,128], index: 4, kind: input, shape index: {}]
  %s5 = inlined_call_operand.vmem [shape: f32[1,8,128], index: 5, kind: input, shape index: {}]
  %s6 = inlined_call_operand.vmem [shape: f32[1,64,128], index: 6, kind: output, shape index: {}]
  %s7 = sld [smem:[#allocation0]]
  $region54: #{flow_gru_forward.2} parent=0
    _
  %s9 = ssub.s32 1, %s7
  %s10 = scalar_select 0, %s9, %s7
  $region1: #{flow_gru_forward.2} parent=0
    #allocation4 [shape = 'u8[6144]{0}', space=vmem, size = 0x1800, scoped, tag = 'input window, operand 1, single buffered']
    #allocation5 [shape = 's32[1]{0}', space=sflag, size = 0x4, scoped, tag = 'scoped memory for flow_gru_forward.2']
    #allocation6 [shape = 'u8[196608]{0}', space=vmem, size = 0x30000, scoped, tag = 'input window, operand 2, single buffered']
    #allocation7 [shape = 's32[1]{0}', space=sflag, size = 0x4, scoped, tag = 'scoped memory for flow_gru_forward.2']
    #allocation8 [shape = 'u8[1536]{0}', space=vmem, size = 0x800, scoped, tag = 'input window, operand 3, single buffered']
    #allocation9 [shape = 'u8[512]{0}', space=vmem, size = 0x400, scoped, tag = 'input window, operand 4, single buffered']
    #allocation10 [shape = 's32[1]{0}', space=sflag, size = 0x4, scoped, tag = 'scoped memory for flow_gru_forward.2']
    %11 = vsyncpa [#allocation5], 0
    %12 = vsyncpa [#allocation7], 0
    %13 = vsyncpa [#allocation10], 0
    // Predicated region
    $region2: #{flow_gru_forward.2} parent=1 // pred_check
      _
    $region3: #{flow_gru_forward.2} parent=1 // pred_check_branch
      %15 = sbr.rel (0) target = $region5
    $region4: #{flow_gru_forward.2} parent=1 // pred_region
      _
    $region5: #{flow_gru_forward.2} parent=1 // pred_fallthru
      _
    // Predicated region
    $region6: #{flow_gru_forward.2} parent=1 // pred_check
      _
    $region7: #{flow_gru_forward.2} parent=1 // pred_check_branch
      %17 = sbr.rel (0) target = $region9
    $region8: #{flow_gru_forward.2} parent=1 // pred_region
      %s19 = ssub.s32 192, 192
      %20 = vsyncadd [#allocation5], %s19
      %s22 = sshll.u32 [#allocation4], 4
      %s23 = int_to_ptr.vmem [resolvable:$true] %s22
      %25 = dma.hbm_to_vmem [thread:$0]  %s1, 192, %s23, [#allocation5]
    $region9: #{flow_gru_forward.2} parent=1 // pred_fallthru
      _
    // Predicated region
    $region10: #{flow_gru_forward.2} parent=1 // pred_check
      _
    $region11: #{flow_gru_forward.2} parent=1 // pred_check_branch
      %27 = sbr.rel (0) target = $region13
    $region12: #{flow_gru_forward.2} parent=1 // pred_region
      %s29 = ssub.s32 6144, 6144
      %30 = vsyncadd [#allocation7], %s29
      %s31 = sshll.u32 [#allocation6], 4
      %s32 = int_to_ptr.vmem [resolvable:$true] %s31
      %37 = dma.hbm_to_vmem [thread:$0]  %s2, 6144, %s32, [#allocation7], 384, 384, 24
    $region13: #{flow_gru_forward.2} parent=1 // pred_fallthru
      _
    // Predicated region
    $region14: #{flow_gru_forward.2} parent=1 // pred_check
      _
    $region15: #{flow_gru_forward.2} parent=1 // pred_check_branch
      %39 = sbr.rel (0) target = $region17
    $region16: #{flow_gru_forward.2} parent=1 // pred_region
      %s41 = ssub.s32 48, 48
      %42 = vsyncadd [#allocation7], %s41
      %s44 = sshll.u32 [#allocation8], 4
      %s45 = int_to_ptr.vmem [resolvable:$true] %s44
      %47 = dma.hbm_to_vmem [thread:$0]  %s3, 48, %s45, [#allocation7]
    $region17: #{flow_gru_forward.2} parent=1 // pred_fallthru
      _
    // Predicated region
    $region18: #{flow_gru_forward.2} parent=1 // pred_check
      _
    $region19: #{flow_gru_forward.2} parent=1 // pred_check_branch
      %49 = sbr.rel (0) target = $region21
    $region20: #{flow_gru_forward.2} parent=1 // pred_region
      %s51 = ssub.s32 16, 16
      %52 = vsyncadd [#allocation10], %s51
      %s54 = sshll.u32 [#allocation9], 4
      %s55 = int_to_ptr.vmem [resolvable:$true] %s54
      %57 = dma.hbm_to_vmem [thread:$0]  %s4, 16, %s55, [#allocation10]
    $region21: #{flow_gru_forward.2} parent=1 // pred_fallthru
      _
    // Predicated region
    $region22: #{flow_gru_forward.2} parent=1 // pred_check
      _
    $region23: #{flow_gru_forward.2} parent=1 // pred_check_branch
      %59 = sbr.rel (0) target = $region25
    $region24: #{flow_gru_forward.2} parent=1 // pred_region
      _
    $region25: #{flow_gru_forward.2} parent=1 // pred_fallthru
      _
    // Predicated region
    $region26: #{flow_gru_forward.2} parent=1 // pred_check
      _
    $region27: #{flow_gru_forward.2} parent=1 // pred_check_branch
      %61 = sbr.rel (0) target = $region29
    $region28: #{flow_gru_forward.2} parent=1 // pred_region
      %62 = dma.done [#allocation5], 192
    $region29: #{flow_gru_forward.2} parent=1 // pred_fallthru
      _
    // Predicated region
    $region30: #{flow_gru_forward.2} parent=1 // pred_check
      _
    $region31: #{flow_gru_forward.2} parent=1 // pred_check_branch
      %64 = sbr.rel (0) target = $region33
    $region32: #{flow_gru_forward.2} parent=1 // pred_region
      %65 = dma.done [#allocation7], 6144
    $region33: #{flow_gru_forward.2} parent=1 // pred_fallthru
      _
    // Predicated region
    $region34: #{flow_gru_forward.2} parent=1 // pred_check
      _
    $region35: #{flow_gru_forward.2} parent=1 // pred_check_branch
      %67 = sbr.rel (0) target = $region37
    $region36: #{flow_gru_forward.2} parent=1 // pred_region
      %68 = dma.done [#allocation7], 48
    $region37: #{flow_gru_forward.2} parent=1 // pred_fallthru
      _
    // Predicated region
    $region38: #{flow_gru_forward.2} parent=1 // pred_check
      _
    $region39: #{flow_gru_forward.2} parent=1 // pred_check_branch
      %70 = sbr.rel (0) target = $region41
    $region40: #{flow_gru_forward.2} parent=1 // pred_region
      %71 = dma.done [#allocation10], 16
    $region41: #{flow_gru_forward.2} parent=1 // pred_fallthru
      _
    %p72 = scmp.eq.s32.totalorder 0, 0
    // Predicated region
    $region42: #{flow_gru_forward.2} parent=1 // pred_check
      %p73 = pneg %p72
    $region43: #{flow_gru_forward.2} parent=1 // pred_check_branch
      %75 = sbr.rel (%p73) target = $region45
    $region44: #{flow_gru_forward.2} parent=1 // pred_region
      %v76 = vld [vmem:[%s5] sm:$0xff]
      %77 = vst [vmem:[#allocation2] sm:$0xff] %v76
    $region45: #{flow_gru_forward.2} parent=1 // pred_fallthru
      _
    %v78 = vld [vmem:[%s0] sm:$0xff]
    %v79 = vld [vmem:[%s0 + $0x8] sm:$0xff]
    %v80 = vld [vmem:[#allocation4] sm:$0xff]
    %v81 = vld [vmem:[#allocation4 + $0x8] sm:$0xf]
    %v82 = vld [vmem:[#allocation8] sm:$0x7]
    %v84 = vlaneseq
    %v85 = vshrl.u32 %v84, 7
    %v86 = vsub.s32 0, %v85
    %v87 = vrot.slane %v82, %v86
    %v88 = vlaneseq
    %v89 = vshrl.u32 %v88, 7
    %v90 = vsub.s32 1, %v89
    %v91 = vrot.slane %v82, %v90
    %v92 = vlaneseq
    %v93 = vshrl.u32 %v92, 7
    %v94 = vsub.s32 2, %v93
    %v95 = vrot.slane %v82, %v94
    %v101 = vcombine.high %v80, %v80
    %vm102 = vcmask 31744
    %v104 = vsel %vm102, %v78, 0
    %v107 = vsel %vm102, %v79, 0
    %vm109 = vcmask 1043456
    %v110 = vsel %vm109, %v80, 0
    %v112 = vsel %vm109, %v101, 0
    %v114 = vsel %vm109, %v81, 0
    %116 = vmatprep.subr.mxu0 %v112
    %117 = vmatpush1.msra.mxu0 %v110
    %118 = vmatprep.subr.mxu0 0.0
    %119 = vmatpush1.msra.mxu0 0.0
    %120 = vmatprep.subr.mxu0 0.0
    %121 = vmatpush1.msra.mxu0 0.0
    %122 = vmatprep.subr.mxu0 0.0
    %123 = vmatpush1.msra.mxu0 0.0
    %124 = vmatprep.subr.mxu0 0.0
    %125 = vmatpush1.msra.mxu0 0.0
    %126 = vmatprep.subr.mxu0 0.0
    %127 = vmatpush1.msra.mxu0 0.0
    %128 = vmatprep.subr.mxu0 0.0
    %129 = vmatpush1.msra.mxu0 0.0
    %130 = vmatprep.subr.mxu0 0.0
    %131 = vmatpush1.msra.mxu0 0.0
    %132 = vmatprep.subr.mxu0 0.0
    %133 = vmatpush1.msra.mxu0 0.0
    %134 = vmatprep.subr.mxu0 0.0
    %135 = vmatpush1.msra.mxu0 0.0
    %136 = vmatprep.subr.mxu0 0.0
    %137 = vmatpush1.msra.mxu0 0.0
    %138 = vmatprep.subr.mxu0 0.0
    %139 = vmatpush1.msra.mxu0 0.0
    %140 = vmatprep.subr.mxu0 0.0
    %141 = vmatpush1.msra.mxu0 0.0
    %142 = vmatprep.subr.mxu0 0.0
    %143 = vmatpush1.msra.mxu0 0.0
    %144 = vmatprep.subr.mxu0 0.0
    %145 = vmatpush1.msra.mxu0 0.0
    %146 = vmatprep.subr.mxu0 0.0
    %147 = vmatpush1.msra.mxu0 0.0
    %148 = vmatprep.subr.mxu0 0.0
    %149 = vmatpush1.msra.mxu0 0.0
    %150 = vmatprep.subr.mxu0 0.0
    %151 = vmatpush1.msra.mxu0 0.0
    %152 = vmatprep.subr.mxu0 0.0
    %153 = vmatpush1.msra.mxu0 0.0
    %154 = vmatprep.subr.mxu0 0.0
    %155 = vmatpush1.msra.mxu0 0.0
    %156 = vmatprep.subr.mxu0 0.0
    %157 = vmatpush1.msra.mxu0 0.0
    %158 = vmatprep.subr.mxu0 0.0
    %159 = vmatpush1.msra.mxu0 0.0
    %160 = vmatprep.subr.mxu0 0.0
    %161 = vmatpush1.msra.mxu0 0.0
    %162 = vmatprep.subr.mxu0 0.0
    %163 = vmatpush1.msra.mxu0 0.0
    %164 = vmatprep.subr.mxu0 0.0
    %165 = vmatpush1.msra.mxu0 0.0
    %166 = vmatprep.subr.mxu0 0.0
    %167 = vmatpush1.msra.mxu0 0.0
    %168 = vmatprep.subr.mxu0 0.0
    %169 = vmatpush1.msra.mxu0 0.0
    %170 = vmatprep.subr.mxu0 0.0
    %171 = vmatpush1.msra.mxu0 0.0
    %172 = vmatprep.subr.mxu0 0.0
    %173 = vmatpush1.msra.mxu0 0.0
    %174 = vmatprep.subr.mxu0 0.0
    %175 = vmatpush1.msra.mxu0 0.0
    %176 = vmatprep.subr.mxu0 0.0
    %177 = vmatpush1.msra.mxu0 0.0
    %178 = vmatprep.subr.mxu0 0.0
    %179 = vmatpush1.msra.mxu0 0.0
    %180 = vmatprep.mubr.f32.mxu0 0.0
    %181 = vmatmul.mubr.f32.gmra.mrb[0].mxu0 %v104
    %v182 = vpop.f32.mrb[0].mxu0
    %v183 = vadd.f32 %v87, %v182
    %v184 = vpop.f32.mrb[0].mxu0
    %v185 = vadd.f32 %v91, %v184
    %186 = vmatprep.mubr.f32.mxu0 0.0
    %187 = vmatmul.mubr.f32.gmra.mrb[0].mxu0 %v107
    %v188 = vpop.f32.mrb[0].mxu0
    %v189 = vadd.f32 %v87, %v188
    %v190 = vpop.f32.mrb[0].mxu0
    %v191 = vadd.f32 %v91, %v190
    %192 = vdwg.mxu0
    %193 = vmatprep.subr.mxu0 0.0
    %194 = vmatpush1.msra.mxu0 %v114
    %195 = vmatprep.subr.mxu0 0.0
    %196 = vmatpush1.msra.mxu0 0.0
    %197 = vmatprep.subr.mxu0 0.0
    %198 = vmatpush1.msra.mxu0 0.0
    %199 = vmatprep.subr.mxu0 0.0
    %200 = vmatpush1.msra.mxu0 0.0
    %201 = vmatprep.subr.mxu0 0.0
    %202 = vmatpush1.msra.mxu0 0.0
    %203 = vmatprep.subr.mxu0 0.0
    %204 = vmatpush1.msra.mxu0 0.0
    %205 = vmatprep.subr.mxu0 0.0
    %206 = vmatpush1.msra.mxu0 0.0
    %207 = vmatprep.subr.mxu0 0.0
    %208 = vmatpush1.msra.mxu0 0.0
    %209 = vmatprep.subr.mxu0 0.0
    %210 = vmatpush1.msra.mxu0 0.0
    %211 = vmatprep.subr.mxu0 0.0
    %212 = vmatpush1.msra.mxu0 0.0
    %213 = vmatprep.subr.mxu0 0.0
    %214 = vmatpush1.msra.mxu0 0.0
    %215 = vmatprep.subr.mxu0 0.0
    %216 = vmatpush1.msra.mxu0 0.0
    %217 = vmatprep.subr.mxu0 0.0
    %218 = vmatpush1.msra.mxu0 0.0
    %219 = vmatprep.subr.mxu0 0.0
    %220 = vmatpush1.msra.mxu0 0.0
    %221 = vmatprep.subr.mxu0 0.0
    %222 = vmatpush1.msra.mxu0 0.0
    %223 = vmatprep.subr.mxu0 0.0
    %224 = vmatpush1.msra.mxu0 0.0
    %225 = vmatprep.subr.mxu0 0.0
    %226 = vmatpush1.msra.mxu0 0.0
    %227 = vmatprep.subr.mxu0 0.0
    %228 = vmatpush1.msra.mxu0 0.0
    %229 = vmatprep.subr.mxu0 0.0
    %230 = vmatpush1.msra.mxu0 0.0
    %231 = vmatprep.subr.mxu0 0.0
    %232 = vmatpush1.msra.mxu0 0.0
    %233 = vmatprep.subr.mxu0 0.0
    %234 = vmatpush1.msra.mxu0 0.0
    %235 = vmatprep.subr.mxu0 0.0
    %236 = vmatpush1.msra.mxu0 0.0
    %237 = vmatprep.subr.mxu0 0.0
    %238 = vmatpush1.msra.mxu0 0.0
    %239 = vmatprep.subr.mxu0 0.0
    %240 = vmatpush1.msra.mxu0 0.0
    %241 = vmatprep.subr.mxu0 0.0
    %242 = vmatpush1.msra.mxu0 0.0
    %243 = vmatprep.subr.mxu0 0.0
    %244 = vmatpush1.msra.mxu0 0.0
    %245 = vmatprep.subr.mxu0 0.0
    %246 = vmatpush1.msra.mxu0 0.0
    %247 = vmatprep.subr.mxu0 0.0
    %248 = vmatpush1.msra.mxu0 0.0
    %249 = vmatprep.subr.mxu0 0.0
    %250 = vmatpush1.msra.mxu0 0.0
    %251 = vmatprep.subr.mxu0 0.0
    %252 = vmatpush1.msra.mxu0 0.0
    %253 = vmatprep.subr.mxu0 0.0
    %254 = vmatpush1.msra.mxu0 0.0
    %255 = vmatprep.subr.mxu0 0.0
    %256 = vmatpush1.msra.mxu0 0.0
    %257 = vmatprep.mubr.f32.mxu0 0.0
    %258 = vmatmul.mubr.f32.gmra.mrb[0].mxu0 %v104
    %v259 = vpop.f32.mrb[0].mxu0
    %v260 = vadd.f32 %v95, %v259
    %v261 = vpop.f32.mrb[0].mxu0
    %262 = vmatprep.mubr.f32.mxu0 0.0
    %263 = vmatmul.mubr.f32.gmra.mrb[0].mxu0 %v107
    %v264 = vpop.f32.mrb[0].mxu0
    %v265 = vadd.f32 %v95, %v264
    %v266 = vpop.f32.mrb[0].mxu0
    %267 = vdwg.mxu0
    %268 = vst [vmem:[#allocation3] sm:$0xff] %v183
    %269 = vst [vmem:[#allocation3 + $0x8] sm:$0xff] %v185
    %270 = vst [vmem:[#allocation3 + $0x10] sm:$0xff] %v260
    %271 = vst [vmem:[#allocation3 + $0x18] sm:$0xff] %v189
    %272 = vst [vmem:[#allocation3 + $0x20] sm:$0xff] %v191
    %273 = vst [vmem:[#allocation3 + $0x28] sm:$0xff] %v265
    %v274 = vld [vmem:[%s0 + $0x10] sm:$0xff]
    %v275 = vld [vmem:[%s0 + $0x18] sm:$0xff]
    %v276 = vld [vmem:[#allocation4] sm:$0xff]
    %v277 = vld [vmem:[#allocation4 + $0x8] sm:$0xf]
    %v278 = vld [vmem:[#allocation8] sm:$0x7]
    %v280 = vlaneseq
    %v281 = vshrl.u32 %v280, 7
    %v282 = vsub.s32 0, %v281
    %v283 = vrot.slane %v278, %v282
    %v284 = vlaneseq
    %v285 = vshrl.u32 %v284, 7
    %v286 = vsub.s32 1, %v285
    %v287 = vrot.slane %v278, %v286
    %v288 = vlaneseq
    %v289 = vshrl.u32 %v288, 7
    %v290 = vsub.s32 2, %v289
    %v291 = vrot.slane %v278, %v290
    %v297 = vcombine.high %v276, %v276
    %v299 = vsel %vm102, %v274, 0
    %v302 = vsel %vm102, %v275, 0
    %v304 = vsel %vm109, %v276, 0
    %v306 = vsel %vm109, %v297, 0
    %v308 = vsel %vm109, %v277, 0
    %310 = vmatprep.subr.mxu0 %v306
    %311 = vmatpush1.msra.mxu0 %v304
    %312 = vmatprep.subr.mxu0 0.0
    %313 = vmatpush1.msra.mxu0 0.0
    %314 = vmatprep.subr.mxu0 0.0
    %315 = vmatpush1.msra.mxu0 0.0
    %316 = vmatprep.subr.mxu0 0.0
    %317 = vmatpush1.msra.mxu0 0.0
    %318 = vmatprep.subr.mxu0 0.0
    %319 = vmatpush1.msra.mxu0 0.0
    %320 = vmatprep.subr.mxu0 0.0
    %321 = vmatpush1.msra.mxu0 0.0
    %322 = vmatprep.subr.mxu0 0.0
    %323 = vmatpush1.msra.mxu0 0.0
    %324 = vmatprep.subr.mxu0 0.0
    %325 = vmatpush1.msra.mxu0 0.0
    %326 = vmatprep.subr.mxu0 0.0
    %327 = vmatpush1.msra.mxu0 0.0
    %328 = vmatprep.subr.mxu0 0.0
    %329 = vmatpush1.msra.mxu0 0.0
    %330 = vmatprep.subr.mxu0 0.0
    %331 = vmatpush1.msra.mxu0 0.0
    %332 = vmatprep.subr.mxu0 0.0
    %333 = vmatpush1.msra.mxu0 0.0
    %334 = vmatprep.subr.mxu0 0.0
    %335 = vmatpush1.msra.mxu0 0.0
    %336 = vmatprep.subr.mxu0 0.0
    %337 = vmatpush1.msra.mxu0 0.0
    %338 = vmatprep.subr.mxu0 0.0
    %339 = vmatpush1.msra.mxu0 0.0
    %340 = vmatprep.subr.mxu0 0.0
    %341 = vmatpush1.msra.mxu0 0.0
    %342 = vmatprep.subr.mxu0 0.0
    %343 = vmatpush1.msra.mxu0 0.0
    %344 = vmatprep.subr.mxu0 0.0
    %345 = vmatpush1.msra.mxu0 0.0
    %346 = vmatprep.subr.mxu0 0.0
    %347 = vmatpush1.msra.mxu0 0.0
    %348 = vmatprep.subr.mxu0 0.0
    %349 = vmatpush1.msra.mxu0 0.0
    %350 = vmatprep.subr.mxu0 0.0
    %351 = vmatpush1.msra.mxu0 0.0
    %352 = vmatprep.subr.mxu0 0.0
    %353 = vmatpush1.msra.mxu0 0.0
    %354 = vmatprep.subr.mxu0 0.0
    %355 = vmatpush1.msra.mxu0 0.0
    %356 = vmatprep.subr.mxu0 0.0
    %357 = vmatpush1.msra.mxu0 0.0
    %358 = vmatprep.subr.mxu0 0.0
    %359 = vmatpush1.msra.mxu0 0.0
    %360 = vmatprep.subr.mxu0 0.0
    %361 = vmatpush1.msra.mxu0 0.0
    %362 = vmatprep.subr.mxu0 0.0
    %363 = vmatpush1.msra.mxu0 0.0
    %364 = vmatprep.subr.mxu0 0.0
    %365 = vmatpush1.msra.mxu0 0.0
    %366 = vmatprep.subr.mxu0 0.0
    %367 = vmatpush1.msra.mxu0 0.0
    %368 = vmatprep.subr.mxu0 0.0
    %369 = vmatpush1.msra.mxu0 0.0
    %370 = vmatprep.subr.mxu0 0.0
    %371 = vmatpush1.msra.mxu0 0.0
    %372 = vmatprep.subr.mxu0 0.0
    %373 = vmatpush1.msra.mxu0 0.0
    %374 = vmatprep.mubr.f32.mxu0 0.0
    %375 = vmatmul.mubr.f32.gmra.mrb[0].mxu0 %v299
    %v376 = vpop.f32.mrb[0].mxu0
    %v377 = vadd.f32 %v283, %v376
    %v378 = vpop.f32.mrb[0].mxu0
    %v379 = vadd.f32 %v287, %v378
    %380 = vmatprep.mubr.f32.mxu0 0.0
    %381 = vmatmul.mubr.f32.gmra.mrb[0].mxu0 %v302
    %v382 = vpop.f32.mrb[0].mxu0
    %v383 = vadd.f32 %v283, %v382
    %v384 = vpop.f32.mrb[0].mxu0
    %v385 = vadd.f32 %v287, %v384
    %386 = vdwg.mxu0
    %387 = vmatprep.subr.mxu0 0.0
    %388 = vmatpush1.msra.mxu0 %v308
    %389 = vmatprep.subr.mxu0 0.0
    %390 = vmatpush1.msra.mxu0 0.0
    %391 = vmatprep.subr.mxu0 0.0
    %392 = vmatpush1.msra.mxu0 0.0
    %393 = vmatprep.subr.mxu0 0.0
    %394 = vmatpush1.msra.mxu0 0.0
    %395 = vmatprep.subr.mxu0 0.0
    %396 = vmatpush1.msra.mxu0 0.0
    %397 = vmatprep.subr.mxu0 0.0
    %398 = vmatpush1.msra.mxu0 0.0
    %399 = vmatprep.subr.mxu0 0.0
    %400 = vmatpush1.msra.mxu0 0.0
    %401 = vmatprep.subr.mxu0 0.0
    %402 = vmatpush1.msra.mxu0 0.0
    %403 = vmatprep.subr.mxu0 0.0
    %404 = vmatpush1.msra.mxu0 0.0
    %405 = vmatprep.subr.mxu0 0.0
    %406 = vmatpush1.msra.mxu0 0.0
    %407 = vmatprep.subr.mxu0 0.0
    %408 = vmatpush1.msra.mxu0 0.0
    %409 = vmatprep.subr.mxu0 0.0
    %410 = vmatpush1.msra.mxu0 0.0
    %411 = vmatprep.subr.mxu0 0.0
    %412 = vmatpush1.msra.mxu0 0.0
    %413 = vmatprep.subr.mxu0 0.0
    %414 = vmatpush1.msra.mxu0 0.0
    %415 = vmatprep.subr.mxu0 0.0
    %416 = vmatpush1.msra.mxu0 0.0
    %417 = vmatprep.subr.mxu0 0.0
    %418 = vmatpush1.msra.mxu0 0.0
    %419 = vmatprep.subr.mxu0 0.0
    %420 = vmatpush1.msra.mxu0 0.0
    %421 = vmatprep.subr.mxu0 0.0
    %422 = vmatpush1.msra.mxu0 0.0
    %423 = vmatprep.subr.mxu0 0.0
    %424 = vmatpush1.msra.mxu0 0.0
    %425 = vmatprep.subr.mxu0 0.0
    %426 = vmatpush1.msra.mxu0 0.0
    %427 = vmatprep.subr.mxu0 0.0
    %428 = vmatpush1.msra.mxu0 0.0
    %429 = vmatprep.subr.mxu0 0.0
    %430 = vmatpush1.msra.mxu0 0.0
    %431 = vmatprep.subr.mxu0 0.0
    %432 = vmatpush1.msra.mxu0 0.0
    %433 = vmatprep.subr.mxu0 0.0
    %434 = vmatpush1.msra.mxu0 0.0
    %435 = vmatprep.subr.mxu0 0.0
    %436 = vmatpush1.msra.mxu0 0.0
    %437 = vmatprep.subr.mxu0 0.0
    %438 = vmatpush1.msra.mxu0 0.0
    %439 = vmatprep.subr.mxu0 0.0
    %440 = vmatpush1.msra.mxu0 0.0
    %441 = vmatprep.subr.mxu0 0.0
    %442 = vmatpush1.msra.mxu0 0.0
    %443 = vmatprep.subr.mxu0 0.0
    %444 = vmatpush1.msra.mxu0 0.0
    %445 = vmatprep.subr.mxu0 0.0
    %446 = vmatpush1.msra.mxu0 0.0
    %447 = vmatprep.subr.mxu0 0.0
    %448 = vmatpush1.msra.mxu0 0.0
    %449 = vmatprep.subr.mxu0 0.0
    %450 = vmatpush1.msra.mxu0 0.0
    %451 = vmatprep.mubr.f32.mxu0 0.0
    %452 = vmatmul.mubr.f32.gmra.mrb[0].mxu0 %v299
    %v453 = vpop.f32.mrb[0].mxu0
    %v454 = vadd.f32 %v291, %v453
    %v455 = vpop.f32.mrb[0].mxu0
    %456 = vmatprep.mubr.f32.mxu0 0.0
    %457 = vmatmul.mubr.f32.gmra.mrb[0].mxu0 %v302
    %v458 = vpop.f32.mrb[0].mxu0
    %v459 = vadd.f32 %v291, %v458
    %v460 = vpop.f32.mrb[0].mxu0
    %461 = vdwg.mxu0
    %462 = vst [vmem:[#allocation3 + $0x30] sm:$0xff] %v377
    %463 = vst [vmem:[#allocation3 + $0x38] sm:$0xff] %v379
    %464 = vst [vmem:[#allocation3 + $0x40] sm:$0xff] %v454
    %465 = vst [vmem:[#allocation3 + $0x48] sm:$0xff] %v383
    %466 = vst [vmem:[#allocation3 + $0x50] sm:$0xff] %v385
    %467 = vst [vmem:[#allocation3 + $0x58] sm:$0xff] %v459
    %v468 = vld [vmem:[%s0 + $0x20] sm:$0xff]
    %v469 = vld [vmem:[%s0 + $0x28] sm:$0xff]
    %v470 = vld [vmem:[#allocation4] sm:$0xff]
    %v471 = vld [vmem:[#allocation4 + $0x8] sm:$0xf]
    %v472 = vld [vmem:[#allocation8] sm:$0x7]
    %v474 = vlaneseq
    %v475 = vshrl.u32 %v474, 7
    %v476 = vsub.s32 0, %v475
    %v477 = vrot.slane %v472, %v476
    %v478 = vlaneseq
    %v479 = vshrl.u32 %v478, 7
    %v480 = vsub.s32 1, %v479
    %v481 = vrot.slane %v472, %v480
    %v482 = vlaneseq
    %v483 = vshrl.u32 %v482, 7
    %v484 = vsub.s32 2, %v483
    %v485 = vrot.slane %v472, %v484
    %v491 = vcombine.high %v470, %v470
    %v493 = vsel %vm102, %v468, 0
    %v496 = vsel %vm102, %v469, 0
    %v498 = vsel %vm109, %v470, 0
    %v500 = vsel %vm109, %v491, 0
    %v502 = vsel %vm109, %v471, 0
    %504 = vmatprep.subr.mxu0 %v500
    %505 = vmatpush1.msra.mxu0 %v498
    %506 = vmatprep.subr.mxu0 0.0
    %507 = vmatpush1.msra.mxu0 0.0
    %508 = vmatprep.subr.mxu0 0.0
    %509 = vmatpush1.msra.mxu0 0.0
    %510 = vmatprep.subr.mxu0 0.0
    %511 = vmatpush1.msra.mxu0 0.0
    %512 = vmatprep.subr.mxu0 0.0
    %513 = vmatpush1.msra.mxu0 0.0
    %514 = vmatprep.subr.mxu0 0.0
    %515 = vmatpush1.msra.mxu0 0.0
    %516 = vmatprep.subr.mxu0 0.0
    %517 = vmatpush1.msra.mxu0 0.0
    %518 = vmatprep.subr.mxu0 0.0
    %519 = vmatpush1.msra.mxu0 0.0
    %520 = vmatprep.subr.mxu0 0.0
    %521 = vmatpush1.msra.mxu0 0.0
    %522 = vmatprep.subr.mxu0 0.0
    %523 = vmatpush1.msra.mxu0 0.0
    %524 = vmatprep.subr.mxu0 0.0
    %525 = vmatpush1.msra.mxu0 0.0
    %526 = vmatprep.subr.mxu0 0.0
    %527 = vmatpush1.msra.mxu0 0.0
    %528 = vmatprep.subr.mxu0 0.0
    %529 = vmatpush1.msra.mxu0 0.0
    %530 = vmatprep.subr.mxu0 0.0
    %531 = vmatpush1.msra.mxu0 0.0
    %532 = vmatprep.subr.mxu0 0.0
    %533 = vmatpush1.msra.mxu0 0.0
    %534 = vmatprep.subr.mxu0 0.0
    %535 = vmatpush1.msra.mxu0 0.0
    %536 = vmatprep.subr.mxu0 0.0
    %537 = vmatpush1.msra.mxu0 0.0
    %538 = vmatprep.subr.mxu0 0.0
    %539 = vmatpush1.msra.mxu0 0.0
    %540 = vmatprep.subr.mxu0 0.0
    %541 = vmatpush1.msra.mxu0 0.0
    %542 = vmatprep.subr.mxu0 0.0
    %543 = vmatpush1.msra.mxu0 0.0
    %544 = vmatprep.subr.mxu0 0.0
    %545 = vmatpush1.msra.mxu0 0.0
    %546 = vmatprep.subr.mxu0 0.0
    %547 = vmatpush1.msra.mxu0 0.0
    %548 = vmatprep.subr.mxu0 0.0
    %549 = vmatpush1.msra.mxu0 0.0
    %550 = vmatprep.subr.mxu0 0.0
    %551 = vmatpush1.msra.mxu0 0.0
    %552 = vmatprep.subr.mxu0 0.0
    %553 = vmatpush1.msra.mxu0 0.0
    %554 = vmatprep.subr.mxu0 0.0
    %555 = vmatpush1.msra.mxu0 0.0
    %556 = vmatprep.subr.mxu0 0.0
    %557 = vmatpush1.msra.mxu0 0.0
    %558 = vmatprep.subr.mxu0 0.0
    %559 = vmatpush1.msra.mxu0 0.0
    %560 = vmatprep.subr.mxu0 0.0
    %561 = vmatpush1.msra.mxu0 0.0
    %562 = vmatprep.subr.mxu0 0.0
    %563 = vmatpush1.msra.mxu0 0.0
    %564 = vmatprep.subr.mxu0 0.0
    %565 = vmatpush1.msra.mxu0 0.0
    %566 = vmatprep.subr.mxu0 0.0
    %567 = vmatpush1.msra.mxu0 0.0
    %568 = vmatprep.mubr.f32.mxu0 0.0
    %569 = vmatmul.mubr.f32.gmra.mrb[0].mxu0 %v493
    %v570 = vpop.f32.mrb[0].mxu0
    %v571 = vadd.f32 %v477, %v570
    %v572 = vpop.f32.mrb[0].mxu0
    %v573 = vadd.f32 %v481, %v572
    %574 = vmatprep.mubr.f32.mxu0 0.0
    %575 = vmatmul.mubr.f32.gmra.mrb[0].mxu0 %v496
    %v576 = vpop.f32.mrb[0].mxu0
    %v577 = vadd.f32 %v477, %v576
    %v578 = vpop.f32.mrb[0].mxu0
    %v579 = vadd.f32 %v481, %v578
    %580 = vdwg.mxu0
    %581 = vmatprep.subr.mxu0 0.0
    %582 = vmatpush1.msra.mxu0 %v502
    %583 = vmatprep.subr.mxu0 0.0
    %584 = vmatpush1.msra.mxu0 0.0
    %585 = vmatprep.subr.mxu0 0.0
    %586 = vmatpush1.msra.mxu0 0.0
    %587 = vmatprep.subr.mxu0 0.0
    %588 = vmatpush1.msra.mxu0 0.0
    %589 = vmatprep.subr.mxu0 0.0
    %590 = vmatpush1.msra.mxu0 0.0
    %591 = vmatprep.subr.mxu0 0.0
    %592 = vmatpush1.msra.mxu0 0.0
    %593 = vmatprep.subr.mxu0 0.0
    %594 = vmatpush1.msra.mxu0 0.0
    %595 = vmatprep.subr.mxu0 0.0
    %596 = vmatpush1.msra.mxu0 0.0
    %597 = vmatprep.subr.mxu0 0.0
    %598 = vmatpush1.msra.mxu0 0.0
    %599 = vmatprep.subr.mxu0 0.0
    %600 = vmatpush1.msra.mxu0 0.0
    %601 = vmatprep.subr.mxu0 0.0
    %602 = vmatpush1.msra.mxu0 0.0
    %603 = vmatprep.subr.mxu0 0.0
    %604 = vmatpush1.msra.mxu0 0.0
    %605 = vmatprep.subr.mxu0 0.0
    %606 = vmatpush1.msra.mxu0 0.0
    %607 = vmatprep.subr.mxu0 0.0
    %608 = vmatpush1.msra.mxu0 0.0
    %609 = vmatprep.subr.mxu0 0.0
    %610 = vmatpush1.msra.mxu0 0.0
    %611 = vmatprep.subr.mxu0 0.0
    %612 = vmatpush1.msra.mxu0 0.0
    %613 = vmatprep.subr.mxu0 0.0
    %614 = vmatpush1.msra.mxu0 0.0
    %615 = vmatprep.subr.mxu0 0.0
    %616 = vmatpush1.msra.mxu0 0.0
    %617 = vmatprep.subr.mxu0 0.0
    %618 = vmatpush1.msra.mxu0 0.0
    %619 = vmatprep.subr.mxu0 0.0
    %620 = vmatpush1.msra.mxu0 0.0
    %621 = vmatprep.subr.mxu0 0.0
    %622 = vmatpush1.msra.mxu0 0.0
    %623 = vmatprep.subr.mxu0 0.0
    %624 = vmatpush1.msra.mxu0 0.0
    %625 = vmatprep.subr.mxu0 0.0
    %626 = vmatpush1.msra.mxu0 0.0
    %627 = vmatprep.subr.mxu0 0.0
    %628 = vmatpush1.msra.mxu0 0.0
    %629 = vmatprep.subr.mxu0 0.0
    %630 = vmatpush1.msra.mxu0 0.0
    %631 = vmatprep.subr.mxu0 0.0
    %632 = vmatpush1.msra.mxu0 0.0
    %633 = vmatprep.subr.mxu0 0.0
    %634 = vmatpush1.msra.mxu0 0.0
    %635 = vmatprep.subr.mxu0 0.0
    %636 = vmatpush1.msra.mxu0 0.0
    %637 = vmatprep.subr.mxu0 0.0
    %638 = vmatpush1.msra.mxu0 0.0
    %639 = vmatprep.subr.mxu0 0.0
    %640 = vmatpush1.msra.mxu0 0.0
    %641 = vmatprep.subr.mxu0 0.0
    %642 = vmatpush1.msra.mxu0 0.0
    %643 = vmatprep.subr.mxu0 0.0
    %644 = vmatpush1.msra.mxu0 0.0
    %645 = vmatprep.mubr.f32.mxu0 0.0
    %646 = vmatmul.mubr.f32.gmra.mrb[0].mxu0 %v493
    %v647 = vpop.f32.mrb[0].mxu0
    %v648 = vadd.f32 %v485, %v647
    %v649 = vpop.f32.mrb[0].mxu0
    %650 = vmatprep.mubr.f32.mxu0 0.0
    %651 = vmatmul.mubr.f32.gmra.mrb[0].mxu0 %v496
    %v652 = vpop.f32.mrb[0].mxu0
    %v653 = vadd.f32 %v485, %v652
    %v654 = vpop.f32.mrb[0].mxu0
    %655 = vdwg.mxu0
    %656 = vst [vmem:[#allocation3 + $0x60] sm:$0xff] %v571
    %657 = vst [vmem:[#allocation3 + $0x68] sm:$0xff] %v573
    %658 = vst [vmem:[#allocation3 + $0x70] sm:$0xff] %v648
    %659 = vst [vmem:[#allocation3 + $0x78] sm:$0xff] %v577
    %660 = vst [vmem:[#allocation3 + $0x80] sm:$0xff] %v579
    %661 = vst [vmem:[#allocation3 + $0x88] sm:$0xff] %v653
    %v662 = vld [vmem:[%s0 + $0x30] sm:$0xff]
    %v663 = vld [vmem:[%s0 + $0x38] sm:$0xff]
    %v664 = vld [vmem:[#allocation4] sm:$0xff]
    %v665 = vld [vmem:[#allocation4 + $0x8] sm:$0xf]
    %v666 = vld [vmem:[#allocation8] sm:$0x7]
    %v668 = vlaneseq
    %v669 = vshrl.u32 %v668, 7
    %v670 = vsub.s32 0, %v669
    %v671 = vrot.slane %v666, %v670
    %v672 = vlaneseq
    %v673 = vshrl.u32 %v672, 7
    %v674 = vsub.s32 1, %v673
    %v675 = vrot.slane %v666, %v674
    %v676 = vlaneseq
    %v677 = vshrl.u32 %v676, 7
    %v678 = vsub.s32 2, %v677
    %v679 = vrot.slane %v666, %v678
    %v685 = vcombine.high %v664, %v664
    %v687 = vsel %vm102, %v662, 0
    %v690 = vsel %vm102, %v663, 0
    %v692 = vsel %vm109, %v664, 0
    %v694 = vsel %vm109, %v685, 0
    %v696 = vsel %vm109, %v665, 0
    %698 = vmatprep.subr.mxu0 %v694
    %699 = vmatpush1.msra.mxu0 %v692
    %700 = vmatprep.subr.mxu0 0.0
    %701 = vmatpush1.msra.mxu0 0.0
    %702 = vmatprep.subr.mxu0 0.0
    %703 = vmatpush1.msra.mxu0 0.0
    %704 = vmatprep.subr.mxu0 0.0
    %705 = vmatpush1.msra.mxu0 0.0
    %706 = vmatprep.subr.mxu0 0.0
    %707 = vmatpush1.msra.mxu0 0.0
    %708 = vmatprep.subr.mxu0 0.0
    %709 = vmatpush1.msra.mxu0 0.0
    %710 = vmatprep.subr.mxu0 0.0
    %711 = vmatpush1.msra.mxu0 0.0
    %712 = vmatprep.subr.mxu0 0.0
    %713 = vmatpush1.msra.mxu0 0.0
    %714 = vmatprep.subr.mxu0 0.0
    %715 = vmatpush1.msra.mxu0 0.0
    %716 = vmatprep.subr.mxu0 0.0
    %717 = vmatpush1.msra.mxu0 0.0
    %718 = vmatprep.subr.mxu0 0.0
    %719 = vmatpush1.msra.mxu0 0.0
    %720 = vmatprep.subr.mxu0 0.0
    %721 = vmatpush1.msra.mxu0 0.0
    %722 = vmatprep.subr.mxu0 0.0
    %723 = vmatpush1.msra.mxu0 0.0
    %724 = vmatprep.subr.mxu0 0.0
    %725 = vmatpush1.msra.mxu0 0.0
    %726 = vmatprep.subr.mxu0 0.0
    %727 = vmatpush1.msra.mxu0 0.0
    %728 = vmatprep.subr.mxu0 0.0
    %729 = vmatpush1.msra.mxu0 0.0
    %730 = vmatprep.subr.mxu0 0.0
    %731 = vmatpush1.msra.mxu0 0.0
    %732 = vmatprep.subr.mxu0 0.0
    %733 = vmatpush1.msra.mxu0 0.0
    %734 = vmatprep.subr.mxu0 0.0
    %735 = vmatpush1.msra.mxu0 0.0
    %736 = vmatprep.subr.mxu0 0.0
    %737 = vmatpush1.msra.mxu0 0.0
    %738 = vmatprep.subr.mxu0 0.0
    %739 = vmatpush1.msra.mxu0 0.0
    %740 = vmatprep.subr.mxu0 0.0
    %741 = vmatpush1.msra.mxu0 0.0
    %742 = vmatprep.subr.mxu0 0.0
    %743 = vmatpush1.msra.mxu0 0.0
    %744 = vmatprep.subr.mxu0 0.0
    %745 = vmatpush1.msra.mxu0 0.0
    %746 = vmatprep.subr.mxu0 0.0
    %747 = vmatpush1.msra.mxu0 0.0
    %748 = vmatprep.subr.mxu0 0.0
    %749 = vmatpush1.msra.mxu0 0.0
    %750 = vmatprep.subr.mxu0 0.0
    %751 = vmatpush1.msra.mxu0 0.0
    %752 = vmatprep.subr.mxu0 0.0
    %753 = vmatpush1.msra.mxu0 0.0
    %754 = vmatprep.subr.mxu0 0.0
    %755 = vmatpush1.msra.mxu0 0.0
    %756 = vmatprep.subr.mxu0 0.0
    %757 = vmatpush1.msra.mxu0 0.0
    %758 = vmatprep.subr.mxu0 0.0
    %759 = vmatpush1.msra.mxu0 0.0
    %760 = vmatprep.subr.mxu0 0.0
    %761 = vmatpush1.msra.mxu0 0.0
    %762 = vmatprep.mubr.f32.mxu0 0.0
    %763 = vmatmul.mubr.f32.gmra.mrb[0].mxu0 %v687
    %v764 = vpop.f32.mrb[0].mxu0
    %v765 = vadd.f32 %v671, %v764
    %v766 = vpop.f32.mrb[0].mxu0
    %v767 = vadd.f32 %v675, %v766
    %768 = vmatprep.mubr.f32.mxu0 0.0
    %769 = vmatmul.mubr.f32.gmra.mrb[0].mxu0 %v690
    %v770 = vpop.f32.mrb[0].mxu0
    %v771 = vadd.f32 %v671, %v770
    %v772 = vpop.f32.mrb[0].mxu0
    %v773 = vadd.f32 %v675, %v772
    %774 = vdwg.mxu0
    %775 = vmatprep.subr.mxu0 0.0
    %776 = vmatpush1.msra.mxu0 %v696
    %777 = vmatprep.subr.mxu0 0.0
    %778 = vmatpush1.msra.mxu0 0.0
    %779 = vmatprep.subr.mxu0 0.0
    %780 = vmatpush1.msra.mxu0 0.0
    %781 = vmatprep.subr.mxu0 0.0
    %782 = vmatpush1.msra.mxu0 0.0
    %783 = vmatprep.subr.mxu0 0.0
    %784 = vmatpush1.msra.mxu0 0.0
    %785 = vmatprep.subr.mxu0 0.0
    %786 = vmatpush1.msra.mxu0 0.0
    %787 = vmatprep.subr.mxu0 0.0
    %788 = vmatpush1.msra.mxu0 0.0
    %789 = vmatprep.subr.mxu0 0.0
    %790 = vmatpush1.msra.mxu0 0.0
    %791 = vmatprep.subr.mxu0 0.0
    %792 = vmatpush1.msra.mxu0 0.0
    %793 = vmatprep.subr.mxu0 0.0
    %794 = vmatpush1.msra.mxu0 0.0
    %795 = vmatprep.subr.mxu0 0.0
    %796 = vmatpush1.msra.mxu0 0.0
    %797 = vmatprep.subr.mxu0 0.0
    %798 = vmatpush1.msra.mxu0 0.0
    %799 = vmatprep.subr.mxu0 0.0
    %800 = vmatpush1.msra.mxu0 0.0
    %801 = vmatprep.subr.mxu0 0.0
    %802 = vmatpush1.msra.mxu0 0.0
    %803 = vmatprep.subr.mxu0 0.0
    %804 = vmatpush1.msra.mxu0 0.0
    %805 = vmatprep.subr.mxu0 0.0
    %806 = vmatpush1.msra.mxu0 0.0
    %807 = vmatprep.subr.mxu0 0.0
    %808 = vmatpush1.msra.mxu0 0.0
    %809 = vmatprep.subr.mxu0 0.0
    %810 = vmatpush1.msra.mxu0 0.0
    %811 = vmatprep.subr.mxu0 0.0
    %812 = vmatpush1.msra.mxu0 0.0
    %813 = vmatprep.subr.mxu0 0.0
    %814 = vmatpush1.msra.mxu0 0.0
    %815 = vmatprep.subr.mxu0 0.0
    %816 = vmatpush1.msra.mxu0 0.0
    %817 = vmatprep.subr.mxu0 0.0
    %818 = vmatpush1.msra.mxu0 0.0
    %819 = vmatprep.subr.mxu0 0.0
    %820 = vmatpush1.msra.mxu0 0.0
    %821 = vmatprep.subr.mxu0 0.0
    %822 = vmatpush1.msra.mxu0 0.0
    %823 = vmatprep.subr.mxu0 0.0
    %824 = vmatpush1.msra.mxu0 0.0
    %825 = vmatprep.subr.mxu0 0.0
    %826 = vmatpush1.msra.mxu0 0.0
    %827 = vmatprep.subr.mxu0 0.0
    %828 = vmatpush1.msra.mxu0 0.0
    %829 = vmatprep.subr.mxu0 0.0
    %830 = vmatpush1.msra.mxu0 0.0
    %831 = vmatprep.subr.mxu0 0.0
    %832 = vmatpush1.msra.mxu0 0.0
    %833 = vmatprep.subr.mxu0 0.0
    %834 = vmatpush1.msra.mxu0 0.0
    %835 = vmatprep.subr.mxu0 0.0
    %836 = vmatpush1.msra.mxu0 0.0
    %837 = vmatprep.subr.mxu0 0.0
    %838 = vmatpush1.msra.mxu0 0.0
    %839 = vmatprep.mubr.f32.mxu0 0.0
    %840 = vmatmul.mubr.f32.gmra.mrb[0].mxu0 %v687
    %v841 = vpop.f32.mrb[0].mxu0
    %v842 = vadd.f32 %v679, %v841
    %v843 = vpop.f32.mrb[0].mxu0
    %844 = vmatprep.mubr.f32.mxu0 0.0
    %845 = vmatmul.mubr.f32.gmra.mrb[0].mxu0 %v690
    %v846 = vpop.f32.mrb[0].mxu0
    %v847 = vadd.f32 %v679, %v846
    %v848 = vpop.f32.mrb[0].mxu0
    %849 = vdwg.mxu0
    %850 = vst [vmem:[#allocation3 + $0x90] sm:$0xff] %v765
    %851 = vst [vmem:[#allocation3 + $0x98] sm:$0xff] %v767
    %852 = vst [vmem:[#allocation3 + $0xa0] sm:$0xff] %v842
    %853 = vst [vmem:[#allocation3 + $0xa8] sm:$0xff] %v771
    %854 = vst [vmem:[#allocation3 + $0xb0] sm:$0xff] %v773
    %855 = vst [vmem:[#allocation3 + $0xb8] sm:$0xff] %v847
    %v856 = vld [vmem:[#allocation9] sm:$0x1]
    %v858 = vlaneseq
    %v859 = vshrl.u32 %v858, 7
    %v860 = vsub.s32 0, %v859
    %v861 = vrot.slane %v856, %v860
    %v863 = vld [vmem:[#allocation2] sm:$0xff]
    %s864 = smul.u32 0, 3
    %s865 = smul.addr %s864, 8
    %s866 = scalar_lea.vmem [#allocation3], %s865
    %v867 = vld [vmem:[%s866] sm:$0xff]
    %v868 = vld [vmem:[%s866 + $0x8] sm:$0xff]
    %v869 = vld [vmem:[%s866 + $0x10] sm:$0xff]
    %v870 = vld [vmem:[#allocation6] sm:$0xff]
    %v871 = vld [vmem:[#allocation6 + $0x8] sm:$0xff]
    %v872 = vld [vmem:[#allocation6 + $0x10] sm:$0xff]
    %v873 = vld [vmem:[#allocation6 + $0x18] sm:$0xff]
    %v874 = vld [vmem:[#allocation6 + $0x20] sm:$0xff]
    %v875 = vld [vmem:[#allocation6 + $0x28] sm:$0xff]
    %v876 = vld [vmem:[#allocation6 + $0x30] sm:$0xff]
    %v877 = vld [vmem:[#allocation6 + $0x38] sm:$0xff]
    %v878 = vld [vmem:[#allocation6 + $0x40] sm:$0xff]
    %v879 = vld [vmem:[#allocation6 + $0x48] sm:$0xff]
    %v880 = vld [vmem:[#allocation6 + $0x50] sm:$0xff]
    %v881 = vld [vmem:[#allocation6 + $0x58] sm:$0xff]
    %v882 = vld [vmem:[#allocation6 + $0x60] sm:$0xff]
    %v883 = vld [vmem:[#allocation6 + $0x68] sm:$0xff]
    %v884 = vld [vmem:[#allocation6 + $0x70] sm:$0xff]
    %v885 = vld [vmem:[#allocation6 + $0x78] sm:$0xff]
    %v886 = vld [vmem:[#allocation6 + $0x80] sm:$0xff]
    %v887 = vld [vmem:[#allocation6 + $0x88] sm:$0xff]
    %v888 = vld [vmem:[#allocation6 + $0x90] sm:$0xff]
    %v889 = vld [vmem:[#allocation6 + $0x98] sm:$0xff]
    %v890 = vld [vmem:[#allocation6 + $0xa0] sm:$0xff]
    %v891 = vld [vmem:[#allocation6 + $0xa8] sm:$0xff]
    %v892 = vld [vmem:[#allocation6 + $0xb0] sm:$0xff]
    %v893 = vld [vmem:[#allocation6 + $0xb8] sm:$0xff]
    %v894 = vld [vmem:[#allocation6 + $0xc0] sm:$0xff]
    %v895 = vld [vmem:[#allocation6 + $0xc8] sm:$0xff]
    %v896 = vld [vmem:[#allocation6 + $0xd0] sm:$0xff]
    %v897 = vld [vmem:[#allocation6 + $0xd8] sm:$0xff]
    %v898 = vld [vmem:[#allocation6 + $0xe0] sm:$0xff]
    %v899 = vld [vmem:[#allocation6 + $0xe8] sm:$0xff]
    %v900 = vld [vmem:[#allocation6 + $0xf0] sm:$0xff]
    %v901 = vld [vmem:[#allocation6 + $0xf8] sm:$0xff]
    %v902 = vld [vmem:[#allocation6 + $0x100] sm:$0xff]
    %v903 = vld [vmem:[#allocation6 + $0x108] sm:$0xff]
    %v904 = vld [vmem:[#allocation6 + $0x110] sm:$0xff]
    %v905 = vld [vmem:[#allocation6 + $0x118] sm:$0xff]
    %v906 = vld [vmem:[#allocation6 + $0x120] sm:$0xff]
    %v907 = vld [vmem:[#allocation6 + $0x128] sm:$0xff]
    %v908 = vld [vmem:[#allocation6 + $0x130] sm:$0xff]
    %v909 = vld [vmem:[#allocation6 + $0x138] sm:$0xff]
    %v910 = vld [vmem:[#allocation6 + $0x140] sm:$0xff]
    %v911 = vld [vmem:[#allocation6 + $0x148] sm:$0xff]
    %v912 = vld [vmem:[#allocation6 + $0x150] sm:$0xff]
    %v913 = vld [vmem:[#allocation6 + $0x158] sm:$0xff]
    %v914 = vld [vmem:[#allocation6 + $0x160] sm:$0xff]
    %v915 = vld [vmem:[#allocation6 + $0x168] sm:$0xff]
    %v916 = vld [vmem:[#allocation6 + $0x170] sm:$0xff]
    %v917 = vld [vmem:[#allocation6 + $0x178] sm:$0xff]
    %918 = vmatprep.subr.mxu0 %v871
    %919 = vmatpush1.msra.mxu0 %v870
    %920 = vmatprep.subr.mxu0 %v874
    %921 = vmatpush1.msra.mxu0 %v873
    %922 = vmatprep.subr.mxu0 %v877
    %923 = vmatpush1.msra.mxu0 %v876
    %924 = vmatprep.subr.mxu0 %v880
    %925 = vmatpush1.msra.mxu0 %v879
    %926 = vmatprep.subr.mxu0 %v883
    %927 = vmatpush1.msra.mxu0 %v882
    %928 = vmatprep.subr.mxu0 %v886
    %929 = vmatpush1.msra.mxu0 %v885
    %930 = vmatprep.subr.mxu0 %v889
    %931 = vmatpush1.msra.mxu0 %v888
    %932 = vmatprep.subr.mxu0 %v892
    %933 = vmatpush1.msra.mxu0 %v891
    %934 = vmatprep.subr.mxu0 %v895
    %935 = vmatpush1.msra.mxu0 %v894
    %936 = vmatprep.subr.mxu0 %v898
    %937 = vmatpush1.msra.mxu0 %v897
    %938 = vmatprep.subr.mxu0 %v901
    %939 = vmatpush1.msra.mxu0 %v900
    %940 = vmatprep.subr.mxu0 %v904
    %941 = vmatpush1.msra.mxu0 %v903
    %942 = vmatprep.subr.mxu0 %v907
    %943 = vmatpush1.msra.mxu0 %v906
    %944 = vmatprep.subr.mxu0 %v910
    %945 = vmatpush1.msra.mxu0 %v909
    %946 = vmatprep.subr.mxu0 %v913
    %947 = vmatpush1.msra.mxu0 %v912
    %948 = vmatprep.subr.mxu0 %v916
    %949 = vmatpush1.msra.mxu0 %v915
    %950 = vmatprep.subr.mxu0 0.0
    %951 = vmatpush1.msra.mxu0 0.0
    %952 = vmatprep.subr.mxu0 0.0
    %953 = vmatpush1.msra.mxu0 0.0
    %954 = vmatprep.subr.mxu0 0.0
    %955 = vmatpush1.msra.mxu0 0.0
    %956 = vmatprep.subr.mxu0 0.0
    %957 = vmatpush1.msra.mxu0 0.0
    %958 = vmatprep.subr.mxu0 0.0
    %959 = vmatpush1.msra.mxu0 0.0
    %960 = vmatprep.subr.mxu0 0.0
    %961 = vmatpush1.msra.mxu0 0.0
    %962 = vmatprep.subr.mxu0 0.0
    %963 = vmatpush1.msra.mxu0 0.0
    %964 = vmatprep.subr.mxu0 0.0
    %965 = vmatpush1.msra.mxu0 0.0
    %966 = vmatprep.subr.mxu0 0.0
    %967 = vmatpush1.msra.mxu0 0.0
    %968 = vmatprep.subr.mxu0 0.0
    %969 = vmatpush1.msra.mxu0 0.0
    %970 = vmatprep.subr.mxu0 0.0
    %971 = vmatpush1.msra.mxu0 0.0
    %972 = vmatprep.subr.mxu0 0.0
    %973 = vmatpush1.msra.mxu0 0.0
    %974 = vmatprep.subr.mxu0 0.0
    %975 = vmatpush1.msra.mxu0 0.0
    %976 = vmatprep.subr.mxu0 0.0
    %977 = vmatpush1.msra.mxu0 0.0
    %978 = vmatprep.subr.mxu0 0.0
    %979 = vmatpush1.msra.mxu0 0.0
    %980 = vmatprep.subr.mxu0 0.0
    %981 = vmatpush1.msra.mxu0 0.0
    %982 = vmatprep.mubr.f32.mxu0 0.0
    %983 = vmatmul.mubr.f32.gmra.mrb[0].mxu0 %v863
    %v984 = vpop.f32.mrb[0].mxu0
    %v985 = vadd.f32 0.0, %v984
    %v986 = vpop.f32.mrb[0].mxu0
    %v987 = vadd.f32 0.0, %v986
    %988 = vdwg.mxu0
    %989 = vmatprep.subr.mxu0 0.0
    %990 = vmatpush1.msra.mxu0 %v872
    %991 = vmatprep.subr.mxu0 0.0
    %992 = vmatpush1.msra.mxu0 %v875
    %993 = vmatprep.subr.mxu0 0.0
    %994 = vmatpush1.msra.mxu0 %v878
    %995 = vmatprep.subr.mxu0 0.0
    %996 = vmatpush1.msra.mxu0 %v881
    %997 = vmatprep.subr.mxu0 0.0
    %998 = vmatpush1.msra.mxu0 %v884
    %999 = vmatprep.subr.mxu0 0.0
    %1000 = vmatpush1.msra.mxu0 %v887
    %1001 = vmatprep.subr.mxu0 0.0
    %1002 = vmatpush1.msra.mxu0 %v890
    %1003 = vmatprep.subr.mxu0 0.0
    %1004 = vmatpush1.msra.mxu0 %v893
    %1005 = vmatprep.subr.mxu0 0.0
    %1006 = vmatpush1.msra.mxu0 %v896
    %1007 = vmatprep.subr.mxu0 0.0
    %1008 = vmatpush1.msra.mxu0 %v899
    %1009 = vmatprep.subr.mxu0 0.0
    %1010 = vmatpush1.msra.mxu0 %v902
    %1011 = vmatprep.subr.mxu0 0.0
    %1012 = vmatpush1.msra.mxu0 %v905
    %1013 = vmatprep.subr.mxu0 0.0
    %1014 = vmatpush1.msra.mxu0 %v908
    %1015 = vmatprep.subr.mxu0 0.0
    %1016 = vmatpush1.msra.mxu0 %v911
    %1017 = vmatprep.subr.mxu0 0.0
    %1018 = vmatpush1.msra.mxu0 %v914
    %1019 = vmatprep.subr.mxu0 0.0
    %1020 = vmatpush1.msra.mxu0 %v917
    %1021 = vmatprep.subr.mxu0 0.0
    %1022 = vmatpush1.msra.mxu0 0.0
    %1023 = vmatprep.subr.mxu0 0.0
    %1024 = vmatpush1.msra.mxu0 0.0
    %1025 = vmatprep.subr.mxu0 0.0
    %1026 = vmatpush1.msra.mxu0 0.0
    %1027 = vmatprep.subr.mxu0 0.0
    %1028 = vmatpush1.msra.mxu0 0.0
    %1029 = vmatprep.subr.mxu0 0.0
    %1030 = vmatpush1.msra.mxu0 0.0
    %1031 = vmatprep.subr.mxu0 0.0
    %1032 = vmatpush1.msra.mxu0 0.0
    %1033 = vmatprep.subr.mxu0 0.0
    %1034 = vmatpush1.msra.mxu0 0.0
    %1035 = vmatprep.subr.mxu0 0.0
    %1036 = vmatpush1.msra.mxu0 0.0
    %1037 = vmatprep.subr.mxu0 0.0
    %1038 = vmatpush1.msra.mxu0 0.0
    %1039 = vmatprep.subr.mxu0 0.0
    %1040 = vmatpush1.msra.mxu0 0.0
    %1041 = vmatprep.subr.mxu0 0.0
    %1042 = vmatpush1.msra.mxu0 0.0
    %1043 = vmatprep.subr.mxu0 0.0
    %1044 = vmatpush1.msra.mxu0 0.0
    %1045 = vmatprep.subr.mxu0 0.0
    %1046 = vmatpush1.msra.mxu0 0.0
    %1047 = vmatprep.subr.mxu0 0.0
    %1048 = vmatpush1.msra.mxu0 0.0
    %1049 = vmatprep.subr.mxu0 0.0
    %1050 = vmatpush1.msra.mxu0 0.0
    %1051 = vmatprep.subr.mxu0 0.0
    %1052 = vmatpush1.msra.mxu0 0.0
    %1053 = vmatprep.mubr.f32.mxu0 0.0
    %1054 = vmatmul.mubr.f32.gmra.mrb[0].mxu0 %v863
    %v1055 = vpop.f32.mrb[0].mxu0
    %v1056 = vadd.f32 0.0, %v1055
    %v1057 = vpop.f32.mrb[0].mxu0
    %1058 = vdwg.mxu0
    %v1059 = vadd.f32 %v867, %v985
    %v1060 = vxor.u32 %v1059, 2147483648
    %v1061 = vmul.f32 %v1060, 1.442695
    %v1062 = vpow.pop %v1061
    %v1063 = vadd.f32 %v1062, 1.0
    %v1064 = vrcp.pop %v1063
    %v1065 = vmul.f32 1.0, %v1064
    %v1066 = vadd.f32 %v868, %v987
    %v1067 = vxor.u32 %v1066, 2147483648
    %v1068 = vmul.f32 %v1067, 1.442695
    %v1069 = vpow.pop %v1068
    %v1070 = vadd.f32 %v1069, 1.0
    %v1071 = vrcp.pop %v1070
    %v1072 = vmul.f32 1.0, %v1071
    %v1073 = vadd.f32 %v1056, %v861
    %v1074 = vmul.f32 %v1065, %v1073
    %v1075 = vadd.f32 %v869, %v1074
    %v1076 = vtanh.pop %v1075
    %v1077 = vsub.f32 1.0, %v1072
    %v1078 = vmul.f32 %v1077, %v1076
    %v1079 = vmul.f32 %v1072, %v863
    %v1080 = vadd.f32 %v1078, %v1079
    %1081 = vst [vmem:[%s6] sm:$0xff] %v1080
    %s1082 = smul.u32 1, 3
    %s1083 = smul.addr %s1082, 8
    %s1084 = scalar_lea.vmem [#allocation3], %s1083
    %v1085 = vld [vmem:[%s1084] sm:$0xff]
    %v1086 = vld [vmem:[%s1084 + $0x8] sm:$0xff]
    %v1087 = vld [vmem:[%s1084 + $0x10] sm:$0xff]
    %v1088 = vld [vmem:[#allocation6] sm:$0xff]
    %v1089 = vld [vmem:[#allocation6 + $0x8] sm:$0xff]
    %v1090 = vld [vmem:[#allocation6 + $0x10] sm:$0xff]
    %v1091 = vld [vmem:[#allocation6 + $0x18] sm:$0xff]
    %v1092 = vld [vmem:[#allocation6 + $0x20] sm:$0xff]
    %v1093 = vld [vmem:[#allocation6 + $0x28] sm:$0xff]
    %v1094 = vld [vmem:[#allocation6 + $0x30] sm:$0xff]
    %v1095 = vld [vmem:[#allocation6 + $0x38] sm:$0xff]
    %v1096 = vld [vmem:[#allocation6 + $0x40] sm:$0xff]
    %v1097 = vld [vmem:[#allocation6 + $0x48] sm:$0xff]
    %v1098 = vld [vmem:[#allocation6 + $0x50] sm:$0xff]
    %v1099 = vld [vmem:[#allocation6 + $0x58] sm:$0xff]
    %v1100 = vld [vmem:[#allocation6 + $0x60] sm:$0xff]
    %v1101 = vld [vmem:[#allocation6 + $0x68] sm:$0xff]
    %v1102 = vld [vmem:[#allocation6 + $0x70] sm:$0xff]
    %v1103 = vld [vmem:[#allocation6 + $0x78] sm:$0xff]
    %v1104 = vld [vmem:[#allocation6 + $0x80] sm:$0xff]
    %v1105 = vld [vmem:[#allocation6 + $0x88] sm:$0xff]
    %v1106 = vld [vmem:[#allocation6 + $0x90] sm:$0xff]
    %v1107 = vld [vmem:[#allocation6 + $0x98] sm:$0xff]
    %v1108 = vld [vmem:[#allocation6 + $0xa0] sm:$0xff]
    %v1109 = vld [vmem:[#allocation6 + $0xa8] sm:$0xff]
    %v1110 = vld [vmem:[#allocation6 + $0xb0] sm:$0xff]
    %v1111 = vld [vmem:[#allocation6 + $0xb8] sm:$0xff]
    %v1112 = vld [vmem:[#allocation6 + $0xc0] sm:$0xff]
    %v1113 = vld [vmem:[#allocation6 + $0xc8] sm:$0xff]
    %v1114 = vld [vmem:[#allocation6 + $0xd0] sm:$0xff]
    %v1115 = vld [vmem:[#allocation6 + $0xd8] sm:$0xff]
    %v1116 = vld [vmem:[#allocation6 + $0xe0] sm:$0xff]
    %v1117 = vld [vmem:[#allocation6 + $0xe8] sm:$0xff]
    %v1118 = vld [vmem:[#allocation6 + $0xf0] sm:$0xff]
    %v1119 = vld [vmem:[#allocation6 + $0xf8] sm:$0xff]
    %v1120 = vld [vmem:[#allocation6 + $0x100] sm:$0xff]
    %v1121 = vld [vmem:[#allocation6 + $0x108] sm:$0xff]
    %v1122 = vld [vmem:[#allocation6 + $0x110] sm:$0xff]
    %v1123 = vld [vmem:[#allocation6 + $0x118] sm:$0xff]
    %v1124 = vld [vmem:[#allocation6 + $0x120] sm:$0xff]
    %v1125 = vld [vmem:[#allocation6 + $0x128] sm:$0xff]
    %v1126 = vld [vmem:[#allocation6 + $0x130] sm:$0xff]
    %v1127 = vld [vmem:[#allocation6 + $0x138] sm:$0xff]
    %v1128 = vld [vmem:[#allocation6 + $0x140] sm:$0xff]
    %v1129 = vld [vmem:[#allocation6 + $0x148] sm:$0xff]
    %v1130 = vld [vmem:[#allocation6 + $0x150] sm:$0xff]
    %v1131 = vld [vmem:[#allocation6 + $0x158] sm:$0xff]
    %v1132 = vld [vmem:[#allocation6 + $0x160] sm:$0xff]
    %v1133 = vld [vmem:[#allocation6 + $0x168] sm:$0xff]
    %v1134 = vld [vmem:[#allocation6 + $0x170] sm:$0xff]
    %v1135 = vld [vmem:[#allocation6 + $0x178] sm:$0xff]
    %1136 = vmatprep.subr.mxu0 %v1089
    %1137 = vmatpush1.msra.mxu0 %v1088
    %1138 = vmatprep.subr.mxu0 %v1092
    %1139 = vmatpush1.msra.mxu0 %v1091
    %1140 = vmatprep.subr.mxu0 %v1095
    %1141 = vmatpush1.msra.mxu0 %v1094
    %1142 = vmatprep.subr.mxu0 %v1098
    %1143 = vmatpush1.msra.mxu0 %v1097
    %1144 = vmatprep.subr.mxu0 %v1101
    %1145 = vmatpush1.msra.mxu0 %v1100
    %1146 = vmatprep.subr.mxu0 %v1104
    %1147 = vmatpush1.msra.mxu0 %v1103
    %1148 = vmatprep.subr.mxu0 %v1107
    %1149 = vmatpush1.msra.mxu0 %v1106
    %1150 = vmatprep.subr.mxu0 %v1110
    %1151 = vmatpush1.msra.mxu0 %v1109
    %1152 = vmatprep.subr.mxu0 %v1113
    %1153 = vmatpush1.msra.mxu0 %v1112
    %1154 = vmatprep.subr.mxu0 %v1116
    %1155 = vmatpush1.msra.mxu0 %v1115
    %1156 = vmatprep.subr.mxu0 %v1119
    %1157 = vmatpush1.msra.mxu0 %v1118
    %1158 = vmatprep.subr.mxu0 %v1122
    %1159 = vmatpush1.msra.mxu0 %v1121
    %1160 = vmatprep.subr.mxu0 %v1125
    %1161 = vmatpush1.msra.mxu0 %v1124
    %1162 = vmatprep.subr.mxu0 %v1128
    %1163 = vmatpush1.msra.mxu0 %v1127
    %1164 = vmatprep.subr.mxu0 %v1131
    %1165 = vmatpush1.msra.mxu0 %v1130
    %1166 = vmatprep.subr.mxu0 %v1134
    %1167 = vmatpush1.msra.mxu0 %v1133
    %1168 = vmatprep.subr.mxu0 0.0
    %1169 = vmatpush1.msra.mxu0 0.0
    %1170 = vmatprep.subr.mxu0 0.0
    %1171 = vmatpush1.msra.mxu0 0.0
    %1172 = vmatprep.subr.mxu0 0.0
    %1173 = vmatpush1.msra.mxu0 0.0
    %1174 = vmatprep.subr.mxu0 0.0
    %1175 = vmatpush1.msra.mxu0 0.0
    %1176 = vmatprep.subr.mxu0 0.0
    %1177 = vmatpush1.msra.mxu0 0.0
    %1178 = vmatprep.subr.mxu0 0.0
    %1179 = vmatpush1.msra.mxu0 0.0
    %1180 = vmatprep.subr.mxu0 0.0
    %1181 = vmatpush1.msra.mxu0 0.0
    %1182 = vmatprep.subr.mxu0 0.0
    %1183 = vmatpush1.msra.mxu0 0.0
    %1184 = vmatprep.subr.mxu0 0.0
    %1185 = vmatpush1.msra.mxu0 0.0
    %1186 = vmatprep.subr.mxu0 0.0
    %1187 = vmatpush1.msra.mxu0 0.0
    %1188 = vmatprep.subr.mxu0 0.0
    %1189 = vmatpush1.msra.mxu0 0.0
    %1190 = vmatprep.subr.mxu0 0.0
    %1191 = vmatpush1.msra.mxu0 0.0
    %1192 = vmatprep.subr.mxu0 0.0
    %1193 = vmatpush1.msra.mxu0 0.0
    %1194 = vmatprep.subr.mxu0 0.0
    %1195 = vmatpush1.msra.mxu0 0.0
    %1196 = vmatprep.subr.mxu0 0.0
    %1197 = vmatpush1.msra.mxu0 0.0
    %1198 = vmatprep.subr.mxu0 0.0
    %1199 = vmatpush1.msra.mxu0 0.0
    %1200 = vmatprep.mubr.f32.mxu0 0.0
    %1201 = vmatmul.mubr.f32.gmra.mrb[0].mxu0 %v1080
    %v1202 = vpop.f32.mrb[0].mxu0
    %v1203 = vadd.f32 0.0, %v1202
    %v1204 = vpop.f32.mrb[0].mxu0
    %v1205 = vadd.f32 0.0, %v1204
    %1206 = vdwg.mxu0
    %1207 = vmatprep.subr.mxu0 0.0
    %1208 = vmatpush1.msra.mxu0 %v1090
    %1209 = vmatprep.subr.mxu0 0.0
    %1210 = vmatpush1.msra.mxu0 %v1093
    %1211 = vmatprep.subr.mxu0 0.0
    %1212 = vmatpush1.msra.mxu0 %v1096
    %1213 = vmatprep.subr.mxu0 0.0
    %1214 = vmatpush1.msra.mxu0 %v1099
    %1215 = vmatprep.subr.mxu0 0.0
    %1216 = vmatpush1.msra.mxu0 %v1102
    %1217 = vmatprep.subr.mxu0 0.0
    %1218 = vmatpush1.msra.mxu0 %v1105
    %1219 = vmatprep.subr.mxu0 0.0
    %1220 = vmatpush1.msra.mxu0 %v1108
    %1221 = vmatprep.subr.mxu0 0.0
    %1222 = vmatpush1.msra.mxu0 %v1111
    %1223 = vmatprep.subr.mxu0 0.0
    %1224 = vmatpush1.msra.mxu0 %v1114
    %1225 = vmatprep.subr.mxu0 0.0
    %1226 = vmatpush1.msra.mxu0 %v1117
    %1227 = vmatprep.subr.mxu0 0.0
    %1228 = vmatpush1.msra.mxu0 %v1120
    %1229 = vmatprep.subr.mxu0 0.0
    %1230 = vmatpush1.msra.mxu0 %v1123
    %1231 = vmatprep.subr.mxu0 0.0
    %1232 = vmatpush1.msra.mxu0 %v1126
    %1233 = vmatprep.subr.mxu0 0.0
    %1234 = vmatpush1.msra.mxu0 %v1129
    %1235 = vmatprep.subr.mxu0 0.0
    %1236 = vmatpush1.msra.mxu0 %v1132
    %1237 = vmatprep.subr.mxu0 0.0
    %1238 = vmatpush1.msra.mxu0 %v1135
    %1239 = vmatprep.subr.mxu0 0.0
    %1240 = vmatpush1.msra.mxu0 0.0
    %1241 = vmatprep.subr.mxu0 0.0
    %1242 = vmatpush1.msra.mxu0 0.0
    %1243 = vmatprep.subr.mxu0 0.0
    %1244 = vmatpush1.msra.mxu0 0.0
    %1245 = vmatprep.subr.mxu0 0.0
    %1246 = vmatpush1.msra.mxu0 0.0
    %1247 = vmatprep.subr.mxu0 0.0
    %1248 = vmatpush1.msra.mxu0 0.0
    %1249 = vmatprep.subr.mxu0 0.0
    %1250 = vmatpush1.msra.mxu0 0.0
    %1251 = vmatprep.subr.mxu0 0.0
    %1252 = vmatpush1.msra.mxu0 0.0
    %1253 = vmatprep.subr.mxu0 0.0
    %1254 = vmatpush1.msra.mxu0 0.0
    %1255 = vmatprep.subr.mxu0 0.0
    %1256 = vmatpush1.msra.mxu0 0.0
    %1257 = vmatprep.subr.mxu0 0.0
    %1258 = vmatpush1.msra.mxu0 0.0
    %1259 = vmatprep.subr.mxu0 0.0
    %1260 = vmatpush1.msra.mxu0 0.0
    %1261 = vmatprep.subr.mxu0 0.0
    %1262 = vmatpush1.msra.mxu0 0.0
    %1263 = vmatprep.subr.mxu0 0.0
    %1264 = vmatpush1.msra.mxu0 0.0
    %1265 = vmatprep.subr.mxu0 0.0
    %1266 = vmatpush1.msra.mxu0 0.0
    %1267 = vmatprep.subr.mxu0 0.0
    %1268 = vmatpush1.msra.mxu0 0.0
    %1269 = vmatprep.subr.mxu0 0.0
    %1270 = vmatpush1.msra.mxu0 0.0
    %1271 = vmatprep.mubr.f32.mxu0 0.0
    %1272 = vmatmul.mubr.f32.gmra.mrb[0].mxu0 %v1080
    %v1273 = vpop.f32.mrb[0].mxu0
    %v1274 = vadd.f32 0.0, %v1273
    %v1275 = vpop.f32.mrb[0].mxu0
    %1276 = vdwg.mxu0
    %v1277 = vadd.f32 %v1085, %v1203
    %v1278 = vxor.u32 %v1277, 2147483648
    %v1279 = vmul.f32 %v1278, 1.442695
    %v1280 = vpow.pop %v1279
    %v1281 = vadd.f32 %v1280, 1.0
    %v1282 = vrcp.pop %v1281
    %v1283 = vmul.f32 1.0, %v1282
    %v1284 = vadd.f32 %v1086, %v1205
    %v1285 = vxor.u32 %v1284, 2147483648
    %v1286 = vmul.f32 %v1285, 1.442695
    %v1287 = vpow.pop %v1286
    %v1288 = vadd.f32 %v1287, 1.0
    %v1289 = vrcp.pop %v1288
    %v1290 = vmul.f32 1.0, %v1289
    %v1291 = vadd.f32 %v1274, %v861
    %v1292 = vmul.f32 %v1283, %v1291
    %v1293 = vadd.f32 %v1087, %v1292
    %v1294 = vtanh.pop %v1293
    %v1295 = vsub.f32 1.0, %v1290
    %v1296 = vmul.f32 %v1295, %v1294
    %v1297 = vmul.f32 %v1290, %v1080
    %v1298 = vadd.f32 %v1296, %v1297
    %s1299 = scalar_lea.vmem %s6, 8
    %1300 = vst [vmem:[%s1299] sm:$0xff] %v1298
    %s1301 = smul.u32 2, 3
    %s1302 = smul.addr %s1301, 8
    %s1303 = scalar_lea.vmem [#allocation3], %s1302
    %v1304 = vld [vmem:[%s1303] sm:$0xff]
    %v1305 = vld [vmem:[%s1303 + $0x8] sm:$0xff]
    %v1306 = vld [vmem:[%s1303 + $0x10] sm:$0xff]
    %v1307 = vld [vmem:[#allocation6] sm:$0xff]
    %v1308 = vld [vmem:[#allocation6 + $0x8] sm:$0xff]
    %v1309 = vld [vmem:[#allocation6 + $0x10] sm:$0xff]
    %v1310 = vld [vmem:[#allocation6 + $0x18] sm:$0xff]
    %v1311 = vld [vmem:[#allocation6 + $0x20] sm:$0xff]
    %v1312 = vld [vmem:[#allocation6 + $0x28] sm:$0xff]
    %v1313 = vld [vmem:[#allocation6 + $0x30] sm:$0xff]
    %v1314 = vld [vmem:[#allocation6 + $0x38] sm:$0xff]
    %v1315 = vld [vmem:[#allocation6 + $0x40] sm:$0xff]
    %v1316 = vld [vmem:[#allocation6 + $0x48] sm:$0xff]
    %v1317 = vld [vmem:[#allocation6 + $0x50] sm:$0xff]
    %v1318 = vld [vmem:[#allocation6 + $0x58] sm:$0xff]
    %v1319 = vld [vmem:[#allocation6 + $0x60] sm:$0xff]
    %v1320 = vld [vmem:[#allocation6 + $0x68] sm:$0xff]
    %v1321 = vld [vmem:[#allocation6 + $0x70] sm:$0xff]
    %v1322 = vld [vmem:[#allocation6 + $0x78] sm:$0xff]
    %v1323 = vld [vmem:[#allocation6 + $0x80] sm:$0xff]
    %v1324 = vld [vmem:[#allocation6 + $0x88] sm:$0xff]
    %v1325 = vld [vmem:[#allocation6 + $0x90] sm:$0xff]
    %v1326 = vld [vmem:[#allocation6 + $0x98] sm:$0xff]
    %v1327 = vld [vmem:[#allocation6 + $0xa0] sm:$0xff]
    %v1328 = vld [vmem:[#allocation6 + $0xa8] sm:$0xff]
    %v1329 = vld [vmem:[#allocation6 + $0xb0] sm:$0xff]
    %v1330 = vld [vmem:[#allocation6 + $0xb8] sm:$0xff]
    %v1331 = vld [vmem:[#allocation6 + $0xc0] sm:$0xff]
    %v1332 = vld [vmem:[#allocation6 + $0xc8] sm:$0xff]
    %v1333 = vld [vmem:[#allocation6 + $0xd0] sm:$0xff]
    %v1334 = vld [vmem:[#allocation6 + $0xd8] sm:$0xff]
    %v1335 = vld [vmem:[#allocation6 + $0xe0] sm:$0xff]
    %v1336 = vld [vmem:[#allocation6 + $0xe8] sm:$0xff]
    %v1337 = vld [vmem:[#allocation6 + $0xf0] sm:$0xff]
    %v1338 = vld [vmem:[#allocation6 + $0xf8] sm:$0xff]
    %v1339 = vld [vmem:[#allocation6 + $0x100] sm:$0xff]
    %v1340 = vld [vmem:[#allocation6 + $0x108] sm:$0xff]
    %v1341 = vld [vmem:[#allocation6 + $0x110] sm:$0xff]
    %v1342 = vld [vmem:[#allocation6 + $0x118] sm:$0xff]
    %v1343 = vld [vmem:[#allocation6 + $0x120] sm:$0xff]
    %v1344 = vld [vmem:[#allocation6 + $0x128] sm:$0xff]
    %v1345 = vld [vmem:[#allocation6 + $0x130] sm:$0xff]
    %v1346 = vld [vmem:[#allocation6 + $0x138] sm:$0xff]
    %v1347 = vld [vmem:[#allocation6 + $0x140] sm:$0xff]
    %v1348 = vld [vmem:[#allocation6 + $0x148] sm:$0xff]
    %v1349 = vld [vmem:[#allocation6 + $0x150] sm:$0xff]
    %v1350 = vld [vmem:[#allocation6 + $0x158] sm:$0xff]
    %v1351 = vld [vmem:[#allocation6 + $0x160] sm:$0xff]
    %v1352 = vld [vmem:[#allocation6 + $0x168] sm:$0xff]
    %v1353 = vld [vmem:[#allocation6 + $0x170] sm:$0xff]
    %v1354 = vld [vmem:[#allocation6 + $0x178] sm:$0xff]
    %1355 = vmatprep.subr.mxu0 %v1308
    %1356 = vmatpush1.msra.mxu0 %v1307
    %1357 = vmatprep.subr.mxu0 %v1311
    %1358 = vmatpush1.msra.mxu0 %v1310
    %1359 = vmatprep.subr.mxu0 %v1314
    %1360 = vmatpush1.msra.mxu0 %v1313
    %1361 = vmatprep.subr.mxu0 %v1317
    %1362 = vmatpush1.msra.mxu0 %v1316
    %1363 = vmatprep.subr.mxu0 %v1320
    %1364 = vmatpush1.msra.mxu0 %v1319
    %1365 = vmatprep.subr.mxu0 %v1323
    %1366 = vmatpush1.msra.mxu0 %v1322
    %1367 = vmatprep.subr.mxu0 %v1326
    %1368 = vmatpush1.msra.mxu0 %v1325
    %1369 = vmatprep.subr.mxu0 %v1329
    %1370 = vmatpush1.msra.mxu0 %v1328
    %1371 = vmatprep.subr.mxu0 %v1332
    %1372 = vmatpush1.msra.mxu0 %v1331
    %1373 = vmatprep.subr.mxu0 %v1335
    %1374 = vmatpush1.msra.mxu0 %v1334
    %1375 = vmatprep.subr.mxu0 %v1338
    %1376 = vmatpush1.msra.mxu0 %v1337
    %1377 = vmatprep.subr.mxu0 %v1341
    %1378 = vmatpush1.msra.mxu0 %v1340
    %1379 = vmatprep.subr.mxu0 %v1344
    %1380 = vmatpush1.msra.mxu0 %v1343
    %1381 = vmatprep.subr.mxu0 %v1347
    %1382 = vmatpush1.msra.mxu0 %v1346
    %1383 = vmatprep.subr.mxu0 %v1350
    %1384 = vmatpush1.msra.mxu0 %v1349
    %1385 = vmatprep.subr.mxu0 %v1353
    %1386 = vmatpush1.msra.mxu0 %v1352
    %1387 = vmatprep.subr.mxu0 0.0
    %1388 = vmatpush1.msra.mxu0 0.0
    %1389 = vmatprep.subr.mxu0 0.0
    %1390 = vmatpush1.msra.mxu0 0.0
    %1391 = vmatprep.subr.mxu0 0.0
    %1392 = vmatpush1.msra.mxu0 0.0
    %1393 = vmatprep.subr.mxu0 0.0
    %1394 = vmatpush1.msra.mxu0 0.0
    %1395 = vmatprep.subr.mxu0 0.0
    %1396 = vmatpush1.msra.mxu0 0.0
    %1397 = vmatprep.subr.mxu0 0.0
    %1398 = vmatpush1.msra.mxu0 0.0
    %1399 = vmatprep.subr.mxu0 0.0
    %1400 = vmatpush1.msra.mxu0 0.0
    %1401 = vmatprep.subr.mxu0 0.0
    %1402 = vmatpush1.msra.mxu0 0.0
    %1403 = vmatprep.subr.mxu0 0.0
    %1404 = vmatpush1.msra.mxu0 0.0
    %1405 = vmatprep.subr.mxu0 0.0
    %1406 = vmatpush1.msra.mxu0 0.0
    %1407 = vmatprep.subr.mxu0 0.0
    %1408 = vmatpush1.msra.mxu0 0.0
    %1409 = vmatprep.subr.mxu0 0.0
    %1410 = vmatpush1.msra.mxu0 0.0
    %1411 = vmatprep.subr.mxu0 0.0
    %1412 = vmatpush1.msra.mxu0 0.0
    %1413 = vmatprep.subr.mxu0 0.0
    %1414 = vmatpush1.msra.mxu0 0.0
    %1415 = vmatprep.subr.mxu0 0.0
    %1416 = vmatpush1.msra.mxu0 0.0
    %1417 = vmatprep.subr.mxu0 0.0
    %1418 = vmatpush1.msra.mxu0 0.0
    %1419 = vmatprep.mubr.f32.mxu0 0.0
    %1420 = vmatmul.mubr.f32.gmra.mrb[0].mxu0 %v1298
    %v1421 = vpop.f32.mrb[0].mxu0
    %v1422 = vadd.f32 0.0, %v1421
    %v1423 = vpop.f32.mrb[0].mxu0
    %v1424 = vadd.f32 0.0, %v1423
    %1425 = vdwg.mxu0
    %1426 = vmatprep.subr.mxu0 0.0
    %1427 = vmatpush1.msra.mxu0 %v1309
    %1428 = vmatprep.subr.mxu0 0.0
    %1429 = vmatpush1.msra.mxu0 %v1312
    %1430 = vmatprep.subr.mxu0 0.0
    %1431 = vmatpush1.msra.mxu0 %v1315
    %1432 = vmatprep.subr.mxu0 0.0
    %1433 = vmatpush1.msra.mxu0 %v1318
    %1434 = vmatprep.subr.mxu0 0.0
    %1435 = vmatpush1.msra.mxu0 %v1321
    %1436 = vmatprep.subr.mxu0 0.0
    %1437 = vmatpush1.msra.mxu0 %v1324
    %1438 = vmatprep.subr.mxu0 0.0
    %1439 = vmatpush1.msra.mxu0 %v1327
    %1440 = vmatprep.subr.mxu0 0.0
    %1441 = vmatpush1.msra.mxu0 %v1330
    %1442 = vmatprep.subr.mxu0 0.0
    %1443 = vmatpush1.msra.mxu0 %v1333
    %1444 = vmatprep.subr.mxu0 0.0
    %1445 = vmatpush1.msra.mxu0 %v1336
    %1446 = vmatprep.subr.mxu0 0.0
    %1447 = vmatpush1.msra.mxu0 %v1339
    %1448 = vmatprep.subr.mxu0 0.0
    %1449 = vmatpush1.msra.mxu0 %v1342
    %1450 = vmatprep.subr.mxu0 0.0
    %1451 = vmatpush1.msra.mxu0 %v1345
    %1452 = vmatprep.subr.mxu0 0.0
    %1453 = vmatpush1.msra.mxu0 %v1348
    %1454 = vmatprep.subr.mxu0 0.0
    %1455 = vmatpush1.msra.mxu0 %v1351
    %1456 = vmatprep.subr.mxu0 0.0
    %1457 = vmatpush1.msra.mxu0 %v1354
    %1458 = vmatprep.subr.mxu0 0.0
    %1459 = vmatpush1.msra.mxu0 0.0
    %1460 = vmatprep.subr.mxu0 0.0
    %1461 = vmatpush1.msra.mxu0 0.0
    %1462 = vmatprep.subr.mxu0 0.0
    %1463 = vmatpush1.msra.mxu0 0.0
    %1464 = vmatprep.subr.mxu0 0.0
    %1465 = vmatpush1.msra.mxu0 0.0
    %1466 = vmatprep.subr.mxu0 0.0
    %1467 = vmatpush1.msra.mxu0 0.0
    %1468 = vmatprep.subr.mxu0 0.0
    %1469 = vmatpush1.msra.mxu0 0.0
    %1470 = vmatprep.subr.mxu0 0.0
    %1471 = vmatpush1.msra.mxu0 0.0
    %1472 = vmatprep.subr.mxu0 0.0
    %1473 = vmatpush1.msra.mxu0 0.0
    %1474 = vmatprep.subr.mxu0 0.0
    %1475 = vmatpush1.msra.mxu0 0.0
    %1476 = vmatprep.subr.mxu0 0.0
    %1477 = vmatpush1.msra.mxu0 0.0
    %1478 = vmatprep.subr.mxu0 0.0
    %1479 = vmatpush1.msra.mxu0 0.0
    %1480 = vmatprep.subr.mxu0 0.0
    %1481 = vmatpush1.msra.mxu0 0.0
    %1482 = vmatprep.subr.mxu0 0.0
    %1483 = vmatpush1.msra.mxu0 0.0
    %1484 = vmatprep.subr.mxu0 0.0
    %1485 = vmatpush1.msra.mxu0 0.0
    %1486 = vmatprep.subr.mxu0 0.0
    %1487 = vmatpush1.msra.mxu0 0.0
    %1488 = vmatprep.subr.mxu0 0.0
    %1489 = vmatpush1.msra.mxu0 0.0
    %1490 = vmatprep.mubr.f32.mxu0 0.0
    %1491 = vmatmul.mubr.f32.gmra.mrb[0].mxu0 %v1298
    %v1492 = vpop.f32.mrb[0].mxu0
    %v1493 = vadd.f32 0.0, %v1492
    %v1494 = vpop.f32.mrb[0].mxu0
    %1495 = vdwg.mxu0
    %v1496 = vadd.f32 %v1304, %v1422
    %v1497 = vxor.u32 %v1496, 2147483648
    %v1498 = vmul.f32 %v1497, 1.442695
    %v1499 = vpow.pop %v1498
    %v1500 = vadd.f32 %v1499, 1.0
    %v1501 = vrcp.pop %v1500
    %v1502 = vmul.f32 1.0, %v1501
    %v1503 = vadd.f32 %v1305, %v1424
    %v1504 = vxor.u32 %v1503, 2147483648
    %v1505 = vmul.f32 %v1504, 1.442695
    %v1506 = vpow.pop %v1505
    %v1507 = vadd.f32 %v1506, 1.0
    %v1508 = vrcp.pop %v1507
    %v1509 = vmul.f32 1.0, %v1508
    %v1510 = vadd.f32 %v1493, %v861
    %v1511 = vmul.f32 %v1502, %v1510
    %v1512 = vadd.f32 %v1306, %v1511
    %v1513 = vtanh.pop %v1512
    %v1514 = vsub.f32 1.0, %v1509
    %v1515 = vmul.f32 %v1514, %v1513
    %v1516 = vmul.f32 %v1509, %v1298
    %v1517 = vadd.f32 %v1515, %v1516
    %s1518 = scalar_lea.vmem %s6, 16
    %1519 = vst [vmem:[%s1518] sm:$0xff] %v1517
    %s1520 = smul.u32 3, 3
    %s1521 = smul.addr %s1520, 8
    %s1522 = scalar_lea.vmem [#allocation3], %s1521
    %v1523 = vld [vmem:[%s1522] sm:$0xff]
    %v1524 = vld [vmem:[%s1522 + $0x8] sm:$0xff]
    %v1525 = vld [vmem:[%s1522 + $0x10] sm:$0xff]
    %v1526 = vld [vmem:[#allocation6] sm:$0xff]
    %v1527 = vld [vmem:[#allocation6 + $0x8] sm:$0xff]
    %v1528 = vld [vmem:[#allocation6 + $0x10] sm:$0xff]
    %v1529 = vld [vmem:[#allocation6 + $0x18] sm:$0xff]
    %v1530 = vld [vmem:[#allocation6 + $0x20] sm:$0xff]
    %v1531 = vld [vmem:[#allocation6 + $0x28] sm:$0xff]
    %v1532 = vld [vmem:[#allocation6 + $0x30] sm:$0xff]
    %v1533 = vld [vmem:[#allocation6 + $0x38] sm:$0xff]
    %v1534 = vld [vmem:[#allocation6 + $0x40] sm:$0xff]
    %v1535 = vld [vmem:[#allocation6 + $0x48] sm:$0xff]
    %v1536 = vld [vmem:[#allocation6 + $0x50] sm:$0xff]
    %v1537 = vld [vmem:[#allocation6 + $0x58] sm:$0xff]
    %v1538 = vld [vmem:[#allocation6 + $0x60] sm:$0xff]
    %v1539 = vld [vmem:[#allocation6 + $0x68] sm:$0xff]
    %v1540 = vld [vmem:[#allocation6 + $0x70] sm:$0xff]
    %v1541 = vld [vmem:[#allocation6 + $0x78] sm:$0xff]
    %v1542 = vld [vmem:[#allocation6 + $0x80] sm:$0xff]
    %v1543 = vld [vmem:[#allocation6 + $0x88] sm:$0xff]
    %v1544 = vld [vmem:[#allocation6 + $0x90] sm:$0xff]
    %v1545 = vld [vmem:[#allocation6 + $0x98] sm:$0xff]
    %v1546 = vld [vmem:[#allocation6 + $0xa0] sm:$0xff]
    %v1547 = vld [vmem:[#allocation6 + $0xa8] sm:$0xff]
    %v1548 = vld [vmem:[#allocation6 + $0xb0] sm:$0xff]
    %v1549 = vld [vmem:[#allocation6 + $0xb8] sm:$0xff]
    %v1550 = vld [vmem:[#allocation6 + $0xc0] sm:$0xff]
    %v1551 = vld [vmem:[#allocation6 + $0xc8] sm:$0xff]
    %v1552 = vld [vmem:[#allocation6 + $0xd0] sm:$0xff]
    %v1553 = vld [vmem:[#allocation6 + $0xd8] sm:$0xff]
    %v1554 = vld [vmem:[#allocation6 + $0xe0] sm:$0xff]
    %v1555 = vld [vmem:[#allocation6 + $0xe8] sm:$0xff]
    %v1556 = vld [vmem:[#allocation6 + $0xf0] sm:$0xff]
    %v1557 = vld [vmem:[#allocation6 + $0xf8] sm:$0xff]
    %v1558 = vld [vmem:[#allocation6 + $0x100] sm:$0xff]
    %v1559 = vld [vmem:[#allocation6 + $0x108] sm:$0xff]
    %v1560 = vld [vmem:[#allocation6 + $0x110] sm:$0xff]
    %v1561 = vld [vmem:[#allocation6 + $0x118] sm:$0xff]
    %v1562 = vld [vmem:[#allocation6 + $0x120] sm:$0xff]
    %v1563 = vld [vmem:[#allocation6 + $0x128] sm:$0xff]
    %v1564 = vld [vmem:[#allocation6 + $0x130] sm:$0xff]
    %v1565 = vld [vmem:[#allocation6 + $0x138] sm:$0xff]
    %v1566 = vld [vmem:[#allocation6 + $0x140] sm:$0xff]
    %v1567 = vld [vmem:[#allocation6 + $0x148] sm:$0xff]
    %v1568 = vld [vmem:[#allocation6 + $0x150] sm:$0xff]
    %v1569 = vld [vmem:[#allocation6 + $0x158] sm:$0xff]
    %v1570 = vld [vmem:[#allocation6 + $0x160] sm:$0xff]
    %v1571 = vld [vmem:[#allocation6 + $0x168] sm:$0xff]
    %v1572 = vld [vmem:[#allocation6 + $0x170] sm:$0xff]
    %v1573 = vld [vmem:[#allocation6 + $0x178] sm:$0xff]
    %1574 = vmatprep.subr.mxu0 %v1527
    %1575 = vmatpush1.msra.mxu0 %v1526
    %1576 = vmatprep.subr.mxu0 %v1530
    %1577 = vmatpush1.msra.mxu0 %v1529
    %1578 = vmatprep.subr.mxu0 %v1533
    %1579 = vmatpush1.msra.mxu0 %v1532
    %1580 = vmatprep.subr.mxu0 %v1536
    %1581 = vmatpush1.msra.mxu0 %v1535
    %1582 = vmatprep.subr.mxu0 %v1539
    %1583 = vmatpush1.msra.mxu0 %v1538
    %1584 = vmatprep.subr.mxu0 %v1542
    %1585 = vmatpush1.msra.mxu0 %v1541
    %1586 = vmatprep.subr.mxu0 %v1545
    %1587 = vmatpush1.msra.mxu0 %v1544
    %1588 = vmatprep.subr.mxu0 %v1548
    %1589 = vmatpush1.msra.mxu0 %v1547
    %1590 = vmatprep.subr.mxu0 %v1551
    %1591 = vmatpush1.msra.mxu0 %v1550
    %1592 = vmatprep.subr.mxu0 %v1554
    %1593 = vmatpush1.msra.mxu0 %v1553
    %1594 = vmatprep.subr.mxu0 %v1557
    %1595 = vmatpush1.msra.mxu0 %v1556
    %1596 = vmatprep.subr.mxu0 %v1560
    %1597 = vmatpush1.msra.mxu0 %v1559
    %1598 = vmatprep.subr.mxu0 %v1563
    %1599 = vmatpush1.msra.mxu0 %v1562
    %1600 = vmatprep.subr.mxu0 %v1566
    %1601 = vmatpush1.msra.mxu0 %v1565
    %1602 = vmatprep.subr.mxu0 %v1569
    %1603 = vmatpush1.msra.mxu0 %v1568
    %1604 = vmatprep.subr.mxu0 %v1572
    %1605 = vmatpush1.msra.mxu0 %v1571
    %1606 = vmatprep.subr.mxu0 0.0
    %1607 = vmatpush1.msra.mxu0 0.0
    %1608 = vmatprep.subr.mxu0 0.0
    %1609 = vmatpush1.msra.mxu0 0.0
    %1610 = vmatprep.subr.mxu0 0.0
    %1611 = vmatpush1.msra.mxu0 0.0
    %1612 = vmatprep.subr.mxu0 0.0
    %1613 = vmatpush1.msra.mxu0 0.0
    %1614 = vmatprep.subr.mxu0 0.0
    %1615 = vmatpush1.msra.mxu0 0.0
    %1616 = vmatprep.subr.mxu0 0.0
    %1617 = vmatpush1.msra.mxu0 0.0
    %1618 = vmatprep.subr.mxu0 0.0
    %1619 = vmatpush1.msra.mxu0 0.0
    %1620 = vmatprep.subr.mxu0 0.0
    %1621 = vmatpush1.msra.mxu0 0.0
    %1622 = vmatprep.subr.mxu0 0.0
    %1623 = vmatpush1.msra.mxu0 0.0
    %1624 = vmatprep.subr.mxu0 0.0
    %1625 = vmatpush1.msra.mxu0 0.0
    %1626 = vmatprep.subr.mxu0 0.0
    %1627 = vmatpush1.msra.mxu0 0.0
    %1628 = vmatprep.subr.mxu0 0.0
    %1629 = vmatpush1.msra.mxu0 0.0
    %1630 = vmatprep.subr.mxu0 0.0
    %1631 = vmatpush1.msra.mxu0 0.0
    %1632 = vmatprep.subr.mxu0 0.0
    %1633 = vmatpush1.msra.mxu0 0.0
    %1634 = vmatprep.subr.mxu0 0.0
    %1635 = vmatpush1.msra.mxu0 0.0
    %1636 = vmatprep.subr.mxu0 0.0
    %1637 = vmatpush1.msra.mxu0 0.0
    %1638 = vmatprep.mubr.f32.mxu0 0.0
    %1639 = vmatmul.mubr.f32.gmra.mrb[0].mxu0 %v1517
    %v1640 = vpop.f32.mrb[0].mxu0
    %v1641 = vadd.f32 0.0, %v1640
    %v1642 = vpop.f32.mrb[0].mxu0
    %v1643 = vadd.f32 0.0, %v1642
    %1644 = vdwg.mxu0
    %1645 = vmatprep.subr.mxu0 0.0
    %1646 = vmatpush1.msra.mxu0 %v1528
    %1647 = vmatprep.subr.mxu0 0.0
    %1648 = vmatpush1.msra.mxu0 %v1531
    %1649 = vmatprep.subr.mxu0 0.0
    %1650 = vmatpush1.msra.mxu0 %v1534
    %1651 = vmatprep.subr.mxu0 0.0
    %1652 = vmatpush1.msra.mxu0 %v1537
    %1653 = vmatprep.subr.mxu0 0.0
    %1654 = vmatpush1.msra.mxu0 %v1540
    %1655 = vmatprep.subr.mxu0 0.0
    %1656 = vmatpush1.msra.mxu0 %v1543
    %1657 = vmatprep.subr.mxu0 0.0
    %1658 = vmatpush1.msra.mxu0 %v1546
    %1659 = vmatprep.subr.mxu0 0.0
    %1660 = vmatpush1.msra.mxu0 %v1549
    %1661 = vmatprep.subr.mxu0 0.0
    %1662 = vmatpush1.msra.mxu0 %v1552
    %1663 = vmatprep.subr.mxu0 0.0
    %1664 = vmatpush1.msra.mxu0 %v1555
    %1665 = vmatprep.subr.mxu0 0.0
    %1666 = vmatpush1.msra.mxu0 %v1558
    %1667 = vmatprep.subr.mxu0 0.0
    %1668 = vmatpush1.msra.mxu0 %v1561
    %1669 = vmatprep.subr.mxu0 0.0
    %1670 = vmatpush1.msra.mxu0 %v1564
    %1671 = vmatprep.subr.mxu0 0.0
    %1672 = vmatpush1.msra.mxu0 %v1567
    %1673 = vmatprep.subr.mxu0 0.0
    %1674 = vmatpush1.msra.mxu0 %v1570
    %1675 = vmatprep.subr.mxu0 0.0
    %1676 = vmatpush1.msra.mxu0 %v1573
    %1677 = vmatprep.subr.mxu0 0.0
    %1678 = vmatpush1.msra.mxu0 0.0
    %1679 = vmatprep.subr.mxu0 0.0
    %1680 = vmatpush1.msra.mxu0 0.0
    %1681 = vmatprep.subr.mxu0 0.0
    %1682 = vmatpush1.msra.mxu0 0.0
    %1683 = vmatprep.subr.mxu0 0.0
    %1684 = vmatpush1.msra.mxu0 0.0
    %1685 = vmatprep.subr.mxu0 0.0
    %1686 = vmatpush1.msra.mxu0 0.0
    %1687 = vmatprep.subr.mxu0 0.0
    %1688 = vmatpush1.msra.mxu0 0.0
    %1689 = vmatprep.subr.mxu0 0.0
    %1690 = vmatpush1.msra.mxu0 0.0
    %1691 = vmatprep.subr.mxu0 0.0
    %1692 = vmatpush1.msra.mxu0 0.0
    %1693 = vmatprep.subr.mxu0 0.0
    %1694 = vmatpush1.msra.mxu0 0.0
    %1695 = vmatprep.subr.mxu0 0.0
    %1696 = vmatpush1.msra.mxu0 0.0
    %1697 = vmatprep.subr.mxu0 0.0
    %1698 = vmatpush1.msra.mxu0 0.0
    %1699 = vmatprep.subr.mxu0 0.0
    %1700 = vmatpush1.msra.mxu0 0.0
    %1701 = vmatprep.subr.mxu0 0.0
    %1702 = vmatpush1.msra.mxu0 0.0
    %1703 = vmatprep.subr.mxu0 0.0
    %1704 = vmatpush1.msra.mxu0 0.0
    %1705 = vmatprep.subr.mxu0 0.0
    %1706 = vmatpush1.msra.mxu0 0.0
    %1707 = vmatprep.subr.mxu0 0.0
    %1708 = vmatpush1.msra.mxu0 0.0
    %1709 = vmatprep.mubr.f32.mxu0 0.0
    %1710 = vmatmul.mubr.f32.gmra.mrb[0].mxu0 %v1517
    %v1711 = vpop.f32.mrb[0].mxu0
    %v1712 = vadd.f32 0.0, %v1711
    %v1713 = vpop.f32.mrb[0].mxu0
    %1714 = vdwg.mxu0
    %v1715 = vadd.f32 %v1523, %v1641
    %v1716 = vxor.u32 %v1715, 2147483648
    %v1717 = vmul.f32 %v1716, 1.442695
    %v1718 = vpow.pop %v1717
    %v1719 = vadd.f32 %v1718, 1.0
    %v1720 = vrcp.pop %v1719
    %v1721 = vmul.f32 1.0, %v1720
    %v1722 = vadd.f32 %v1524, %v1643
    %v1723 = vxor.u32 %v1722, 2147483648
    %v1724 = vmul.f32 %v1723, 1.442695
    %v1725 = vpow.pop %v1724
    %v1726 = vadd.f32 %v1725, 1.0
    %v1727 = vrcp.pop %v1726
    %v1728 = vmul.f32 1.0, %v1727
    %v1729 = vadd.f32 %v1712, %v861
    %v1730 = vmul.f32 %v1721, %v1729
    %v1731 = vadd.f32 %v1525, %v1730
    %v1732 = vtanh.pop %v1731
    %v1733 = vsub.f32 1.0, %v1728
    %v1734 = vmul.f32 %v1733, %v1732
    %v1735 = vmul.f32 %v1728, %v1517
    %v1736 = vadd.f32 %v1734, %v1735
    %s1737 = scalar_lea.vmem %s6, 24
    %1738 = vst [vmem:[%s1737] sm:$0xff] %v1736
    %s1739 = smul.u32 4, 3
    %s1740 = smul.addr %s1739, 8
    %s1741 = scalar_lea.vmem [#allocation3], %s1740
    %v1742 = vld [vmem:[%s1741] sm:$0xff]
    %v1743 = vld [vmem:[%s1741 + $0x8] sm:$0xff]
    %v1744 = vld [vmem:[%s1741 + $0x10] sm:$0xff]
    %v1745 = vld [vmem:[#allocation6] sm:$0xff]
    %v1746 = vld [vmem:[#allocation6 + $0x8] sm:$0xff]
    %v1747 = vld [vmem:[#allocation6 + $0x10] sm:$0xff]
    %v1748 = vld [vmem:[#allocation6 + $0x18] sm:$0xff]
    %v1749 = vld [vmem:[#allocation6 + $0x20] sm:$0xff]
    %v1750 = vld [vmem:[#allocation6 + $0x28] sm:$0xff]
    %v1751 = vld [vmem:[#allocation6 + $0x30] sm:$0xff]
    %v1752 = vld [vmem:[#allocation6 + $0x38] sm:$0xff]
    %v1753 = vld [vmem:[#allocation6 + $0x40] sm:$0xff]
    %v1754 = vld [vmem:[#allocation6 + $0x48] sm:$0xff]
    %v1755 = vld [vmem:[#allocation6 + $0x50] sm:$0xff]
    %v1756 = vld [vmem:[#allocation6 + $0x58] sm:$0xff]
    %v1757 = vld [vmem:[#allocation6 + $0x60] sm:$0xff]
    %v1758 = vld [vmem:[#allocation6 + $0x68] sm:$0xff]
    %v1759 = vld [vmem:[#allocation6 + $0x70] sm:$0xff]
    %v1760 = vld [vmem:[#allocation6 + $0x78] sm:$0xff]
    %v1761 = vld [vmem:[#allocation6 + $0x80] sm:$0xff]
    %v1762 = vld [vmem:[#allocation6 + $0x88] sm:$0xff]
    %v1763 = vld [vmem:[#allocation6 + $0x90] sm:$0xff]
    %v1764 = vld [vmem:[#allocation6 + $0x98] sm:$0xff]
    %v1765 = vld [vmem:[#allocation6 + $0xa0] sm:$0xff]
    %v1766 = vld [vmem:[#allocation6 + $0xa8] sm:$0xff]
    %v1767 = vld [vmem:[#allocation6 + $0xb0] sm:$0xff]
    %v1768 = vld [vmem:[#allocation6 + $0xb8] sm:$0xff]
    %v1769 = vld [vmem:[#allocation6 + $0xc0] sm:$0xff]
    %v1770 = vld [vmem:[#allocation6 + $0xc8] sm:$0xff]
    %v1771 = vld [vmem:[#allocation6 + $0xd0] sm:$0xff]
    %v1772 = vld [vmem:[#allocation6 + $0xd8] sm:$0xff]
    %v1773 = vld [vmem:[#allocation6 + $0xe0] sm:$0xff]
    %v1774 = vld [vmem:[#allocation6 + $0xe8] sm:$0xff]
    %v1775 = vld [vmem:[#allocation6 + $0xf0] sm:$0xff]
    %v1776 = vld [vmem:[#allocation6 + $0xf8] sm:$0xff]
    %v1777 = vld [vmem:[#allocation6 + $0x100] sm:$0xff]
    %v1778 = vld [vmem:[#allocation6 + $0x108] sm:$0xff]
    %v1779 = vld [vmem:[#allocation6 + $0x110] sm:$0xff]
    %v1780 = vld [vmem:[#allocation6 + $0x118] sm:$0xff]
    %v1781 = vld [vmem:[#allocation6 + $0x120] sm:$0xff]
    %v1782 = vld [vmem:[#allocation6 + $0x128] sm:$0xff]
    %v1783 = vld [vmem:[#allocation6 + $0x130] sm:$0xff]
    %v1784 = vld [vmem:[#allocation6 + $0x138] sm:$0xff]
    %v1785 = vld [vmem:[#allocation6 + $0x140] sm:$0xff]
    %v1786 = vld [vmem:[#allocation6 + $0x148] sm:$0xff]
    %v1787 = vld [vmem:[#allocation6 + $0x150] sm:$0xff]
    %v1788 = vld [vmem:[#allocation6 + $0x158] sm:$0xff]
    %v1789 = vld [vmem:[#allocation6 + $0x160] sm:$0xff]
    %v1790 = vld [vmem:[#allocation6 + $0x168] sm:$0xff]
    %v1791 = vld [vmem:[#allocation6 + $0x170] sm:$0xff]
    %v1792 = vld [vmem:[#allocation6 + $0x178] sm:$0xff]
    %1793 = vmatprep.subr.mxu0 %v1746
    %1794 = vmatpush1.msra.mxu0 %v1745
    %1795 = vmatprep.subr.mxu0 %v1749
    %1796 = vmatpush1.msra.mxu0 %v1748
    %1797 = vmatprep.subr.mxu0 %v1752
    %1798 = vmatpush1.msra.mxu0 %v1751
    %1799 = vmatprep.subr.mxu0 %v1755
    %1800 = vmatpush1.msra.mxu0 %v1754
    %1801 = vmatprep.subr.mxu0 %v1758
    %1802 = vmatpush1.msra.mxu0 %v1757
    %1803 = vmatprep.subr.mxu0 %v1761
    %1804 = vmatpush1.msra.mxu0 %v1760
    %1805 = vmatprep.subr.mxu0 %v1764
    %1806 = vmatpush1.msra.mxu0 %v1763
    %1807 = vmatprep.subr.mxu0 %v1767
    %1808 = vmatpush1.msra.mxu0 %v1766
    %1809 = vmatprep.subr.mxu0 %v1770
    %1810 = vmatpush1.msra.mxu0 %v1769
    %1811 = vmatprep.subr.mxu0 %v1773
    %1812 = vmatpush1.msra.mxu0 %v1772
    %1813 = vmatprep.subr.mxu0 %v1776
    %1814 = vmatpush1.msra.mxu0 %v1775
    %1815 = vmatprep.subr.mxu0 %v1779
    %1816 = vmatpush1.msra.mxu0 %v1778
    %1817 = vmatprep.subr.mxu0 %v1782
    %1818 = vmatpush1.msra.mxu0 %v1781
    %1819 = vmatprep.subr.mxu0 %v1785
    %1820 = vmatpush1.msra.mxu0 %v1784
    %1821 = vmatprep.subr.mxu0 %v1788
    %1822 = vmatpush1.msra.mxu0 %v1787
    %1823 = vmatprep.subr.mxu0 %v1791
    %1824 = vmatpush1.msra.mxu0 %v1790
    %1825 = vmatprep.subr.mxu0 0.0
    %1826 = vmatpush1.msra.mxu0 0.0
    %1827 = vmatprep.subr.mxu0 0.0
    %1828 = vmatpush1.msra.mxu0 0.0
    %1829 = vmatprep.subr.mxu0 0.0
    %1830 = vmatpush1.msra.mxu0 0.0
    %1831 = vmatprep.subr.mxu0 0.0
    %1832 = vmatpush1.msra.mxu0 0.0
    %1833 = vmatprep.subr.mxu0 0.0
    %1834 = vmatpush1.msra.mxu0 0.0
    %1835 = vmatprep.subr.mxu0 0.0
    %1836 = vmatpush1.msra.mxu0 0.0
    %1837 = vmatprep.subr.mxu0 0.0
    %1838 = vmatpush1.msra.mxu0 0.0
    %1839 = vmatprep.subr.mxu0 0.0
    %1840 = vmatpush1.msra.mxu0 0.0
    %1841 = vmatprep.subr.mxu0 0.0
    %1842 = vmatpush1.msra.mxu0 0.0
    %1843 = vmatprep.subr.mxu0 0.0
    %1844 = vmatpush1.msra.mxu0 0.0
    %1845 = vmatprep.subr.mxu0 0.0
    %1846 = vmatpush1.msra.mxu0 0.0
    %1847 = vmatprep.subr.mxu0 0.0
    %1848 = vmatpush1.msra.mxu0 0.0
    %1849 = vmatprep.subr.mxu0 0.0
    %1850 = vmatpush1.msra.mxu0 0.0
    %1851 = vmatprep.subr.mxu0 0.0
    %1852 = vmatpush1.msra.mxu0 0.0
    %1853 = vmatprep.subr.mxu0 0.0
    %1854 = vmatpush1.msra.mxu0 0.0
    %1855 = vmatprep.subr.mxu0 0.0
    %1856 = vmatpush1.msra.mxu0 0.0
    %1857 = vmatprep.mubr.f32.mxu0 0.0
    %1858 = vmatmul.mubr.f32.gmra.mrb[0].mxu0 %v1736
    %v1859 = vpop.f32.mrb[0].mxu0
    %v1860 = vadd.f32 0.0, %v1859
    %v1861 = vpop.f32.mrb[0].mxu0
    %v1862 = vadd.f32 0.0, %v1861
    %1863 = vdwg.mxu0
    %1864 = vmatprep.subr.mxu0 0.0
    %1865 = vmatpush1.msra.mxu0 %v1747
    %1866 = vmatprep.subr.mxu0 0.0
    %1867 = vmatpush1.msra.mxu0 %v1750
    %1868 = vmatprep.subr.mxu0 0.0
    %1869 = vmatpush1.msra.mxu0 %v1753
    %1870 = vmatprep.subr.mxu0 0.0
    %1871 = vmatpush1.msra.mxu0 %v1756
    %1872 = vmatprep.subr.mxu0 0.0
    %1873 = vmatpush1.msra.mxu0 %v1759
    %1874 = vmatprep.subr.mxu0 0.0
    %1875 = vmatpush1.msra.mxu0 %v1762
    %1876 = vmatprep.subr.mxu0 0.0
    %1877 = vmatpush1.msra.mxu0 %v1765
    %1878 = vmatprep.subr.mxu0 0.0
    %1879 = vmatpush1.msra.mxu0 %v1768
    %1880 = vmatprep.subr.mxu0 0.0
    %1881 = vmatpush1.msra.mxu0 %v1771
    %1882 = vmatprep.subr.mxu0 0.0
    %1883 = vmatpush1.msra.mxu0 %v1774
    %1884 = vmatprep.subr.mxu0 0.0
    %1885 = vmatpush1.msra.mxu0 %v1777
    %1886 = vmatprep.subr.mxu0 0.0
    %1887 = vmatpush1.msra.mxu0 %v1780
    %1888 = vmatprep.subr.mxu0 0.0
    %1889 = vmatpush1.msra.mxu0 %v1783
    %1890 = vmatprep.subr.mxu0 0.0
    %1891 = vmatpush1.msra.mxu0 %v1786
    %1892 = vmatprep.subr.mxu0 0.0
    %1893 = vmatpush1.msra.mxu0 %v1789
    %1894 = vmatprep.subr.mxu0 0.0
    %1895 = vmatpush1.msra.mxu0 %v1792
    %1896 = vmatprep.subr.mxu0 0.0
    %1897 = vmatpush1.msra.mxu0 0.0
    %1898 = vmatprep.subr.mxu0 0.0
    %1899 = vmatpush1.msra.mxu0 0.0
    %1900 = vmatprep.subr.mxu0 0.0
    %1901 = vmatpush1.msra.mxu0 0.0
    %1902 = vmatprep.subr.mxu0 0.0
    %1903 = vmatpush1.msra.mxu0 0.0
    %1904 = vmatprep.subr.mxu0 0.0
    %1905 = vmatpush1.msra.mxu0 0.0
    %1906 = vmatprep.subr.mxu0 0.0
    %1907 = vmatpush1.msra.mxu0 0.0
    %1908 = vmatprep.subr.mxu0 0.0
    %1909 = vmatpush1.msra.mxu0 0.0
    %1910 = vmatprep.subr.mxu0 0.0
    %1911 = vmatpush1.msra.mxu0 0.0
    %1912 = vmatprep.subr.mxu0 0.0
    %1913 = vmatpush1.msra.mxu0 0.0
    %1914 = vmatprep.subr.mxu0 0.0
    %1915 = vmatpush1.msra.mxu0 0.0
    %1916 = vmatprep.subr.mxu0 0.0
    %1917 = vmatpush1.msra.mxu0 0.0
    %1918 = vmatprep.subr.mxu0 0.0
    %1919 = vmatpush1.msra.mxu0 0.0
    %1920 = vmatprep.subr.mxu0 0.0
    %1921 = vmatpush1.msra.mxu0 0.0
    %1922 = vmatprep.subr.mxu0 0.0
    %1923 = vmatpush1.msra.mxu0 0.0
    %1924 = vmatprep.subr.mxu0 0.0
    %1925 = vmatpush1.msra.mxu0 0.0
    %1926 = vmatprep.subr.mxu0 0.0
    %1927 = vmatpush1.msra.mxu0 0.0
    %1928 = vmatprep.mubr.f32.mxu0 0.0
    %1929 = vmatmul.mubr.f32.gmra.mrb[0].mxu0 %v1736
    %v1930 = vpop.f32.mrb[0].mxu0
    %v1931 = vadd.f32 0.0, %v1930
    %v1932 = vpop.f32.mrb[0].mxu0
    %1933 = vdwg.mxu0
    %v1934 = vadd.f32 %v1742, %v1860
    %v1935 = vxor.u32 %v1934, 2147483648
    %v1936 = vmul.f32 %v1935, 1.442695
    %v1937 = vpow.pop %v1936
    %v1938 = vadd.f32 %v1937, 1.0
    %v1939 = vrcp.pop %v1938
    %v1940 = vmul.f32 1.0, %v1939
    %v1941 = vadd.f32 %v1743, %v1862
    %v1942 = vxor.u32 %v1941, 2147483648
    %v1943 = vmul.f32 %v1942, 1.442695
    %v1944 = vpow.pop %v1943
    %v1945 = vadd.f32 %v1944, 1.0
    %v1946 = vrcp.pop %v1945
    %v1947 = vmul.f32 1.0, %v1946
    %v1948 = vadd.f32 %v1931, %v861
    %v1949 = vmul.f32 %v1940, %v1948
    %v1950 = vadd.f32 %v1744, %v1949
    %v1951 = vtanh.pop %v1950
    %v1952 = vsub.f32 1.0, %v1947
    %v1953 = vmul.f32 %v1952, %v1951
    %v1954 = vmul.f32 %v1947, %v1736
    %v1955 = vadd.f32 %v1953, %v1954
    %s1956 = scalar_lea.vmem %s6, 32
    %1957 = vst [vmem:[%s1956] sm:$0xff] %v1955
    %s1958 = smul.u32 5, 3
    %s1959 = smul.addr %s1958, 8
    %s1960 = scalar_lea.vmem [#allocation3], %s1959
    %v1961 = vld [vmem:[%s1960] sm:$0xff]
    %v1962 = vld [vmem:[%s1960 + $0x8] sm:$0xff]
    %v1963 = vld [vmem:[%s1960 + $0x10] sm:$0xff]
    %v1964 = vld [vmem:[#allocation6] sm:$0xff]
    %v1965 = vld [vmem:[#allocation6 + $0x8] sm:$0xff]
    %v1966 = vld [vmem:[#allocation6 + $0x10] sm:$0xff]
    %v1967 = vld [vmem:[#allocation6 + $0x18] sm:$0xff]
    %v1968 = vld [vmem:[#allocation6 + $0x20] sm:$0xff]
    %v1969 = vld [vmem:[#allocation6 + $0x28] sm:$0xff]
    %v1970 = vld [vmem:[#allocation6 + $0x30] sm:$0xff]
    %v1971 = vld [vmem:[#allocation6 + $0x38] sm:$0xff]
    %v1972 = vld [vmem:[#allocation6 + $0x40] sm:$0xff]
    %v1973 = vld [vmem:[#allocation6 + $0x48] sm:$0xff]
    %v1974 = vld [vmem:[#allocation6 + $0x50] sm:$0xff]
    %v1975 = vld [vmem:[#allocation6 + $0x58] sm:$0xff]
    %v1976 = vld [vmem:[#allocation6 + $0x60] sm:$0xff]
    %v1977 = vld [vmem:[#allocation6 + $0x68] sm:$0xff]
    %v1978 = vld [vmem:[#allocation6 + $0x70] sm:$0xff]
    %v1979 = vld [vmem:[#allocation6 + $0x78] sm:$0xff]
    %v1980 = vld [vmem:[#allocation6 + $0x80] sm:$0xff]
    %v1981 = vld [vmem:[#allocation6 + $0x88] sm:$0xff]
    %v1982 = vld [vmem:[#allocation6 + $0x90] sm:$0xff]
    %v1983 = vld [vmem:[#allocation6 + $0x98] sm:$0xff]
    %v1984 = vld [vmem:[#allocation6 + $0xa0] sm:$0xff]
    %v1985 = vld [vmem:[#allocation6 + $0xa8] sm:$0xff]
    %v1986 = vld [vmem:[#allocation6 + $0xb0] sm:$0xff]
    %v1987 = vld [vmem:[#allocation6 + $0xb8] sm:$0xff]
    %v1988 = vld [vmem:[#allocation6 + $0xc0] sm:$0xff]
    %v1989 = vld [vmem:[#allocation6 + $0xc8] sm:$0xff]
    %v1990 = vld [vmem:[#allocation6 + $0xd0] sm:$0xff]
    %v1991 = vld [vmem:[#allocation6 + $0xd8] sm:$0xff]
    %v1992 = vld [vmem:[#allocation6 + $0xe0] sm:$0xff]
    %v1993 = vld [vmem:[#allocation6 + $0xe8] sm:$0xff]
    %v1994 = vld [vmem:[#allocation6 + $0xf0] sm:$0xff]
    %v1995 = vld [vmem:[#allocation6 + $0xf8] sm:$0xff]
    %v1996 = vld [vmem:[#allocation6 + $0x100] sm:$0xff]
    %v1997 = vld [vmem:[#allocation6 + $0x108] sm:$0xff]
    %v1998 = vld [vmem:[#allocation6 + $0x110] sm:$0xff]
    %v1999 = vld [vmem:[#allocation6 + $0x118] sm:$0xff]
    %v2000 = vld [vmem:[#allocation6 + $0x120] sm:$0xff]
    %v2001 = vld [vmem:[#allocation6 + $0x128] sm:$0xff]
    %v2002 = vld [vmem:[#allocation6 + $0x130] sm:$0xff]
    %v2003 = vld [vmem:[#allocation6 + $0x138] sm:$0xff]
    %v2004 = vld [vmem:[#allocation6 + $0x140] sm:$0xff]
    %v2005 = vld [vmem:[#allocation6 + $0x148] sm:$0xff]
    %v2006 = vld [vmem:[#allocation6 + $0x150] sm:$0xff]
    %v2007 = vld [vmem:[#allocation6 + $0x158] sm:$0xff]
    %v2008 = vld [vmem:[#allocation6 + $0x160] sm:$0xff]
    %v2009 = vld [vmem:[#allocation6 + $0x168] sm:$0xff]
    %v2010 = vld [vmem:[#allocation6 + $0x170] sm:$0xff]
    %v2011 = vld [vmem:[#allocation6 + $0x178] sm:$0xff]
    %2012 = vmatprep.subr.mxu0 %v1965
    %2013 = vmatpush1.msra.mxu0 %v1964
    %2014 = vmatprep.subr.mxu0 %v1968
    %2015 = vmatpush1.msra.mxu0 %v1967
    %2016 = vmatprep.subr.mxu0 %v1971
    %2017 = vmatpush1.msra.mxu0 %v1970
    %2018 = vmatprep.subr.mxu0 %v1974
    %2019 = vmatpush1.msra.mxu0 %v1973
    %2020 = vmatprep.subr.mxu0 %v1977
    %2021 = vmatpush1.msra.mxu0 %v1976
    %2022 = vmatprep.subr.mxu0 %v1980
    %2023 = vmatpush1.msra.mxu0 %v1979
    %2024 = vmatprep.subr.mxu0 %v1983
    %2025 = vmatpush1.msra.mxu0 %v1982
    %2026 = vmatprep.subr.mxu0 %v1986
    %2027 = vmatpush1.msra.mxu0 %v1985
    %2028 = vmatprep.subr.mxu0 %v1989
    %2029 = vmatpush1.msra.mxu0 %v1988
    %2030 = vmatprep.subr.mxu0 %v1992
    %2031 = vmatpush1.msra.mxu0 %v1991
    %2032 = vmatprep.subr.mxu0 %v1995
    %2033 = vmatpush1.msra.mxu0 %v1994
    %2034 = vmatprep.subr.mxu0 %v1998
    %2035 = vmatpush1.msra.mxu0 %v1997
    %2036 = vmatprep.subr.mxu0 %v2001
    %2037 = vmatpush1.msra.mxu0 %v2000
    %2038 = vmatprep.subr.mxu0 %v2004
    %2039 = vmatpush1.msra.mxu0 %v2003
    %2040 = vmatprep.subr.mxu0 %v2007
    %2041 = vmatpush1.msra.mxu0 %v2006
    %2042 = vmatprep.subr.mxu0 %v2010
    %2043 = vmatpush1.msra.mxu0 %v2009
    %2044 = vmatprep.subr.mxu0 0.0
    %2045 = vmatpush1.msra.mxu0 0.0
    %2046 = vmatprep.subr.mxu0 0.0
    %2047 = vmatpush1.msra.mxu0 0.0
    %2048 = vmatprep.subr.mxu0 0.0
    %2049 = vmatpush1.msra.mxu0 0.0
    %2050 = vmatprep.subr.mxu0 0.0
    %2051 = vmatpush1.msra.mxu0 0.0
    %2052 = vmatprep.subr.mxu0 0.0
    %2053 = vmatpush1.msra.mxu0 0.0
    %2054 = vmatprep.subr.mxu0 0.0
    %2055 = vmatpush1.msra.mxu0 0.0
    %2056 = vmatprep.subr.mxu0 0.0
    %2057 = vmatpush1.msra.mxu0 0.0
    %2058 = vmatprep.subr.mxu0 0.0
    %2059 = vmatpush1.msra.mxu0 0.0
    %2060 = vmatprep.subr.mxu0 0.0
    %2061 = vmatpush1.msra.mxu0 0.0
    %2062 = vmatprep.subr.mxu0 0.0
    %2063 = vmatpush1.msra.mxu0 0.0
    %2064 = vmatprep.subr.mxu0 0.0
    %2065 = vmatpush1.msra.mxu0 0.0
    %2066 = vmatprep.subr.mxu0 0.0
    %2067 = vmatpush1.msra.mxu0 0.0
    %2068 = vmatprep.subr.mxu0 0.0
    %2069 = vmatpush1.msra.mxu0 0.0
    %2070 = vmatprep.subr.mxu0 0.0
    %2071 = vmatpush1.msra.mxu0 0.0
    %2072 = vmatprep.subr.mxu0 0.0
    %2073 = vmatpush1.msra.mxu0 0.0
    %2074 = vmatprep.subr.mxu0 0.0
    %2075 = vmatpush1.msra.mxu0 0.0
    %2076 = vmatprep.mubr.f32.mxu0 0.0
    %2077 = vmatmul.mubr.f32.gmra.mrb[0].mxu0 %v1955
    %v2078 = vpop.f32.mrb[0].mxu0
    %v2079 = vadd.f32 0.0, %v2078
    %v2080 = vpop.f32.mrb[0].mxu0
    %v2081 = vadd.f32 0.0, %v2080
    %2082 = vdwg.mxu0
    %2083 = vmatprep.subr.mxu0 0.0
    %2084 = vmatpush1.msra.mxu0 %v1966
    %2085 = vmatprep.subr.mxu0 0.0
    %2086 = vmatpush1.msra.mxu0 %v1969
    %2087 = vmatprep.subr.mxu0 0.0
    %2088 = vmatpush1.msra.mxu0 %v1972
    %2089 = vmatprep.subr.mxu0 0.0
    %2090 = vmatpush1.msra.mxu0 %v1975
    %2091 = vmatprep.subr.mxu0 0.0
    %2092 = vmatpush1.msra.mxu0 %v1978
    %2093 = vmatprep.subr.mxu0 0.0
    %2094 = vmatpush1.msra.mxu0 %v1981
    %2095 = vmatprep.subr.mxu0 0.0
    %2096 = vmatpush1.msra.mxu0 %v1984
    %2097 = vmatprep.subr.mxu0 0.0
    %2098 = vmatpush1.msra.mxu0 %v1987
    %2099 = vmatprep.subr.mxu0 0.0
    %2100 = vmatpush1.msra.mxu0 %v1990
    %2101 = vmatprep.subr.mxu0 0.0
    %2102 = vmatpush1.msra.mxu0 %v1993
    %2103 = vmatprep.subr.mxu0 0.0
    %2104 = vmatpush1.msra.mxu0 %v1996
    %2105 = vmatprep.subr.mxu0 0.0
    %2106 = vmatpush1.msra.mxu0 %v1999
    %2107 = vmatprep.subr.mxu0 0.0
    %2108 = vmatpush1.msra.mxu0 %v2002
    %2109 = vmatprep.subr.mxu0 0.0
    %2110 = vmatpush1.msra.mxu0 %v2005
    %2111 = vmatprep.subr.mxu0 0.0
    %2112 = vmatpush1.msra.mxu0 %v2008
    %2113 = vmatprep.subr.mxu0 0.0
    %2114 = vmatpush1.msra.mxu0 %v2011
    %2115 = vmatprep.subr.mxu0 0.0
    %2116 = vmatpush1.msra.mxu0 0.0
    %2117 = vmatprep.subr.mxu0 0.0
    %2118 = vmatpush1.msra.mxu0 0.0
    %2119 = vmatprep.subr.mxu0 0.0
    %2120 = vmatpush1.msra.mxu0 0.0
    %2121 = vmatprep.subr.mxu0 0.0
    %2122 = vmatpush1.msra.mxu0 0.0
    %2123 = vmatprep.subr.mxu0 0.0
    %2124 = vmatpush1.msra.mxu0 0.0
    %2125 = vmatprep.subr.mxu0 0.0
    %2126 = vmatpush1.msra.mxu0 0.0
    %2127 = vmatprep.subr.mxu0 0.0
    %2128 = vmatpush1.msra.mxu0 0.0
    %2129 = vmatprep.subr.mxu0 0.0
    %2130 = vmatpush1.msra.mxu0 0.0
    %2131 = vmatprep.subr.mxu0 0.0
    %2132 = vmatpush1.msra.mxu0 0.0
    %2133 = vmatprep.subr.mxu0 0.0
    %2134 = vmatpush1.msra.mxu0 0.0
    %2135 = vmatprep.subr.mxu0 0.0
    %2136 = vmatpush1.msra.mxu0 0.0
    %2137 = vmatprep.subr.mxu0 0.0
    %2138 = vmatpush1.msra.mxu0 0.0
    %2139 = vmatprep.subr.mxu0 0.0
    %2140 = vmatpush1.msra.mxu0 0.0
    %2141 = vmatprep.subr.mxu0 0.0
    %2142 = vmatpush1.msra.mxu0 0.0
    %2143 = vmatprep.subr.mxu0 0.0
    %2144 = vmatpush1.msra.mxu0 0.0
    %2145 = vmatprep.subr.mxu0 0.0
    %2146 = vmatpush1.msra.mxu0 0.0
    %2147 = vmatprep.mubr.f32.mxu0 0.0
    %2148 = vmatmul.mubr.f32.gmra.mrb[0].mxu0 %v1955
    %v2149 = vpop.f32.mrb[0].mxu0
    %v2150 = vadd.f32 0.0, %v2149
    %v2151 = vpop.f32.mrb[0].mxu0
    %2152 = vdwg.mxu0
    %v2153 = vadd.f32 %v1961, %v2079
    %v2154 = vxor.u32 %v2153, 2147483648
    %v2155 = vmul.f32 %v2154, 1.442695
    %v2156 = vpow.pop %v2155
    %v2157 = vadd.f32 %v2156, 1.0
    %v2158 = vrcp.pop %v2157
    %v2159 = vmul.f32 1.0, %v2158
    %v2160 = vadd.f32 %v1962, %v2081
    %v2161 = vxor.u32 %v2160, 2147483648
    %v2162 = vmul.f32 %v2161, 1.442695
    %v2163 = vpow.pop %v2162
    %v2164 = vadd.f32 %v2163, 1.0
    %v2165 = vrcp.pop %v2164
    %v2166 = vmul.f32 1.0, %v2165
    %v2167 = vadd.f32 %v2150, %v861
    %v2168 = vmul.f32 %v2159, %v2167
    %v2169 = vadd.f32 %v1963, %v2168
    %v2170 = vtanh.pop %v2169
    %v2171 = vsub.f32 1.0, %v2166
    %v2172 = vmul.f32 %v2171, %v2170
    %v2173 = vmul.f32 %v2166, %v1955
    %v2174 = vadd.f32 %v2172, %v2173
    %s2175 = scalar_lea.vmem %s6, 40
    %2176 = vst [vmem:[%s2175] sm:$0xff] %v2174
    %s2177 = smul.u32 6, 3
    %s2178 = smul.addr %s2177, 8
    %s2179 = scalar_lea.vmem [#allocation3], %s2178
    %v2180 = vld [vmem:[%s2179] sm:$0xff]
    %v2181 = vld [vmem:[%s2179 + $0x8] sm:$0xff]
    %v2182 = vld [vmem:[%s2179 + $0x10] sm:$0xff]
    %v2183 = vld [vmem:[#allocation6] sm:$0xff]
    %v2184 = vld [vmem:[#allocation6 + $0x8] sm:$0xff]
    %v2185 = vld [vmem:[#allocation6 + $0x10] sm:$0xff]
    %v2186 = vld [vmem:[#allocation6 + $0x18] sm:$0xff]
    %v2187 = vld [vmem:[#allocation6 + $0x20] sm:$0xff]
    %v2188 = vld [vmem:[#allocation6 + $0x28] sm:$0xff]
    %v2189 = vld [vmem:[#allocation6 + $0x30] sm:$0xff]
    %v2190 = vld [vmem:[#allocation6 + $0x38] sm:$0xff]
    %v2191 = vld [vmem:[#allocation6 + $0x40] sm:$0xff]
    %v2192 = vld [vmem:[#allocation6 + $0x48] sm:$0xff]
    %v2193 = vld [vmem:[#allocation6 + $0x50] sm:$0xff]
    %v2194 = vld [vmem:[#allocation6 + $0x58] sm:$0xff]
    %v2195 = vld [vmem:[#allocation6 + $0x60] sm:$0xff]
    %v2196 = vld [vmem:[#allocation6 + $0x68] sm:$0xff]
    %v2197 = vld [vmem:[#allocation6 + $0x70] sm:$0xff]
    %v2198 = vld [vmem:[#allocation6 + $0x78] sm:$0xff]
    %v2199 = vld [vmem:[#allocation6 + $0x80] sm:$0xff]
    %v2200 = vld [vmem:[#allocation6 + $0x88] sm:$0xff]
    %v2201 = vld [vmem:[#allocation6 + $0x90] sm:$0xff]
    %v2202 = vld [vmem:[#allocation6 + $0x98] sm:$0xff]
    %v2203 = vld [vmem:[#allocation6 + $0xa0] sm:$0xff]
    %v2204 = vld [vmem:[#allocation6 + $0xa8] sm:$0xff]
    %v2205 = vld [vmem:[#allocation6 + $0xb0] sm:$0xff]
    %v2206 = vld [vmem:[#allocation6 + $0xb8] sm:$0xff]
    %v2207 = vld [vmem:[#allocation6 + $0xc0] sm:$0xff]
    %v2208 = vld [vmem:[#allocation6 + $0xc8] sm:$0xff]
    %v2209 = vld [vmem:[#allocation6 + $0xd0] sm:$0xff]
    %v2210 = vld [vmem:[#allocation6 + $0xd8] sm:$0xff]
    %v2211 = vld [vmem:[#allocation6 + $0xe0] sm:$0xff]
    %v2212 = vld [vmem:[#allocation6 + $0xe8] sm:$0xff]
    %v2213 = vld [vmem:[#allocation6 + $0xf0] sm:$0xff]
    %v2214 = vld [vmem:[#allocation6 + $0xf8] sm:$0xff]
    %v2215 = vld [vmem:[#allocation6 + $0x100] sm:$0xff]
    %v2216 = vld [vmem:[#allocation6 + $0x108] sm:$0xff]
    %v2217 = vld [vmem:[#allocation6 + $0x110] sm:$0xff]
    %v2218 = vld [vmem:[#allocation6 + $0x118] sm:$0xff]
    %v2219 = vld [vmem:[#allocation6 + $0x120] sm:$0xff]
    %v2220 = vld [vmem:[#allocation6 + $0x128] sm:$0xff]
    %v2221 = vld [vmem:[#allocation6 + $0x130] sm:$0xff]
    %v2222 = vld [vmem:[#allocation6 + $0x138] sm:$0xff]
    %v2223 = vld [vmem:[#allocation6 + $0x140] sm:$0xff]
    %v2224 = vld [vmem:[#allocation6 + $0x148] sm:$0xff]
    %v2225 = vld [vmem:[#allocation6 + $0x150] sm:$0xff]
    %v2226 = vld [vmem:[#allocation6 + $0x158] sm:$0xff]
    %v2227 = vld [vmem:[#allocation6 + $0x160] sm:$0xff]
    %v2228 = vld [vmem:[#allocation6 + $0x168] sm:$0xff]
    %v2229 = vld [vmem:[#allocation6 + $0x170] sm:$0xff]
    %v2230 = vld [vmem:[#allocation6 + $0x178] sm:$0xff]
    %2231 = vmatprep.subr.mxu0 %v2184
    %2232 = vmatpush1.msra.mxu0 %v2183
    %2233 = vmatprep.subr.mxu0 %v2187
    %2234 = vmatpush1.msra.mxu0 %v2186
    %2235 = vmatprep.subr.mxu0 %v2190
    %2236 = vmatpush1.msra.mxu0 %v2189
    %2237 = vmatprep.subr.mxu0 %v2193
    %2238 = vmatpush1.msra.mxu0 %v2192
    %2239 = vmatprep.subr.mxu0 %v2196
    %2240 = vmatpush1.msra.mxu0 %v2195
    %2241 = vmatprep.subr.mxu0 %v2199
    %2242 = vmatpush1.msra.mxu0 %v2198
    %2243 = vmatprep.subr.mxu0 %v2202
    %2244 = vmatpush1.msra.mxu0 %v2201
    %2245 = vmatprep.subr.mxu0 %v2205
    %2246 = vmatpush1.msra.mxu0 %v2204
    %2247 = vmatprep.subr.mxu0 %v2208
    %2248 = vmatpush1.msra.mxu0 %v2207
    %2249 = vmatprep.subr.mxu0 %v2211
    %2250 = vmatpush1.msra.mxu0 %v2210
    %2251 = vmatprep.subr.mxu0 %v2214
    %2252 = vmatpush1.msra.mxu0 %v2213
    %2253 = vmatprep.subr.mxu0 %v2217
    %2254 = vmatpush1.msra.mxu0 %v2216
    %2255 = vmatprep.subr.mxu0 %v2220
    %2256 = vmatpush1.msra.mxu0 %v2219
    %2257 = vmatprep.subr.mxu0 %v2223
    %2258 = vmatpush1.msra.mxu0 %v2222
    %2259 = vmatprep.subr.mxu0 %v2226
    %2260 = vmatpush1.msra.mxu0 %v2225
    %2261 = vmatprep.subr.mxu0 %v2229
    %2262 = vmatpush1.msra.mxu0 %v2228
    %2263 = vmatprep.subr.mxu0 0.0
    %2264 = vmatpush1.msra.mxu0 0.0
    %2265 = vmatprep.subr.mxu0 0.0
    %2266 = vmatpush1.msra.mxu0 0.0
    %2267 = vmatprep.subr.mxu0 0.0
    %2268 = vmatpush1.msra.mxu0 0.0
    %2269 = vmatprep.subr.mxu0 0.0
    %2270 = vmatpush1.msra.mxu0 0.0
    %2271 = vmatprep.subr.mxu0 0.0
    %2272 = vmatpush1.msra.mxu0 0.0
    %2273 = vmatprep.subr.mxu0 0.0
    %2274 = vmatpush1.msra.mxu0 0.0
    %2275 = vmatprep.subr.mxu0 0.0
    %2276 = vmatpush1.msra.mxu0 0.0
    %2277 = vmatprep.subr.mxu0 0.0
    %2278 = vmatpush1.msra.mxu0 0.0
    %2279 = vmatprep.subr.mxu0 0.0
    %2280 = vmatpush1.msra.mxu0 0.0
    %2281 = vmatprep.subr.mxu0 0.0
    %2282 = vmatpush1.msra.mxu0 0.0
    %2283 = vmatprep.subr.mxu0 0.0
    %2284 = vmatpush1.msra.mxu0 0.0
    %2285 = vmatprep.subr.mxu0 0.0
    %2286 = vmatpush1.msra.mxu0 0.0
    %2287 = vmatprep.subr.mxu0 0.0
    %2288 = vmatpush1.msra.mxu0 0.0
    %2289 = vmatprep.subr.mxu0 0.0
    %2290 = vmatpush1.msra.mxu0 0.0
    %2291 = vmatprep.subr.mxu0 0.0
    %2292 = vmatpush1.msra.mxu0 0.0
    %2293 = vmatprep.subr.mxu0 0.0
    %2294 = vmatpush1.msra.mxu0 0.0
    %2295 = vmatprep.mubr.f32.mxu0 0.0
    %2296 = vmatmul.mubr.f32.gmra.mrb[0].mxu0 %v2174
    %v2297 = vpop.f32.mrb[0].mxu0
    %v2298 = vadd.f32 0.0, %v2297
    %v2299 = vpop.f32.mrb[0].mxu0
    %v2300 = vadd.f32 0.0, %v2299
    %2301 = vdwg.mxu0
    %2302 = vmatprep.subr.mxu0 0.0
    %2303 = vmatpush1.msra.mxu0 %v2185
    %2304 = vmatprep.subr.mxu0 0.0
    %2305 = vmatpush1.msra.mxu0 %v2188
    %2306 = vmatprep.subr.mxu0 0.0
    %2307 = vmatpush1.msra.mxu0 %v2191
    %2308 = vmatprep.subr.mxu0 0.0
    %2309 = vmatpush1.msra.mxu0 %v2194
    %2310 = vmatprep.subr.mxu0 0.0
    %2311 = vmatpush1.msra.mxu0 %v2197
    %2312 = vmatprep.subr.mxu0 0.0
    %2313 = vmatpush1.msra.mxu0 %v2200
    %2314 = vmatprep.subr.mxu0 0.0
    %2315 = vmatpush1.msra.mxu0 %v2203
    %2316 = vmatprep.subr.mxu0 0.0
    %2317 = vmatpush1.msra.mxu0 %v2206
    %2318 = vmatprep.subr.mxu0 0.0
    %2319 = vmatpush1.msra.mxu0 %v2209
    %2320 = vmatprep.subr.mxu0 0.0
    %2321 = vmatpush1.msra.mxu0 %v2212
    %2322 = vmatprep.subr.mxu0 0.0
    %2323 = vmatpush1.msra.mxu0 %v2215
    %2324 = vmatprep.subr.mxu0 0.0
    %2325 = vmatpush1.msra.mxu0 %v2218
    %2326 = vmatprep.subr.mxu0 0.0
    %2327 = vmatpush1.msra.mxu0 %v2221
    %2328 = vmatprep.subr.mxu0 0.0
    %2329 = vmatpush1.msra.mxu0 %v2224
    %2330 = vmatprep.subr.mxu0 0.0
    %2331 = vmatpush1.msra.mxu0 %v2227
    %2332 = vmatprep.subr.mxu0 0.0
    %2333 = vmatpush1.msra.mxu0 %v2230
    %2334 = vmatprep.subr.mxu0 0.0
    %2335 = vmatpush1.msra.mxu0 0.0
    %2336 = vmatprep.subr.mxu0 0.0
    %2337 = vmatpush1.msra.mxu0 0.0
    %2338 = vmatprep.subr.mxu0 0.0
    %2339 = vmatpush1.msra.mxu0 0.0
    %2340 = vmatprep.subr.mxu0 0.0
    %2341 = vmatpush1.msra.mxu0 0.0
    %2342 = vmatprep.subr.mxu0 0.0
    %2343 = vmatpush1.msra.mxu0 0.0
    %2344 = vmatprep.subr.mxu0 0.0
    %2345 = vmatpush1.msra.mxu0 0.0
    %2346 = vmatprep.subr.mxu0 0.0
    %2347 = vmatpush1.msra.mxu0 0.0
    %2348 = vmatprep.subr.mxu0 0.0
    %2349 = vmatpush1.msra.mxu0 0.0
    %2350 = vmatprep.subr.mxu0 0.0
    %2351 = vmatpush1.msra.mxu0 0.0
    %2352 = vmatprep.subr.mxu0 0.0
    %2353 = vmatpush1.msra.mxu0 0.0
    %2354 = vmatprep.subr.mxu0 0.0
    %2355 = vmatpush1.msra.mxu0 0.0
    %2356 = vmatprep.subr.mxu0 0.0
    %2357 = vmatpush1.msra.mxu0 0.0
    %2358 = vmatprep.subr.mxu0 0.0
    %2359 = vmatpush1.msra.mxu0 0.0
    %2360 = vmatprep.subr.mxu0 0.0
    %2361 = vmatpush1.msra.mxu0 0.0
    %2362 = vmatprep.subr.mxu0 0.0
    %2363 = vmatpush1.msra.mxu0 0.0
    %2364 = vmatprep.subr.mxu0 0.0
    %2365 = vmatpush1.msra.mxu0 0.0
    %2366 = vmatprep.mubr.f32.mxu0 0.0
    %2367 = vmatmul.mubr.f32.gmra.mrb[0].mxu0 %v2174
    %v2368 = vpop.f32.mrb[0].mxu0
    %v2369 = vadd.f32 0.0, %v2368
    %v2370 = vpop.f32.mrb[0].mxu0
    %2371 = vdwg.mxu0
    %v2372 = vadd.f32 %v2180, %v2298
    %v2373 = vxor.u32 %v2372, 2147483648
    %v2374 = vmul.f32 %v2373, 1.442695
    %v2375 = vpow.pop %v2374
    %v2376 = vadd.f32 %v2375, 1.0
    %v2377 = vrcp.pop %v2376
    %v2378 = vmul.f32 1.0, %v2377
    %v2379 = vadd.f32 %v2181, %v2300
    %v2380 = vxor.u32 %v2379, 2147483648
    %v2381 = vmul.f32 %v2380, 1.442695
    %v2382 = vpow.pop %v2381
    %v2383 = vadd.f32 %v2382, 1.0
    %v2384 = vrcp.pop %v2383
    %v2385 = vmul.f32 1.0, %v2384
    %v2386 = vadd.f32 %v2369, %v861
    %v2387 = vmul.f32 %v2378, %v2386
    %v2388 = vadd.f32 %v2182, %v2387
    %v2389 = vtanh.pop %v2388
    %v2390 = vsub.f32 1.0, %v2385
    %v2391 = vmul.f32 %v2390, %v2389
    %v2392 = vmul.f32 %v2385, %v2174
    %v2393 = vadd.f32 %v2391, %v2392
    %s2394 = scalar_lea.vmem %s6, 48
    %2395 = vst [vmem:[%s2394] sm:$0xff] %v2393
    %s2396 = smul.u32 7, 3
    %s2397 = smul.addr %s2396, 8
    %s2398 = scalar_lea.vmem [#allocation3], %s2397
    %v2399 = vld [vmem:[%s2398] sm:$0xff]
    %v2400 = vld [vmem:[%s2398 + $0x8] sm:$0xff]
    %v2401 = vld [vmem:[%s2398 + $0x10] sm:$0xff]
    %v2402 = vld [vmem:[#allocation6] sm:$0xff]
    %v2403 = vld [vmem:[#allocation6 + $0x8] sm:$0xff]
    %v2404 = vld [vmem:[#allocation6 + $0x10] sm:$0xff]
    %v2405 = vld [vmem:[#allocation6 + $0x18] sm:$0xff]
    %v2406 = vld [vmem:[#allocation6 + $0x20] sm:$0xff]
    %v2407 = vld [vmem:[#allocation6 + $0x28] sm:$0xff]
    %v2408 = vld [vmem:[#allocation6 + $0x30] sm:$0xff]
    %v2409 = vld [vmem:[#allocation6 + $0x38] sm:$0xff]
    %v2410 = vld [vmem:[#allocation6 + $0x40] sm:$0xff]
    %v2411 = vld [vmem:[#allocation6 + $0x48] sm:$0xff]
    %v2412 = vld [vmem:[#allocation6 + $0x50] sm:$0xff]
    %v2413 = vld [vmem:[#allocation6 + $0x58] sm:$0xff]
    %v2414 = vld [vmem:[#allocation6 + $0x60] sm:$0xff]
    %v2415 = vld [vmem:[#allocation6 + $0x68] sm:$0xff]
    %v2416 = vld [vmem:[#allocation6 + $0x70] sm:$0xff]
    %v2417 = vld [vmem:[#allocation6 + $0x78] sm:$0xff]
    %v2418 = vld [vmem:[#allocation6 + $0x80] sm:$0xff]
    %v2419 = vld [vmem:[#allocation6 + $0x88] sm:$0xff]
    %v2420 = vld [vmem:[#allocation6 + $0x90] sm:$0xff]
    %v2421 = vld [vmem:[#allocation6 + $0x98] sm:$0xff]
    %v2422 = vld [vmem:[#allocation6 + $0xa0] sm:$0xff]
    %v2423 = vld [vmem:[#allocation6 + $0xa8] sm:$0xff]
    %v2424 = vld [vmem:[#allocation6 + $0xb0] sm:$0xff]
    %v2425 = vld [vmem:[#allocation6 + $0xb8] sm:$0xff]
    %v2426 = vld [vmem:[#allocation6 + $0xc0] sm:$0xff]
    %v2427 = vld [vmem:[#allocation6 + $0xc8] sm:$0xff]
    %v2428 = vld [vmem:[#allocation6 + $0xd0] sm:$0xff]
    %v2429 = vld [vmem:[#allocation6 + $0xd8] sm:$0xff]
    %v2430 = vld [vmem:[#allocation6 + $0xe0] sm:$0xff]
    %v2431 = vld [vmem:[#allocation6 + $0xe8] sm:$0xff]
    %v2432 = vld [vmem:[#allocation6 + $0xf0] sm:$0xff]
    %v2433 = vld [vmem:[#allocation6 + $0xf8] sm:$0xff]
    %v2434 = vld [vmem:[#allocation6 + $0x100] sm:$0xff]
    %v2435 = vld [vmem:[#allocation6 + $0x108] sm:$0xff]
    %v2436 = vld [vmem:[#allocation6 + $0x110] sm:$0xff]
    %v2437 = vld [vmem:[#allocation6 + $0x118] sm:$0xff]
    %v2438 = vld [vmem:[#allocation6 + $0x120] sm:$0xff]
    %v2439 = vld [vmem:[#allocation6 + $0x128] sm:$0xff]
    %v2440 = vld [vmem:[#allocation6 + $0x130] sm:$0xff]
    %v2441 = vld [vmem:[#allocation6 + $0x138] sm:$0xff]
    %v2442 = vld [vmem:[#allocation6 + $0x140] sm:$0xff]
    %v2443 = vld [vmem:[#allocation6 + $0x148] sm:$0xff]
    %v2444 = vld [vmem:[#allocation6 + $0x150] sm:$0xff]
    %v2445 = vld [vmem:[#allocation6 + $0x158] sm:$0xff]
    %v2446 = vld [vmem:[#allocation6 + $0x160] sm:$0xff]
    %v2447 = vld [vmem:[#allocation6 + $0x168] sm:$0xff]
    %v2448 = vld [vmem:[#allocation6 + $0x170] sm:$0xff]
    %v2449 = vld [vmem:[#allocation6 + $0x178] sm:$0xff]
    %2450 = vmatprep.subr.mxu0 %v2403
    %2451 = vmatpush1.msra.mxu0 %v2402
    %2452 = vmatprep.subr.mxu0 %v2406
    %2453 = vmatpush1.msra.mxu0 %v2405
    %2454 = vmatprep.subr.mxu0 %v2409
    %2455 = vmatpush1.msra.mxu0 %v2408
    %2456 = vmatprep.subr.mxu0 %v2412
    %2457 = vmatpush1.msra.mxu0 %v2411
    %2458 = vmatprep.subr.mxu0 %v2415
    %2459 = vmatpush1.msra.mxu0 %v2414
    %2460 = vmatprep.subr.mxu0 %v2418
    %2461 = vmatpush1.msra.mxu0 %v2417
    %2462 = vmatprep.subr.mxu0 %v2421
    %2463 = vmatpush1.msra.mxu0 %v2420
    %2464 = vmatprep.subr.mxu0 %v2424
    %2465 = vmatpush1.msra.mxu0 %v2423
    %2466 = vmatprep.subr.mxu0 %v2427
    %2467 = vmatpush1.msra.mxu0 %v2426
    %2468 = vmatprep.subr.mxu0 %v2430
    %2469 = vmatpush1.msra.mxu0 %v2429
    %2470 = vmatprep.subr.mxu0 %v2433
    %2471 = vmatpush1.msra.mxu0 %v2432
    %2472 = vmatprep.subr.mxu0 %v2436
    %2473 = vmatpush1.msra.mxu0 %v2435
    %2474 = vmatprep.subr.mxu0 %v2439
    %2475 = vmatpush1.msra.mxu0 %v2438
    %2476 = vmatprep.subr.mxu0 %v2442
    %2477 = vmatpush1.msra.mxu0 %v2441
    %2478 = vmatprep.subr.mxu0 %v2445
    %2479 = vmatpush1.msra.mxu0 %v2444
    %2480 = vmatprep.subr.mxu0 %v2448
    %2481 = vmatpush1.msra.mxu0 %v2447
    %2482 = vmatprep.subr.mxu0 0.0
    %2483 = vmatpush1.msra.mxu0 0.0
    %2484 = vmatprep.subr.mxu0 0.0
    %2485 = vmatpush1.msra.mxu0 0.0
    %2486 = vmatprep.subr.mxu0 0.0
    %2487 = vmatpush1.msra.mxu0 0.0
    %2488 = vmatprep.subr.mxu0 0.0
    %2489 = vmatpush1.msra.mxu0 0.0
    %2490 = vmatprep.subr.mxu0 0.0
    %2491 = vmatpush1.msra.mxu0 0.0
    %2492 = vmatprep.subr.mxu0 0.0
    %2493 = vmatpush1.msra.mxu0 0.0
    %2494 = vmatprep.subr.mxu0 0.0
    %2495 = vmatpush1.msra.mxu0 0.0
    %2496 = vmatprep.subr.mxu0 0.0
    %2497 = vmatpush1.msra.mxu0 0.0
    %2498 = vmatprep.subr.mxu0 0.0
    %2499 = vmatpush1.msra.mxu0 0.0
    %2500 = vmatprep.subr.mxu0 0.0
    %2501 = vmatpush1.msra.mxu0 0.0
    %2502 = vmatprep.subr.mxu0 0.0
    %2503 = vmatpush1.msra.mxu0 0.0
    %2504 = vmatprep.subr.mxu0 0.0
    %2505 = vmatpush1.msra.mxu0 0.0
    %2506 = vmatprep.subr.mxu0 0.0
    %2507 = vmatpush1.msra.mxu0 0.0
    %2508 = vmatprep.subr.mxu0 0.0
    %2509 = vmatpush1.msra.mxu0 0.0
    %2510 = vmatprep.subr.mxu0 0.0
    %2511 = vmatpush1.msra.mxu0 0.0
    %2512 = vmatprep.subr.mxu0 0.0
    %2513 = vmatpush1.msra.mxu0 0.0
    %2514 = vmatprep.mubr.f32.mxu0 0.0
    %2515 = vmatmul.mubr.f32.gmra.mrb[0].mxu0 %v2393
    %v2516 = vpop.f32.mrb[0].mxu0
    %v2517 = vadd.f32 0.0, %v2516
    %v2518 = vpop.f32.mrb[0].mxu0
    %v2519 = vadd.f32 0.0, %v2518
    %2520 = vdwg.mxu0
    %2521 = vmatprep.subr.mxu0 0.0
    %2522 = vmatpush1.msra.mxu0 %v2404
    %2523 = vmatprep.subr.mxu0 0.0
    %2524 = vmatpush1.msra.mxu0 %v2407
    %2525 = vmatprep.subr.mxu0 0.0
    %2526 = vmatpush1.msra.mxu0 %v2410
    %2527 = vmatprep.subr.mxu0 0.0
    %2528 = vmatpush1.msra.mxu0 %v2413
    %2529 = vmatprep.subr.mxu0 0.0
    %2530 = vmatpush1.msra.mxu0 %v2416
    %2531 = vmatprep.subr.mxu0 0.0
    %2532 = vmatpush1.msra.mxu0 %v2419
    %2533 = vmatprep.subr.mxu0 0.0
    %2534 = vmatpush1.msra.mxu0 %v2422
    %2535 = vmatprep.subr.mxu0 0.0
    %2536 = vmatpush1.msra.mxu0 %v2425
    %2537 = vmatprep.subr.mxu0 0.0
    %2538 = vmatpush1.msra.mxu0 %v2428
    %2539 = vmatprep.subr.mxu0 0.0
    %2540 = vmatpush1.msra.mxu0 %v2431
    %2541 = vmatprep.subr.mxu0 0.0
    %2542 = vmatpush1.msra.mxu0 %v2434
    %2543 = vmatprep.subr.mxu0 0.0
    %2544 = vmatpush1.msra.mxu0 %v2437
    %2545 = vmatprep.subr.mxu0 0.0
    %2546 = vmatpush1.msra.mxu0 %v2440
    %2547 = vmatprep.subr.mxu0 0.0
    %2548 = vmatpush1.msra.mxu0 %v2443
    %2549 = vmatprep.subr.mxu0 0.0
    %2550 = vmatpush1.msra.mxu0 %v2446
    %2551 = vmatprep.subr.mxu0 0.0
    %2552 = vmatpush1.msra.mxu0 %v2449
    %2553 = vmatprep.subr.mxu0 0.0
    %2554 = vmatpush1.msra.mxu0 0.0
    %2555 = vmatprep.subr.mxu0 0.0
    %2556 = vmatpush1.msra.mxu0 0.0
    %2557 = vmatprep.subr.mxu0 0.0
    %2558 = vmatpush1.msra.mxu0 0.0
    %2559 = vmatprep.subr.mxu0 0.0
    %2560 = vmatpush1.msra.mxu0 0.0
    %2561 = vmatprep.subr.mxu0 0.0
    %2562 = vmatpush1.msra.mxu0 0.0
    %2563 = vmatprep.subr.mxu0 0.0
    %2564 = vmatpush1.msra.mxu0 0.0
    %2565 = vmatprep.subr.mxu0 0.0
    %2566 = vmatpush1.msra.mxu0 0.0
    %2567 = vmatprep.subr.mxu0 0.0
    %2568 = vmatpush1.msra.mxu0 0.0
    %2569 = vmatprep.subr.mxu0 0.0
    %2570 = vmatpush1.msra.mxu0 0.0
    %2571 = vmatprep.subr.mxu0 0.0
    %2572 = vmatpush1.msra.mxu0 0.0
    %2573 = vmatprep.subr.mxu0 0.0
    %2574 = vmatpush1.msra.mxu0 0.0
    %2575 = vmatprep.subr.mxu0 0.0
    %2576 = vmatpush1.msra.mxu0 0.0
    %2577 = vmatprep.subr.mxu0 0.0
    %2578 = vmatpush1.msra.mxu0 0.0
    %2579 = vmatprep.subr.mxu0 0.0
    %2580 = vmatpush1.msra.mxu0 0.0
    %2581 = vmatprep.subr.mxu0 0.0
    %2582 = vmatpush1.msra.mxu0 0.0
    %2583 = vmatprep.subr.mxu0 0.0
    %2584 = vmatpush1.msra.mxu0 0.0
    %2585 = vmatprep.mubr.f32.mxu0 0.0
    %2586 = vmatmul.mubr.f32.gmra.mrb[0].mxu0 %v2393
    %v2587 = vpop.f32.mrb[0].mxu0
    %v2588 = vadd.f32 0.0, %v2587
    %v2589 = vpop.f32.mrb[0].mxu0
    %2590 = vdwg.mxu0
    %v2591 = vadd.f32 %v2399, %v2517
    %v2592 = vxor.u32 %v2591, 2147483648
    %v2593 = vmul.f32 %v2592, 1.442695
    %v2594 = vpow.pop %v2593
    %v2595 = vadd.f32 %v2594, 1.0
    %v2596 = vrcp.pop %v2595
    %v2597 = vmul.f32 1.0, %v2596
    %v2598 = vadd.f32 %v2400, %v2519
    %v2599 = vxor.u32 %v2598, 2147483648
    %v2600 = vmul.f32 %v2599, 1.442695
    %v2601 = vpow.pop %v2600
    %v2602 = vadd.f32 %v2601, 1.0
    %v2603 = vrcp.pop %v2602
    %v2604 = vmul.f32 1.0, %v2603
    %v2605 = vadd.f32 %v2588, %v861
    %v2606 = vmul.f32 %v2597, %v2605
    %v2607 = vadd.f32 %v2401, %v2606
    %v2608 = vtanh.pop %v2607
    %v2609 = vsub.f32 1.0, %v2604
    %v2610 = vmul.f32 %v2609, %v2608
    %v2611 = vmul.f32 %v2604, %v2393
    %v2612 = vadd.f32 %v2610, %v2611
    %s2613 = scalar_lea.vmem %s6, 56
    %2614 = vst [vmem:[%s2613] sm:$0xff] %v2612
    %2615 = vst [vmem:[#allocation2] sm:$0xff] %v2612
    // Predicated region
    $region46: #{flow_gru_forward.2} parent=1 // pred_check
      _
    $region47: #{flow_gru_forward.2} parent=1 // pred_check_branch
      %2617 = sbr.rel (0) target = $region49
    $region48: #{flow_gru_forward.2} parent=1 // pred_region
      _
    $region49: #{flow_gru_forward.2} parent=1 // pred_fallthru
      _
    // Predicated region
    $region50: #{flow_gru_forward.2} parent=1 // pred_check
      _
    $region51: #{flow_gru_forward.2} parent=1 // pred_check_branch
      %2619 = sbr.rel (0) target = $region53
    $region52: #{flow_gru_forward.2} parent=1 // pred_region
      _
    $region53: #{flow_gru_forward.2} parent=1 // pred_fallthru
      _
    %2620 = vsyncpa [#allocation5], 1
    %2621 = vsyncpa [#allocation7], 1
    %2622 = vsyncpa [#allocation10], 1

// kernel: flow_gru_forward.3
$region0: #{flow_gru_forward.3}
  #allocation0 [shape = 'u32[]', space=smem, size = 0x4, offset = 0x4, fixed_abs, tag = 'smem constant byte address 0x4 - core index']
  #allocation1 [shape = 'u32[144,128]{1,0:T(1,128)}', space=vmem, size = 0x12000, scoped, tag = 'internal scratch']
  #allocation2 [shape = 'f32[8,128]{1,0:T(8,128)}', space=vmem, size = 0x1000, scoped, tag = 'scratch operand']
  #allocation3 [shape = 'f32[64,384]{1,0:T(8,128)}', space=vmem, size = 0x18000, scoped, tag = 'scratch operand']
  %s0 = inlined_call_operand.vmem [shape: f32[1,64,128], index: 0, kind: input, shape index: {}]
  %s1 = inlined_call_operand.vmem [shape: f32[128,384], index: 1, kind: input, shape index: {}]
  %s2 = inlined_call_operand.hbm [shape: f32[128,384], index: 2, kind: input, shape index: {}]
  %s3 = inlined_call_operand.vmem [shape: f32[1,384], index: 3, kind: input, shape index: {}]
  %s4 = inlined_call_operand.vmem [shape: f32[1,128], index: 4, kind: input, shape index: {}]
  %s5 = inlined_call_operand.vmem [shape: f32[1,8,128], index: 5, kind: input, shape index: {}]
  %s6 = inlined_call_operand.vmem [shape: f32[1,64,128], index: 6, kind: output, shape index: {}]
  %s7 = sld [smem:[#allocation0]]
  $region42: #{flow_gru_forward.3} parent=0
    _
  %s9 = ssub.s32 1, %s7
  %s10 = scalar_select 0, %s9, %s7
  $region1: #{flow_gru_forward.3} parent=0
    #allocation4 [shape = 'u8[196608]{0}', space=vmem, size = 0x30000, scoped, tag = 'input window, operand 2, single buffered']
    #allocation5 [shape = 's32[1]{0}', space=sflag, size = 0x4, scoped, tag = 'scoped memory for flow_gru_forward.3']
    %11 = vsyncpa [#allocation5], 0
    // Predicated region
    $region2: #{flow_gru_forward.3} parent=1 // pred_check
      _
    $region3: #{flow_gru_forward.3} parent=1 // pred_check_branch
      %13 = sbr.rel (0) target = $region5
    $region4: #{flow_gru_forward.3} parent=1 // pred_region
      _
    $region5: #{flow_gru_forward.3} parent=1 // pred_fallthru
      _
    // Predicated region
    $region6: #{flow_gru_forward.3} parent=1 // pred_check
      _
    $region7: #{flow_gru_forward.3} parent=1 // pred_check_branch
      %15 = sbr.rel (0) target = $region9
    $region8: #{flow_gru_forward.3} parent=1 // pred_region
      _
    $region9: #{flow_gru_forward.3} parent=1 // pred_fallthru
      _
    // Predicated region
    $region10: #{flow_gru_forward.3} parent=1 // pred_check
      _
    $region11: #{flow_gru_forward.3} parent=1 // pred_check_branch
      %17 = sbr.rel (0) target = $region13
    $region12: #{flow_gru_forward.3} parent=1 // pred_region
      %s19 = ssub.s32 6144, 6144
      %20 = vsyncadd [#allocation5], %s19
      %s21 = sshll.u32 [#allocation4], 4
      %s22 = int_to_ptr.vmem [resolvable:$true] %s21
      %27 = dma.hbm_to_vmem [thread:$0]  %s2, 6144, %s22, [#allocation5], 384, 384, 24
    $region13: #{flow_gru_forward.3} parent=1 // pred_fallthru
      _
    // Predicated region
    $region14: #{flow_gru_forward.3} parent=1 // pred_check
      _
    $region15: #{flow_gru_forward.3} parent=1 // pred_check_branch
      %29 = sbr.rel (0) target = $region17
    $region16: #{flow_gru_forward.3} parent=1 // pred_region
      _
    $region17: #{flow_gru_forward.3} parent=1 // pred_fallthru
      _
    // Predicated region
    $region18: #{flow_gru_forward.3} parent=1 // pred_check
      _
    $region19: #{flow_gru_forward.3} parent=1 // pred_check_branch
      %31 = sbr.rel (0) target = $region21
    $region20: #{flow_gru_forward.3} parent=1 // pred_region
      _
    $region21: #{flow_gru_forward.3} parent=1 // pred_fallthru
      _
    // Predicated region
    $region22: #{flow_gru_forward.3} parent=1 // pred_check
      _
    $region23: #{flow_gru_forward.3} parent=1 // pred_check_branch
      %33 = sbr.rel (0) target = $region25
    $region24: #{flow_gru_forward.3} parent=1 // pred_region
      _
    $region25: #{flow_gru_forward.3} parent=1 // pred_fallthru
      _
    // Predicated region
    $region26: #{flow_gru_forward.3} parent=1 // pred_check
      _
    $region27: #{flow_gru_forward.3} parent=1 // pred_check_branch
      %35 = sbr.rel (0) target = $region29
    $region28: #{flow_gru_forward.3} parent=1 // pred_region
      %36 = dma.done [#allocation5], 6144
    $region29: #{flow_gru_forward.3} parent=1 // pred_fallthru
      _
    %p37 = scmp.eq.s32.totalorder 0, 0
    // Predicated region
    $region30: #{flow_gru_forward.3} parent=1 // pred_check
      %p38 = pneg %p37
    $region31: #{flow_gru_forward.3} parent=1 // pred_check_branch
      %40 = sbr.rel (%p38) target = $region33
    $region32: #{flow_gru_forward.3} parent=1 // pred_region
      %v41 = vld [vmem:[%s5] sm:$0xff]
      %42 = vst [vmem:[#allocation2] sm:$0xff] %v41
    $region33: #{flow_gru_forward.3} parent=1 // pred_fallthru
      _
    %v43 = vld [vmem:[%s0] sm:$0xff]
    %v44 = vld [vmem:[%s0 + $0x8] sm:$0xff]
    %v45 = vld [vmem:[%s1] sm:$0xff]
    %v46 = vld [vmem:[%s1 + $0x8] sm:$0xff]
    %v47 = vld [vmem:[%s1 + $0x10] sm:$0xff]
    %v48 = vld [vmem:[%s1 + $0x18] sm:$0xff]
    %v49 = vld [vmem:[%s1 + $0x20] sm:$0xff]
    %v50 = vld [vmem:[%s1 + $0x28] sm:$0xff]
    %v51 = vld [vmem:[%s1 + $0x30] sm:$0xff]
    %v52 = vld [vmem:[%s1 + $0x38] sm:$0xff]
    %v53 = vld [vmem:[%s1 + $0x40] sm:$0xff]
    %v54 = vld [vmem:[%s1 + $0x48] sm:$0xff]
    %v55 = vld [vmem:[%s1 + $0x50] sm:$0xff]
    %v56 = vld [vmem:[%s1 + $0x58] sm:$0xff]
    %v57 = vld [vmem:[%s1 + $0x60] sm:$0xff]
    %v58 = vld [vmem:[%s1 + $0x68] sm:$0xff]
    %v59 = vld [vmem:[%s1 + $0x70] sm:$0xff]
    %v60 = vld [vmem:[%s1 + $0x78] sm:$0xff]
    %v61 = vld [vmem:[%s1 + $0x80] sm:$0xff]
    %v62 = vld [vmem:[%s1 + $0x88] sm:$0xff]
    %v63 = vld [vmem:[%s1 + $0x90] sm:$0xff]
    %v64 = vld [vmem:[%s1 + $0x98] sm:$0xff]
    %v65 = vld [vmem:[%s1 + $0xa0] sm:$0xff]
    %v66 = vld [vmem:[%s1 + $0xa8] sm:$0xff]
    %v67 = vld [vmem:[%s1 + $0xb0] sm:$0xff]
    %v68 = vld [vmem:[%s1 + $0xb8] sm:$0xff]
    %v69 = vld [vmem:[%s1 + $0xc0] sm:$0xff]
    %v70 = vld [vmem:[%s1 + $0xc8] sm:$0xff]
    %v71 = vld [vmem:[%s1 + $0xd0] sm:$0xff]
    %v72 = vld [vmem:[%s1 + $0xd8] sm:$0xff]
    %v73 = vld [vmem:[%s1 + $0xe0] sm:$0xff]
    %v74 = vld [vmem:[%s1 + $0xe8] sm:$0xff]
    %v75 = vld [vmem:[%s1 + $0xf0] sm:$0xff]
    %v76 = vld [vmem:[%s1 + $0xf8] sm:$0xff]
    %v77 = vld [vmem:[%s1 + $0x100] sm:$0xff]
    %v78 = vld [vmem:[%s1 + $0x108] sm:$0xff]
    %v79 = vld [vmem:[%s1 + $0x110] sm:$0xff]
    %v80 = vld [vmem:[%s1 + $0x118] sm:$0xff]
    %v81 = vld [vmem:[%s1 + $0x120] sm:$0xff]
    %v82 = vld [vmem:[%s1 + $0x128] sm:$0xff]
    %v83 = vld [vmem:[%s1 + $0x130] sm:$0xff]
    %v84 = vld [vmem:[%s1 + $0x138] sm:$0xff]
    %v85 = vld [vmem:[%s1 + $0x140] sm:$0xff]
    %v86 = vld [vmem:[%s1 + $0x148] sm:$0xff]
    %v87 = vld [vmem:[%s1 + $0x150] sm:$0xff]
    %v88 = vld [vmem:[%s1 + $0x158] sm:$0xff]
    %v89 = vld [vmem:[%s1 + $0x160] sm:$0xff]
    %v90 = vld [vmem:[%s1 + $0x168] sm:$0xff]
    %v91 = vld [vmem:[%s1 + $0x170] sm:$0xff]
    %v92 = vld [vmem:[%s1 + $0x178] sm:$0xff]
    %v93 = vld [vmem:[%s3] sm:$0x7]
    %v95 = vlaneseq
    %v96 = vshrl.u32 %v95, 7
    %v97 = vsub.s32 0, %v96
    %v98 = vrot.slane %v93, %v97
    %v99 = vlaneseq
    %v100 = vshrl.u32 %v99, 7
    %v101 = vsub.s32 1, %v100
    %v102 = vrot.slane %v93, %v101
    %v103 = vlaneseq
    %v104 = vshrl.u32 %v103, 7
    %v105 = vsub.s32 2, %v104
    %v106 = vrot.slane %v93, %v105
    %110 = vmatprep.subr.mxu0 %v46
    %111 = vmatpush1.msra.mxu0 %v45
    %112 = vmatprep.subr.mxu0 %v49
    %113 = vmatpush1.msra.mxu0 %v48
    %114 = vmatprep.subr.mxu0 %v52
    %115 = vmatpush1.msra.mxu0 %v51
    %116 = vmatprep.subr.mxu0 %v55
    %117 = vmatpush1.msra.mxu0 %v54
    %118 = vmatprep.subr.mxu0 %v58
    %119 = vmatpush1.msra.mxu0 %v57
    %120 = vmatprep.subr.mxu0 %v61
    %121 = vmatpush1.msra.mxu0 %v60
    %122 = vmatprep.subr.mxu0 %v64
    %123 = vmatpush1.msra.mxu0 %v63
    %124 = vmatprep.subr.mxu0 %v67
    %125 = vmatpush1.msra.mxu0 %v66
    %126 = vmatprep.subr.mxu0 %v70
    %127 = vmatpush1.msra.mxu0 %v69
    %128 = vmatprep.subr.mxu0 %v73
    %129 = vmatpush1.msra.mxu0 %v72
    %130 = vmatprep.subr.mxu0 %v76
    %131 = vmatpush1.msra.mxu0 %v75
    %132 = vmatprep.subr.mxu0 %v79
    %133 = vmatpush1.msra.mxu0 %v78
    %134 = vmatprep.subr.mxu0 %v82
    %135 = vmatpush1.msra.mxu0 %v81
    %136 = vmatprep.subr.mxu0 %v85
    %137 = vmatpush1.msra.mxu0 %v84
    %138 = vmatprep.subr.mxu0 %v88
    %139 = vmatpush1.msra.mxu0 %v87
    %140 = vmatprep.subr.mxu0 %v91
    %141 = vmatpush1.msra.mxu0 %v90
    %142 = vmatprep.subr.mxu0 0.0
    %143 = vmatpush1.msra.mxu0 0.0
    %144 = vmatprep.subr.mxu0 0.0
    %145 = vmatpush1.msra.mxu0 0.0
    %146 = vmatprep.subr.mxu0 0.0
    %147 = vmatpush1.msra.mxu0 0.0
    %148 = vmatprep.subr.mxu0 0.0
    %149 = vmatpush1.msra.mxu0 0.0
    %150 = vmatprep.subr.mxu0 0.0
    %151 = vmatpush1.msra.mxu0 0.0
    %152 = vmatprep.subr.mxu0 0.0
    %153 = vmatpush1.msra.mxu0 0.0
    %154 = vmatprep.subr.mxu0 0.0
    %155 = vmatpush1.msra.mxu0 0.0
    %156 = vmatprep.subr.mxu0 0.0
    %157 = vmatpush1.msra.mxu0 0.0
    %158 = vmatprep.subr.mxu0 0.0
    %159 = vmatpush1.msra.mxu0 0.0
    %160 = vmatprep.subr.mxu0 0.0
    %161 = vmatpush1.msra.mxu0 0.0
    %162 = vmatprep.subr.mxu0 0.0
    %163 = vmatpush1.msra.mxu0 0.0
    %164 = vmatprep.subr.mxu0 0.0
    %165 = vmatpush1.msra.mxu0 0.0
    %166 = vmatprep.subr.mxu0 0.0
    %167 = vmatpush1.msra.mxu0 0.0
    %168 = vmatprep.subr.mxu0 0.0
    %169 = vmatpush1.msra.mxu0 0.0
    %170 = vmatprep.subr.mxu0 0.0
    %171 = vmatpush1.msra.mxu0 0.0
    %172 = vmatprep.subr.mxu0 0.0
    %173 = vmatpush1.msra.mxu0 0.0
    %174 = vmatprep.mubr.f32.mxu0 0.0
    %175 = vmatmul.mubr.f32.gmra.mrb[0].mxu0 %v43
    %v176 = vpop.f32.mrb[0].mxu0
    %v177 = vadd.f32 %v98, %v176
    %v178 = vpop.f32.mrb[0].mxu0
    %v179 = vadd.f32 %v102, %v178
    %180 = vmatprep.mubr.f32.mxu0 0.0
    %181 = vmatmul.mubr.f32.gmra.mrb[0].mxu0 %v44
    %v182 = vpop.f32.mrb[0].mxu0
    %v183 = vadd.f32 %v98, %v182
    %v184 = vpop.f32.mrb[0].mxu0
    %v185 = vadd.f32 %v102, %v184
    %186 = vdwg.mxu0
    %187 = vmatprep.subr.mxu0 0.0
    %188 = vmatpush1.msra.mxu0 %v47
    %189 = vmatprep.subr.mxu0 0.0
    %190 = vmatpush1.msra.mxu0 %v50
    %191 = vmatprep.subr.mxu0 0.0
    %192 = vmatpush1.msra.mxu0 %v53
    %193 = vmatprep.subr.mxu0 0.0
    %194 = vmatpush1.msra.mxu0 %v56
    %195 = vmatprep.subr.mxu0 0.0
    %196 = vmatpush1.msra.mxu0 %v59
    %197 = vmatprep.subr.mxu0 0.0
    %198 = vmatpush1.msra.mxu0 %v62
    %199 = vmatprep.subr.mxu0 0.0
    %200 = vmatpush1.msra.mxu0 %v65
    %201 = vmatprep.subr.mxu0 0.0
    %202 = vmatpush1.msra.mxu0 %v68
    %203 = vmatprep.subr.mxu0 0.0
    %204 = vmatpush1.msra.mxu0 %v71
    %205 = vmatprep.subr.mxu0 0.0
    %206 = vmatpush1.msra.mxu0 %v74
    %207 = vmatprep.subr.mxu0 0.0
    %208 = vmatpush1.msra.mxu0 %v77
    %209 = vmatprep.subr.mxu0 0.0
    %210 = vmatpush1.msra.mxu0 %v80
    %211 = vmatprep.subr.mxu0 0.0
    %212 = vmatpush1.msra.mxu0 %v83
    %213 = vmatprep.subr.mxu0 0.0
    %214 = vmatpush1.msra.mxu0 %v86
    %215 = vmatprep.subr.mxu0 0.0
    %216 = vmatpush1.msra.mxu0 %v89
    %217 = vmatprep.subr.mxu0 0.0
    %218 = vmatpush1.msra.mxu0 %v92
    %219 = vmatprep.subr.mxu0 0.0
    %220 = vmatpush1.msra.mxu0 0.0
    %221 = vmatprep.subr.mxu0 0.0
    %222 = vmatpush1.msra.mxu0 0.0
    %223 = vmatprep.subr.mxu0 0.0
    %224 = vmatpush1.msra.mxu0 0.0
    %225 = vmatprep.subr.mxu0 0.0
    %226 = vmatpush1.msra.mxu0 0.0
    %227 = vmatprep.subr.mxu0 0.0
    %228 = vmatpush1.msra.mxu0 0.0
    %229 = vmatprep.subr.mxu0 0.0
    %230 = vmatpush1.msra.mxu0 0.0
    %231 = vmatprep.subr.mxu0 0.0
    %232 = vmatpush1.msra.mxu0 0.0
    %233 = vmatprep.subr.mxu0 0.0
    %234 = vmatpush1.msra.mxu0 0.0
    %235 = vmatprep.subr.mxu0 0.0
    %236 = vmatpush1.msra.mxu0 0.0
    %237 = vmatprep.subr.mxu0 0.0
    %238 = vmatpush1.msra.mxu0 0.0
    %239 = vmatprep.subr.mxu0 0.0
    %240 = vmatpush1.msra.mxu0 0.0
    %241 = vmatprep.subr.mxu0 0.0
    %242 = vmatpush1.msra.mxu0 0.0
    %243 = vmatprep.subr.mxu0 0.0
    %244 = vmatpush1.msra.mxu0 0.0
    %245 = vmatprep.subr.mxu0 0.0
    %246 = vmatpush1.msra.mxu0 0.0
    %247 = vmatprep.subr.mxu0 0.0
    %248 = vmatpush1.msra.mxu0 0.0
    %249 = vmatprep.subr.mxu0 0.0
    %250 = vmatpush1.msra.mxu0 0.0
    %251 = vmatprep.mubr.f32.mxu0 0.0
    %252 = vmatmul.mubr.f32.gmra.mrb[0].mxu0 %v43
    %v253 = vpop.f32.mrb[0].mxu0
    %v254 = vadd.f32 %v106, %v253
    %v255 = vpop.f32.mrb[0].mxu0
    %256 = vmatprep.mubr.f32.mxu0 0.0
    %257 = vmatmul.mubr.f32.gmra.mrb[0].mxu0 %v44
    %v258 = vpop.f32.mrb[0].mxu0
    %v259 = vadd.f32 %v106, %v258
    %v260 = vpop.f32.mrb[0].mxu0
    %261 = vdwg.mxu0
    %262 = vst [vmem:[#allocation3] sm:$0xff] %v177
    %263 = vst [vmem:[#allocation3 + $0x8] sm:$0xff] %v179
    %264 = vst [vmem:[#allocation3 + $0x10] sm:$0xff] %v254
    %265 = vst [vmem:[#allocation3 + $0x18] sm:$0xff] %v183
    %266 = vst [vmem:[#allocation3 + $0x20] sm:$0xff] %v185
    %267 = vst [vmem:[#allocation3 + $0x28] sm:$0xff] %v259
    %v268 = vld [vmem:[%s0 + $0x10] sm:$0xff]
    %v269 = vld [vmem:[%s0 + $0x18] sm:$0xff]
    %v270 = vld [vmem:[%s1] sm:$0xff]
    %v271 = vld [vmem:[%s1 + $0x8] sm:$0xff]
    %v272 = vld [vmem:[%s1 + $0x10] sm:$0xff]
    %v273 = vld [vmem:[%s1 + $0x18] sm:$0xff]
    %v274 = vld [vmem:[%s1 + $0x20] sm:$0xff]
    %v275 = vld [vmem:[%s1 + $0x28] sm:$0xff]
    %v276 = vld [vmem:[%s1 + $0x30] sm:$0xff]
    %v277 = vld [vmem:[%s1 + $0x38] sm:$0xff]
    %v278 = vld [vmem:[%s1 + $0x40] sm:$0xff]
    %v279 = vld [vmem:[%s1 + $0x48] sm:$0xff]
    %v280 = vld [vmem:[%s1 + $0x50] sm:$0xff]
    %v281 = vld [vmem:[%s1 + $0x58] sm:$0xff]
    %v282 = vld [vmem:[%s1 + $0x60] sm:$0xff]
    %v283 = vld [vmem:[%s1 + $0x68] sm:$0xff]
    %v284 = vld [vmem:[%s1 + $0x70] sm:$0xff]
    %v285 = vld [vmem:[%s1 + $0x78] sm:$0xff]
    %v286 = vld [vmem:[%s1 + $0x80] sm:$0xff]
    %v287 = vld [vmem:[%s1 + $0x88] sm:$0xff]
    %v288 = vld [vmem:[%s1 + $0x90] sm:$0xff]
    %v289 = vld [vmem:[%s1 + $0x98] sm:$0xff]
    %v290 = vld [vmem:[%s1 + $0xa0] sm:$0xff]
    %v291 = vld [vmem:[%s1 + $0xa8] sm:$0xff]
    %v292 = vld [vmem:[%s1 + $0xb0] sm:$0xff]
    %v293 = vld [vmem:[%s1 + $0xb8] sm:$0xff]
    %v294 = vld [vmem:[%s1 + $0xc0] sm:$0xff]
    %v295 = vld [vmem:[%s1 + $0xc8] sm:$0xff]
    %v296 = vld [vmem:[%s1 + $0xd0] sm:$0xff]
    %v297 = vld [vmem:[%s1 + $0xd8] sm:$0xff]
    %v298 = vld [vmem:[%s1 + $0xe0] sm:$0xff]
    %v299 = vld [vmem:[%s1 + $0xe8] sm:$0xff]
    %v300 = vld [vmem:[%s1 + $0xf0] sm:$0xff]
    %v301 = vld [vmem:[%s1 + $0xf8] sm:$0xff]
    %v302 = vld [vmem:[%s1 + $0x100] sm:$0xff]
    %v303 = vld [vmem:[%s1 + $0x108] sm:$0xff]
    %v304 = vld [vmem:[%s1 + $0x110] sm:$0xff]
    %v305 = vld [vmem:[%s1 + $0x118] sm:$0xff]
    %v306 = vld [vmem:[%s1 + $0x120] sm:$0xff]
    %v307 = vld [vmem:[%s1 + $0x128] sm:$0xff]
    %v308 = vld [vmem:[%s1 + $0x130] sm:$0xff]
    %v309 = vld [vmem:[%s1 + $0x138] sm:$0xff]
    %v310 = vld [vmem:[%s1 + $0x140] sm:$0xff]
    %v311 = vld [vmem:[%s1 + $0x148] sm:$0xff]
    %v312 = vld [vmem:[%s1 + $0x150] sm:$0xff]
    %v313 = vld [vmem:[%s1 + $0x158] sm:$0xff]
    %v314 = vld [vmem:[%s1 + $0x160] sm:$0xff]
    %v315 = vld [vmem:[%s1 + $0x168] sm:$0xff]
    %v316 = vld [vmem:[%s1 + $0x170] sm:$0xff]
    %v317 = vld [vmem:[%s1 + $0x178] sm:$0xff]
    %v318 = vld [vmem:[%s3] sm:$0x7]
    %v320 = vlaneseq
    %v321 = vshrl.u32 %v320, 7
    %v322 = vsub.s32 0, %v321
    %v323 = vrot.slane %v318, %v322
    %v324 = vlaneseq
    %v325 = vshrl.u32 %v324, 7
    %v326 = vsub.s32 1, %v325
    %v327 = vrot.slane %v318, %v326
    %v328 = vlaneseq
    %v329 = vshrl.u32 %v328, 7
    %v330 = vsub.s32 2, %v329
    %v331 = vrot.slane %v318, %v330
    %335 = vmatprep.subr.mxu0 %v271
    %336 = vmatpush1.msra.mxu0 %v270
    %337 = vmatprep.subr.mxu0 %v274
    %338 = vmatpush1.msra.mxu0 %v273
    %339 = vmatprep.subr.mxu0 %v277
    %340 = vmatpush1.msra.mxu0 %v276
    %341 = vmatprep.subr.mxu0 %v280
    %342 = vmatpush1.msra.mxu0 %v279
    %343 = vmatprep.subr.mxu0 %v283
    %344 = vmatpush1.msra.mxu0 %v282
    %345 = vmatprep.subr.mxu0 %v286
    %346 = vmatpush1.msra.mxu0 %v285
    %347 = vmatprep.subr.mxu0 %v289
    %348 = vmatpush1.msra.mxu0 %v288
    %349 = vmatprep.subr.mxu0 %v292
    %350 = vmatpush1.msra.mxu0 %v291
    %351 = vmatprep.subr.mxu0 %v295
    %352 = vmatpush1.msra.mxu0 %v294
    %353 = vmatprep.subr.mxu0 %v298
    %354 = vmatpush1.msra.mxu0 %v297
    %355 = vmatprep.subr.mxu0 %v301
    %356 = vmatpush1.msra.mxu0 %v300
    %357 = vmatprep.subr.mxu0 %v304
    %358 = vmatpush1.msra.mxu0 %v303
    %359 = vmatprep.subr.mxu0 %v307
    %360 = vmatpush1.msra.mxu0 %v306
    %361 = vmatprep.subr.mxu0 %v310
    %362 = vmatpush1.msra.mxu0 %v309
    %363 = vmatprep.subr.mxu0 %v313
    %364 = vmatpush1.msra.mxu0 %v312
    %365 = vmatprep.subr.mxu0 %v316
    %366 = vmatpush1.msra.mxu0 %v315
    %367 = vmatprep.subr.mxu0 0.0
    %368 = vmatpush1.msra.mxu0 0.0
    %369 = vmatprep.subr.mxu0 0.0
    %370 = vmatpush1.msra.mxu0 0.0
    %371 = vmatprep.subr.mxu0 0.0
    %372 = vmatpush1.msra.mxu0 0.0
    %373 = vmatprep.subr.mxu0 0.0
    %374 = vmatpush1.msra.mxu0 0.0
    %375 = vmatprep.subr.mxu0 0.0
    %376 = vmatpush1.msra.mxu0 0.0
    %377 = vmatprep.subr.mxu0 0.0
    %378 = vmatpush1.msra.mxu0 0.0
    %379 = vmatprep.subr.mxu0 0.0
    %380 = vmatpush1.msra.mxu0 0.0
    %381 = vmatprep.subr.mxu0 0.0
    %382 = vmatpush1.msra.mxu0 0.0
    %383 = vmatprep.subr.mxu0 0.0
    %384 = vmatpush1.msra.mxu0 0.0
    %385 = vmatprep.subr.mxu0 0.0
    %386 = vmatpush1.msra.mxu0 0.0
    %387 = vmatprep.subr.mxu0 0.0
    %388 = vmatpush1.msra.mxu0 0.0
    %389 = vmatprep.subr.mxu0 0.0
    %390 = vmatpush1.msra.mxu0 0.0
    %391 = vmatprep.subr.mxu0 0.0
    %392 = vmatpush1.msra.mxu0 0.0
    %393 = vmatprep.subr.mxu0 0.0
    %394 = vmatpush1.msra.mxu0 0.0
    %395 = vmatprep.subr.mxu0 0.0
    %396 = vmatpush1.msra.mxu0 0.0
    %397 = vmatprep.subr.mxu0 0.0
    %398 = vmatpush1.msra.mxu0 0.0
    %399 = vmatprep.mubr.f32.mxu0 0.0
    %400 = vmatmul.mubr.f32.gmra.mrb[0].mxu0 %v268
    %v401 = vpop.f32.mrb[0].mxu0
    %v402 = vadd.f32 %v323, %v401
    %v403 = vpop.f32.mrb[0].mxu0
    %v404 = vadd.f32 %v327, %v403
    %405 = vmatprep.mubr.f32.mxu0 0.0
    %406 = vmatmul.mubr.f32.gmra.mrb[0].mxu0 %v269
    %v407 = vpop.f32.mrb[0].mxu0
    %v408 = vadd.f32 %v323, %v407
    %v409 = vpop.f32.mrb[0].mxu0
    %v410 = vadd.f32 %v327, %v409
    %411 = vdwg.mxu0
    %412 = vmatprep.subr.mxu0 0.0
    %413 = vmatpush1.msra.mxu0 %v272
    %414 = vmatprep.subr.mxu0 0.0
    %415 = vmatpush1.msra.mxu0 %v275
    %416 = vmatprep.subr.mxu0 0.0
    %417 = vmatpush1.msra.mxu0 %v278
    %418 = vmatprep.subr.mxu0 0.0
    %419 = vmatpush1.msra.mxu0 %v281
    %420 = vmatprep.subr.mxu0 0.0
    %421 = vmatpush1.msra.mxu0 %v284
    %422 = vmatprep.subr.mxu0 0.0
    %423 = vmatpush1.msra.mxu0 %v287
    %424 = vmatprep.subr.mxu0 0.0
    %425 = vmatpush1.msra.mxu0 %v290
    %426 = vmatprep.subr.mxu0 0.0
    %427 = vmatpush1.msra.mxu0 %v293
    %428 = vmatprep.subr.mxu0 0.0
    %429 = vmatpush1.msra.mxu0 %v296
    %430 = vmatprep.subr.mxu0 0.0
    %431 = vmatpush1.msra.mxu0 %v299
    %432 = vmatprep.subr.mxu0 0.0
    %433 = vmatpush1.msra.mxu0 %v302
    %434 = vmatprep.subr.mxu0 0.0
    %435 = vmatpush1.msra.mxu0 %v305
    %436 = vmatprep.subr.mxu0 0.0
    %437 = vmatpush1.msra.mxu0 %v308
    %438 = vmatprep.subr.mxu0 0.0
    %439 = vmatpush1.msra.mxu0 %v311
    %440 = vmatprep.subr.mxu0 0.0
    %441 = vmatpush1.msra.mxu0 %v314
    %442 = vmatprep.subr.mxu0 0.0
    %443 = vmatpush1.msra.mxu0 %v317
    %444 = vmatprep.subr.mxu0 0.0
    %445 = vmatpush1.msra.mxu0 0.0
    %446 = vmatprep.subr.mxu0 0.0
    %447 = vmatpush1.msra.mxu0 0.0
    %448 = vmatprep.subr.mxu0 0.0
    %449 = vmatpush1.msra.mxu0 0.0
    %450 = vmatprep.subr.mxu0 0.0
    %451 = vmatpush1.msra.mxu0 0.0
    %452 = vmatprep.subr.mxu0 0.0
    %453 = vmatpush1.msra.mxu0 0.0
    %454 = vmatprep.subr.mxu0 0.0
    %455 = vmatpush1.msra.mxu0 0.0
    %456 = vmatprep.subr.mxu0 0.0
    %457 = vmatpush1.msra.mxu0 0.0
    %458 = vmatprep.subr.mxu0 0.0
    %459 = vmatpush1.msra.mxu0 0.0
    %460 = vmatprep.subr.mxu0 0.0
    %461 = vmatpush1.msra.mxu0 0.0
    %462 = vmatprep.subr.mxu0 0.0
    %463 = vmatpush1.msra.mxu0 0.0
    %464 = vmatprep.subr.mxu0 0.0
    %465 = vmatpush1.msra.mxu0 0.0
    %466 = vmatprep.subr.mxu0 0.0
    %467 = vmatpush1.msra.mxu0 0.0
    %468 = vmatprep.subr.mxu0 0.0
    %469 = vmatpush1.msra.mxu0 0.0
    %470 = vmatprep.subr.mxu0 0.0
    %471 = vmatpush1.msra.mxu0 0.0
    %472 = vmatprep.subr.mxu0 0.0
    %473 = vmatpush1.msra.mxu0 0.0
    %474 = vmatprep.subr.mxu0 0.0
    %475 = vmatpush1.msra.mxu0 0.0
    %476 = vmatprep.mubr.f32.mxu0 0.0
    %477 = vmatmul.mubr.f32.gmra.mrb[0].mxu0 %v268
    %v478 = vpop.f32.mrb[0].mxu0
    %v479 = vadd.f32 %v331, %v478
    %v480 = vpop.f32.mrb[0].mxu0
    %481 = vmatprep.mubr.f32.mxu0 0.0
    %482 = vmatmul.mubr.f32.gmra.mrb[0].mxu0 %v269
    %v483 = vpop.f32.mrb[0].mxu0
    %v484 = vadd.f32 %v331, %v483
    %v485 = vpop.f32.mrb[0].mxu0
    %486 = vdwg.mxu0
    %487 = vst [vmem:[#allocation3 + $0x30] sm:$0xff] %v402
    %488 = vst [vmem:[#allocation3 + $0x38] sm:$0xff] %v404
    %489 = vst [vmem:[#allocation3 + $0x40] sm:$0xff] %v479
    %490 = vst [vmem:[#allocation3 + $0x48] sm:$0xff] %v408
    %491 = vst [vmem:[#allocation3 + $0x50] sm:$0xff] %v410
    %492 = vst [vmem:[#allocation3 + $0x58] sm:$0xff] %v484
    %v493 = vld [vmem:[%s0 + $0x20] sm:$0xff]
    %v494 = vld [vmem:[%s0 + $0x28] sm:$0xff]
    %v495 = vld [vmem:[%s1] sm:$0xff]
    %v496 = vld [vmem:[%s1 + $0x8] sm:$0xff]
    %v497 = vld [vmem:[%s1 + $0x10] sm:$0xff]
    %v498 = vld [vmem:[%s1 + $0x18] sm:$0xff]
    %v499 = vld [vmem:[%s1 + $0x20] sm:$0xff]
    %v500 = vld [vmem:[%s1 + $0x28] sm:$0xff]
    %v501 = vld [vmem:[%s1 + $0x30] sm:$0xff]
    %v502 = vld [vmem:[%s1 + $0x38] sm:$0xff]
    %v503 = vld [vmem:[%s1 + $0x40] sm:$0xff]
    %v504 = vld [vmem:[%s1 + $0x48] sm:$0xff]
    %v505 = vld [vmem:[%s1 + $0x50] sm:$0xff]
    %v506 = vld [vmem:[%s1 + $0x58] sm:$0xff]
    %v507 = vld [vmem:[%s1 + $0x60] sm:$0xff]
    %v508 = vld [vmem:[%s1 + $0x68] sm:$0xff]
    %v509 = vld [vmem:[%s1 + $0x70] sm:$0xff]
    %v510 = vld [vmem:[%s1 + $0x78] sm:$0xff]
    %v511 = vld [vmem:[%s1 + $0x80] sm:$0xff]
    %v512 = vld [vmem:[%s1 + $0x88] sm:$0xff]
    %v513 = vld [vmem:[%s1 + $0x90] sm:$0xff]
    %v514 = vld [vmem:[%s1 + $0x98] sm:$0xff]
    %v515 = vld [vmem:[%s1 + $0xa0] sm:$0xff]
    %v516 = vld [vmem:[%s1 + $0xa8] sm:$0xff]
    %v517 = vld [vmem:[%s1 + $0xb0] sm:$0xff]
    %v518 = vld [vmem:[%s1 + $0xb8] sm:$0xff]
    %v519 = vld [vmem:[%s1 + $0xc0] sm:$0xff]
    %v520 = vld [vmem:[%s1 + $0xc8] sm:$0xff]
    %v521 = vld [vmem:[%s1 + $0xd0] sm:$0xff]
    %v522 = vld [vmem:[%s1 + $0xd8] sm:$0xff]
    %v523 = vld [vmem:[%s1 + $0xe0] sm:$0xff]
    %v524 = vld [vmem:[%s1 + $0xe8] sm:$0xff]
    %v525 = vld [vmem:[%s1 + $0xf0] sm:$0xff]
    %v526 = vld [vmem:[%s1 + $0xf8] sm:$0xff]
    %v527 = vld [vmem:[%s1 + $0x100] sm:$0xff]
    %v528 = vld [vmem:[%s1 + $0x108] sm:$0xff]
    %v529 = vld [vmem:[%s1 + $0x110] sm:$0xff]
    %v530 = vld [vmem:[%s1 + $0x118] sm:$0xff]
    %v531 = vld [vmem:[%s1 + $0x120] sm:$0xff]
    %v532 = vld [vmem:[%s1 + $0x128] sm:$0xff]
    %v533 = vld [vmem:[%s1 + $0x130] sm:$0xff]
    %v534 = vld [vmem:[%s1 + $0x138] sm:$0xff]
    %v535 = vld [vmem:[%s1 + $0x140] sm:$0xff]
    %v536 = vld [vmem:[%s1 + $0x148] sm:$0xff]
    %v537 = vld [vmem:[%s1 + $0x150] sm:$0xff]
    %v538 = vld [vmem:[%s1 + $0x158] sm:$0xff]
    %v539 = vld [vmem:[%s1 + $0x160] sm:$0xff]
    %v540 = vld [vmem:[%s1 + $0x168] sm:$0xff]
    %v541 = vld [vmem:[%s1 + $0x170] sm:$0xff]
    %v542 = vld [vmem:[%s1 + $0x178] sm:$0xff]
    %v543 = vld [vmem:[%s3] sm:$0x7]
    %v545 = vlaneseq
    %v546 = vshrl.u32 %v545, 7
    %v547 = vsub.s32 0, %v546
    %v548 = vrot.slane %v543, %v547
    %v549 = vlaneseq
    %v550 = vshrl.u32 %v549, 7
    %v551 = vsub.s32 1, %v550
    %v552 = vrot.slane %v543, %v551
    %v553 = vlaneseq
    %v554 = vshrl.u32 %v553, 7
    %v555 = vsub.s32 2, %v554
    %v556 = vrot.slane %v543, %v555
    %560 = vmatprep.subr.mxu0 %v496
    %561 = vmatpush1.msra.mxu0 %v495
    %562 = vmatprep.subr.mxu0 %v499
    %563 = vmatpush1.msra.mxu0 %v498
    %564 = vmatprep.subr.mxu0 %v502
    %565 = vmatpush1.msra.mxu0 %v501
    %566 = vmatprep.subr.mxu0 %v505
    %567 = vmatpush1.msra.mxu0 %v504
    %568 = vmatprep.subr.mxu0 %v508
    %569 = vmatpush1.msra.mxu0 %v507
    %570 = vmatprep.subr.mxu0 %v511
    %571 = vmatpush1.msra.mxu0 %v510
    %572 = vmatprep.subr.mxu0 %v514
    %573 = vmatpush1.msra.mxu0 %v513
    %574 = vmatprep.subr.mxu0 %v517
    %575 = vmatpush1.msra.mxu0 %v516
    %576 = vmatprep.subr.mxu0 %v520
    %577 = vmatpush1.msra.mxu0 %v519
    %578 = vmatprep.subr.mxu0 %v523
    %579 = vmatpush1.msra.mxu0 %v522
    %580 = vmatprep.subr.mxu0 %v526
    %581 = vmatpush1.msra.mxu0 %v525
    %582 = vmatprep.subr.mxu0 %v529
    %583 = vmatpush1.msra.mxu0 %v528
    %584 = vmatprep.subr.mxu0 %v532
    %585 = vmatpush1.msra.mxu0 %v531
    %586 = vmatprep.subr.mxu0 %v535
    %587 = vmatpush1.msra.mxu0 %v534
    %588 = vmatprep.subr.mxu0 %v538
    %589 = vmatpush1.msra.mxu0 %v537
    %590 = vmatprep.subr.mxu0 %v541
    %591 = vmatpush1.msra.mxu0 %v540
    %592 = vmatprep.subr.mxu0 0.0
    %593 = vmatpush1.msra.mxu0 0.0
    %594 = vmatprep.subr.mxu0 0.0
    %595 = vmatpush1.msra.mxu0 0.0
    %596 = vmatprep.subr.mxu0 0.0
    %597 = vmatpush1.msra.mxu0 0.0
    %598 = vmatprep.subr.mxu0 0.0
    %599 = vmatpush1.msra.mxu0 0.0
    %600 = vmatprep.subr.mxu0 0.0
    %601 = vmatpush1.msra.mxu0 0.0
    %602 = vmatprep.subr.mxu0 0.0
    %603 = vmatpush1.msra.mxu0 0.0
    %604 = vmatprep.subr.mxu0 0.0
    %605 = vmatpush1.msra.mxu0 0.0
    %606 = vmatprep.subr.mxu0 0.0
    %607 = vmatpush1.msra.mxu0 0.0
    %608 = vmatprep.subr.mxu0 0.0
    %609 = vmatpush1.msra.mxu0 0.0
    %610 = vmatprep.subr.mxu0 0.0
    %611 = vmatpush1.msra.mxu0 0.0
    %612 = vmatprep.subr.mxu0 0.0
    %613 = vmatpush1.msra.mxu0 0.0
    %614 = vmatprep.subr.mxu0 0.0
    %615 = vmatpush1.msra.mxu0 0.0
    %616 = vmatprep.subr.mxu0 0.0
    %617 = vmatpush1.msra.mxu0 0.0
    %618 = vmatprep.subr.mxu0 0.0
    %619 = vmatpush1.msra.mxu0 0.0
    %620 = vmatprep.subr.mxu0 0.0
    %621 = vmatpush1.msra.mxu0 0.0
    %622 = vmatprep.subr.mxu0 0.0
    %623 = vmatpush1.msra.mxu0 0.0
    %624 = vmatprep.mubr.f32.mxu0 0.0
    %625 = vmatmul.mubr.f32.gmra.mrb[0].mxu0 %v493
    %v626 = vpop.f32.mrb[0].mxu0
    %v627 = vadd.f32 %v548, %v626
    %v628 = vpop.f32.mrb[0].mxu0
    %v629 = vadd.f32 %v552, %v628
    %630 = vmatprep.mubr.f32.mxu0 0.0
    %631 = vmatmul.mubr.f32.gmra.mrb[0].mxu0 %v494
    %v632 = vpop.f32.mrb[0].mxu0
    %v633 = vadd.f32 %v548, %v632
    %v634 = vpop.f32.mrb[0].mxu0
    %v635 = vadd.f32 %v552, %v634
    %636 = vdwg.mxu0
    %637 = vmatprep.subr.mxu0 0.0
    %638 = vmatpush1.msra.mxu0 %v497
    %639 = vmatprep.subr.mxu0 0.0
    %640 = vmatpush1.msra.mxu0 %v500
    %641 = vmatprep.subr.mxu0 0.0
    %642 = vmatpush1.msra.mxu0 %v503
    %643 = vmatprep.subr.mxu0 0.0
    %644 = vmatpush1.msra.mxu0 %v506
    %645 = vmatprep.subr.mxu0 0.0
    %646 = vmatpush1.msra.mxu0 %v509
    %647 = vmatprep.subr.mxu0 0.0
    %648 = vmatpush1.msra.mxu0 %v512
    %649 = vmatprep.subr.mxu0 0.0
    %650 = vmatpush1.msra.mxu0 %v515
    %651 = vmatprep.subr.mxu0 0.0
    %652 = vmatpush1.msra.mxu0 %v518
    %653 = vmatprep.subr.mxu0 0.0
    %654 = vmatpush1.msra.mxu0 %v521
    %655 = vmatprep.subr.mxu0 0.0
    %656 = vmatpush1.msra.mxu0 %v524
    %657 = vmatprep.subr.mxu0 0.0
    %658 = vmatpush1.msra.mxu0 %v527
    %659 = vmatprep.subr.mxu0 0.0
    %660 = vmatpush1.msra.mxu0 %v530
    %661 = vmatprep.subr.mxu0 0.0
    %662 = vmatpush1.msra.mxu0 %v533
    %663 = vmatprep.subr.mxu0 0.0
    %664 = vmatpush1.msra.mxu0 %v536
    %665 = vmatprep.subr.mxu0 0.0
    %666 = vmatpush1.msra.mxu0 %v539
    %667 = vmatprep.subr.mxu0 0.0
    %668 = vmatpush1.msra.mxu0 %v542
    %669 = vmatprep.subr.mxu0 0.0
    %670 = vmatpush1.msra.mxu0 0.0
    %671 = vmatprep.subr.mxu0 0.0
    %672 = vmatpush1.msra.mxu0 0.0
    %673 = vmatprep.subr.mxu0 0.0
    %674 = vmatpush1.msra.mxu0 0.0
    %675 = vmatprep.subr.mxu0 0.0
    %676 = vmatpush1.msra.mxu0 0.0
    %677 = vmatprep.subr.mxu0 0.0
    %678 = vmatpush1.msra.mxu0 0.0
    %679 = vmatprep.subr.mxu0 0.0
    %680 = vmatpush1.msra.mxu0 0.0
    %681 = vmatprep.subr.mxu0 0.0
    %682 = vmatpush1.msra.mxu0 0.0
    %683 = vmatprep.subr.mxu0 0.0
    %684 = vmatpush1.msra.mxu0 0.0
    %685 = vmatprep.subr.mxu0 0.0
    %686 = vmatpush1.msra.mxu0 0.0
    %687 = vmatprep.subr.mxu0 0.0
    %688 = vmatpush1.msra.mxu0 0.0
    %689 = vmatprep.subr.mxu0 0.0
    %690 = vmatpush1.msra.mxu0 0.0
    %691 = vmatprep.subr.mxu0 0.0
    %692 = vmatpush1.msra.mxu0 0.0
    %693 = vmatprep.subr.mxu0 0.0
    %694 = vmatpush1.msra.mxu0 0.0
    %695 = vmatprep.subr.mxu0 0.0
    %696 = vmatpush1.msra.mxu0 0.0
    %697 = vmatprep.subr.mxu0 0.0
    %698 = vmatpush1.msra.mxu0 0.0
    %699 = vmatprep.subr.mxu0 0.0
    %700 = vmatpush1.msra.mxu0 0.0
    %701 = vmatprep.mubr.f32.mxu0 0.0
    %702 = vmatmul.mubr.f32.gmra.mrb[0].mxu0 %v493
    %v703 = vpop.f32.mrb[0].mxu0
    %v704 = vadd.f32 %v556, %v703
    %v705 = vpop.f32.mrb[0].mxu0
    %706 = vmatprep.mubr.f32.mxu0 0.0
    %707 = vmatmul.mubr.f32.gmra.mrb[0].mxu0 %v494
    %v708 = vpop.f32.mrb[0].mxu0
    %v709 = vadd.f32 %v556, %v708
    %v710 = vpop.f32.mrb[0].mxu0
    %711 = vdwg.mxu0
    %712 = vst [vmem:[#allocation3 + $0x60] sm:$0xff] %v627
    %713 = vst [vmem:[#allocation3 + $0x68] sm:$0xff] %v629
    %714 = vst [vmem:[#allocation3 + $0x70] sm:$0xff] %v704
    %715 = vst [vmem:[#allocation3 + $0x78] sm:$0xff] %v633
    %716 = vst [vmem:[#allocation3 + $0x80] sm:$0xff] %v635
    %717 = vst [vmem:[#allocation3 + $0x88] sm:$0xff] %v709
    %v718 = vld [vmem:[%s0 + $0x30] sm:$0xff]
    %v719 = vld [vmem:[%s0 + $0x38] sm:$0xff]
    %v720 = vld [vmem:[%s1] sm:$0xff]
    %v721 = vld [vmem:[%s1 + $0x8] sm:$0xff]
    %v722 = vld [vmem:[%s1 + $0x10] sm:$0xff]
    %v723 = vld [vmem:[%s1 + $0x18] sm:$0xff]
    %v724 = vld [vmem:[%s1 + $0x20] sm:$0xff]
    %v725 = vld [vmem:[%s1 + $0x28] sm:$0xff]
    %v726 = vld [vmem:[%s1 + $0x30] sm:$0xff]
    %v727 = vld [vmem:[%s1 + $0x38] sm:$0xff]
    %v728 = vld [vmem:[%s1 + $0x40] sm:$0xff]
    %v729 = vld [vmem:[%s1 + $0x48] sm:$0xff]
    %v730 = vld [vmem:[%s1 + $0x50] sm:$0xff]
    %v731 = vld [vmem:[%s1 + $0x58] sm:$0xff]
    %v732 = vld [vmem:[%s1 + $0x60] sm:$0xff]
    %v733 = vld [vmem:[%s1 + $0x68] sm:$0xff]
    %v734 = vld [vmem:[%s1 + $0x70] sm:$0xff]
    %v735 = vld [vmem:[%s1 + $0x78] sm:$0xff]
    %v736 = vld [vmem:[%s1 + $0x80] sm:$0xff]
    %v737 = vld [vmem:[%s1 + $0x88] sm:$0xff]
    %v738 = vld [vmem:[%s1 + $0x90] sm:$0xff]
    %v739 = vld [vmem:[%s1 + $0x98] sm:$0xff]
    %v740 = vld [vmem:[%s1 + $0xa0] sm:$0xff]
    %v741 = vld [vmem:[%s1 + $0xa8] sm:$0xff]
    %v742 = vld [vmem:[%s1 + $0xb0] sm:$0xff]
    %v743 = vld [vmem:[%s1 + $0xb8] sm:$0xff]
    %v744 = vld [vmem:[%s1 + $0xc0] sm:$0xff]
    %v745 = vld [vmem:[%s1 + $0xc8] sm:$0xff]
    %v746 = vld [vmem:[%s1 + $0xd0] sm:$0xff]
    %v747 = vld [vmem:[%s1 + $0xd8] sm:$0xff]
    %v748 = vld [vmem:[%s1 + $0xe0] sm:$0xff]
    %v749 = vld [vmem:[%s1 + $0xe8] sm:$0xff]
    %v750 = vld [vmem:[%s1 + $0xf0] sm:$0xff]
    %v751 = vld [vmem:[%s1 + $0xf8] sm:$0xff]
    %v752 = vld [vmem:[%s1 + $0x100] sm:$0xff]
    %v753 = vld [vmem:[%s1 + $0x108] sm:$0xff]
    %v754 = vld [vmem:[%s1 + $0x110] sm:$0xff]
    %v755 = vld [vmem:[%s1 + $0x118] sm:$0xff]
    %v756 = vld [vmem:[%s1 + $0x120] sm:$0xff]
    %v757 = vld [vmem:[%s1 + $0x128] sm:$0xff]
    %v758 = vld [vmem:[%s1 + $0x130] sm:$0xff]
    %v759 = vld [vmem:[%s1 + $0x138] sm:$0xff]
    %v760 = vld [vmem:[%s1 + $0x140] sm:$0xff]
    %v761 = vld [vmem:[%s1 + $0x148] sm:$0xff]
    %v762 = vld [vmem:[%s1 + $0x150] sm:$0xff]
    %v763 = vld [vmem:[%s1 + $0x158] sm:$0xff]
    %v764 = vld [vmem:[%s1 + $0x160] sm:$0xff]
    %v765 = vld [vmem:[%s1 + $0x168] sm:$0xff]
    %v766 = vld [vmem:[%s1 + $0x170] sm:$0xff]
    %v767 = vld [vmem:[%s1 + $0x178] sm:$0xff]
    %v768 = vld [vmem:[%s3] sm:$0x7]
    %v770 = vlaneseq
    %v771 = vshrl.u32 %v770, 7
    %v772 = vsub.s32 0, %v771
    %v773 = vrot.slane %v768, %v772
    %v774 = vlaneseq
    %v775 = vshrl.u32 %v774, 7
    %v776 = vsub.s32 1, %v775
    %v777 = vrot.slane %v768, %v776
    %v778 = vlaneseq
    %v779 = vshrl.u32 %v778, 7
    %v780 = vsub.s32 2, %v779
    %v781 = vrot.slane %v768, %v780
    %785 = vmatprep.subr.mxu0 %v721
    %786 = vmatpush1.msra.mxu0 %v720
    %787 = vmatprep.subr.mxu0 %v724
    %788 = vmatpush1.msra.mxu0 %v723
    %789 = vmatprep.subr.mxu0 %v727
    %790 = vmatpush1.msra.mxu0 %v726
    %791 = vmatprep.subr.mxu0 %v730
    %792 = vmatpush1.msra.mxu0 %v729
    %793 = vmatprep.subr.mxu0 %v733
    %794 = vmatpush1.msra.mxu0 %v732
    %795 = vmatprep.subr.mxu0 %v736
    %796 = vmatpush1.msra.mxu0 %v735
    %797 = vmatprep.subr.mxu0 %v739
    %798 = vmatpush1.msra.mxu0 %v738
    %799 = vmatprep.subr.mxu0 %v742
    %800 = vmatpush1.msra.mxu0 %v741
    %801 = vmatprep.subr.mxu0 %v745
    %802 = vmatpush1.msra.mxu0 %v744
    %803 = vmatprep.subr.mxu0 %v748
    %804 = vmatpush1.msra.mxu0 %v747
    %805 = vmatprep.subr.mxu0 %v751
    %806 = vmatpush1.msra.mxu0 %v750
    %807 = vmatprep.subr.mxu0 %v754
    %808 = vmatpush1.msra.mxu0 %v753
    %809 = vmatprep.subr.mxu0 %v757
    %810 = vmatpush1.msra.mxu0 %v756
    %811 = vmatprep.subr.mxu0 %v760
    %812 = vmatpush1.msra.mxu0 %v759
    %813 = vmatprep.subr.mxu0 %v763
    %814 = vmatpush1.msra.mxu0 %v762
    %815 = vmatprep.subr.mxu0 %v766
    %816 = vmatpush1.msra.mxu0 %v765
    %817 = vmatprep.subr.mxu0 0.0
    %818 = vmatpush1.msra.mxu0 0.0
    %819 = vmatprep.subr.mxu0 0.0
    %820 = vmatpush1.msra.mxu0 0.0
    %821 = vmatprep.subr.mxu0 0.0
    %822 = vmatpush1.msra.mxu0 0.0
    %823 = vmatprep.subr.mxu0 0.0
    %824 = vmatpush1.msra.mxu0 0.0
    %825 = vmatprep.subr.mxu0 0.0
    %826 = vmatpush1.msra.mxu0 0.0
    %827 = vmatprep.subr.mxu0 0.0
    %828 = vmatpush1.msra.mxu0 0.0
    %829 = vmatprep.subr.mxu0 0.0
    %830 = vmatpush1.msra.mxu0 0.0
    %831 = vmatprep.subr.mxu0 0.0
    %832 = vmatpush1.msra.mxu0 0.0
    %833 = vmatprep.subr.mxu0 0.0
    %834 = vmatpush1.msra.mxu0 0.0
    %835 = vmatprep.subr.mxu0 0.0
    %836 = vmatpush1.msra.mxu0 0.0
    %837 = vmatprep.subr.mxu0 0.0
    %838 = vmatpush1.msra.mxu0 0.0
    %839 = vmatprep.subr.mxu0 0.0
    %840 = vmatpush1.msra.mxu0 0.0
    %841 = vmatprep.subr.mxu0 0.0
    %842 = vmatpush1.msra.mxu0 0.0
    %843 = vmatprep.subr.mxu0 0.0
    %844 = vmatpush1.msra.mxu0 0.0
    %845 = vmatprep.subr.mxu0 0.0
    %846 = vmatpush1.msra.mxu0 0.0
    %847 = vmatprep.subr.mxu0 0.0
    %848 = vmatpush1.msra.mxu0 0.0
    %849 = vmatprep.mubr.f32.mxu0 0.0
    %850 = vmatmul.mubr.f32.gmra.mrb[0].mxu0 %v718
    %v851 = vpop.f32.mrb[0].mxu0
    %v852 = vadd.f32 %v773, %v851
    %v853 = vpop.f32.mrb[0].mxu0
    %v854 = vadd.f32 %v777, %v853
    %855 = vmatprep.mubr.f32.mxu0 0.0
    %856 = vmatmul.mubr.f32.gmra.mrb[0].mxu0 %v719
    %v857 = vpop.f32.mrb[0].mxu0
    %v858 = vadd.f32 %v773, %v857
    %v859 = vpop.f32.mrb[0].mxu0
    %v860 = vadd.f32 %v777, %v859
    %861 = vdwg.mxu0
    %862 = vmatprep.subr.mxu0 0.0
    %863 = vmatpush1.msra.mxu0 %v722
    %864 = vmatprep.subr.mxu0 0.0
    %865 = vmatpush1.msra.mxu0 %v725
    %866 = vmatprep.subr.mxu0 0.0
    %867 = vmatpush1.msra.mxu0 %v728
    %868 = vmatprep.subr.mxu0 0.0
    %869 = vmatpush1.msra.mxu0 %v731
    %870 = vmatprep.subr.mxu0 0.0
    %871 = vmatpush1.msra.mxu0 %v734
    %872 = vmatprep.subr.mxu0 0.0
    %873 = vmatpush1.msra.mxu0 %v737
    %874 = vmatprep.subr.mxu0 0.0
    %875 = vmatpush1.msra.mxu0 %v740
    %876 = vmatprep.subr.mxu0 0.0
    %877 = vmatpush1.msra.mxu0 %v743
    %878 = vmatprep.subr.mxu0 0.0
    %879 = vmatpush1.msra.mxu0 %v746
    %880 = vmatprep.subr.mxu0 0.0
    %881 = vmatpush1.msra.mxu0 %v749
    %882 = vmatprep.subr.mxu0 0.0
    %883 = vmatpush1.msra.mxu0 %v752
    %884 = vmatprep.subr.mxu0 0.0
    %885 = vmatpush1.msra.mxu0 %v755
    %886 = vmatprep.subr.mxu0 0.0
    %887 = vmatpush1.msra.mxu0 %v758
    %888 = vmatprep.subr.mxu0 0.0
    %889 = vmatpush1.msra.mxu0 %v761
    %890 = vmatprep.subr.mxu0 0.0
    %891 = vmatpush1.msra.mxu0 %v764
    %892 = vmatprep.subr.mxu0 0.0
    %893 = vmatpush1.msra.mxu0 %v767
    %894 = vmatprep.subr.mxu0 0.0
    %895 = vmatpush1.msra.mxu0 0.0
    %896 = vmatprep.subr.mxu0 0.0
    %897 = vmatpush1.msra.mxu0 0.0
    %898 = vmatprep.subr.mxu0 0.0
    %899 = vmatpush1.msra.mxu0 0.0
    %900 = vmatprep.subr.mxu0 0.0
    %901 = vmatpush1.msra.mxu0 0.0
    %902 = vmatprep.subr.mxu0 0.0
    %903 = vmatpush1.msra.mxu0 0.0
    %904 = vmatprep.subr.mxu0 0.0
    %905 = vmatpush1.msra.mxu0 0.0
    %906 = vmatprep.subr.mxu0 0.0
    %907 = vmatpush1.msra.mxu0 0.0
    %908 = vmatprep.subr.mxu0 0.0
    %909 = vmatpush1.msra.mxu0 0.0
    %910 = vmatprep.subr.mxu0 0.0
    %911 = vmatpush1.msra.mxu0 0.0
    %912 = vmatprep.subr.mxu0 0.0
    %913 = vmatpush1.msra.mxu0 0.0
    %914 = vmatprep.subr.mxu0 0.0
    %915 = vmatpush1.msra.mxu0 0.0
    %916 = vmatprep.subr.mxu0 0.0
    %917 = vmatpush1.msra.mxu0 0.0
    %918 = vmatprep.subr.mxu0 0.0
    %919 = vmatpush1.msra.mxu0 0.0
    %920 = vmatprep.subr.mxu0 0.0
    %921 = vmatpush1.msra.mxu0 0.0
    %922 = vmatprep.subr.mxu0 0.0
    %923 = vmatpush1.msra.mxu0 0.0
    %924 = vmatprep.subr.mxu0 0.0
    %925 = vmatpush1.msra.mxu0 0.0
    %926 = vmatprep.mubr.f32.mxu0 0.0
    %927 = vmatmul.mubr.f32.gmra.mrb[0].mxu0 %v718
    %v928 = vpop.f32.mrb[0].mxu0
    %v929 = vadd.f32 %v781, %v928
    %v930 = vpop.f32.mrb[0].mxu0
    %931 = vmatprep.mubr.f32.mxu0 0.0
    %932 = vmatmul.mubr.f32.gmra.mrb[0].mxu0 %v719
    %v933 = vpop.f32.mrb[0].mxu0
    %v934 = vadd.f32 %v781, %v933
    %v935 = vpop.f32.mrb[0].mxu0
    %936 = vdwg.mxu0
    %937 = vst [vmem:[#allocation3 + $0x90] sm:$0xff] %v852
    %938 = vst [vmem:[#allocation3 + $0x98] sm:$0xff] %v854
    %939 = vst [vmem:[#allocation3 + $0xa0] sm:$0xff] %v929
    %940 = vst [vmem:[#allocation3 + $0xa8] sm:$0xff] %v858
    %941 = vst [vmem:[#allocation3 + $0xb0] sm:$0xff] %v860
    %942 = vst [vmem:[#allocation3 + $0xb8] sm:$0xff] %v934
    %v943 = vld [vmem:[%s4] sm:$0x1]
    %v945 = vlaneseq
    %v946 = vshrl.u32 %v945, 7
    %v947 = vsub.s32 0, %v946
    %v948 = vrot.slane %v943, %v947
    %v950 = vld [vmem:[#allocation2] sm:$0xff]
    %s951 = smul.u32 0, 3
    %s952 = smul.addr %s951, 8
    %s953 = scalar_lea.vmem [#allocation3], %s952
    %v954 = vld [vmem:[%s953] sm:$0xff]
    %v955 = vld [vmem:[%s953 + $0x8] sm:$0xff]
    %v956 = vld [vmem:[%s953 + $0x10] sm:$0xff]
    %v957 = vld [vmem:[#allocation4] sm:$0xff]
    %v958 = vld [vmem:[#allocation4 + $0x8] sm:$0xff]
    %v959 = vld [vmem:[#allocation4 + $0x10] sm:$0xff]
    %v960 = vld [vmem:[#allocation4 + $0x18] sm:$0xff]
    %v961 = vld [vmem:[#allocation4 + $0x20] sm:$0xff]
    %v962 = vld [vmem:[#allocation4 + $0x28] sm:$0xff]
    %v963 = vld [vmem:[#allocation4 + $0x30] sm:$0xff]
    %v964 = vld [vmem:[#allocation4 + $0x38] sm:$0xff]
    %v965 = vld [vmem:[#allocation4 + $0x40] sm:$0xff]
    %v966 = vld [vmem:[#allocation4 + $0x48] sm:$0xff]
    %v967 = vld [vmem:[#allocation4 + $0x50] sm:$0xff]
    %v968 = vld [vmem:[#allocation4 + $0x58] sm:$0xff]
    %v969 = vld [vmem:[#allocation4 + $0x60] sm:$0xff]
    %v970 = vld [vmem:[#allocation4 + $0x68] sm:$0xff]
    %v971 = vld [vmem:[#allocation4 + $0x70] sm:$0xff]
    %v972 = vld [vmem:[#allocation4 + $0x78] sm:$0xff]
    %v973 = vld [vmem:[#allocation4 + $0x80] sm:$0xff]
    %v974 = vld [vmem:[#allocation4 + $0x88] sm:$0xff]
    %v975 = vld [vmem:[#allocation4 + $0x90] sm:$0xff]
    %v976 = vld [vmem:[#allocation4 + $0x98] sm:$0xff]
    %v977 = vld [vmem:[#allocation4 + $0xa0] sm:$0xff]
    %v978 = vld [vmem:[#allocation4 + $0xa8] sm:$0xff]
    %v979 = vld [vmem:[#allocation4 + $0xb0] sm:$0xff]
    %v980 = vld [vmem:[#allocation4 + $0xb8] sm:$0xff]
    %v981 = vld [vmem:[#allocation4 + $0xc0] sm:$0xff]
    %v982 = vld [vmem:[#allocation4 + $0xc8] sm:$0xff]
    %v983 = vld [vmem:[#allocation4 + $0xd0] sm:$0xff]
    %v984 = vld [vmem:[#allocation4 + $0xd8] sm:$0xff]
    %v985 = vld [vmem:[#allocation4 + $0xe0] sm:$0xff]
    %v986 = vld [vmem:[#allocation4 + $0xe8] sm:$0xff]
    %v987 = vld [vmem:[#allocation4 + $0xf0] sm:$0xff]
    %v988 = vld [vmem:[#allocation4 + $0xf8] sm:$0xff]
    %v989 = vld [vmem:[#allocation4 + $0x100] sm:$0xff]
    %v990 = vld [vmem:[#allocation4 + $0x108] sm:$0xff]
    %v991 = vld [vmem:[#allocation4 + $0x110] sm:$0xff]
    %v992 = vld [vmem:[#allocation4 + $0x118] sm:$0xff]
    %v993 = vld [vmem:[#allocation4 + $0x120] sm:$0xff]
    %v994 = vld [vmem:[#allocation4 + $0x128] sm:$0xff]
    %v995 = vld [vmem:[#allocation4 + $0x130] sm:$0xff]
    %v996 = vld [vmem:[#allocation4 + $0x138] sm:$0xff]
    %v997 = vld [vmem:[#allocation4 + $0x140] sm:$0xff]
    %v998 = vld [vmem:[#allocation4 + $0x148] sm:$0xff]
    %v999 = vld [vmem:[#allocation4 + $0x150] sm:$0xff]
    %v1000 = vld [vmem:[#allocation4 + $0x158] sm:$0xff]
    %v1001 = vld [vmem:[#allocation4 + $0x160] sm:$0xff]
    %v1002 = vld [vmem:[#allocation4 + $0x168] sm:$0xff]
    %v1003 = vld [vmem:[#allocation4 + $0x170] sm:$0xff]
    %v1004 = vld [vmem:[#allocation4 + $0x178] sm:$0xff]
    %1005 = vmatprep.subr.mxu0 %v958
    %1006 = vmatpush1.msra.mxu0 %v957
    %1007 = vmatprep.subr.mxu0 %v961
    %1008 = vmatpush1.msra.mxu0 %v960
    %1009 = vmatprep.subr.mxu0 %v964
    %1010 = vmatpush1.msra.mxu0 %v963
    %1011 = vmatprep.subr.mxu0 %v967
    %1012 = vmatpush1.msra.mxu0 %v966
    %1013 = vmatprep.subr.mxu0 %v970
    %1014 = vmatpush1.msra.mxu0 %v969
    %1015 = vmatprep.subr.mxu0 %v973
    %1016 = vmatpush1.msra.mxu0 %v972
    %1017 = vmatprep.subr.mxu0 %v976
    %1018 = vmatpush1.msra.mxu0 %v975
    %1019 = vmatprep.subr.mxu0 %v979
    %1020 = vmatpush1.msra.mxu0 %v978
    %1021 = vmatprep.subr.mxu0 %v982
    %1022 = vmatpush1.msra.mxu0 %v981
    %1023 = vmatprep.subr.mxu0 %v985
    %1024 = vmatpush1.msra.mxu0 %v984
    %1025 = vmatprep.subr.mxu0 %v988
    %1026 = vmatpush1.msra.mxu0 %v987
    %1027 = vmatprep.subr.mxu0 %v991
    %1028 = vmatpush1.msra.mxu0 %v990
    %1029 = vmatprep.subr.mxu0 %v994
    %1030 = vmatpush1.msra.mxu0 %v993
    %1031 = vmatprep.subr.mxu0 %v997
    %1032 = vmatpush1.msra.mxu0 %v996
    %1033 = vmatprep.subr.mxu0 %v1000
    %1034 = vmatpush1.msra.mxu0 %v999
    %1035 = vmatprep.subr.mxu0 %v1003
    %1036 = vmatpush1.msra.mxu0 %v1002
    %1037 = vmatprep.subr.mxu0 0.0
    %1038 = vmatpush1.msra.mxu0 0.0
    %1039 = vmatprep.subr.mxu0 0.0
    %1040 = vmatpush1.msra.mxu0 0.0
    %1041 = vmatprep.subr.mxu0 0.0
    %1042 = vmatpush1.msra.mxu0 0.0
    %1043 = vmatprep.subr.mxu0 0.0
    %1044 = vmatpush1.msra.mxu0 0.0
    %1045 = vmatprep.subr.mxu0 0.0
    %1046 = vmatpush1.msra.mxu0 0.0
    %1047 = vmatprep.subr.mxu0 0.0
    %1048 = vmatpush1.msra.mxu0 0.0
    %1049 = vmatprep.subr.mxu0 0.0
    %1050 = vmatpush1.msra.mxu0 0.0
    %1051 = vmatprep.subr.mxu0 0.0
    %1052 = vmatpush1.msra.mxu0 0.0
    %1053 = vmatprep.subr.mxu0 0.0
    %1054 = vmatpush1.msra.mxu0 0.0
    %1055 = vmatprep.subr.mxu0 0.0
    %1056 = vmatpush1.msra.mxu0 0.0
    %1057 = vmatprep.subr.mxu0 0.0
    %1058 = vmatpush1.msra.mxu0 0.0
    %1059 = vmatprep.subr.mxu0 0.0
    %1060 = vmatpush1.msra.mxu0 0.0
    %1061 = vmatprep.subr.mxu0 0.0
    %1062 = vmatpush1.msra.mxu0 0.0
    %1063 = vmatprep.subr.mxu0 0.0
    %1064 = vmatpush1.msra.mxu0 0.0
    %1065 = vmatprep.subr.mxu0 0.0
    %1066 = vmatpush1.msra.mxu0 0.0
    %1067 = vmatprep.subr.mxu0 0.0
    %1068 = vmatpush1.msra.mxu0 0.0
    %1069 = vmatprep.mubr.f32.mxu0 0.0
    %1070 = vmatmul.mubr.f32.gmra.mrb[0].mxu0 %v950
    %v1071 = vpop.f32.mrb[0].mxu0
    %v1072 = vadd.f32 0.0, %v1071
    %v1073 = vpop.f32.mrb[0].mxu0
    %v1074 = vadd.f32 0.0, %v1073
    %1075 = vdwg.mxu0
    %1076 = vmatprep.subr.mxu0 0.0
    %1077 = vmatpush1.msra.mxu0 %v959
    %1078 = vmatprep.subr.mxu0 0.0
    %1079 = vmatpush1.msra.mxu0 %v962
    %1080 = vmatprep.subr.mxu0 0.0
    %1081 = vmatpush1.msra.mxu0 %v965
    %1082 = vmatprep.subr.mxu0 0.0
    %1083 = vmatpush1.msra.mxu0 %v968
    %1084 = vmatprep.subr.mxu0 0.0
    %1085 = vmatpush1.msra.mxu0 %v971
    %1086 = vmatprep.subr.mxu0 0.0
    %1087 = vmatpush1.msra.mxu0 %v974
    %1088 = vmatprep.subr.mxu0 0.0
    %1089 = vmatpush1.msra.mxu0 %v977
    %1090 = vmatprep.subr.mxu0 0.0
    %1091 = vmatpush1.msra.mxu0 %v980
    %1092 = vmatprep.subr.mxu0 0.0
    %1093 = vmatpush1.msra.mxu0 %v983
    %1094 = vmatprep.subr.mxu0 0.0
    %1095 = vmatpush1.msra.mxu0 %v986
    %1096 = vmatprep.subr.mxu0 0.0
    %1097 = vmatpush1.msra.mxu0 %v989
    %1098 = vmatprep.subr.mxu0 0.0
    %1099 = vmatpush1.msra.mxu0 %v992
    %1100 = vmatprep.subr.mxu0 0.0
    %1101 = vmatpush1.msra.mxu0 %v995
    %1102 = vmatprep.subr.mxu0 0.0
    %1103 = vmatpush1.msra.mxu0 %v998
    %1104 = vmatprep.subr.mxu0 0.0
    %1105 = vmatpush1.msra.mxu0 %v1001
    %1106 = vmatprep.subr.mxu0 0.0
    %1107 = vmatpush1.msra.mxu0 %v1004
    %1108 = vmatprep.subr.mxu0 0.0
    %1109 = vmatpush1.msra.mxu0 0.0
    %1110 = vmatprep.subr.mxu0 0.0
    %1111 = vmatpush1.msra.mxu0 0.0
    %1112 = vmatprep.subr.mxu0 0.0
    %1113 = vmatpush1.msra.mxu0 0.0
    %1114 = vmatprep.subr.mxu0 0.0
    %1115 = vmatpush1.msra.mxu0 0.0
    %1116 = vmatprep.subr.mxu0 0.0
    %1117 = vmatpush1.msra.mxu0 0.0
    %1118 = vmatprep.subr.mxu0 0.0
    %1119 = vmatpush1.msra.mxu0 0.0
    %1120 = vmatprep.subr.mxu0 0.0
    %1121 = vmatpush1.msra.mxu0 0.0
    %1122 = vmatprep.subr.mxu0 0.0
    %1123 = vmatpush1.msra.mxu0 0.0
    %1124 = vmatprep.subr.mxu0 0.0
    %1125 = vmatpush1.msra.mxu0 0.0
    %1126 = vmatprep.subr.mxu0 0.0
    %1127 = vmatpush1.msra.mxu0 0.0
    %1128 = vmatprep.subr.mxu0 0.0
    %1129 = vmatpush1.msra.mxu0 0.0
    %1130 = vmatprep.subr.mxu0 0.0
    %1131 = vmatpush1.msra.mxu0 0.0
    %1132 = vmatprep.subr.mxu0 0.0
    %1133 = vmatpush1.msra.mxu0 0.0
    %1134 = vmatprep.subr.mxu0 0.0
    %1135 = vmatpush1.msra.mxu0 0.0
    %1136 = vmatprep.subr.mxu0 0.0
    %1137 = vmatpush1.msra.mxu0 0.0
    %1138 = vmatprep.subr.mxu0 0.0
    %1139 = vmatpush1.msra.mxu0 0.0
    %1140 = vmatprep.mubr.f32.mxu0 0.0
    %1141 = vmatmul.mubr.f32.gmra.mrb[0].mxu0 %v950
    %v1142 = vpop.f32.mrb[0].mxu0
    %v1143 = vadd.f32 0.0, %v1142
    %v1144 = vpop.f32.mrb[0].mxu0
    %1145 = vdwg.mxu0
    %v1146 = vadd.f32 %v954, %v1072
    %v1147 = vxor.u32 %v1146, 2147483648
    %v1148 = vmul.f32 %v1147, 1.442695
    %v1149 = vpow.pop %v1148
    %v1150 = vadd.f32 %v1149, 1.0
    %v1151 = vrcp.pop %v1150
    %v1152 = vmul.f32 1.0, %v1151
    %v1153 = vadd.f32 %v955, %v1074
    %v1154 = vxor.u32 %v1153, 2147483648
    %v1155 = vmul.f32 %v1154, 1.442695
    %v1156 = vpow.pop %v1155
    %v1157 = vadd.f32 %v1156, 1.0
    %v1158 = vrcp.pop %v1157
    %v1159 = vmul.f32 1.0, %v1158
    %v1160 = vadd.f32 %v1143, %v948
    %v1161 = vmul.f32 %v1152, %v1160
    %v1162 = vadd.f32 %v956, %v1161
    %v1163 = vtanh.pop %v1162
    %v1164 = vsub.f32 1.0, %v1159
    %v1165 = vmul.f32 %v1164, %v1163
    %v1166 = vmul.f32 %v1159, %v950
    %v1167 = vadd.f32 %v1165, %v1166
    %1168 = vst [vmem:[%s6] sm:$0xff] %v1167
    %s1169 = smul.u32 1, 3
    %s1170 = smul.addr %s1169, 8
    %s1171 = scalar_lea.vmem [#allocation3], %s1170
    %v1172 = vld [vmem:[%s1171] sm:$0xff]
    %v1173 = vld [vmem:[%s1171 + $0x8] sm:$0xff]
    %v1174 = vld [vmem:[%s1171 + $0x10] sm:$0xff]
    %v1175 = vld [vmem:[#allocation4] sm:$0xff]
    %v1176 = vld [vmem:[#allocation4 + $0x8] sm:$0xff]
    %v1177 = vld [vmem:[#allocation4 + $0x10] sm:$0xff]
    %v1178 = vld [vmem:[#allocation4 + $0x18] sm:$0xff]
    %v1179 = vld [vmem:[#allocation4 + $0x20] sm:$0xff]
    %v1180 = vld [vmem:[#allocation4 + $0x28] sm:$0xff]
    %v1181 = vld [vmem:[#allocation4 + $0x30] sm:$0xff]
    %v1182 = vld [vmem:[#allocation4 + $0x38] sm:$0xff]
    %v1183 = vld [vmem:[#allocation4 + $0x40] sm:$0xff]
    %v1184 = vld [vmem:[#allocation4 + $0x48] sm:$0xff]
    %v1185 = vld [vmem:[#allocation4 + $0x50] sm:$0xff]
    %v1186 = vld [vmem:[#allocation4 + $0x58] sm:$0xff]
    %v1187 = vld [vmem:[#allocation4 + $0x60] sm:$0xff]
    %v1188 = vld [vmem:[#allocation4 + $0x68] sm:$0xff]
    %v1189 = vld [vmem:[#allocation4 + $0x70] sm:$0xff]
    %v1190 = vld [vmem:[#allocation4 + $0x78] sm:$0xff]
    %v1191 = vld [vmem:[#allocation4 + $0x80] sm:$0xff]
    %v1192 = vld [vmem:[#allocation4 + $0x88] sm:$0xff]
    %v1193 = vld [vmem:[#allocation4 + $0x90] sm:$0xff]
    %v1194 = vld [vmem:[#allocation4 + $0x98] sm:$0xff]
    %v1195 = vld [vmem:[#allocation4 + $0xa0] sm:$0xff]
    %v1196 = vld [vmem:[#allocation4 + $0xa8] sm:$0xff]
    %v1197 = vld [vmem:[#allocation4 + $0xb0] sm:$0xff]
    %v1198 = vld [vmem:[#allocation4 + $0xb8] sm:$0xff]
    %v1199 = vld [vmem:[#allocation4 + $0xc0] sm:$0xff]
    %v1200 = vld [vmem:[#allocation4 + $0xc8] sm:$0xff]
    %v1201 = vld [vmem:[#allocation4 + $0xd0] sm:$0xff]
    %v1202 = vld [vmem:[#allocation4 + $0xd8] sm:$0xff]
    %v1203 = vld [vmem:[#allocation4 + $0xe0] sm:$0xff]
    %v1204 = vld [vmem:[#allocation4 + $0xe8] sm:$0xff]
    %v1205 = vld [vmem:[#allocation4 + $0xf0] sm:$0xff]
    %v1206 = vld [vmem:[#allocation4 + $0xf8] sm:$0xff]
    %v1207 = vld [vmem:[#allocation4 + $0x100] sm:$0xff]
    %v1208 = vld [vmem:[#allocation4 + $0x108] sm:$0xff]
    %v1209 = vld [vmem:[#allocation4 + $0x110] sm:$0xff]
    %v1210 = vld [vmem:[#allocation4 + $0x118] sm:$0xff]
    %v1211 = vld [vmem:[#allocation4 + $0x120] sm:$0xff]
    %v1212 = vld [vmem:[#allocation4 + $0x128] sm:$0xff]
    %v1213 = vld [vmem:[#allocation4 + $0x130] sm:$0xff]
    %v1214 = vld [vmem:[#allocation4 + $0x138] sm:$0xff]
    %v1215 = vld [vmem:[#allocation4 + $0x140] sm:$0xff]
    %v1216 = vld [vmem:[#allocation4 + $0x148] sm:$0xff]
    %v1217 = vld [vmem:[#allocation4 + $0x150] sm:$0xff]
    %v1218 = vld [vmem:[#allocation4 + $0x158] sm:$0xff]
    %v1219 = vld [vmem:[#allocation4 + $0x160] sm:$0xff]
    %v1220 = vld [vmem:[#allocation4 + $0x168] sm:$0xff]
    %v1221 = vld [vmem:[#allocation4 + $0x170] sm:$0xff]
    %v1222 = vld [vmem:[#allocation4 + $0x178] sm:$0xff]
    %1223 = vmatprep.subr.mxu0 %v1176
    %1224 = vmatpush1.msra.mxu0 %v1175
    %1225 = vmatprep.subr.mxu0 %v1179
    %1226 = vmatpush1.msra.mxu0 %v1178
    %1227 = vmatprep.subr.mxu0 %v1182
    %1228 = vmatpush1.msra.mxu0 %v1181
    %1229 = vmatprep.subr.mxu0 %v1185
    %1230 = vmatpush1.msra.mxu0 %v1184
    %1231 = vmatprep.subr.mxu0 %v1188
    %1232 = vmatpush1.msra.mxu0 %v1187
    %1233 = vmatprep.subr.mxu0 %v1191
    %1234 = vmatpush1.msra.mxu0 %v1190
    %1235 = vmatprep.subr.mxu0 %v1194
    %1236 = vmatpush1.msra.mxu0 %v1193
    %1237 = vmatprep.subr.mxu0 %v1197
    %1238 = vmatpush1.msra.mxu0 %v1196
    %1239 = vmatprep.subr.mxu0 %v1200
    %1240 = vmatpush1.msra.mxu0 %v1199
    %1241 = vmatprep.subr.mxu0 %v1203
    %1242 = vmatpush1.msra.mxu0 %v1202
    %1243 = vmatprep.subr.mxu0 %v1206
    %1244 = vmatpush1.msra.mxu0 %v1205
    %1245 = vmatprep.subr.mxu0 %v1209
    %1246 = vmatpush1.msra.mxu0 %v1208
    %1247 = vmatprep.subr.mxu0 %v1212
    %1248 = vmatpush1.msra.mxu0 %v1211
    %1249 = vmatprep.subr.mxu0 %v1215
    %1250 = vmatpush1.msra.mxu0 %v1214
    %1251 = vmatprep.subr.mxu0 %v1218
    %1252 = vmatpush1.msra.mxu0 %v1217
    %1253 = vmatprep.subr.mxu0 %v1221
    %1254 = vmatpush1.msra.mxu0 %v1220
    %1255 = vmatprep.subr.mxu0 0.0
    %1256 = vmatpush1.msra.mxu0 0.0
    %1257 = vmatprep.subr.mxu0 0.0
    %1258 = vmatpush1.msra.mxu0 0.0
    %1259 = vmatprep.subr.mxu0 0.0
    %1260 = vmatpush1.msra.mxu0 0.0
    %1261 = vmatprep.subr.mxu0 0.0
    %1262 = vmatpush1.msra.mxu0 0.0
    %1263 = vmatprep.subr.mxu0 0.0
    %1264 = vmatpush1.msra.mxu0 0.0
    %1265 = vmatprep.subr.mxu0 0.0
    %1266 = vmatpush1.msra.mxu0 0.0
    %1267 = vmatprep.subr.mxu0 0.0
    %1268 = vmatpush1.msra.mxu0 0.0
    %1269 = vmatprep.subr.mxu0 0.0
    %1270 = vmatpush1.msra.mxu0 0.0
    %1271 = vmatprep.subr.mxu0 0.0
    %1272 = vmatpush1.msra.mxu0 0.0
    %1273 = vmatprep.subr.mxu0 0.0
    %1274 = vmatpush1.msra.mxu0 0.0
    %1275 = vmatprep.subr.mxu0 0.0
    %1276 = vmatpush1.msra.mxu0 0.0
    %1277 = vmatprep.subr.mxu0 0.0
    %1278 = vmatpush1.msra.mxu0 0.0
    %1279 = vmatprep.subr.mxu0 0.0
    %1280 = vmatpush1.msra.mxu0 0.0
    %1281 = vmatprep.subr.mxu0 0.0
    %1282 = vmatpush1.msra.mxu0 0.0
    %1283 = vmatprep.subr.mxu0 0.0
    %1284 = vmatpush1.msra.mxu0 0.0
    %1285 = vmatprep.subr.mxu0 0.0
    %1286 = vmatpush1.msra.mxu0 0.0
    %1287 = vmatprep.mubr.f32.mxu0 0.0
    %1288 = vmatmul.mubr.f32.gmra.mrb[0].mxu0 %v1167
    %v1289 = vpop.f32.mrb[0].mxu0
    %v1290 = vadd.f32 0.0, %v1289
    %v1291 = vpop.f32.mrb[0].mxu0
    %v1292 = vadd.f32 0.0, %v1291
    %1293 = vdwg.mxu0
    %1294 = vmatprep.subr.mxu0 0.0
    %1295 = vmatpush1.msra.mxu0 %v1177
    %1296 = vmatprep.subr.mxu0 0.0
    %1297 = vmatpush1.msra.mxu0 %v1180
    %1298 = vmatprep.subr.mxu0 0.0
    %1299 = vmatpush1.msra.mxu0 %v1183
    %1300 = vmatprep.subr.mxu0 0.0
    %1301 = vmatpush1.msra.mxu0 %v1186
    %1302 = vmatprep.subr.mxu0 0.0
    %1303 = vmatpush1.msra.mxu0 %v1189
    %1304 = vmatprep.subr.mxu0 0.0
    %1305 = vmatpush1.msra.mxu0 %v1192
    %1306 = vmatprep.subr.mxu0 0.0
    %1307 = vmatpush1.msra.mxu0 %v1195
    %1308 = vmatprep.subr.mxu0 0.0
    %1309 = vmatpush1.msra.mxu0 %v1198
    %1310 = vmatprep.subr.mxu0 0.0
    %1311 = vmatpush1.msra.mxu0 %v1201
    %1312 = vmatprep.subr.mxu0 0.0
    %1313 = vmatpush1.msra.mxu0 %v1204
    %1314 = vmatprep.subr.mxu0 0.0
    %1315 = vmatpush1.msra.mxu0 %v1207
    %1316 = vmatprep.subr.mxu0 0.0
    %1317 = vmatpush1.msra.mxu0 %v1210
    %1318 = vmatprep.subr.mxu0 0.0
    %1319 = vmatpush1.msra.mxu0 %v1213
    %1320 = vmatprep.subr.mxu0 0.0
    %1321 = vmatpush1.msra.mxu0 %v1216
    %1322 = vmatprep.subr.mxu0 0.0
    %1323 = vmatpush1.msra.mxu0 %v1219
    %1324 = vmatprep.subr.mxu0 0.0
    %1325 = vmatpush1.msra.mxu0 %v1222
    %1326 = vmatprep.subr.mxu0 0.0
    %1327 = vmatpush1.msra.mxu0 0.0
    %1328 = vmatprep.subr.mxu0 0.0
    %1329 = vmatpush1.msra.mxu0 0.0
    %1330 = vmatprep.subr.mxu0 0.0
    %1331 = vmatpush1.msra.mxu0 0.0
    %1332 = vmatprep.subr.mxu0 0.0
    %1333 = vmatpush1.msra.mxu0 0.0
    %1334 = vmatprep.subr.mxu0 0.0
    %1335 = vmatpush1.msra.mxu0 0.0
    %1336 = vmatprep.subr.mxu0 0.0
    %1337 = vmatpush1.msra.mxu0 0.0
    %1338 = vmatprep.subr.mxu0 0.0
    %1339 = vmatpush1.msra.mxu0 0.0
    %1340 = vmatprep.subr.mxu0 0.0
    %1341 = vmatpush1.msra.mxu0 0.0
    %1342 = vmatprep.subr.mxu0 0.0
    %1343 = vmatpush1.msra.mxu0 0.0
    %1344 = vmatprep.subr.mxu0 0.0
    %1345 = vmatpush1.msra.mxu0 0.0
    %1346 = vmatprep.subr.mxu0 0.0
    %1347 = vmatpush1.msra.mxu0 0.0
    %1348 = vmatprep.subr.mxu0 0.0
    %1349 = vmatpush1.msra.mxu0 0.0
    %1350 = vmatprep.subr.mxu0 0.0
    %1351 = vmatpush1.msra.mxu0 0.0
    %1352 = vmatprep.subr.mxu0 0.0
    %1353 = vmatpush1.msra.mxu0 0.0
    %1354 = vmatprep.subr.mxu0 0.0
    %1355 = vmatpush1.msra.mxu0 0.0
    %1356 = vmatprep.subr.mxu0 0.0
    %1357 = vmatpush1.msra.mxu0 0.0
    %1358 = vmatprep.mubr.f32.mxu0 0.0
    %1359 = vmatmul.mubr.f32.gmra.mrb[0].mxu0 %v1167
    %v1360 = vpop.f32.mrb[0].mxu0
    %v1361 = vadd.f32 0.0, %v1360
    %v1362 = vpop.f32.mrb[0].mxu0
    %1363 = vdwg.mxu0
    %v1364 = vadd.f32 %v1172, %v1290
    %v1365 = vxor.u32 %v1364, 2147483648
    %v1366 = vmul.f32 %v1365, 1.442695
    %v1367 = vpow.pop %v1366
    %v1368 = vadd.f32 %v1367, 1.0
    %v1369 = vrcp.pop %v1368
    %v1370 = vmul.f32 1.0, %v1369
    %v1371 = vadd.f32 %v1173, %v1292
    %v1372 = vxor.u32 %v1371, 2147483648
    %v1373 = vmul.f32 %v1372, 1.442695
    %v1374 = vpow.pop %v1373
    %v1375 = vadd.f32 %v1374, 1.0
    %v1376 = vrcp.pop %v1375
    %v1377 = vmul.f32 1.0, %v1376
    %v1378 = vadd.f32 %v1361, %v948
    %v1379 = vmul.f32 %v1370, %v1378
    %v1380 = vadd.f32 %v1174, %v1379
    %v1381 = vtanh.pop %v1380
    %v1382 = vsub.f32 1.0, %v1377
    %v1383 = vmul.f32 %v1382, %v1381
    %v1384 = vmul.f32 %v1377, %v1167
    %v1385 = vadd.f32 %v1383, %v1384
    %s1386 = scalar_lea.vmem %s6, 8
    %1387 = vst [vmem:[%s1386] sm:$0xff] %v1385
    %s1388 = smul.u32 2, 3
    %s1389 = smul.addr %s1388, 8
    %s1390 = scalar_lea.vmem [#allocation3], %s1389
    %v1391 = vld [vmem:[%s1390] sm:$0xff]
    %v1392 = vld [vmem:[%s1390 + $0x8] sm:$0xff]
    %v1393 = vld [vmem:[%s1390 + $0x10] sm:$0xff]
    %v1394 = vld [vmem:[#allocation4] sm:$0xff]
    %v1395 = vld [vmem:[#allocation4 + $0x8] sm:$0xff]
    %v1396 = vld [vmem:[#allocation4 + $0x10] sm:$0xff]
    %v1397 = vld [vmem:[#allocation4 + $0x18] sm:$0xff]
    %v1398 = vld [vmem:[#allocation4 + $0x20] sm:$0xff]
    %v1399 = vld [vmem:[#allocation4 + $0x28] sm:$0xff]
    %v1400 = vld [vmem:[#allocation4 + $0x30] sm:$0xff]
    %v1401 = vld [vmem:[#allocation4 + $0x38] sm:$0xff]
    %v1402 = vld [vmem:[#allocation4 + $0x40] sm:$0xff]
    %v1403 = vld [vmem:[#allocation4 + $0x48] sm:$0xff]
    %v1404 = vld [vmem:[#allocation4 + $0x50] sm:$0xff]
    %v1405 = vld [vmem:[#allocation4 + $0x58] sm:$0xff]
    %v1406 = vld [vmem:[#allocation4 + $0x60] sm:$0xff]
    %v1407 = vld [vmem:[#allocation4 + $0x68] sm:$0xff]
    %v1408 = vld [vmem:[#allocation4 + $0x70] sm:$0xff]
    %v1409 = vld [vmem:[#allocation4 + $0x78] sm:$0xff]
    %v1410 = vld [vmem:[#allocation4 + $0x80] sm:$0xff]
    %v1411 = vld [vmem:[#allocation4 + $0x88] sm:$0xff]
    %v1412 = vld [vmem:[#allocation4 + $0x90] sm:$0xff]
    %v1413 = vld [vmem:[#allocation4 + $0x98] sm:$0xff]
    %v1414 = vld [vmem:[#allocation4 + $0xa0] sm:$0xff]
    %v1415 = vld [vmem:[#allocation4 + $0xa8] sm:$0xff]
    %v1416 = vld [vmem:[#allocation4 + $0xb0] sm:$0xff]
    %v1417 = vld [vmem:[#allocation4 + $0xb8] sm:$0xff]
    %v1418 = vld [vmem:[#allocation4 + $0xc0] sm:$0xff]
    %v1419 = vld [vmem:[#allocation4 + $0xc8] sm:$0xff]
    %v1420 = vld [vmem:[#allocation4 + $0xd0] sm:$0xff]
    %v1421 = vld [vmem:[#allocation4 + $0xd8] sm:$0xff]
    %v1422 = vld [vmem:[#allocation4 + $0xe0] sm:$0xff]
    %v1423 = vld [vmem:[#allocation4 + $0xe8] sm:$0xff]
    %v1424 = vld [vmem:[#allocation4 + $0xf0] sm:$0xff]
    %v1425 = vld [vmem:[#allocation4 + $0xf8] sm:$0xff]
    %v1426 = vld [vmem:[#allocation4 + $0x100] sm:$0xff]
    %v1427 = vld [vmem:[#allocation4 + $0x108] sm:$0xff]
    %v1428 = vld [vmem:[#allocation4 + $0x110] sm:$0xff]
    %v1429 = vld [vmem:[#allocation4 + $0x118] sm:$0xff]
    %v1430 = vld [vmem:[#allocation4 + $0x120] sm:$0xff]
    %v1431 = vld [vmem:[#allocation4 + $0x128] sm:$0xff]
    %v1432 = vld [vmem:[#allocation4 + $0x130] sm:$0xff]
    %v1433 = vld [vmem:[#allocation4 + $0x138] sm:$0xff]
    %v1434 = vld [vmem:[#allocation4 + $0x140] sm:$0xff]
    %v1435 = vld [vmem:[#allocation4 + $0x148] sm:$0xff]
    %v1436 = vld [vmem:[#allocation4 + $0x150] sm:$0xff]
    %v1437 = vld [vmem:[#allocation4 + $0x158] sm:$0xff]
    %v1438 = vld [vmem:[#allocation4 + $0x160] sm:$0xff]
    %v1439 = vld [vmem:[#allocation4 + $0x168] sm:$0xff]
    %v1440 = vld [vmem:[#allocation4 + $0x170] sm:$0xff]
    %v1441 = vld [vmem:[#allocation4 + $0x178] sm:$0xff]
    %1442 = vmatprep.subr.mxu0 %v1395
    %1443 = vmatpush1.msra.mxu0 %v1394
    %1444 = vmatprep.subr.mxu0 %v1398
    %1445 = vmatpush1.msra.mxu0 %v1397
    %1446 = vmatprep.subr.mxu0 %v1401
    %1447 = vmatpush1.msra.mxu0 %v1400
    %1448 = vmatprep.subr.mxu0 %v1404
    %1449 = vmatpush1.msra.mxu0 %v1403
    %1450 = vmatprep.subr.mxu0 %v1407
    %1451 = vmatpush1.msra.mxu0 %v1406
    %1452 = vmatprep.subr.mxu0 %v1410
    %1453 = vmatpush1.msra.mxu0 %v1409
    %1454 = vmatprep.subr.mxu0 %v1413
    %1455 = vmatpush1.msra.mxu0 %v1412
    %1456 = vmatprep.subr.mxu0 %v1416
    %1457 = vmatpush1.msra.mxu0 %v1415
    %1458 = vmatprep.subr.mxu0 %v1419
    %1459 = vmatpush1.msra.mxu0 %v1418
    %1460 = vmatprep.subr.mxu0 %v1422
    %1461 = vmatpush1.msra.mxu0 %v1421
    %1462 = vmatprep.subr.mxu0 %v1425
    %1463 = vmatpush1.msra.mxu0 %v1424
    %1464 = vmatprep.subr.mxu0 %v1428
    %1465 = vmatpush1.msra.mxu0 %v1427
    %1466 = vmatprep.subr.mxu0 %v1431
    %1467 = vmatpush1.msra.mxu0 %v1430
    %1468 = vmatprep.subr.mxu0 %v1434
    %1469 = vmatpush1.msra.mxu0 %v1433
    %1470 = vmatprep.subr.mxu0 %v1437
    %1471 = vmatpush1.msra.mxu0 %v1436
    %1472 = vmatprep.subr.mxu0 %v1440
    %1473 = vmatpush1.msra.mxu0 %v1439
    %1474 = vmatprep.subr.mxu0 0.0
    %1475 = vmatpush1.msra.mxu0 0.0
    %1476 = vmatprep.subr.mxu0 0.0
    %1477 = vmatpush1.msra.mxu0 0.0
    %1478 = vmatprep.subr.mxu0 0.0
    %1479 = vmatpush1.msra.mxu0 0.0
    %1480 = vmatprep.subr.mxu0 0.0
    %1481 = vmatpush1.msra.mxu0 0.0
    %1482 = vmatprep.subr.mxu0 0.0
    %1483 = vmatpush1.msra.mxu0 0.0
    %1484 = vmatprep.subr.mxu0 0.0
    %1485 = vmatpush1.msra.mxu0 0.0
    %1486 = vmatprep.subr.mxu0 0.0
    %1487 = vmatpush1.msra.mxu0 0.0
    %1488 = vmatprep.subr.mxu0 0.0
    %1489 = vmatpush1.msra.mxu0 0.0
    %1490 = vmatprep.subr.mxu0 0.0
    %1491 = vmatpush1.msra.mxu0 0.0
    %1492 = vmatprep.subr.mxu0 0.0
    %1493 = vmatpush1.msra.mxu0 0.0
    %1494 = vmatprep.subr.mxu0 0.0
    %1495 = vmatpush1.msra.mxu0 0.0
    %1496 = vmatprep.subr.mxu0 0.0
    %1497 = vmatpush1.msra.mxu0 0.0
    %1498 = vmatprep.subr.mxu0 0.0
    %1499 = vmatpush1.msra.mxu0 0.0
    %1500 = vmatprep.subr.mxu0 0.0
    %1501 = vmatpush1.msra.mxu0 0.0
    %1502 = vmatprep.subr.mxu0 0.0
    %1503 = vmatpush1.msra.mxu0 0.0
    %1504 = vmatprep.subr.mxu0 0.0
    %1505 = vmatpush1.msra.mxu0 0.0
    %1506 = vmatprep.mubr.f32.mxu0 0.0
    %1507 = vmatmul.mubr.f32.gmra.mrb[0].mxu0 %v1385
    %v1508 = vpop.f32.mrb[0].mxu0
    %v1509 = vadd.f32 0.0, %v1508
    %v1510 = vpop.f32.mrb[0].mxu0
    %v1511 = vadd.f32 0.0, %v1510
    %1512 = vdwg.mxu0
    %1513 = vmatprep.subr.mxu0 0.0
    %1514 = vmatpush1.msra.mxu0 %v1396
    %1515 = vmatprep.subr.mxu0 0.0
    %1516 = vmatpush1.msra.mxu0 %v1399
    %1517 = vmatprep.subr.mxu0 0.0
    %1518 = vmatpush1.msra.mxu0 %v1402
    %1519 = vmatprep.subr.mxu0 0.0
    %1520 = vmatpush1.msra.mxu0 %v1405
    %1521 = vmatprep.subr.mxu0 0.0
    %1522 = vmatpush1.msra.mxu0 %v1408
    %1523 = vmatprep.subr.mxu0 0.0
    %1524 = vmatpush1.msra.mxu0 %v1411
    %1525 = vmatprep.subr.mxu0 0.0
    %1526 = vmatpush1.msra.mxu0 %v1414
    %1527 = vmatprep.subr.mxu0 0.0
    %1528 = vmatpush1.msra.mxu0 %v1417
    %1529 = vmatprep.subr.mxu0 0.0
    %1530 = vmatpush1.msra.mxu0 %v1420
    %1531 = vmatprep.subr.mxu0 0.0
    %1532 = vmatpush1.msra.mxu0 %v1423
    %1533 = vmatprep.subr.mxu0 0.0
    %1534 = vmatpush1.msra.mxu0 %v1426
    %1535 = vmatprep.subr.mxu0 0.0
    %1536 = vmatpush1.msra.mxu0 %v1429
    %1537 = vmatprep.subr.mxu0 0.0
    %1538 = vmatpush1.msra.mxu0 %v1432
    %1539 = vmatprep.subr.mxu0 0.0
    %1540 = vmatpush1.msra.mxu0 %v1435
    %1541 = vmatprep.subr.mxu0 0.0
    %1542 = vmatpush1.msra.mxu0 %v1438
    %1543 = vmatprep.subr.mxu0 0.0
    %1544 = vmatpush1.msra.mxu0 %v1441
    %1545 = vmatprep.subr.mxu0 0.0
    %1546 = vmatpush1.msra.mxu0 0.0
    %1547 = vmatprep.subr.mxu0 0.0
    %1548 = vmatpush1.msra.mxu0 0.0
    %1549 = vmatprep.subr.mxu0 0.0
    %1550 = vmatpush1.msra.mxu0 0.0
    %1551 = vmatprep.subr.mxu0 0.0
    %1552 = vmatpush1.msra.mxu0 0.0
    %1553 = vmatprep.subr.mxu0 0.0
    %1554 = vmatpush1.msra.mxu0 0.0
    %1555 = vmatprep.subr.mxu0 0.0
    %1556 = vmatpush1.msra.mxu0 0.0
    %1557 = vmatprep.subr.mxu0 0.0
    %1558 = vmatpush1.msra.mxu0 0.0
    %1559 = vmatprep.subr.mxu0 0.0
    %1560 = vmatpush1.msra.mxu0 0.0
    %1561 = vmatprep.subr.mxu0 0.0
    %1562 = vmatpush1.msra.mxu0 0.0
    %1563 = vmatprep.subr.mxu0 0.0
    %1564 = vmatpush1.msra.mxu0 0.0
    %1565 = vmatprep.subr.mxu0 0.0
    %1566 = vmatpush1.msra.mxu0 0.0
    %1567 = vmatprep.subr.mxu0 0.0
    %1568 = vmatpush1.msra.mxu0 0.0
    %1569 = vmatprep.subr.mxu0 0.0
    %1570 = vmatpush1.msra.mxu0 0.0
    %1571 = vmatprep.subr.mxu0 0.0
    %1572 = vmatpush1.msra.mxu0 0.0
    %1573 = vmatprep.subr.mxu0 0.0
    %1574 = vmatpush1.msra.mxu0 0.0
    %1575 = vmatprep.subr.mxu0 0.0
    %1576 = vmatpush1.msra.mxu0 0.0
    %1577 = vmatprep.mubr.f32.mxu0 0.0
    %1578 = vmatmul.mubr.f32.gmra.mrb[0].mxu0 %v1385
    %v1579 = vpop.f32.mrb[0].mxu0
    %v1580 = vadd.f32 0.0, %v1579
    %v1581 = vpop.f32.mrb[0].mxu0
    %1582 = vdwg.mxu0
    %v1583 = vadd.f32 %v1391, %v1509
    %v1584 = vxor.u32 %v1583, 2147483648
    %v1585 = vmul.f32 %v1584, 1.442695
    %v1586 = vpow.pop %v1585
    %v1587 = vadd.f32 %v1586, 1.0
    %v1588 = vrcp.pop %v1587
    %v1589 = vmul.f32 1.0, %v1588
    %v1590 = vadd.f32 %v1392, %v1511
    %v1591 = vxor.u32 %v1590, 2147483648
    %v1592 = vmul.f32 %v1591, 1.442695
    %v1593 = vpow.pop %v1592
    %v1594 = vadd.f32 %v1593, 1.0
    %v1595 = vrcp.pop %v1594
    %v1596 = vmul.f32 1.0, %v1595
    %v1597 = vadd.f32 %v1580, %v948
    %v1598 = vmul.f32 %v1589, %v1597
    %v1599 = vadd.f32 %v1393, %v1598
    %v1600 = vtanh.pop %v1599
    %v1601 = vsub.f32 1.0, %v1596
    %v1602 = vmul.f32 %v1601, %v1600
    %v1603 = vmul.f32 %v1596, %v1385
    %v1604 = vadd.f32 %v1602, %v1603
    %s1605 = scalar_lea.vmem %s6, 16
    %1606 = vst [vmem:[%s1605] sm:$0xff] %v1604
    %s1607 = smul.u32 3, 3
    %s1608 = smul.addr %s1607, 8
    %s1609 = scalar_lea.vmem [#allocation3], %s1608
    %v1610 = vld [vmem:[%s1609] sm:$0xff]
    %v1611 = vld [vmem:[%s1609 + $0x8] sm:$0xff]
    %v1612 = vld [vmem:[%s1609 + $0x10] sm:$0xff]
    %v1613 = vld [vmem:[#allocation4] sm:$0xff]
    %v1614 = vld [vmem:[#allocation4 + $0x8] sm:$0xff]
    %v1615 = vld [vmem:[#allocation4 + $0x10] sm:$0xff]
    %v1616 = vld [vmem:[#allocation4 + $0x18] sm:$0xff]
    %v1617 = vld [vmem:[#allocation4 + $0x20] sm:$0xff]
    %v1618 = vld [vmem:[#allocation4 + $0x28] sm:$0xff]
    %v1619 = vld [vmem:[#allocation4 + $0x30] sm:$0xff]
    %v1620 = vld [vmem:[#allocation4 + $0x38] sm:$0xff]
    %v1621 = vld [vmem:[#allocation4 + $0x40] sm:$0xff]
    %v1622 = vld [vmem:[#allocation4 + $0x48] sm:$0xff]
    %v1623 = vld [vmem:[#allocation4 + $0x50] sm:$0xff]
    %v1624 = vld [vmem:[#allocation4 + $0x58] sm:$0xff]
    %v1625 = vld [vmem:[#allocation4 + $0x60] sm:$0xff]
    %v1626 = vld [vmem:[#allocation4 + $0x68] sm:$0xff]
    %v1627 = vld [vmem:[#allocation4 + $0x70] sm:$0xff]
    %v1628 = vld [vmem:[#allocation4 + $0x78] sm:$0xff]
    %v1629 = vld [vmem:[#allocation4 + $0x80] sm:$0xff]
    %v1630 = vld [vmem:[#allocation4 + $0x88] sm:$0xff]
    %v1631 = vld [vmem:[#allocation4 + $0x90] sm:$0xff]
    %v1632 = vld [vmem:[#allocation4 + $0x98] sm:$0xff]
    %v1633 = vld [vmem:[#allocation4 + $0xa0] sm:$0xff]
    %v1634 = vld [vmem:[#allocation4 + $0xa8] sm:$0xff]
    %v1635 = vld [vmem:[#allocation4 + $0xb0] sm:$0xff]
    %v1636 = vld [vmem:[#allocation4 + $0xb8] sm:$0xff]
    %v1637 = vld [vmem:[#allocation4 + $0xc0] sm:$0xff]
    %v1638 = vld [vmem:[#allocation4 + $0xc8] sm:$0xff]
    %v1639 = vld [vmem:[#allocation4 + $0xd0] sm:$0xff]
    %v1640 = vld [vmem:[#allocation4 + $0xd8] sm:$0xff]
    %v1641 = vld [vmem:[#allocation4 + $0xe0] sm:$0xff]
    %v1642 = vld [vmem:[#allocation4 + $0xe8] sm:$0xff]
    %v1643 = vld [vmem:[#allocation4 + $0xf0] sm:$0xff]
    %v1644 = vld [vmem:[#allocation4 + $0xf8] sm:$0xff]
    %v1645 = vld [vmem:[#allocation4 + $0x100] sm:$0xff]
    %v1646 = vld [vmem:[#allocation4 + $0x108] sm:$0xff]
    %v1647 = vld [vmem:[#allocation4 + $0x110] sm:$0xff]
    %v1648 = vld [vmem:[#allocation4 + $0x118] sm:$0xff]
    %v1649 = vld [vmem:[#allocation4 + $0x120] sm:$0xff]
    %v1650 = vld [vmem:[#allocation4 + $0x128] sm:$0xff]
    %v1651 = vld [vmem:[#allocation4 + $0x130] sm:$0xff]
    %v1652 = vld [vmem:[#allocation4 + $0x138] sm:$0xff]
    %v1653 = vld [vmem:[#allocation4 + $0x140] sm:$0xff]
    %v1654 = vld [vmem:[#allocation4 + $0x148] sm:$0xff]
    %v1655 = vld [vmem:[#allocation4 + $0x150] sm:$0xff]
    %v1656 = vld [vmem:[#allocation4 + $0x158] sm:$0xff]
    %v1657 = vld [vmem:[#allocation4 + $0x160] sm:$0xff]
    %v1658 = vld [vmem:[#allocation4 + $0x168] sm:$0xff]
    %v1659 = vld [vmem:[#allocation4 + $0x170] sm:$0xff]
    %v1660 = vld [vmem:[#allocation4 + $0x178] sm:$0xff]
    %1661 = vmatprep.subr.mxu0 %v1614
    %1662 = vmatpush1.msra.mxu0 %v1613
    %1663 = vmatprep.subr.mxu0 %v1617
    %1664 = vmatpush1.msra.mxu0 %v1616
    %1665 = vmatprep.subr.mxu0 %v1620
    %1666 = vmatpush1.msra.mxu0 %v1619
    %1667 = vmatprep.subr.mxu0 %v1623
    %1668 = vmatpush1.msra.mxu0 %v1622
    %1669 = vmatprep.subr.mxu0 %v1626
    %1670 = vmatpush1.msra.mxu0 %v1625
    %1671 = vmatprep.subr.mxu0 %v1629
    %1672 = vmatpush1.msra.mxu0 %v1628
    %1673 = vmatprep.subr.mxu0 %v1632
    %1674 = vmatpush1.msra.mxu0 %v1631
    %1675 = vmatprep.subr.mxu0 %v1635
    %1676 = vmatpush1.msra.mxu0 %v1634
    %1677 = vmatprep.subr.mxu0 %v1638
    %1678 = vmatpush1.msra.mxu0 %v1637
    %1679 = vmatprep.subr.mxu0 %v1641
    %1680 = vmatpush1.msra.mxu0 %v1640
    %1681 = vmatprep.subr.mxu0 %v1644
    %1682 = vmatpush1.msra.mxu0 %v1643
    %1683 = vmatprep.subr.mxu0 %v1647
    %1684 = vmatpush1.msra.mxu0 %v1646
    %1685 = vmatprep.subr.mxu0 %v1650
    %1686 = vmatpush1.msra.mxu0 %v1649
    %1687 = vmatprep.subr.mxu0 %v1653
    %1688 = vmatpush1.msra.mxu0 %v1652
    %1689 = vmatprep.subr.mxu0 %v1656
    %1690 = vmatpush1.msra.mxu0 %v1655
    %1691 = vmatprep.subr.mxu0 %v1659
    %1692 = vmatpush1.msra.mxu0 %v1658
    %1693 = vmatprep.subr.mxu0 0.0
    %1694 = vmatpush1.msra.mxu0 0.0
    %1695 = vmatprep.subr.mxu0 0.0
    %1696 = vmatpush1.msra.mxu0 0.0
    %1697 = vmatprep.subr.mxu0 0.0
    %1698 = vmatpush1.msra.mxu0 0.0
    %1699 = vmatprep.subr.mxu0 0.0
    %1700 = vmatpush1.msra.mxu0 0.0
    %1701 = vmatprep.subr.mxu0 0.0
    %1702 = vmatpush1.msra.mxu0 0.0
    %1703 = vmatprep.subr.mxu0 0.0
    %1704 = vmatpush1.msra.mxu0 0.0
    %1705 = vmatprep.subr.mxu0 0.0
    %1706 = vmatpush1.msra.mxu0 0.0
    %1707 = vmatprep.subr.mxu0 0.0
    %1708 = vmatpush1.msra.mxu0 0.0
    %1709 = vmatprep.subr.mxu0 0.0
    %1710 = vmatpush1.msra.mxu0 0.0
    %1711 = vmatprep.subr.mxu0 0.0
    %1712 = vmatpush1.msra.mxu0 0.0
    %1713 = vmatprep.subr.mxu0 0.0
    %1714 = vmatpush1.msra.mxu0 0.0
    %1715 = vmatprep.subr.mxu0 0.0
    %1716 = vmatpush1.msra.mxu0 0.0
    %1717 = vmatprep.subr.mxu0 0.0
    %1718 = vmatpush1.msra.mxu0 0.0
    %1719 = vmatprep.subr.mxu0 0.0
    %1720 = vmatpush1.msra.mxu0 0.0
    %1721 = vmatprep.subr.mxu0 0.0
    %1722 = vmatpush1.msra.mxu0 0.0
    %1723 = vmatprep.subr.mxu0 0.0
    %1724 = vmatpush1.msra.mxu0 0.0
    %1725 = vmatprep.mubr.f32.mxu0 0.0
    %1726 = vmatmul.mubr.f32.gmra.mrb[0].mxu0 %v1604
    %v1727 = vpop.f32.mrb[0].mxu0
    %v1728 = vadd.f32 0.0, %v1727
    %v1729 = vpop.f32.mrb[0].mxu0
    %v1730 = vadd.f32 0.0, %v1729
    %1731 = vdwg.mxu0
    %1732 = vmatprep.subr.mxu0 0.0
    %1733 = vmatpush1.msra.mxu0 %v1615
    %1734 = vmatprep.subr.mxu0 0.0
    %1735 = vmatpush1.msra.mxu0 %v1618
    %1736 = vmatprep.subr.mxu0 0.0
    %1737 = vmatpush1.msra.mxu0 %v1621
    %1738 = vmatprep.subr.mxu0 0.0
    %1739 = vmatpush1.msra.mxu0 %v1624
    %1740 = vmatprep.subr.mxu0 0.0
    %1741 = vmatpush1.msra.mxu0 %v1627
    %1742 = vmatprep.subr.mxu0 0.0
    %1743 = vmatpush1.msra.mxu0 %v1630
    %1744 = vmatprep.subr.mxu0 0.0
    %1745 = vmatpush1.msra.mxu0 %v1633
    %1746 = vmatprep.subr.mxu0 0.0
    %1747 = vmatpush1.msra.mxu0 %v1636
    %1748 = vmatprep.subr.mxu0 0.0
    %1749 = vmatpush1.msra.mxu0 %v1639
    %1750 = vmatprep.subr.mxu0 0.0
    %1751 = vmatpush1.msra.mxu0 %v1642
    %1752 = vmatprep.subr.mxu0 0.0
    %1753 = vmatpush1.msra.mxu0 %v1645
    %1754 = vmatprep.subr.mxu0 0.0
    %1755 = vmatpush1.msra.mxu0 %v1648
    %1756 = vmatprep.subr.mxu0 0.0
    %1757 = vmatpush1.msra.mxu0 %v1651
    %1758 = vmatprep.subr.mxu0 0.0
    %1759 = vmatpush1.msra.mxu0 %v1654
    %1760 = vmatprep.subr.mxu0 0.0
    %1761 = vmatpush1.msra.mxu0 %v1657
    %1762 = vmatprep.subr.mxu0 0.0
    %1763 = vmatpush1.msra.mxu0 %v1660
    %1764 = vmatprep.subr.mxu0 0.0
    %1765 = vmatpush1.msra.mxu0 0.0
    %1766 = vmatprep.subr.mxu0 0.0
    %1767 = vmatpush1.msra.mxu0 0.0
    %1768 = vmatprep.subr.mxu0 0.0
    %1769 = vmatpush1.msra.mxu0 0.0
    %1770 = vmatprep.subr.mxu0 0.0
    %1771 = vmatpush1.msra.mxu0 0.0
    %1772 = vmatprep.subr.mxu0 0.0
    %1773 = vmatpush1.msra.mxu0 0.0
    %1774 = vmatprep.subr.mxu0 0.0
    %1775 = vmatpush1.msra.mxu0 0.0
    %1776 = vmatprep.subr.mxu0 0.0
    %1777 = vmatpush1.msra.mxu0 0.0
    %1778 = vmatprep.subr.mxu0 0.0
    %1779 = vmatpush1.msra.mxu0 0.0
    %1780 = vmatprep.subr.mxu0 0.0
    %1781 = vmatpush1.msra.mxu0 0.0
    %1782 = vmatprep.subr.mxu0 0.0
    %1783 = vmatpush1.msra.mxu0 0.0
    %1784 = vmatprep.subr.mxu0 0.0
    %1785 = vmatpush1.msra.mxu0 0.0
    %1786 = vmatprep.subr.mxu0 0.0
    %1787 = vmatpush1.msra.mxu0 0.0
    %1788 = vmatprep.subr.mxu0 0.0
    %1789 = vmatpush1.msra.mxu0 0.0
    %1790 = vmatprep.subr.mxu0 0.0
    %1791 = vmatpush1.msra.mxu0 0.0
    %1792 = vmatprep.subr.mxu0 0.0
    %1793 = vmatpush1.msra.mxu0 0.0
    %1794 = vmatprep.subr.mxu0 0.0
    %1795 = vmatpush1.msra.mxu0 0.0
    %1796 = vmatprep.mubr.f32.mxu0 0.0
    %1797 = vmatmul.mubr.f32.gmra.mrb[0].mxu0 %v1604
    %v1798 = vpop.f32.mrb[0].mxu0
    %v1799 = vadd.f32 0.0, %v1798
    %v1800 = vpop.f32.mrb[0].mxu0
    %1801 = vdwg.mxu0
    %v1802 = vadd.f32 %v1610, %v1728
    %v1803 = vxor.u32 %v1802, 2147483648
    %v1804 = vmul.f32 %v1803, 1.442695
    %v1805 = vpow.pop %v1804
    %v1806 = vadd.f32 %v1805, 1.0
    %v1807 = vrcp.pop %v1806
    %v1808 = vmul.f32 1.0, %v1807
    %v1809 = vadd.f32 %v1611, %v1730
    %v1810 = vxor.u32 %v1809, 2147483648
    %v1811 = vmul.f32 %v1810, 1.442695
    %v1812 = vpow.pop %v1811
    %v1813 = vadd.f32 %v1812, 1.0
    %v1814 = vrcp.pop %v1813
    %v1815 = vmul.f32 1.0, %v1814
    %v1816 = vadd.f32 %v1799, %v948
    %v1817 = vmul.f32 %v1808, %v1816
    %v1818 = vadd.f32 %v1612, %v1817
    %v1819 = vtanh.pop %v1818
    %v1820 = vsub.f32 1.0, %v1815
    %v1821 = vmul.f32 %v1820, %v1819
    %v1822 = vmul.f32 %v1815, %v1604
    %v1823 = vadd.f32 %v1821, %v1822
    %s1824 = scalar_lea.vmem %s6, 24
    %1825 = vst [vmem:[%s1824] sm:$0xff] %v1823
    %s1826 = smul.u32 4, 3
    %s1827 = smul.addr %s1826, 8
    %s1828 = scalar_lea.vmem [#allocation3], %s1827
    %v1829 = vld [vmem:[%s1828] sm:$0xff]
    %v1830 = vld [vmem:[%s1828 + $0x8] sm:$0xff]
    %v1831 = vld [vmem:[%s1828 + $0x10] sm:$0xff]
    %v1832 = vld [vmem:[#allocation4] sm:$0xff]
    %v1833 = vld [vmem:[#allocation4 + $0x8] sm:$0xff]
    %v1834 = vld [vmem:[#allocation4 + $0x10] sm:$0xff]
    %v1835 = vld [vmem:[#allocation4 + $0x18] sm:$0xff]
    %v1836 = vld [vmem:[#allocation4 + $0x20] sm:$0xff]
    %v1837 = vld [vmem:[#allocation4 + $0x28] sm:$0xff]
    %v1838 = vld [vmem:[#allocation4 + $0x30] sm:$0xff]
    %v1839 = vld [vmem:[#allocation4 + $0x38] sm:$0xff]
    %v1840 = vld [vmem:[#allocation4 + $0x40] sm:$0xff]
    %v1841 = vld [vmem:[#allocation4 + $0x48] sm:$0xff]
    %v1842 = vld [vmem:[#allocation4 + $0x50] sm:$0xff]
    %v1843 = vld [vmem:[#allocation4 + $0x58] sm:$0xff]
    %v1844 = vld [vmem:[#allocation4 + $0x60] sm:$0xff]
    %v1845 = vld [vmem:[#allocation4 + $0x68] sm:$0xff]
    %v1846 = vld [vmem:[#allocation4 + $0x70] sm:$0xff]
    %v1847 = vld [vmem:[#allocation4 + $0x78] sm:$0xff]
    %v1848 = vld [vmem:[#allocation4 + $0x80] sm:$0xff]
    %v1849 = vld [vmem:[#allocation4 + $0x88] sm:$0xff]
    %v1850 = vld [vmem:[#allocation4 + $0x90] sm:$0xff]
    %v1851 = vld [vmem:[#allocation4 + $0x98] sm:$0xff]
    %v1852 = vld [vmem:[#allocation4 + $0xa0] sm:$0xff]
    %v1853 = vld [vmem:[#allocation4 + $0xa8] sm:$0xff]
    %v1854 = vld [vmem:[#allocation4 + $0xb0] sm:$0xff]
    %v1855 = vld [vmem:[#allocation4 + $0xb8] sm:$0xff]
    %v1856 = vld [vmem:[#allocation4 + $0xc0] sm:$0xff]
    %v1857 = vld [vmem:[#allocation4 + $0xc8] sm:$0xff]
    %v1858 = vld [vmem:[#allocation4 + $0xd0] sm:$0xff]
    %v1859 = vld [vmem:[#allocation4 + $0xd8] sm:$0xff]
    %v1860 = vld [vmem:[#allocation4 + $0xe0] sm:$0xff]
    %v1861 = vld [vmem:[#allocation4 + $0xe8] sm:$0xff]
    %v1862 = vld [vmem:[#allocation4 + $0xf0] sm:$0xff]
    %v1863 = vld [vmem:[#allocation4 + $0xf8] sm:$0xff]
    %v1864 = vld [vmem:[#allocation4 + $0x100] sm:$0xff]
    %v1865 = vld [vmem:[#allocation4 + $0x108] sm:$0xff]
    %v1866 = vld [vmem:[#allocation4 + $0x110] sm:$0xff]
    %v1867 = vld [vmem:[#allocation4 + $0x118] sm:$0xff]
    %v1868 = vld [vmem:[#allocation4 + $0x120] sm:$0xff]
    %v1869 = vld [vmem:[#allocation4 + $0x128] sm:$0xff]
    %v1870 = vld [vmem:[#allocation4 + $0x130] sm:$0xff]
    %v1871 = vld [vmem:[#allocation4 + $0x138] sm:$0xff]
    %v1872 = vld [vmem:[#allocation4 + $0x140] sm:$0xff]
    %v1873 = vld [vmem:[#allocation4 + $0x148] sm:$0xff]
    %v1874 = vld [vmem:[#allocation4 + $0x150] sm:$0xff]
    %v1875 = vld [vmem:[#allocation4 + $0x158] sm:$0xff]
    %v1876 = vld [vmem:[#allocation4 + $0x160] sm:$0xff]
    %v1877 = vld [vmem:[#allocation4 + $0x168] sm:$0xff]
    %v1878 = vld [vmem:[#allocation4 + $0x170] sm:$0xff]
    %v1879 = vld [vmem:[#allocation4 + $0x178] sm:$0xff]
    %1880 = vmatprep.subr.mxu0 %v1833
    %1881 = vmatpush1.msra.mxu0 %v1832
    %1882 = vmatprep.subr.mxu0 %v1836
    %1883 = vmatpush1.msra.mxu0 %v1835
    %1884 = vmatprep.subr.mxu0 %v1839
    %1885 = vmatpush1.msra.mxu0 %v1838
    %1886 = vmatprep.subr.mxu0 %v1842
    %1887 = vmatpush1.msra.mxu0 %v1841
    %1888 = vmatprep.subr.mxu0 %v1845
    %1889 = vmatpush1.msra.mxu0 %v1844
    %1890 = vmatprep.subr.mxu0 %v1848
    %1891 = vmatpush1.msra.mxu0 %v1847
    %1892 = vmatprep.subr.mxu0 %v1851
    %1893 = vmatpush1.msra.mxu0 %v1850
    %1894 = vmatprep.subr.mxu0 %v1854
    %1895 = vmatpush1.msra.mxu0 %v1853
    %1896 = vmatprep.subr.mxu0 %v1857
    %1897 = vmatpush1.msra.mxu0 %v1856
    %1898 = vmatprep.subr.mxu0 %v1860
    %1899 = vmatpush1.msra.mxu0 %v1859
    %1900 = vmatprep.subr.mxu0 %v1863
    %1901 = vmatpush1.msra.mxu0 %v1862
    %1902 = vmatprep.subr.mxu0 %v1866
    %1903 = vmatpush1.msra.mxu0 %v1865
    %1904 = vmatprep.subr.mxu0 %v1869
    %1905 = vmatpush1.msra.mxu0 %v1868
    %1906 = vmatprep.subr.mxu0 %v1872
    %1907 = vmatpush1.msra.mxu0 %v1871
    %1908 = vmatprep.subr.mxu0 %v1875
    %1909 = vmatpush1.msra.mxu0 %v1874
    %1910 = vmatprep.subr.mxu0 %v1878
    %1911 = vmatpush1.msra.mxu0 %v1877
    %1912 = vmatprep.subr.mxu0 0.0
    %1913 = vmatpush1.msra.mxu0 0.0
    %1914 = vmatprep.subr.mxu0 0.0
    %1915 = vmatpush1.msra.mxu0 0.0
    %1916 = vmatprep.subr.mxu0 0.0
    %1917 = vmatpush1.msra.mxu0 0.0
    %1918 = vmatprep.subr.mxu0 0.0
    %1919 = vmatpush1.msra.mxu0 0.0
    %1920 = vmatprep.subr.mxu0 0.0
    %1921 = vmatpush1.msra.mxu0 0.0
    %1922 = vmatprep.subr.mxu0 0.0
    %1923 = vmatpush1.msra.mxu0 0.0
    %1924 = vmatprep.subr.mxu0 0.0
    %1925 = vmatpush1.msra.mxu0 0.0
    %1926 = vmatprep.subr.mxu0 0.0
    %1927 = vmatpush1.msra.mxu0 0.0
    %1928 = vmatprep.subr.mxu0 0.0
    %1929 = vmatpush1.msra.mxu0 0.0
    %1930 = vmatprep.subr.mxu0 0.0
    %1931 = vmatpush1.msra.mxu0 0.0
    %1932 = vmatprep.subr.mxu0 0.0
    %1933 = vmatpush1.msra.mxu0 0.0
    %1934 = vmatprep.subr.mxu0 0.0
    %1935 = vmatpush1.msra.mxu0 0.0
    %1936 = vmatprep.subr.mxu0 0.0
    %1937 = vmatpush1.msra.mxu0 0.0
    %1938 = vmatprep.subr.mxu0 0.0
    %1939 = vmatpush1.msra.mxu0 0.0
    %1940 = vmatprep.subr.mxu0 0.0
    %1941 = vmatpush1.msra.mxu0 0.0
    %1942 = vmatprep.subr.mxu0 0.0
    %1943 = vmatpush1.msra.mxu0 0.0
    %1944 = vmatprep.mubr.f32.mxu0 0.0
    %1945 = vmatmul.mubr.f32.gmra.mrb[0].mxu0 %v1823
    %v1946 = vpop.f32.mrb[0].mxu0
    %v1947 = vadd.f32 0.0, %v1946
    %v1948 = vpop.f32.mrb[0].mxu0
    %v1949 = vadd.f32 0.0, %v1948
    %1950 = vdwg.mxu0
    %1951 = vmatprep.subr.mxu0 0.0
    %1952 = vmatpush1.msra.mxu0 %v1834
    %1953 = vmatprep.subr.mxu0 0.0
    %1954 = vmatpush1.msra.mxu0 %v1837
    %1955 = vmatprep.subr.mxu0 0.0
    %1956 = vmatpush1.msra.mxu0 %v1840
    %1957 = vmatprep.subr.mxu0 0.0
    %1958 = vmatpush1.msra.mxu0 %v1843
    %1959 = vmatprep.subr.mxu0 0.0
    %1960 = vmatpush1.msra.mxu0 %v1846
    %1961 = vmatprep.subr.mxu0 0.0
    %1962 = vmatpush1.msra.mxu0 %v1849
    %1963 = vmatprep.subr.mxu0 0.0
    %1964 = vmatpush1.msra.mxu0 %v1852
    %1965 = vmatprep.subr.mxu0 0.0
    %1966 = vmatpush1.msra.mxu0 %v1855
    %1967 = vmatprep.subr.mxu0 0.0
    %1968 = vmatpush1.msra.mxu0 %v1858
    %1969 = vmatprep.subr.mxu0 0.0
    %1970 = vmatpush1.msra.mxu0 %v1861
    %1971 = vmatprep.subr.mxu0 0.0
    %1972 = vmatpush1.msra.mxu0 %v1864
    %1973 = vmatprep.subr.mxu0 0.0
    %1974 = vmatpush1.msra.mxu0 %v1867
    %1975 = vmatprep.subr.mxu0 0.0
    %1976 = vmatpush1.msra.mxu0 %v1870
    %1977 = vmatprep.subr.mxu0 0.0
    %1978 = vmatpush1.msra.mxu0 %v1873
    %1979 = vmatprep.subr.mxu0 0.0
    %1980 = vmatpush1.msra.mxu0 %v1876
    %1981 = vmatprep.subr.mxu0 0.0
    %1982 = vmatpush1.msra.mxu0 %v1879
    %1983 = vmatprep.subr.mxu0 0.0
    %1984 = vmatpush1.msra.mxu0 0.0
    %1985 = vmatprep.subr.mxu0 0.0
    %1986 = vmatpush1.msra.mxu0 0.0
    %1987 = vmatprep.subr.mxu0 0.0
    %1988 = vmatpush1.msra.mxu0 0.0
    %1989 = vmatprep.subr.mxu0 0.0
    %1990 = vmatpush1.msra.mxu0 0.0
    %1991 = vmatprep.subr.mxu0 0.0
    %1992 = vmatpush1.msra.mxu0 0.0
    %1993 = vmatprep.subr.mxu0 0.0
    %1994 = vmatpush1.msra.mxu0 0.0
    %1995 = vmatprep.subr.mxu0 0.0
    %1996 = vmatpush1.msra.mxu0 0.0
    %1997 = vmatprep.subr.mxu0 0.0
    %1998 = vmatpush1.msra.mxu0 0.0
    %1999 = vmatprep.subr.mxu0 0.0
    %2000 = vmatpush1.msra.mxu0 0.0
    %2001 = vmatprep.subr.mxu0 0.0
    %2002 = vmatpush1.msra.mxu0 0.0
    %2003 = vmatprep.subr.mxu0 0.0
    %2004 = vmatpush1.msra.mxu0 0.0
    %2005 = vmatprep.subr.mxu0 0.0
    %2006 = vmatpush1.msra.mxu0 0.0
    %2007 = vmatprep.subr.mxu0 0.0
    %2008 = vmatpush1.msra.mxu0 0.0
    %2009 = vmatprep.subr.mxu0 0.0
    %2010 = vmatpush1.msra.mxu0 0.0
    %2011 = vmatprep.subr.mxu0 0.0
    %2012 = vmatpush1.msra.mxu0 0.0
    %2013 = vmatprep.subr.mxu0 0.0
    %2014 = vmatpush1.msra.mxu0 0.0
    %2015 = vmatprep.mubr.f32.mxu0 0.0
    %2016 = vmatmul.mubr.f32.gmra.mrb[0].mxu0 %v1823
    %v2017 = vpop.f32.mrb[0].mxu0
    %v2018 = vadd.f32 0.0, %v2017
    %v2019 = vpop.f32.mrb[0].mxu0
    %2020 = vdwg.mxu0
    %v2021 = vadd.f32 %v1829, %v1947
    %v2022 = vxor.u32 %v2021, 2147483648
    %v2023 = vmul.f32 %v2022, 1.442695
    %v2024 = vpow.pop %v2023
    %v2025 = vadd.f32 %v2024, 1.0
    %v2026 = vrcp.pop %v2025
    %v2027 = vmul.f32 1.0, %v2026
    %v2028 = vadd.f32 %v1830, %v1949
    %v2029 = vxor.u32 %v2028, 2147483648
    %v2030 = vmul.f32 %v2029, 1.442695
    %v2031 = vpow.pop %v2030
    %v2032 = vadd.f32 %v2031, 1.0
    %v2033 = vrcp.pop %v2032
    %v2034 = vmul.f32 1.0, %v2033
    %v2035 = vadd.f32 %v2018, %v948
    %v2036 = vmul.f32 %v2027, %v2035
    %v2037 = vadd.f32 %v1831, %v2036
    %v2038 = vtanh.pop %v2037
    %v2039 = vsub.f32 1.0, %v2034
    %v2040 = vmul.f32 %v2039, %v2038
    %v2041 = vmul.f32 %v2034, %v1823
    %v2042 = vadd.f32 %v2040, %v2041
    %s2043 = scalar_lea.vmem %s6, 32
    %2044 = vst [vmem:[%s2043] sm:$0xff] %v2042
    %s2045 = smul.u32 5, 3
    %s2046 = smul.addr %s2045, 8
    %s2047 = scalar_lea.vmem [#allocation3], %s2046
    %v2048 = vld [vmem:[%s2047] sm:$0xff]
    %v2049 = vld [vmem:[%s2047 + $0x8] sm:$0xff]
    %v2050 = vld [vmem:[%s2047 + $0x10] sm:$0xff]
    %v2051 = vld [vmem:[#allocation4] sm:$0xff]
    %v2052 = vld [vmem:[#allocation4 + $0x8] sm:$0xff]
    %v2053 = vld [vmem:[#allocation4 + $0x10] sm:$0xff]
    %v2054 = vld [vmem:[#allocation4 + $0x18] sm:$0xff]
    %v2055 = vld [vmem:[#allocation4 + $0x20] sm:$0xff]
    %v2056 = vld [vmem:[#allocation4 + $0x28] sm:$0xff]
    %v2057 = vld [vmem:[#allocation4 + $0x30] sm:$0xff]
    %v2058 = vld [vmem:[#allocation4 + $0x38] sm:$0xff]
    %v2059 = vld [vmem:[#allocation4 + $0x40] sm:$0xff]
    %v2060 = vld [vmem:[#allocation4 + $0x48] sm:$0xff]
    %v2061 = vld [vmem:[#allocation4 + $0x50] sm:$0xff]
    %v2062 = vld [vmem:[#allocation4 + $0x58] sm:$0xff]
    %v2063 = vld [vmem:[#allocation4 + $0x60] sm:$0xff]
    %v2064 = vld [vmem:[#allocation4 + $0x68] sm:$0xff]
    %v2065 = vld [vmem:[#allocation4 + $0x70] sm:$0xff]
    %v2066 = vld [vmem:[#allocation4 + $0x78] sm:$0xff]
    %v2067 = vld [vmem:[#allocation4 + $0x80] sm:$0xff]
    %v2068 = vld [vmem:[#allocation4 + $0x88] sm:$0xff]
    %v2069 = vld [vmem:[#allocation4 + $0x90] sm:$0xff]
    %v2070 = vld [vmem:[#allocation4 + $0x98] sm:$0xff]
    %v2071 = vld [vmem:[#allocation4 + $0xa0] sm:$0xff]
    %v2072 = vld [vmem:[#allocation4 + $0xa8] sm:$0xff]
    %v2073 = vld [vmem:[#allocation4 + $0xb0] sm:$0xff]
    %v2074 = vld [vmem:[#allocation4 + $0xb8] sm:$0xff]
    %v2075 = vld [vmem:[#allocation4 + $0xc0] sm:$0xff]
    %v2076 = vld [vmem:[#allocation4 + $0xc8] sm:$0xff]
    %v2077 = vld [vmem:[#allocation4 + $0xd0] sm:$0xff]
    %v2078 = vld [vmem:[#allocation4 + $0xd8] sm:$0xff]
    %v2079 = vld [vmem:[#allocation4 + $0xe0] sm:$0xff]
    %v2080 = vld [vmem:[#allocation4 + $0xe8] sm:$0xff]
    %v2081 = vld [vmem:[#allocation4 + $0xf0] sm:$0xff]
    %v2082 = vld [vmem:[#allocation4 + $0xf8] sm:$0xff]
    %v2083 = vld [vmem:[#allocation4 + $0x100] sm:$0xff]
    %v2084 = vld [vmem:[#allocation4 + $0x108] sm:$0xff]
    %v2085 = vld [vmem:[#allocation4 + $0x110] sm:$0xff]
    %v2086 = vld [vmem:[#allocation4 + $0x118] sm:$0xff]
    %v2087 = vld [vmem:[#allocation4 + $0x120] sm:$0xff]
    %v2088 = vld [vmem:[#allocation4 + $0x128] sm:$0xff]
    %v2089 = vld [vmem:[#allocation4 + $0x130] sm:$0xff]
    %v2090 = vld [vmem:[#allocation4 + $0x138] sm:$0xff]
    %v2091 = vld [vmem:[#allocation4 + $0x140] sm:$0xff]
    %v2092 = vld [vmem:[#allocation4 + $0x148] sm:$0xff]
    %v2093 = vld [vmem:[#allocation4 + $0x150] sm:$0xff]
    %v2094 = vld [vmem:[#allocation4 + $0x158] sm:$0xff]
    %v2095 = vld [vmem:[#allocation4 + $0x160] sm:$0xff]
    %v2096 = vld [vmem:[#allocation4 + $0x168] sm:$0xff]
    %v2097 = vld [vmem:[#allocation4 + $0x170] sm:$0xff]
    %v2098 = vld [vmem:[#allocation4 + $0x178] sm:$0xff]
    %2099 = vmatprep.subr.mxu0 %v2052
    %2100 = vmatpush1.msra.mxu0 %v2051
    %2101 = vmatprep.subr.mxu0 %v2055
    %2102 = vmatpush1.msra.mxu0 %v2054
    %2103 = vmatprep.subr.mxu0 %v2058
    %2104 = vmatpush1.msra.mxu0 %v2057
    %2105 = vmatprep.subr.mxu0 %v2061
    %2106 = vmatpush1.msra.mxu0 %v2060
    %2107 = vmatprep.subr.mxu0 %v2064
    %2108 = vmatpush1.msra.mxu0 %v2063
    %2109 = vmatprep.subr.mxu0 %v2067
    %2110 = vmatpush1.msra.mxu0 %v2066
    %2111 = vmatprep.subr.mxu0 %v2070
    %2112 = vmatpush1.msra.mxu0 %v2069
    %2113 = vmatprep.subr.mxu0 %v2073
    %2114 = vmatpush1.msra.mxu0 %v2072
    %2115 = vmatprep.subr.mxu0 %v2076
    %2116 = vmatpush1.msra.mxu0 %v2075
    %2117 = vmatprep.subr.mxu0 %v2079
    %2118 = vmatpush1.msra.mxu0 %v2078
    %2119 = vmatprep.subr.mxu0 %v2082
    %2120 = vmatpush1.msra.mxu0 %v2081
    %2121 = vmatprep.subr.mxu0 %v2085
    %2122 = vmatpush1.msra.mxu0 %v2084
    %2123 = vmatprep.subr.mxu0 %v2088
    %2124 = vmatpush1.msra.mxu0 %v2087
    %2125 = vmatprep.subr.mxu0 %v2091
    %2126 = vmatpush1.msra.mxu0 %v2090
    %2127 = vmatprep.subr.mxu0 %v2094
    %2128 = vmatpush1.msra.mxu0 %v2093
    %2129 = vmatprep.subr.mxu0 %v2097
    %2130 = vmatpush1.msra.mxu0 %v2096
    %2131 = vmatprep.subr.mxu0 0.0
    %2132 = vmatpush1.msra.mxu0 0.0
    %2133 = vmatprep.subr.mxu0 0.0
    %2134 = vmatpush1.msra.mxu0 0.0
    %2135 = vmatprep.subr.mxu0 0.0
    %2136 = vmatpush1.msra.mxu0 0.0
    %2137 = vmatprep.subr.mxu0 0.0
    %2138 = vmatpush1.msra.mxu0 0.0
    %2139 = vmatprep.subr.mxu0 0.0
    %2140 = vmatpush1.msra.mxu0 0.0
    %2141 = vmatprep.subr.mxu0 0.0
    %2142 = vmatpush1.msra.mxu0 0.0
    %2143 = vmatprep.subr.mxu0 0.0
    %2144 = vmatpush1.msra.mxu0 0.0
    %2145 = vmatprep.subr.mxu0 0.0
    %2146 = vmatpush1.msra.mxu0 0.0
    %2147 = vmatprep.subr.mxu0 0.0
    %2148 = vmatpush1.msra.mxu0 0.0
    %2149 = vmatprep.subr.mxu0 0.0
    %2150 = vmatpush1.msra.mxu0 0.0
    %2151 = vmatprep.subr.mxu0 0.0
    %2152 = vmatpush1.msra.mxu0 0.0
    %2153 = vmatprep.subr.mxu0 0.0
    %2154 = vmatpush1.msra.mxu0 0.0
    %2155 = vmatprep.subr.mxu0 0.0
    %2156 = vmatpush1.msra.mxu0 0.0
    %2157 = vmatprep.subr.mxu0 0.0
    %2158 = vmatpush1.msra.mxu0 0.0
    %2159 = vmatprep.subr.mxu0 0.0
    %2160 = vmatpush1.msra.mxu0 0.0
    %2161 = vmatprep.subr.mxu0 0.0
    %2162 = vmatpush1.msra.mxu0 0.0
    %2163 = vmatprep.mubr.f32.mxu0 0.0
    %2164 = vmatmul.mubr.f32.gmra.mrb[0].mxu0 %v2042
    %v2165 = vpop.f32.mrb[0].mxu0
    %v2166 = vadd.f32 0.0, %v2165
    %v2167 = vpop.f32.mrb[0].mxu0
    %v2168 = vadd.f32 0.0, %v2167
    %2169 = vdwg.mxu0
    %2170 = vmatprep.subr.mxu0 0.0
    %2171 = vmatpush1.msra.mxu0 %v2053
    %2172 = vmatprep.subr.mxu0 0.0
    %2173 = vmatpush1.msra.mxu0 %v2056
    %2174 = vmatprep.subr.mxu0 0.0
    %2175 = vmatpush1.msra.mxu0 %v2059
    %2176 = vmatprep.subr.mxu0 0.0
    %2177 = vmatpush1.msra.mxu0 %v2062
    %2178 = vmatprep.subr.mxu0 0.0
    %2179 = vmatpush1.msra.mxu0 %v2065
    %2180 = vmatprep.subr.mxu0 0.0
    %2181 = vmatpush1.msra.mxu0 %v2068
    %2182 = vmatprep.subr.mxu0 0.0
    %2183 = vmatpush1.msra.mxu0 %v2071
    %2184 = vmatprep.subr.mxu0 0.0
    %2185 = vmatpush1.msra.mxu0 %v2074
    %2186 = vmatprep.subr.mxu0 0.0
    %2187 = vmatpush1.msra.mxu0 %v2077
    %2188 = vmatprep.subr.mxu0 0.0
    %2189 = vmatpush1.msra.mxu0 %v2080
    %2190 = vmatprep.subr.mxu0 0.0
    %2191 = vmatpush1.msra.mxu0 %v2083
    %2192 = vmatprep.subr.mxu0 0.0
    %2193 = vmatpush1.msra.mxu0 %v2086
    %2194 = vmatprep.subr.mxu0 0.0
    %2195 = vmatpush1.msra.mxu0 %v2089
    %2196 = vmatprep.subr.mxu0 0.0
    %2197 = vmatpush1.msra.mxu0 %v2092
    %2198 = vmatprep.subr.mxu0 0.0
    %2199 = vmatpush1.msra.mxu0 %v2095
    %2200 = vmatprep.subr.mxu0 0.0
    %2201 = vmatpush1.msra.mxu0 %v2098
    %2202 = vmatprep.subr.mxu0 0.0
    %2203 = vmatpush1.msra.mxu0 0.0
    %2204 = vmatprep.subr.mxu0 0.0
    %2205 = vmatpush1.msra.mxu0 0.0
    %2206 = vmatprep.subr.mxu0 0.0
    %2207 = vmatpush1.msra.mxu0 0.0
    %2208 = vmatprep.subr.mxu0 0.0
    %2209 = vmatpush1.msra.mxu0 0.0
    %2210 = vmatprep.subr.mxu0 0.0
    %2211 = vmatpush1.msra.mxu0 0.0
    %2212 = vmatprep.subr.mxu0 0.0
    %2213 = vmatpush1.msra.mxu0 0.0
    %2214 = vmatprep.subr.mxu0 0.0
    %2215 = vmatpush1.msra.mxu0 0.0
    %2216 = vmatprep.subr.mxu0 0.0
    %2217 = vmatpush1.msra.mxu0 0.0
    %2218 = vmatprep.subr.mxu0 0.0
    %2219 = vmatpush1.msra.mxu0 0.0
    %2220 = vmatprep.subr.mxu0 0.0
    %2221 = vmatpush1.msra.mxu0 0.0
    %2222 = vmatprep.subr.mxu0 0.0
    %2223 = vmatpush1.msra.mxu0 0.0
    %2224 = vmatprep.subr.mxu0 0.0
    %2225 = vmatpush1.msra.mxu0 0.0
    %2226 = vmatprep.subr.mxu0 0.0
    %2227 = vmatpush1.msra.mxu0 0.0
    %2228 = vmatprep.subr.mxu0 0.0
    %2229 = vmatpush1.msra.mxu0 0.0
    %2230 = vmatprep.subr.mxu0 0.0
    %2231 = vmatpush1.msra.mxu0 0.0
    %2232 = vmatprep.subr.mxu0 0.0
    %2233 = vmatpush1.msra.mxu0 0.0
    %2234 = vmatprep.mubr.f32.mxu0 0.0
    %2235 = vmatmul.mubr.f32.gmra.mrb[0].mxu0 %v2042
    %v2236 = vpop.f32.mrb[0].mxu0
    %v2237 = vadd.f32 0.0, %v2236
    %v2238 = vpop.f32.mrb[0].mxu0
    %2239 = vdwg.mxu0
    %v2240 = vadd.f32 %v2048, %v2166
    %v2241 = vxor.u32 %v2240, 2147483648
    %v2242 = vmul.f32 %v2241, 1.442695
    %v2243 = vpow.pop %v2242
    %v2244 = vadd.f32 %v2243, 1.0
    %v2245 = vrcp.pop %v2244
    %v2246 = vmul.f32 1.0, %v2245
    %v2247 = vadd.f32 %v2049, %v2168
    %v2248 = vxor.u32 %v2247, 2147483648
    %v2249 = vmul.f32 %v2248, 1.442695
    %v2250 = vpow.pop %v2249
    %v2251 = vadd.f32 %v2250, 1.0
    %v2252 = vrcp.pop %v2251
    %v2253 = vmul.f32 1.0, %v2252
    %v2254 = vadd.f32 %v2237, %v948
    %v2255 = vmul.f32 %v2246, %v2254
    %v2256 = vadd.f32 %v2050, %v2255
    %v2257 = vtanh.pop %v2256
    %v2258 = vsub.f32 1.0, %v2253
    %v2259 = vmul.f32 %v2258, %v2257
    %v2260 = vmul.f32 %v2253, %v2042
    %v2261 = vadd.f32 %v2259, %v2260
    %s2262 = scalar_lea.vmem %s6, 40
    %2263 = vst [vmem:[%s2262] sm:$0xff] %v2261
    %s2264 = smul.u32 6, 3
    %s2265 = smul.addr %s2264, 8
    %s2266 = scalar_lea.vmem [#allocation3], %s2265
    %v2267 = vld [vmem:[%s2266] sm:$0xff]
    %v2268 = vld [vmem:[%s2266 + $0x8] sm:$0xff]
    %v2269 = vld [vmem:[%s2266 + $0x10] sm:$0xff]
    %v2270 = vld [vmem:[#allocation4] sm:$0xff]
    %v2271 = vld [vmem:[#allocation4 + $0x8] sm:$0xff]
    %v2272 = vld [vmem:[#allocation4 + $0x10] sm:$0xff]
    %v2273 = vld [vmem:[#allocation4 + $0x18] sm:$0xff]
    %v2274 = vld [vmem:[#allocation4 + $0x20] sm:$0xff]
    %v2275 = vld [vmem:[#allocation4 + $0x28] sm:$0xff]
    %v2276 = vld [vmem:[#allocation4 + $0x30] sm:$0xff]
    %v2277 = vld [vmem:[#allocation4 + $0x38] sm:$0xff]
    %v2278 = vld [vmem:[#allocation4 + $0x40] sm:$0xff]
    %v2279 = vld [vmem:[#allocation4 + $0x48] sm:$0xff]
    %v2280 = vld [vmem:[#allocation4 + $0x50] sm:$0xff]
    %v2281 = vld [vmem:[#allocation4 + $0x58] sm:$0xff]
    %v2282 = vld [vmem:[#allocation4 + $0x60] sm:$0xff]
    %v2283 = vld [vmem:[#allocation4 + $0x68] sm:$0xff]
    %v2284 = vld [vmem:[#allocation4 + $0x70] sm:$0xff]
    %v2285 = vld [vmem:[#allocation4 + $0x78] sm:$0xff]
    %v2286 = vld [vmem:[#allocation4 + $0x80] sm:$0xff]
    %v2287 = vld [vmem:[#allocation4 + $0x88] sm:$0xff]
    %v2288 = vld [vmem:[#allocation4 + $0x90] sm:$0xff]
    %v2289 = vld [vmem:[#allocation4 + $0x98] sm:$0xff]
    %v2290 = vld [vmem:[#allocation4 + $0xa0] sm:$0xff]
    %v2291 = vld [vmem:[#allocation4 + $0xa8] sm:$0xff]
    %v2292 = vld [vmem:[#allocation4 + $0xb0] sm:$0xff]
    %v2293 = vld [vmem:[#allocation4 + $0xb8] sm:$0xff]
    %v2294 = vld [vmem:[#allocation4 + $0xc0] sm:$0xff]
    %v2295 = vld [vmem:[#allocation4 + $0xc8] sm:$0xff]
    %v2296 = vld [vmem:[#allocation4 + $0xd0] sm:$0xff]
    %v2297 = vld [vmem:[#allocation4 + $0xd8] sm:$0xff]
    %v2298 = vld [vmem:[#allocation4 + $0xe0] sm:$0xff]
    %v2299 = vld [vmem:[#allocation4 + $0xe8] sm:$0xff]
    %v2300 = vld [vmem:[#allocation4 + $0xf0] sm:$0xff]
    %v2301 = vld [vmem:[#allocation4 + $0xf8] sm:$0xff]
    %v2302 = vld [vmem:[#allocation4 + $0x100] sm:$0xff]
    %v2303 = vld [vmem:[#allocation4 + $0x108] sm:$0xff]
    %v2304 = vld [vmem:[#allocation4 + $0x110] sm:$0xff]
    %v2305 = vld [vmem:[#allocation4 + $0x118] sm:$0xff]
    %v2306 = vld [vmem:[#allocation4 + $0x120] sm:$0xff]
    %v2307 = vld [vmem:[#allocation4 + $0x128] sm:$0xff]
    %v2308 = vld [vmem:[#allocation4 + $0x130] sm:$0xff]
    %v2309 = vld [vmem:[#allocation4 + $0x138] sm:$0xff]
    %v2310 = vld [vmem:[#allocation4 + $0x140] sm:$0xff]
    %v2311 = vld [vmem:[#allocation4 + $0x148] sm:$0xff]
    %v2312 = vld [vmem:[#allocation4 + $0x150] sm:$0xff]
    %v2313 = vld [vmem:[#allocation4 + $0x158] sm:$0xff]
    %v2314 = vld [vmem:[#allocation4 + $0x160] sm:$0xff]
    %v2315 = vld [vmem:[#allocation4 + $0x168] sm:$0xff]
    %v2316 = vld [vmem:[#allocation4 + $0x170] sm:$0xff]
    %v2317 = vld [vmem:[#allocation4 + $0x178] sm:$0xff]
    %2318 = vmatprep.subr.mxu0 %v2271
    %2319 = vmatpush1.msra.mxu0 %v2270
    %2320 = vmatprep.subr.mxu0 %v2274
    %2321 = vmatpush1.msra.mxu0 %v2273
    %2322 = vmatprep.subr.mxu0 %v2277
    %2323 = vmatpush1.msra.mxu0 %v2276
    %2324 = vmatprep.subr.mxu0 %v2280
    %2325 = vmatpush1.msra.mxu0 %v2279
    %2326 = vmatprep.subr.mxu0 %v2283
    %2327 = vmatpush1.msra.mxu0 %v2282
    %2328 = vmatprep.subr.mxu0 %v2286
    %2329 = vmatpush1.msra.mxu0 %v2285
    %2330 = vmatprep.subr.mxu0 %v2289
    %2331 = vmatpush1.msra.mxu0 %v2288
    %2332 = vmatprep.subr.mxu0 %v2292
    %2333 = vmatpush1.msra.mxu0 %v2291
    %2334 = vmatprep.subr.mxu0 %v2295
    %2335 = vmatpush1.msra.mxu0 %v2294
    %2336 = vmatprep.subr.mxu0 %v2298
    %2337 = vmatpush1.msra.mxu0 %v2297
    %2338 = vmatprep.subr.mxu0 %v2301
    %2339 = vmatpush1.msra.mxu0 %v2300
    %2340 = vmatprep.subr.mxu0 %v2304
    %2341 = vmatpush1.msra.mxu0 %v2303
    %2342 = vmatprep.subr.mxu0 %v2307
    %2343 = vmatpush1.msra.mxu0 %v2306
    %2344 = vmatprep.subr.mxu0 %v2310
    %2345 = vmatpush1.msra.mxu0 %v2309
    %2346 = vmatprep.subr.mxu0 %v2313
    %2347 = vmatpush1.msra.mxu0 %v2312
    %2348 = vmatprep.subr.mxu0 %v2316
    %2349 = vmatpush1.msra.mxu0 %v2315
    %2350 = vmatprep.subr.mxu0 0.0
    %2351 = vmatpush1.msra.mxu0 0.0
    %2352 = vmatprep.subr.mxu0 0.0
    %2353 = vmatpush1.msra.mxu0 0.0
    %2354 = vmatprep.subr.mxu0 0.0
    %2355 = vmatpush1.msra.mxu0 0.0
    %2356 = vmatprep.subr.mxu0 0.0
    %2357 = vmatpush1.msra.mxu0 0.0
    %2358 = vmatprep.subr.mxu0 0.0
    %2359 = vmatpush1.msra.mxu0 0.0
    %2360 = vmatprep.subr.mxu0 0.0
    %2361 = vmatpush1.msra.mxu0 0.0
    %2362 = vmatprep.subr.mxu0 0.0
    %2363 = vmatpush1.msra.mxu0 0.0
    %2364 = vmatprep.subr.mxu0 0.0
    %2365 = vmatpush1.msra.mxu0 0.0
    %2366 = vmatprep.subr.mxu0 0.0
    %2367 = vmatpush1.msra.mxu0 0.0
    %2368 = vmatprep.subr.mxu0 0.0
    %2369 = vmatpush1.msra.mxu0 0.0
    %2370 = vmatprep.subr.mxu0 0.0
    %2371 = vmatpush1.msra.mxu0 0.0
    %2372 = vmatprep.subr.mxu0 0.0
    %2373 = vmatpush1.msra.mxu0 0.0
    %2374 = vmatprep.subr.mxu0 0.0
    %2375 = vmatpush1.msra.mxu0 0.0
    %2376 = vmatprep.subr.mxu0 0.0
    %2377 = vmatpush1.msra.mxu0 0.0
    %2378 = vmatprep.subr.mxu0 0.0
    %2379 = vmatpush1.msra.mxu0 0.0
    %2380 = vmatprep.subr.mxu0 0.0
    %2381 = vmatpush1.msra.mxu0 0.0
    %2382 = vmatprep.mubr.f32.mxu0 0.0
    %2383 = vmatmul.mubr.f32.gmra.mrb[0].mxu0 %v2261
    %v2384 = vpop.f32.mrb[0].mxu0
    %v2385 = vadd.f32 0.0, %v2384
    %v2386 = vpop.f32.mrb[0].mxu0
    %v2387 = vadd.f32 0.0, %v2386
    %2388 = vdwg.mxu0
    %2389 = vmatprep.subr.mxu0 0.0
    %2390 = vmatpush1.msra.mxu0 %v2272
    %2391 = vmatprep.subr.mxu0 0.0
    %2392 = vmatpush1.msra.mxu0 %v2275
    %2393 = vmatprep.subr.mxu0 0.0
    %2394 = vmatpush1.msra.mxu0 %v2278
    %2395 = vmatprep.subr.mxu0 0.0
    %2396 = vmatpush1.msra.mxu0 %v2281
    %2397 = vmatprep.subr.mxu0 0.0
    %2398 = vmatpush1.msra.mxu0 %v2284
    %2399 = vmatprep.subr.mxu0 0.0
    %2400 = vmatpush1.msra.mxu0 %v2287
    %2401 = vmatprep.subr.mxu0 0.0
    %2402 = vmatpush1.msra.mxu0 %v2290
    %2403 = vmatprep.subr.mxu0 0.0
    %2404 = vmatpush1.msra.mxu0 %v2293
    %2405 = vmatprep.subr.mxu0 0.0
    %2406 = vmatpush1.msra.mxu0 %v2296
    %2407 = vmatprep.subr.mxu0 0.0
    %2408 = vmatpush1.msra.mxu0 %v2299
    %2409 = vmatprep.subr.mxu0 0.0
    %2410 = vmatpush1.msra.mxu0 %v2302
    %2411 = vmatprep.subr.mxu0 0.0
    %2412 = vmatpush1.msra.mxu0 %v2305
    %2413 = vmatprep.subr.mxu0 0.0
    %2414 = vmatpush1.msra.mxu0 %v2308
    %2415 = vmatprep.subr.mxu0 0.0
    %2416 = vmatpush1.msra.mxu0 %v2311
    %2417 = vmatprep.subr.mxu0 0.0
    %2418 = vmatpush1.msra.mxu0 %v2314
    %2419 = vmatprep.subr.mxu0 0.0
    %2420 = vmatpush1.msra.mxu0 %v2317
    %2421 = vmatprep.subr.mxu0 0.0
    %2422 = vmatpush1.msra.mxu0 0.0
    %2423 = vmatprep.subr.mxu0 0.0
    %2424 = vmatpush1.msra.mxu0 0.0
    %2425 = vmatprep.subr.mxu0 0.0
    %2426 = vmatpush1.msra.mxu0 0.0
    %2427 = vmatprep.subr.mxu0 0.0
    %2428 = vmatpush1.msra.mxu0 0.0
    %2429 = vmatprep.subr.mxu0 0.0
    %2430 = vmatpush1.msra.mxu0 0.0
    %2431 = vmatprep.subr.mxu0 0.0
    %2432 = vmatpush1.msra.mxu0 0.0
    %2433 = vmatprep.subr.mxu0 0.0
    %2434 = vmatpush1.msra.mxu0 0.0
    %2435 = vmatprep.subr.mxu0 0.0
    %2436 = vmatpush1.msra.mxu0 0.0
    %2437 = vmatprep.subr.mxu0 0.0
    %2438 = vmatpush1.msra.mxu0 0.0
    %2439 = vmatprep.subr.mxu0 0.0
    %2440 = vmatpush1.msra.mxu0 0.0
    %2441 = vmatprep.subr.mxu0 0.0
    %2442 = vmatpush1.msra.mxu0 0.0
    %2443 = vmatprep.subr.mxu0 0.0
    %2444 = vmatpush1.msra.mxu0 0.0
    %2445 = vmatprep.subr.mxu0 0.0
    %2446 = vmatpush1.msra.mxu0 0.0
    %2447 = vmatprep.subr.mxu0 0.0
    %2448 = vmatpush1.msra.mxu0 0.0
    %2449 = vmatprep.subr.mxu0 0.0
    %2450 = vmatpush1.msra.mxu0 0.0
    %2451 = vmatprep.subr.mxu0 0.0
    %2452 = vmatpush1.msra.mxu0 0.0
    %2453 = vmatprep.mubr.f32.mxu0 0.0
    %2454 = vmatmul.mubr.f32.gmra.mrb[0].mxu0 %v2261
    %v2455 = vpop.f32.mrb[0].mxu0
    %v2456 = vadd.f32 0.0, %v2455
    %v2457 = vpop.f32.mrb[0].mxu0
    %2458 = vdwg.mxu0
    %v2459 = vadd.f32 %v2267, %v2385
    %v2460 = vxor.u32 %v2459, 2147483648
    %v2461 = vmul.f32 %v2460, 1.442695
    %v2462 = vpow.pop %v2461
    %v2463 = vadd.f32 %v2462, 1.0
    %v2464 = vrcp.pop %v2463
    %v2465 = vmul.f32 1.0, %v2464
    %v2466 = vadd.f32 %v2268, %v2387
    %v2467 = vxor.u32 %v2466, 2147483648
    %v2468 = vmul.f32 %v2467, 1.442695
    %v2469 = vpow.pop %v2468
    %v2470 = vadd.f32 %v2469, 1.0
    %v2471 = vrcp.pop %v2470
    %v2472 = vmul.f32 1.0, %v2471
    %v2473 = vadd.f32 %v2456, %v948
    %v2474 = vmul.f32 %v2465, %v2473
    %v2475 = vadd.f32 %v2269, %v2474
    %v2476 = vtanh.pop %v2475
    %v2477 = vsub.f32 1.0, %v2472
    %v2478 = vmul.f32 %v2477, %v2476
    %v2479 = vmul.f32 %v2472, %v2261
    %v2480 = vadd.f32 %v2478, %v2479
    %s2481 = scalar_lea.vmem %s6, 48
    %2482 = vst [vmem:[%s2481] sm:$0xff] %v2480
    %s2483 = smul.u32 7, 3
    %s2484 = smul.addr %s2483, 8
    %s2485 = scalar_lea.vmem [#allocation3], %s2484
    %v2486 = vld [vmem:[%s2485] sm:$0xff]
    %v2487 = vld [vmem:[%s2485 + $0x8] sm:$0xff]
    %v2488 = vld [vmem:[%s2485 + $0x10] sm:$0xff]
    %v2489 = vld [vmem:[#allocation4] sm:$0xff]
    %v2490 = vld [vmem:[#allocation4 + $0x8] sm:$0xff]
    %v2491 = vld [vmem:[#allocation4 + $0x10] sm:$0xff]
    %v2492 = vld [vmem:[#allocation4 + $0x18] sm:$0xff]
    %v2493 = vld [vmem:[#allocation4 + $0x20] sm:$0xff]
    %v2494 = vld [vmem:[#allocation4 + $0x28] sm:$0xff]
    %v2495 = vld [vmem:[#allocation4 + $0x30] sm:$0xff]
    %v2496 = vld [vmem:[#allocation4 + $0x38] sm:$0xff]
    %v2497 = vld [vmem:[#allocation4 + $0x40] sm:$0xff]
    %v2498 = vld [vmem:[#allocation4 + $0x48] sm:$0xff]
    %v2499 = vld [vmem:[#allocation4 + $0x50] sm:$0xff]
    %v2500 = vld [vmem:[#allocation4 + $0x58] sm:$0xff]
    %v2501 = vld [vmem:[#allocation4 + $0x60] sm:$0xff]
    %v2502 = vld [vmem:[#allocation4 + $0x68] sm:$0xff]
    %v2503 = vld [vmem:[#allocation4 + $0x70] sm:$0xff]
    %v2504 = vld [vmem:[#allocation4 + $0x78] sm:$0xff]
    %v2505 = vld [vmem:[#allocation4 + $0x80] sm:$0xff]
    %v2506 = vld [vmem:[#allocation4 + $0x88] sm:$0xff]
    %v2507 = vld [vmem:[#allocation4 + $0x90] sm:$0xff]
    %v2508 = vld [vmem:[#allocation4 + $0x98] sm:$0xff]
    %v2509 = vld [vmem:[#allocation4 + $0xa0] sm:$0xff]
    %v2510 = vld [vmem:[#allocation4 + $0xa8] sm:$0xff]
    %v2511 = vld [vmem:[#allocation4 + $0xb0] sm:$0xff]
    %v2512 = vld [vmem:[#allocation4 + $0xb8] sm:$0xff]
    %v2513 = vld [vmem:[#allocation4 + $0xc0] sm:$0xff]
    %v2514 = vld [vmem:[#allocation4 + $0xc8] sm:$0xff]
    %v2515 = vld [vmem:[#allocation4 + $0xd0] sm:$0xff]
    %v2516 = vld [vmem:[#allocation4 + $0xd8] sm:$0xff]
    %v2517 = vld [vmem:[#allocation4 + $0xe0] sm:$0xff]
    %v2518 = vld [vmem:[#allocation4 + $0xe8] sm:$0xff]
    %v2519 = vld [vmem:[#allocation4 + $0xf0] sm:$0xff]
    %v2520 = vld [vmem:[#allocation4 + $0xf8] sm:$0xff]
    %v2521 = vld [vmem:[#allocation4 + $0x100] sm:$0xff]
    %v2522 = vld [vmem:[#allocation4 + $0x108] sm:$0xff]
    %v2523 = vld [vmem:[#allocation4 + $0x110] sm:$0xff]
    %v2524 = vld [vmem:[#allocation4 + $0x118] sm:$0xff]
    %v2525 = vld [vmem:[#allocation4 + $0x120] sm:$0xff]
    %v2526 = vld [vmem:[#allocation4 + $0x128] sm:$0xff]
    %v2527 = vld [vmem:[#allocation4 + $0x130] sm:$0xff]
    %v2528 = vld [vmem:[#allocation4 + $0x138] sm:$0xff]
    %v2529 = vld [vmem:[#allocation4 + $0x140] sm:$0xff]
    %v2530 = vld [vmem:[#allocation4 + $0x148] sm:$0xff]
    %v2531 = vld [vmem:[#allocation4 + $0x150] sm:$0xff]
    %v2532 = vld [vmem:[#allocation4 + $0x158] sm:$0xff]
    %v2533 = vld [vmem:[#allocation4 + $0x160] sm:$0xff]
    %v2534 = vld [vmem:[#allocation4 + $0x168] sm:$0xff]
    %v2535 = vld [vmem:[#allocation4 + $0x170] sm:$0xff]
    %v2536 = vld [vmem:[#allocation4 + $0x178] sm:$0xff]
    %2537 = vmatprep.subr.mxu0 %v2490
    %2538 = vmatpush1.msra.mxu0 %v2489
    %2539 = vmatprep.subr.mxu0 %v2493
    %2540 = vmatpush1.msra.mxu0 %v2492
    %2541 = vmatprep.subr.mxu0 %v2496
    %2542 = vmatpush1.msra.mxu0 %v2495
    %2543 = vmatprep.subr.mxu0 %v2499
    %2544 = vmatpush1.msra.mxu0 %v2498
    %2545 = vmatprep.subr.mxu0 %v2502
    %2546 = vmatpush1.msra.mxu0 %v2501
    %2547 = vmatprep.subr.mxu0 %v2505
    %2548 = vmatpush1.msra.mxu0 %v2504
    %2549 = vmatprep.subr.mxu0 %v2508
    %2550 = vmatpush1.msra.mxu0 %v2507
    %2551 = vmatprep.subr.mxu0 %v2511
    %2552 = vmatpush1.msra.mxu0 %v2510
    %2553 = vmatprep.subr.mxu0 %v2514
    %2554 = vmatpush1.msra.mxu0 %v2513
    %2555 = vmatprep.subr.mxu0 %v2517
    %2556 = vmatpush1.msra.mxu0 %v2516
    %2557 = vmatprep.subr.mxu0 %v2520
    %2558 = vmatpush1.msra.mxu0 %v2519
    %2559 = vmatprep.subr.mxu0 %v2523
    %2560 = vmatpush1.msra.mxu0 %v2522
    %2561 = vmatprep.subr.mxu0 %v2526
    %2562 = vmatpush1.msra.mxu0 %v2525
    %2563 = vmatprep.subr.mxu0 %v2529
    %2564 = vmatpush1.msra.mxu0 %v2528
    %2565 = vmatprep.subr.mxu0 %v2532
    %2566 = vmatpush1.msra.mxu0 %v2531
    %2567 = vmatprep.subr.mxu0 %v2535
    %2568 = vmatpush1.msra.mxu0 %v2534
    %2569 = vmatprep.subr.mxu0 0.0
    %2570 = vmatpush1.msra.mxu0 0.0
    %2571 = vmatprep.subr.mxu0 0.0
    %2572 = vmatpush1.msra.mxu0 0.0
    %2573 = vmatprep.subr.mxu0 0.0
    %2574 = vmatpush1.msra.mxu0 0.0
    %2575 = vmatprep.subr.mxu0 0.0
    %2576 = vmatpush1.msra.mxu0 0.0
    %2577 = vmatprep.subr.mxu0 0.0
    %2578 = vmatpush1.msra.mxu0 0.0
    %2579 = vmatprep.subr.mxu0 0.0
    %2580 = vmatpush1.msra.mxu0 0.0
    %2581 = vmatprep.subr.mxu0 0.0
    %2582 = vmatpush1.msra.mxu0 0.0
    %2583 = vmatprep.subr.mxu0 0.0
    %2584 = vmatpush1.msra.mxu0 0.0
    %2585 = vmatprep.subr.mxu0 0.0
    %2586 = vmatpush1.msra.mxu0 0.0
    %2587 = vmatprep.subr.mxu0 0.0
    %2588 = vmatpush1.msra.mxu0 0.0
    %2589 = vmatprep.subr.mxu0 0.0
    %2590 = vmatpush1.msra.mxu0 0.0
    %2591 = vmatprep.subr.mxu0 0.0
    %2592 = vmatpush1.msra.mxu0 0.0
    %2593 = vmatprep.subr.mxu0 0.0
    %2594 = vmatpush1.msra.mxu0 0.0
    %2595 = vmatprep.subr.mxu0 0.0
    %2596 = vmatpush1.msra.mxu0 0.0
    %2597 = vmatprep.subr.mxu0 0.0
    %2598 = vmatpush1.msra.mxu0 0.0
    %2599 = vmatprep.subr.mxu0 0.0
    %2600 = vmatpush1.msra.mxu0 0.0
    %2601 = vmatprep.mubr.f32.mxu0 0.0
    %2602 = vmatmul.mubr.f32.gmra.mrb[0].mxu0 %v2480
    %v2603 = vpop.f32.mrb[0].mxu0
    %v2604 = vadd.f32 0.0, %v2603
    %v2605 = vpop.f32.mrb[0].mxu0
    %v2606 = vadd.f32 0.0, %v2605
    %2607 = vdwg.mxu0
    %2608 = vmatprep.subr.mxu0 0.0
    %2609 = vmatpush1.msra.mxu0 %v2491
    %2610 = vmatprep.subr.mxu0 0.0
    %2611 = vmatpush1.msra.mxu0 %v2494
    %2612 = vmatprep.subr.mxu0 0.0
    %2613 = vmatpush1.msra.mxu0 %v2497
    %2614 = vmatprep.subr.mxu0 0.0
    %2615 = vmatpush1.msra.mxu0 %v2500
    %2616 = vmatprep.subr.mxu0 0.0
    %2617 = vmatpush1.msra.mxu0 %v2503
    %2618 = vmatprep.subr.mxu0 0.0
    %2619 = vmatpush1.msra.mxu0 %v2506
    %2620 = vmatprep.subr.mxu0 0.0
    %2621 = vmatpush1.msra.mxu0 %v2509
    %2622 = vmatprep.subr.mxu0 0.0
    %2623 = vmatpush1.msra.mxu0 %v2512
    %2624 = vmatprep.subr.mxu0 0.0
    %2625 = vmatpush1.msra.mxu0 %v2515
    %2626 = vmatprep.subr.mxu0 0.0
    %2627 = vmatpush1.msra.mxu0 %v2518
    %2628 = vmatprep.subr.mxu0 0.0
    %2629 = vmatpush1.msra.mxu0 %v2521
    %2630 = vmatprep.subr.mxu0 0.0
    %2631 = vmatpush1.msra.mxu0 %v2524
    %2632 = vmatprep.subr.mxu0 0.0
    %2633 = vmatpush1.msra.mxu0 %v2527
    %2634 = vmatprep.subr.mxu0 0.0
    %2635 = vmatpush1.msra.mxu0 %v2530
    %2636 = vmatprep.subr.mxu0 0.0
    %2637 = vmatpush1.msra.mxu0 %v2533
    %2638 = vmatprep.subr.mxu0 0.0
    %2639 = vmatpush1.msra.mxu0 %v2536
    %2640 = vmatprep.subr.mxu0 0.0
    %2641 = vmatpush1.msra.mxu0 0.0
    %2642 = vmatprep.subr.mxu0 0.0
    %2643 = vmatpush1.msra.mxu0 0.0
    %2644 = vmatprep.subr.mxu0 0.0
    %2645 = vmatpush1.msra.mxu0 0.0
    %2646 = vmatprep.subr.mxu0 0.0
    %2647 = vmatpush1.msra.mxu0 0.0
    %2648 = vmatprep.subr.mxu0 0.0
    %2649 = vmatpush1.msra.mxu0 0.0
    %2650 = vmatprep.subr.mxu0 0.0
    %2651 = vmatpush1.msra.mxu0 0.0
    %2652 = vmatprep.subr.mxu0 0.0
    %2653 = vmatpush1.msra.mxu0 0.0
    %2654 = vmatprep.subr.mxu0 0.0
    %2655 = vmatpush1.msra.mxu0 0.0
    %2656 = vmatprep.subr.mxu0 0.0
    %2657 = vmatpush1.msra.mxu0 0.0
    %2658 = vmatprep.subr.mxu0 0.0
    %2659 = vmatpush1.msra.mxu0 0.0
    %2660 = vmatprep.subr.mxu0 0.0
    %2661 = vmatpush1.msra.mxu0 0.0
    %2662 = vmatprep.subr.mxu0 0.0
    %2663 = vmatpush1.msra.mxu0 0.0
    %2664 = vmatprep.subr.mxu0 0.0
    %2665 = vmatpush1.msra.mxu0 0.0
    %2666 = vmatprep.subr.mxu0 0.0
    %2667 = vmatpush1.msra.mxu0 0.0
    %2668 = vmatprep.subr.mxu0 0.0
    %2669 = vmatpush1.msra.mxu0 0.0
    %2670 = vmatprep.subr.mxu0 0.0
    %2671 = vmatpush1.msra.mxu0 0.0
    %2672 = vmatprep.mubr.f32.mxu0 0.0
    %2673 = vmatmul.mubr.f32.gmra.mrb[0].mxu0 %v2480
    %v2674 = vpop.f32.mrb[0].mxu0
    %v2675 = vadd.f32 0.0, %v2674
    %v2676 = vpop.f32.mrb[0].mxu0
    %2677 = vdwg.mxu0
    %v2678 = vadd.f32 %v2486, %v2604
    %v2679 = vxor.u32 %v2678, 2147483648
    %v2680 = vmul.f32 %v2679, 1.442695
    %v2681 = vpow.pop %v2680
    %v2682 = vadd.f32 %v2681, 1.0
    %v2683 = vrcp.pop %v2682
    %v2684 = vmul.f32 1.0, %v2683
    %v2685 = vadd.f32 %v2487, %v2606
    %v2686 = vxor.u32 %v2685, 2147483648
    %v2687 = vmul.f32 %v2686, 1.442695
    %v2688 = vpow.pop %v2687
    %v2689 = vadd.f32 %v2688, 1.0
    %v2690 = vrcp.pop %v2689
    %v2691 = vmul.f32 1.0, %v2690
    %v2692 = vadd.f32 %v2675, %v948
    %v2693 = vmul.f32 %v2684, %v2692
    %v2694 = vadd.f32 %v2488, %v2693
    %v2695 = vtanh.pop %v2694
    %v2696 = vsub.f32 1.0, %v2691
    %v2697 = vmul.f32 %v2696, %v2695
    %v2698 = vmul.f32 %v2691, %v2480
    %v2699 = vadd.f32 %v2697, %v2698
    %s2700 = scalar_lea.vmem %s6, 56
    %2701 = vst [vmem:[%s2700] sm:$0xff] %v2699
    %2702 = vst [vmem:[#allocation2] sm:$0xff] %v2699
    // Predicated region
    $region34: #{flow_gru_forward.3} parent=1 // pred_check
      _
    $region35: #{flow_gru_forward.3} parent=1 // pred_check_branch
      %2704 = sbr.rel (0) target = $region37
    $region36: #{flow_gru_forward.3} parent=1 // pred_region
      _
    $region37: #{flow_gru_forward.3} parent=1 // pred_fallthru
      _
    // Predicated region
    $region38: #{flow_gru_forward.3} parent=1 // pred_check
      _
    $region39: #{flow_gru_forward.3} parent=1 // pred_check_branch
      %2706 = sbr.rel (0) target = $region41
    $region40: #{flow_gru_forward.3} parent=1 // pred_region
      _
    $region41: #{flow_gru_forward.3} parent=1 // pred_fallthru
      _
    %2707 = vsyncpa [#allocation5], 1

</llo_original>
